<compile_context>
chip_gen: v7x
topology: tpu7x:2x2x1
jax: 0.10.0
libtpu: 0.0.40
codegen_flags: <defaults>
</compile_context>

<pallas_src>
import math

import numpy as np
import jax
import jax.numpy as jnp
from jax.experimental import pallas as pl
from jax.experimental.pallas import tpu as pltpu


# ----------------------------------------------------------------------------
# Fused forward kernel: one grid step per batch element.
# ----------------------------------------------------------------------------
def _net_fused_kernel(x_ref,
                      w1_ref, sh1_ref, p1_ref,
                      w2_ref, sh2_ref, p2_ref,
                      w3_ref, sh3_ref, p3_ref,
                      wl1_ref, bl1_ref, wl2_ref, bl2_ref,
                      o_ref):
    """Activations are (channels, flattened zero-padded spatial) in VMEM."""

    def conv_bn_relu(x, w_ref, shift_ref, c_in, wp):
        # x: (c_in, np) zero-padded flattened image, np = (h+2)*(w+2)
        # w_ref: (9, c_out, c_in); slice s = kh*3 + kw holds W[:, :, kh, kw]
        # (BN scale already folded into the weights, shift added below).
        np_ = x.shape[1]
        acc = None
        for s in range(9):
            dh = s // 3 - 1
            dw = s % 3 - 1
            d = dh * wp + dw
            rolled = x if d == 0 else pltpu.roll(x, (-d) % np_, axis=1)
            wk = w_ref[s]                                  # (c_out, c_in)
            if c_in == 1:
                term = wk * rolled                         # broadcast MAC
            else:
                term = jnp.dot(wk, rolled,
                               preferred_element_type=jnp.float32)
            acc = term if acc is None else acc + term
        # Interior positions are exact; halo positions are garbage that the
        # pooling selection matmul filters out.
        return jnp.maximum(acc + shift_ref[...], 0.0)

    def maxpool2_select(y, sel_ref, wp):
        # 2x2 max over the interior grid (two lane rolls + max), then a 0/1
        # selection matmul that downsamples and re-embeds into the next
        # layer's zero-padded layout (or the dense 3x3 grid for the last one).
        np_ = y.shape[1]
        m = jnp.maximum(y, pltpu.roll(y, np_ - 1, axis=1))
        m = jnp.maximum(m, pltpu.roll(m, np_ - wp, axis=1))
        return jnp.dot(m, sel_ref[...], preferred_element_type=jnp.float32)

    h = x_ref[...]                                          # (1, 26*26)
    h = conv_bn_relu(h, w1_ref, sh1_ref, c_in=1, wp=26)     # (10, 676)
    h = maxpool2_select(h, p1_ref, wp=26)                   # (10, 196)
    h = conv_bn_relu(h, w2_ref, sh2_ref, c_in=10, wp=14)    # (28, 196)
    h = maxpool2_select(h, p2_ref, wp=14)                   # (28, 64)
    h = conv_bn_relu(h, w3_ref, sh3_ref, c_in=28, wp=8)     # (28, 64)
    h = maxpool2_select(h, p3_ref, wp=8)                    # (28, 9) unpadded

    # l1: out[o] = sum_{c,s} W1[o, c*9+s] * h[c, s]; the flatten is absorbed
    # into the packing of wl1 (slice s holds W1[:, c*9+s] over channels c).
    acc = None
    for s in range(9):
        t = jnp.dot(wl1_ref[s], h[:, s:s + 1],
                    preferred_element_type=jnp.float32)     # (168, 1)
        acc = t if acc is None else acc + t
    h1 = jnp.maximum(acc + bl1_ref[...], 0.0)               # (168, 1)

    h2 = jnp.dot(wl2_ref[...], h1, preferred_element_type=jnp.float32)
    o_ref[...] = jnp.maximum(h2 + bl2_ref[...], 0.0)        # (100, 1)


# ----------------------------------------------------------------------------
# Wrapper: weight packing, BN folding, pooling selection matrices.
# ----------------------------------------------------------------------------
def _pool_select_matrix(h, w, pad_out):
    """0/1 matrix: zero-padded (h+2,w+2) conv-output layout -> pooled layout."""
    wp_in = w + 2
    ho, wo = h // 2, w // 2
    if pad_out:
        wp_out = wo + 2
        np_out = (ho + 2) * wp_out
    else:
        wp_out = wo
        np_out = ho * wo
    sel = np.zeros(((h + 2) * wp_in, np_out), np.float32)
    for i in range(ho):
        for j in range(wo):
            src = (2 * i + 1) * wp_in + (2 * j + 1)
            dst = (i + 1) * wp_out + (j + 1) if pad_out else i * wp_out + j
            sel[src, dst] = 1.0
    return jnp.asarray(sel)


def _fold_bn(w, gamma, beta, mean, var, eps=1e-5):
    # TODO(synk): BatchNorm2d is applied in inference form (running statistics
    # folded into the conv weights); training-mode batch stats are not
    # computed in-kernel.
    inv = gamma / jnp.sqrt(var + eps)
    w_f = w * inv[:, None, None, None]
    shift = beta - mean * inv
    return w_f, shift


def _pack_conv(w):
    # (C_out, C_in, 3, 3) -> (9, C_out, C_in), slice s = kh*3 + kw.
    c_out, c_in = w.shape[0], w.shape[1]
    return jnp.transpose(w, (2, 3, 0, 1)).reshape(9, c_out, c_in)


def _const_spec(shape):
    return pl.BlockSpec(shape, lambda b, _n=len(shape): (0,) * _n)


def net_forward(params, x):
    """x: (B, 1, 24, 24) float32 -> (B, 100) float32."""
    B = x.shape[0]

    w1, sh1 = _fold_bn(params["wc1"], params["g1"], params["b1"],
                       params["m1"], params["v1"])
    w2, sh2 = _fold_bn(params["wc2"], params["g2"], params["b2"],
                       params["m2"], params["v2"])
    w3, sh3 = _fold_bn(params["wc3"], params["g3"], params["b3"],
                       params["m3"], params["v3"])
    w1p, w2p, w3p = _pack_conv(w1), _pack_conv(w2), _pack_conv(w3)
    sh1c = sh1.reshape(10, 1)
    sh2c = sh2.reshape(28, 1)
    sh3c = sh3.reshape(28, 1)

    p1 = _pool_select_matrix(24, 24, pad_out=True)    # (676, 196)
    p2 = _pool_select_matrix(12, 12, pad_out=True)    # (196, 64)
    p3 = _pool_select_matrix(6, 6, pad_out=False)     # (64, 9)

    # l1 weight packed so slice s (168, 28) holds W1[:, c*9 + s] over c.
    wl1p = jnp.transpose(params["wl1"].reshape(168, 28, 9), (2, 0, 1))
    bl1c = params["bl1"].reshape(168, 1)
    wl2 = params["wl2"]                               # (100, 168)
    bl2c = params["bl2"].reshape(100, 1)

    # Zero-pad the input spatially (the conv halo) and flatten H*W onto lanes.
    xp = jnp.pad(x, ((0, 0), (0, 0), (1, 1), (1, 1))).reshape(B, 1, 26 * 26)

    out = pl.pallas_call(
        _net_fused_kernel,
        out_shape=jax.ShapeDtypeStruct((B, 100, 1), jnp.float32),
        grid=(B,),
        in_specs=[
            pl.BlockSpec((None, 1, 26 * 26), lambda b: (b, 0, 0)),
            _const_spec((9, 10, 1)), _const_spec((10, 1)),
            _const_spec((676, 196)),
            _const_spec((9, 28, 10)), _const_spec((28, 1)),
            _const_spec((196, 64)),
            _const_spec((9, 28, 28)), _const_spec((28, 1)),
            _const_spec((64, 9)),
            _const_spec((9, 168, 28)), _const_spec((168, 1)),
            _const_spec((100, 168)), _const_spec((100, 1)),
        ],
        out_specs=pl.BlockSpec((None, 100, 1), lambda b: (b, 0, 0)),
        compiler_params=pltpu.CompilerParams(
            dimension_semantics=("parallel",)),
    )(xp, w1p, sh1c, p1, w2p, sh2c, p2, w3p, sh3c, p3, wl1p, bl1c, wl2, bl2c)
    return out.reshape(B, 100)


# ----------------------------------------------------------------------------
# Pure-JAX reference (BatchNorm in inference form, matching the kernel).
# ----------------------------------------------------------------------------
def net_forward_ref(params, x, eps=1e-5):
    hp = jax.lax.Precision.HIGHEST

    def block(h, w, gamma, beta, mean, var):
        h = jax.lax.conv_general_dilated(
            h, w, (1, 1), ((1, 1), (1, 1)),
            dimension_numbers=("NCHW", "OIHW", "NCHW"), precision=hp)
        inv = (gamma / jnp.sqrt(var + eps))[None, :, None, None]
        h = (h - mean[None, :, None, None]) * inv + beta[None, :, None, None]
        h = jnp.maximum(h, 0.0)
        n, c, hh, ww = h.shape
        return h.reshape(n, c, hh // 2, 2, ww // 2, 2).max(axis=(3, 5))

    h = block(x, params["wc1"], params["g1"], params["b1"],
              params["m1"], params["v1"])
    h = block(h, params["wc2"], params["g2"], params["b2"],
              params["m2"], params["v2"])
    h = block(h, params["wc3"], params["g3"], params["b3"],
              params["m3"], params["v3"])
    h = h.reshape(h.shape[0], -1)                      # view(-1, 28*3*3)
    h = jnp.maximum(jnp.dot(h, params["wl1"].T, precision=hp)
                    + params["bl1"], 0.0)
    h = jnp.maximum(jnp.dot(h, params["wl2"].T, precision=hp)
                    + params["bl2"], 0.0)
    return h


# ----------------------------------------------------------------------------
# Parameter init (mirrors PyTorch defaults; BN stats randomized so the
# folding path is actually exercised).
# ----------------------------------------------------------------------------
def init_params(key):
    ks = jax.random.split(key, 8)

    def conv_w(k, c_out, c_in):
        bound = 1.0 / math.sqrt(c_in * 9)
        return jax.random.uniform(k, (c_out, c_in, 3, 3), jnp.float32,
                                  -bound, bound)

    def lin(k, fan_in, fan_out):
        bound = 1.0 / math.sqrt(fan_in)
        kw, kb = jax.random.split(k)
        w = jax.random.uniform(kw, (fan_out, fan_in), jnp.float32,
                               -bound, bound)
        b = jax.random.uniform(kb, (fan_out,), jnp.float32, -bound, bound)
        return w, b

    def bn(k, c):
        k1, k2, k3, k4 = jax.random.split(k, 4)
        gamma = jax.random.uniform(k1, (c,), jnp.float32, 0.5, 1.5)
        beta = 0.1 * jax.random.normal(k2, (c,), jnp.float32)
        mean = 0.1 * jax.random.normal(k3, (c,), jnp.float32)
        var = jax.random.uniform(k4, (c,), jnp.float32, 0.5, 1.5)
        return gamma, beta, mean, var

    wl1, bl1 = lin(ks[3], 28 * 3 * 3, 28 * 3 * 2)   # l1: 252 -> 168
    wl2, bl2 = lin(ks[4], 28 * 3 * 2, 100)          # l2: 168 -> 100
    g1, b1, m1, v1 = bn(ks[5], 10)
    g2, b2, m2, v2 = bn(ks[6], 28)
    g3, b3, m3, v3 = bn(ks[7], 28)
    return {
        "wc1": conv_w(ks[0], 10, 1),
        "wc2": conv_w(ks[1], 28, 10),
        "wc3": conv_w(ks[2], 28, 28),
        "wl1": wl1, "bl1": bl1, "wl2": wl2, "bl2": bl2,
        "g1": g1, "b1": b1, "m1": m1, "v1": v1,
        "g2": g2, "b2": b2, "m2": m2, "v2": v2,
        "g3": g3, "b3": b3, "m3": m3, "v3": v3,
    }


if __name__ == "__main__":
    key = jax.random.PRNGKey(0)
    kx, kp = jax.random.split(key)
    x = jax.random.normal(kx, (2, 1, 24, 24), dtype=jnp.float32)   # batch=2
    params = init_params(kp)

    out = jax.block_until_ready(net_forward(params, x))
    assert out.shape == (2, 100), out.shape

    ref = net_forward_ref(params, x)
    if not jnp.allclose(out, ref, atol=1e-3, rtol=1e-3):
        err = float(jnp.max(jnp.abs(out - ref)))
        raise AssertionError(f"Pallas output mismatch vs. JAX reference: {err}")

    print("KERNEL_OK")
</pallas_src>

<mosaic_0001>
module attributes {stable_mosaic.version = 11 : i64} {
  func.func @_net_fused_kernel(%arg0: i32, %arg1: memref<1x1x676xf32, #tpu.memory_space<vmem>>, %arg2: memref<9x10x1xf32, #tpu.memory_space<vmem>>, %arg3: memref<10x1xf32, #tpu.memory_space<vmem>>, %arg4: memref<676x196xf32, #tpu.memory_space<vmem>>, %arg5: memref<9x28x10xf32, #tpu.memory_space<vmem>>, %arg6: memref<28x1xf32, #tpu.memory_space<vmem>>, %arg7: memref<196x64xf32, #tpu.memory_space<vmem>>, %arg8: memref<9x28x28xf32, #tpu.memory_space<vmem>>, %arg9: memref<28x1xf32, #tpu.memory_space<vmem>>, %arg10: memref<64x9xf32, #tpu.memory_space<vmem>>, %arg11: memref<9x168x28xf32, #tpu.memory_space<vmem>>, %arg12: memref<168x1xf32, #tpu.memory_space<vmem>>, %arg13: memref<100x168xf32, #tpu.memory_space<vmem>>, %arg14: memref<100x1xf32, #tpu.memory_space<vmem>>, %arg15: memref<1x100x1xf32, #tpu.memory_space<vmem>>) attributes {dimension_semantics = [#tpu.dimension_semantics<parallel>], iteration_bounds = array<i64: 2>, scalar_prefetch = 0 : i64, scratch_operands = 0 : i64, tpu.core_type = #tpu.core_type<tc>, window_params = [{transform_indices = @transform_0, window_bounds = array<i64: 1, 1, 676>}, {pipeline_mode = #tpu.pipeline_mode<synchronous>, transform_indices = @transform_1, window_bounds = array<i64: 9, 10, 1>}, {pipeline_mode = #tpu.pipeline_mode<synchronous>, transform_indices = @transform_2, window_bounds = array<i64: 10, 1>}, {pipeline_mode = #tpu.pipeline_mode<synchronous>, transform_indices = @transform_3, window_bounds = array<i64: 676, 196>}, {pipeline_mode = #tpu.pipeline_mode<synchronous>, transform_indices = @transform_4, window_bounds = array<i64: 9, 28, 10>}, {pipeline_mode = #tpu.pipeline_mode<synchronous>, transform_indices = @transform_5, window_bounds = array<i64: 28, 1>}, {pipeline_mode = #tpu.pipeline_mode<synchronous>, transform_indices = @transform_6, window_bounds = array<i64: 196, 64>}, {pipeline_mode = #tpu.pipeline_mode<synchronous>, transform_indices = @transform_7, window_bounds = array<i64: 9, 28, 28>}, {pipeline_mode = #tpu.pipeline_mode<synchronous>, transform_indices = @transform_8, window_bounds = array<i64: 28, 1>}, {pipeline_mode = #tpu.pipeline_mode<synchronous>, transform_indices = @transform_9, window_bounds = array<i64: 64, 9>}, {pipeline_mode = #tpu.pipeline_mode<synchronous>, transform_indices = @transform_10, window_bounds = array<i64: 9, 168, 28>}, {pipeline_mode = #tpu.pipeline_mode<synchronous>, transform_indices = @transform_11, window_bounds = array<i64: 168, 1>}, {pipeline_mode = #tpu.pipeline_mode<synchronous>, transform_indices = @transform_12, window_bounds = array<i64: 100, 168>}, {pipeline_mode = #tpu.pipeline_mode<synchronous>, transform_indices = @transform_13, window_bounds = array<i64: 100, 1>}, {transform_indices = @transform_14, window_bounds = array<i64: 1, 100, 1>}]} {
    %c0 = arith.constant 0 : index
    %c0_0 = arith.constant 0 : index
    %c0_1 = arith.constant 0 : index
    %0 = vector.load %arg1[%c0, %c0_0, %c0_1] : memref<1x1x676xf32, #tpu.memory_space<vmem>>, vector<1x1x676xf32>
    %1 = vector.shape_cast %0 : vector<1x1x676xf32> to vector<1x676xf32>
    %c27_i32 = arith.constant 27 : i32
    %2 = tpu.dynamic_rotate %1 by %c27_i32 dim 1 : vector<1x676xf32>, i32 -> vector<1x676xf32>
    %c0_2 = arith.constant 0 : index
    %c0_3 = arith.constant 0 : index
    %c0_4 = arith.constant 0 : index
    %3 = vector.load %arg2[%c0_2, %c0_3, %c0_4] : memref<9x10x1xf32, #tpu.memory_space<vmem>>, vector<1x10x1xf32>
    %4 = vector.shape_cast %3 : vector<1x10x1xf32> to vector<10x1xf32>
    %5 = vector.broadcast %4 : vector<10x1xf32> to vector<10x676xf32>
    %6 = vector.broadcast %2 : vector<1x676xf32> to vector<10x676xf32>
    %7 = arith.mulf %5, %6 : vector<10x676xf32>
    %c26_i32 = arith.constant 26 : i32
    %8 = tpu.dynamic_rotate %1 by %c26_i32 dim 1 : vector<1x676xf32>, i32 -> vector<1x676xf32>
    %c1 = arith.constant 1 : index
    %c0_5 = arith.constant 0 : index
    %c0_6 = arith.constant 0 : index
    %9 = vector.load %arg2[%c1, %c0_5, %c0_6] : memref<9x10x1xf32, #tpu.memory_space<vmem>>, vector<1x10x1xf32>
    %10 = vector.shape_cast %9 : vector<1x10x1xf32> to vector<10x1xf32>
    %11 = vector.broadcast %10 : vector<10x1xf32> to vector<10x676xf32>
    %12 = vector.broadcast %8 : vector<1x676xf32> to vector<10x676xf32>
    %13 = arith.mulf %11, %12 : vector<10x676xf32>
    %14 = arith.addf %7, %13 : vector<10x676xf32>
    %c25_i32 = arith.constant 25 : i32
    %15 = tpu.dynamic_rotate %1 by %c25_i32 dim 1 : vector<1x676xf32>, i32 -> vector<1x676xf32>
    %c2 = arith.constant 2 : index
    %c0_7 = arith.constant 0 : index
    %c0_8 = arith.constant 0 : index
    %16 = vector.load %arg2[%c2, %c0_7, %c0_8] : memref<9x10x1xf32, #tpu.memory_space<vmem>>, vector<1x10x1xf32>
    %17 = vector.shape_cast %16 : vector<1x10x1xf32> to vector<10x1xf32>
    %18 = vector.broadcast %17 : vector<10x1xf32> to vector<10x676xf32>
    %19 = vector.broadcast %15 : vector<1x676xf32> to vector<10x676xf32>
    %20 = arith.mulf %18, %19 : vector<10x676xf32>
    %21 = arith.addf %14, %20 : vector<10x676xf32>
    %c1_i32 = arith.constant 1 : i32
    %22 = tpu.dynamic_rotate %1 by %c1_i32 dim 1 : vector<1x676xf32>, i32 -> vector<1x676xf32>
    %c3 = arith.constant 3 : index
    %c0_9 = arith.constant 0 : index
    %c0_10 = arith.constant 0 : index
    %23 = vector.load %arg2[%c3, %c0_9, %c0_10] : memref<9x10x1xf32, #tpu.memory_space<vmem>>, vector<1x10x1xf32>
    %24 = vector.shape_cast %23 : vector<1x10x1xf32> to vector<10x1xf32>
    %25 = vector.broadcast %24 : vector<10x1xf32> to vector<10x676xf32>
    %26 = vector.broadcast %22 : vector<1x676xf32> to vector<10x676xf32>
    %27 = arith.mulf %25, %26 : vector<10x676xf32>
    %28 = arith.addf %21, %27 : vector<10x676xf32>
    %c4 = arith.constant 4 : index
    %c0_11 = arith.constant 0 : index
    %c0_12 = arith.constant 0 : index
    %29 = vector.load %arg2[%c4, %c0_11, %c0_12] : memref<9x10x1xf32, #tpu.memory_space<vmem>>, vector<1x10x1xf32>
    %30 = vector.shape_cast %29 : vector<1x10x1xf32> to vector<10x1xf32>
    %31 = vector.broadcast %30 : vector<10x1xf32> to vector<10x676xf32>
    %32 = vector.broadcast %1 : vector<1x676xf32> to vector<10x676xf32>
    %33 = arith.mulf %31, %32 : vector<10x676xf32>
    %34 = arith.addf %28, %33 : vector<10x676xf32>
    %c675_i32 = arith.constant 675 : i32
    %35 = tpu.dynamic_rotate %1 by %c675_i32 dim 1 : vector<1x676xf32>, i32 -> vector<1x676xf32>
    %c5 = arith.constant 5 : index
    %c0_13 = arith.constant 0 : index
    %c0_14 = arith.constant 0 : index
    %36 = vector.load %arg2[%c5, %c0_13, %c0_14] : memref<9x10x1xf32, #tpu.memory_space<vmem>>, vector<1x10x1xf32>
    %37 = vector.shape_cast %36 : vector<1x10x1xf32> to vector<10x1xf32>
    %38 = vector.broadcast %37 : vector<10x1xf32> to vector<10x676xf32>
    %39 = vector.broadcast %35 : vector<1x676xf32> to vector<10x676xf32>
    %40 = arith.mulf %38, %39 : vector<10x676xf32>
    %41 = arith.addf %34, %40 : vector<10x676xf32>
    %c651_i32 = arith.constant 651 : i32
    %42 = tpu.dynamic_rotate %1 by %c651_i32 dim 1 : vector<1x676xf32>, i32 -> vector<1x676xf32>
    %c6 = arith.constant 6 : index
    %c0_15 = arith.constant 0 : index
    %c0_16 = arith.constant 0 : index
    %43 = vector.load %arg2[%c6, %c0_15, %c0_16] : memref<9x10x1xf32, #tpu.memory_space<vmem>>, vector<1x10x1xf32>
    %44 = vector.shape_cast %43 : vector<1x10x1xf32> to vector<10x1xf32>
    %45 = vector.broadcast %44 : vector<10x1xf32> to vector<10x676xf32>
    %46 = vector.broadcast %42 : vector<1x676xf32> to vector<10x676xf32>
    %47 = arith.mulf %45, %46 : vector<10x676xf32>
    %48 = arith.addf %41, %47 : vector<10x676xf32>
    %c650_i32 = arith.constant 650 : i32
    %49 = tpu.dynamic_rotate %1 by %c650_i32 dim 1 : vector<1x676xf32>, i32 -> vector<1x676xf32>
    %c7 = arith.constant 7 : index
    %c0_17 = arith.constant 0 : index
    %c0_18 = arith.constant 0 : index
    %50 = vector.load %arg2[%c7, %c0_17, %c0_18] : memref<9x10x1xf32, #tpu.memory_space<vmem>>, vector<1x10x1xf32>
    %51 = vector.shape_cast %50 : vector<1x10x1xf32> to vector<10x1xf32>
    %52 = vector.broadcast %51 : vector<10x1xf32> to vector<10x676xf32>
    %53 = vector.broadcast %49 : vector<1x676xf32> to vector<10x676xf32>
    %54 = arith.mulf %52, %53 : vector<10x676xf32>
    %55 = arith.addf %48, %54 : vector<10x676xf32>
    %c649_i32 = arith.constant 649 : i32
    %56 = tpu.dynamic_rotate %1 by %c649_i32 dim 1 : vector<1x676xf32>, i32 -> vector<1x676xf32>
    %c8 = arith.constant 8 : index
    %c0_19 = arith.constant 0 : index
    %c0_20 = arith.constant 0 : index
    %57 = vector.load %arg2[%c8, %c0_19, %c0_20] : memref<9x10x1xf32, #tpu.memory_space<vmem>>, vector<1x10x1xf32>
    %58 = vector.shape_cast %57 : vector<1x10x1xf32> to vector<10x1xf32>
    %59 = vector.broadcast %58 : vector<10x1xf32> to vector<10x676xf32>
    %60 = vector.broadcast %56 : vector<1x676xf32> to vector<10x676xf32>
    %61 = arith.mulf %59, %60 : vector<10x676xf32>
    %62 = arith.addf %55, %61 : vector<10x676xf32>
    %c0_21 = arith.constant 0 : index
    %c0_22 = arith.constant 0 : index
    %63 = vector.load %arg3[%c0_21, %c0_22] : memref<10x1xf32, #tpu.memory_space<vmem>>, vector<10x1xf32>
    %64 = vector.broadcast %63 : vector<10x1xf32> to vector<10x676xf32>
    %65 = arith.addf %62, %64 : vector<10x676xf32>
    %cst = arith.constant 0.000000e+00 : f32
    %66 = vector.broadcast %cst : f32 to vector<10x676xf32>
    %67 = arith.maximumf %65, %66 : vector<10x676xf32>
    %c675_i32_23 = arith.constant 675 : i32
    %68 = tpu.dynamic_rotate %67 by %c675_i32_23 dim 1 : vector<10x676xf32>, i32 -> vector<10x676xf32>
    %69 = arith.maximumf %67, %68 : vector<10x676xf32>
    %c650_i32_24 = arith.constant 650 : i32
    %70 = tpu.dynamic_rotate %69 by %c650_i32_24 dim 1 : vector<10x676xf32>, i32 -> vector<10x676xf32>
    %71 = arith.maximumf %69, %70 : vector<10x676xf32>
    %c0_25 = arith.constant 0 : index
    %c0_26 = arith.constant 0 : index
    %72 = vector.load %arg4[%c0_25, %c0_26] : memref<676x196xf32, #tpu.memory_space<vmem>>, vector<676x196xf32>
    %cst_27 = arith.constant dense<0.000000e+00> : vector<10x196xf32>
    %73 = tpu.matmul %71, %72, %cst_27 {dimension_numbers = #tpu.dot_dimension_numbers<[1], [0], [0], [1], [0, 0, 1, 1], [], []>} : vector<10x676xf32>, vector<676x196xf32>, vector<10x196xf32> -> vector<10x196xf32>
    %c15_i32 = arith.constant 15 : i32
    %74 = tpu.dynamic_rotate %73 by %c15_i32 dim 1 : vector<10x196xf32>, i32 -> vector<10x196xf32>
    %c0_28 = arith.constant 0 : index
    %c0_29 = arith.constant 0 : index
    %c0_30 = arith.constant 0 : index
    %75 = vector.load %arg5[%c0_28, %c0_29, %c0_30] : memref<9x28x10xf32, #tpu.memory_space<vmem>>, vector<1x28x10xf32>
    %76 = vector.shape_cast %75 : vector<1x28x10xf32> to vector<28x10xf32>
    %cst_31 = arith.constant dense<0.000000e+00> : vector<28x196xf32>
    %77 = tpu.matmul %76, %74, %cst_31 {dimension_numbers = #tpu.dot_dimension_numbers<[1], [0], [0], [1], [0, 0, 1, 1], [], []>} : vector<28x10xf32>, vector<10x196xf32>, vector<28x196xf32> -> vector<28x196xf32>
    %c14_i32 = arith.constant 14 : i32
    %78 = tpu.dynamic_rotate %73 by %c14_i32 dim 1 : vector<10x196xf32>, i32 -> vector<10x196xf32>
    %c1_32 = arith.constant 1 : index
    %c0_33 = arith.constant 0 : index
    %c0_34 = arith.constant 0 : index
    %79 = vector.load %arg5[%c1_32, %c0_33, %c0_34] : memref<9x28x10xf32, #tpu.memory_space<vmem>>, vector<1x28x10xf32>
    %80 = vector.shape_cast %79 : vector<1x28x10xf32> to vector<28x10xf32>
    %cst_35 = arith.constant dense<0.000000e+00> : vector<28x196xf32>
    %81 = tpu.matmul %80, %78, %cst_35 {dimension_numbers = #tpu.dot_dimension_numbers<[1], [0], [0], [1], [0, 0, 1, 1], [], []>} : vector<28x10xf32>, vector<10x196xf32>, vector<28x196xf32> -> vector<28x196xf32>
    %82 = arith.addf %77, %81 : vector<28x196xf32>
    %c13_i32 = arith.constant 13 : i32
    %83 = tpu.dynamic_rotate %73 by %c13_i32 dim 1 : vector<10x196xf32>, i32 -> vector<10x196xf32>
    %c2_36 = arith.constant 2 : index
    %c0_37 = arith.constant 0 : index
    %c0_38 = arith.constant 0 : index
    %84 = vector.load %arg5[%c2_36, %c0_37, %c0_38] : memref<9x28x10xf32, #tpu.memory_space<vmem>>, vector<1x28x10xf32>
    %85 = vector.shape_cast %84 : vector<1x28x10xf32> to vector<28x10xf32>
    %cst_39 = arith.constant dense<0.000000e+00> : vector<28x196xf32>
    %86 = tpu.matmul %85, %83, %cst_39 {dimension_numbers = #tpu.dot_dimension_numbers<[1], [0], [0], [1], [0, 0, 1, 1], [], []>} : vector<28x10xf32>, vector<10x196xf32>, vector<28x196xf32> -> vector<28x196xf32>
    %87 = arith.addf %82, %86 : vector<28x196xf32>
    %c1_i32_40 = arith.constant 1 : i32
    %88 = tpu.dynamic_rotate %73 by %c1_i32_40 dim 1 : vector<10x196xf32>, i32 -> vector<10x196xf32>
    %c3_41 = arith.constant 3 : index
    %c0_42 = arith.constant 0 : index
    %c0_43 = arith.constant 0 : index
    %89 = vector.load %arg5[%c3_41, %c0_42, %c0_43] : memref<9x28x10xf32, #tpu.memory_space<vmem>>, vector<1x28x10xf32>
    %90 = vector.shape_cast %89 : vector<1x28x10xf32> to vector<28x10xf32>
    %cst_44 = arith.constant dense<0.000000e+00> : vector<28x196xf32>
    %91 = tpu.matmul %90, %88, %cst_44 {dimension_numbers = #tpu.dot_dimension_numbers<[1], [0], [0], [1], [0, 0, 1, 1], [], []>} : vector<28x10xf32>, vector<10x196xf32>, vector<28x196xf32> -> vector<28x196xf32>
    %92 = arith.addf %87, %91 : vector<28x196xf32>
    %c4_45 = arith.constant 4 : index
    %c0_46 = arith.constant 0 : index
    %c0_47 = arith.constant 0 : index
    %93 = vector.load %arg5[%c4_45, %c0_46, %c0_47] : memref<9x28x10xf32, #tpu.memory_space<vmem>>, vector<1x28x10xf32>
    %94 = vector.shape_cast %93 : vector<1x28x10xf32> to vector<28x10xf32>
    %cst_48 = arith.constant dense<0.000000e+00> : vector<28x196xf32>
    %95 = tpu.matmul %94, %73, %cst_48 {dimension_numbers = #tpu.dot_dimension_numbers<[1], [0], [0], [1], [0, 0, 1, 1], [], []>} : vector<28x10xf32>, vector<10x196xf32>, vector<28x196xf32> -> vector<28x196xf32>
    %96 = arith.addf %92, %95 : vector<28x196xf32>
    %c195_i32 = arith.constant 195 : i32
    %97 = tpu.dynamic_rotate %73 by %c195_i32 dim 1 : vector<10x196xf32>, i32 -> vector<10x196xf32>
    %c5_49 = arith.constant 5 : index
    %c0_50 = arith.constant 0 : index
    %c0_51 = arith.constant 0 : index
    %98 = vector.load %arg5[%c5_49, %c0_50, %c0_51] : memref<9x28x10xf32, #tpu.memory_space<vmem>>, vector<1x28x10xf32>
    %99 = vector.shape_cast %98 : vector<1x28x10xf32> to vector<28x10xf32>
    %cst_52 = arith.constant dense<0.000000e+00> : vector<28x196xf32>
    %100 = tpu.matmul %99, %97, %cst_52 {dimension_numbers = #tpu.dot_dimension_numbers<[1], [0], [0], [1], [0, 0, 1, 1], [], []>} : vector<28x10xf32>, vector<10x196xf32>, vector<28x196xf32> -> vector<28x196xf32>
    %101 = arith.addf %96, %100 : vector<28x196xf32>
    %c183_i32 = arith.constant 183 : i32
    %102 = tpu.dynamic_rotate %73 by %c183_i32 dim 1 : vector<10x196xf32>, i32 -> vector<10x196xf32>
    %c6_53 = arith.constant 6 : index
    %c0_54 = arith.constant 0 : index
    %c0_55 = arith.constant 0 : index
    %103 = vector.load %arg5[%c6_53, %c0_54, %c0_55] : memref<9x28x10xf32, #tpu.memory_space<vmem>>, vector<1x28x10xf32>
    %104 = vector.shape_cast %103 : vector<1x28x10xf32> to vector<28x10xf32>
    %cst_56 = arith.constant dense<0.000000e+00> : vector<28x196xf32>
    %105 = tpu.matmul %104, %102, %cst_56 {dimension_numbers = #tpu.dot_dimension_numbers<[1], [0], [0], [1], [0, 0, 1, 1], [], []>} : vector<28x10xf32>, vector<10x196xf32>, vector<28x196xf32> -> vector<28x196xf32>
    %106 = arith.addf %101, %105 : vector<28x196xf32>
    %c182_i32 = arith.constant 182 : i32
    %107 = tpu.dynamic_rotate %73 by %c182_i32 dim 1 : vector<10x196xf32>, i32 -> vector<10x196xf32>
    %c7_57 = arith.constant 7 : index
    %c0_58 = arith.constant 0 : index
    %c0_59 = arith.constant 0 : index
    %108 = vector.load %arg5[%c7_57, %c0_58, %c0_59] : memref<9x28x10xf32, #tpu.memory_space<vmem>>, vector<1x28x10xf32>
    %109 = vector.shape_cast %108 : vector<1x28x10xf32> to vector<28x10xf32>
    %cst_60 = arith.constant dense<0.000000e+00> : vector<28x196xf32>
    %110 = tpu.matmul %109, %107, %cst_60 {dimension_numbers = #tpu.dot_dimension_numbers<[1], [0], [0], [1], [0, 0, 1, 1], [], []>} : vector<28x10xf32>, vector<10x196xf32>, vector<28x196xf32> -> vector<28x196xf32>
    %111 = arith.addf %106, %110 : vector<28x196xf32>
    %c181_i32 = arith.constant 181 : i32
    %112 = tpu.dynamic_rotate %73 by %c181_i32 dim 1 : vector<10x196xf32>, i32 -> vector<10x196xf32>
    %c8_61 = arith.constant 8 : index
    %c0_62 = arith.constant 0 : index
    %c0_63 = arith.constant 0 : index
    %113 = vector.load %arg5[%c8_61, %c0_62, %c0_63] : memref<9x28x10xf32, #tpu.memory_space<vmem>>, vector<1x28x10xf32>
    %114 = vector.shape_cast %113 : vector<1x28x10xf32> to vector<28x10xf32>
    %cst_64 = arith.constant dense<0.000000e+00> : vector<28x196xf32>
    %115 = tpu.matmul %114, %112, %cst_64 {dimension_numbers = #tpu.dot_dimension_numbers<[1], [0], [0], [1], [0, 0, 1, 1], [], []>} : vector<28x10xf32>, vector<10x196xf32>, vector<28x196xf32> -> vector<28x196xf32>
    %116 = arith.addf %111, %115 : vector<28x196xf32>
    %c0_65 = arith.constant 0 : index
    %c0_66 = arith.constant 0 : index
    %117 = vector.load %arg6[%c0_65, %c0_66] : memref<28x1xf32, #tpu.memory_space<vmem>>, vector<28x1xf32>
    %118 = vector.broadcast %117 : vector<28x1xf32> to vector<28x196xf32>
    %119 = arith.addf %116, %118 : vector<28x196xf32>
    %cst_67 = arith.constant 0.000000e+00 : f32
    %120 = vector.broadcast %cst_67 : f32 to vector<28x196xf32>
    %121 = arith.maximumf %119, %120 : vector<28x196xf32>
    %c195_i32_68 = arith.constant 195 : i32
    %122 = tpu.dynamic_rotate %121 by %c195_i32_68 dim 1 : vector<28x196xf32>, i32 -> vector<28x196xf32>
    %123 = arith.maximumf %121, %122 : vector<28x196xf32>
    %c182_i32_69 = arith.constant 182 : i32
    %124 = tpu.dynamic_rotate %123 by %c182_i32_69 dim 1 : vector<28x196xf32>, i32 -> vector<28x196xf32>
    %125 = arith.maximumf %123, %124 : vector<28x196xf32>
    %c0_70 = arith.constant 0 : index
    %c0_71 = arith.constant 0 : index
    %126 = vector.load %arg7[%c0_70, %c0_71] : memref<196x64xf32, #tpu.memory_space<vmem>>, vector<196x64xf32>
    %cst_72 = arith.constant dense<0.000000e+00> : vector<28x64xf32>
    %127 = tpu.matmul %125, %126, %cst_72 {dimension_numbers = #tpu.dot_dimension_numbers<[1], [0], [0], [1], [0, 0, 1, 1], [], []>} : vector<28x196xf32>, vector<196x64xf32>, vector<28x64xf32> -> vector<28x64xf32>
    %c9_i32 = arith.constant 9 : i32
    %128 = tpu.dynamic_rotate %127 by %c9_i32 dim 1 : vector<28x64xf32>, i32 -> vector<28x64xf32>
    %c0_73 = arith.constant 0 : index
    %c0_74 = arith.constant 0 : index
    %c0_75 = arith.constant 0 : index
    %129 = vector.load %arg8[%c0_73, %c0_74, %c0_75] : memref<9x28x28xf32, #tpu.memory_space<vmem>>, vector<1x28x28xf32>
    %130 = vector.shape_cast %129 : vector<1x28x28xf32> to vector<28x28xf32>
    %cst_76 = arith.constant dense<0.000000e+00> : vector<28x64xf32>
    %131 = tpu.matmul %130, %128, %cst_76 {dimension_numbers = #tpu.dot_dimension_numbers<[1], [0], [0], [1], [0, 0, 1, 1], [], []>} : vector<28x28xf32>, vector<28x64xf32>, vector<28x64xf32> -> vector<28x64xf32>
    %c8_i32 = arith.constant 8 : i32
    %132 = tpu.dynamic_rotate %127 by %c8_i32 dim 1 : vector<28x64xf32>, i32 -> vector<28x64xf32>
    %c1_77 = arith.constant 1 : index
    %c0_78 = arith.constant 0 : index
    %c0_79 = arith.constant 0 : index
    %133 = vector.load %arg8[%c1_77, %c0_78, %c0_79] : memref<9x28x28xf32, #tpu.memory_space<vmem>>, vector<1x28x28xf32>
    %134 = vector.shape_cast %133 : vector<1x28x28xf32> to vector<28x28xf32>
    %cst_80 = arith.constant dense<0.000000e+00> : vector<28x64xf32>
    %135 = tpu.matmul %134, %132, %cst_80 {dimension_numbers = #tpu.dot_dimension_numbers<[1], [0], [0], [1], [0, 0, 1, 1], [], []>} : vector<28x28xf32>, vector<28x64xf32>, vector<28x64xf32> -> vector<28x64xf32>
    %136 = arith.addf %131, %135 : vector<28x64xf32>
    %c7_i32 = arith.constant 7 : i32
    %137 = tpu.dynamic_rotate %127 by %c7_i32 dim 1 : vector<28x64xf32>, i32 -> vector<28x64xf32>
    %c2_81 = arith.constant 2 : index
    %c0_82 = arith.constant 0 : index
    %c0_83 = arith.constant 0 : index
    %138 = vector.load %arg8[%c2_81, %c0_82, %c0_83] : memref<9x28x28xf32, #tpu.memory_space<vmem>>, vector<1x28x28xf32>
    %139 = vector.shape_cast %138 : vector<1x28x28xf32> to vector<28x28xf32>
    %cst_84 = arith.constant dense<0.000000e+00> : vector<28x64xf32>
    %140 = tpu.matmul %139, %137, %cst_84 {dimension_numbers = #tpu.dot_dimension_numbers<[1], [0], [0], [1], [0, 0, 1, 1], [], []>} : vector<28x28xf32>, vector<28x64xf32>, vector<28x64xf32> -> vector<28x64xf32>
    %141 = arith.addf %136, %140 : vector<28x64xf32>
    %c1_i32_85 = arith.constant 1 : i32
    %142 = tpu.dynamic_rotate %127 by %c1_i32_85 dim 1 : vector<28x64xf32>, i32 -> vector<28x64xf32>
    %c3_86 = arith.constant 3 : index
    %c0_87 = arith.constant 0 : index
    %c0_88 = arith.constant 0 : index
    %143 = vector.load %arg8[%c3_86, %c0_87, %c0_88] : memref<9x28x28xf32, #tpu.memory_space<vmem>>, vector<1x28x28xf32>
    %144 = vector.shape_cast %143 : vector<1x28x28xf32> to vector<28x28xf32>
    %cst_89 = arith.constant dense<0.000000e+00> : vector<28x64xf32>
    %145 = tpu.matmul %144, %142, %cst_89 {dimension_numbers = #tpu.dot_dimension_numbers<[1], [0], [0], [1], [0, 0, 1, 1], [], []>} : vector<28x28xf32>, vector<28x64xf32>, vector<28x64xf32> -> vector<28x64xf32>
    %146 = arith.addf %141, %145 : vector<28x64xf32>
    %c4_90 = arith.constant 4 : index
    %c0_91 = arith.constant 0 : index
    %c0_92 = arith.constant 0 : index
    %147 = vector.load %arg8[%c4_90, %c0_91, %c0_92] : memref<9x28x28xf32, #tpu.memory_space<vmem>>, vector<1x28x28xf32>
    %148 = vector.shape_cast %147 : vector<1x28x28xf32> to vector<28x28xf32>
    %cst_93 = arith.constant dense<0.000000e+00> : vector<28x64xf32>
    %149 = tpu.matmul %148, %127, %cst_93 {dimension_numbers = #tpu.dot_dimension_numbers<[1], [0], [0], [1], [0, 0, 1, 1], [], []>} : vector<28x28xf32>, vector<28x64xf32>, vector<28x64xf32> -> vector<28x64xf32>
    %150 = arith.addf %146, %149 : vector<28x64xf32>
    %c63_i32 = arith.constant 63 : i32
    %151 = tpu.dynamic_rotate %127 by %c63_i32 dim 1 : vector<28x64xf32>, i32 -> vector<28x64xf32>
    %c5_94 = arith.constant 5 : index
    %c0_95 = arith.constant 0 : index
    %c0_96 = arith.constant 0 : index
    %152 = vector.load %arg8[%c5_94, %c0_95, %c0_96] : memref<9x28x28xf32, #tpu.memory_space<vmem>>, vector<1x28x28xf32>
    %153 = vector.shape_cast %152 : vector<1x28x28xf32> to vector<28x28xf32>
    %cst_97 = arith.constant dense<0.000000e+00> : vector<28x64xf32>
    %154 = tpu.matmul %153, %151, %cst_97 {dimension_numbers = #tpu.dot_dimension_numbers<[1], [0], [0], [1], [0, 0, 1, 1], [], []>} : vector<28x28xf32>, vector<28x64xf32>, vector<28x64xf32> -> vector<28x64xf32>
    %155 = arith.addf %150, %154 : vector<28x64xf32>
    %c57_i32 = arith.constant 57 : i32
    %156 = tpu.dynamic_rotate %127 by %c57_i32 dim 1 : vector<28x64xf32>, i32 -> vector<28x64xf32>
    %c6_98 = arith.constant 6 : index
    %c0_99 = arith.constant 0 : index
    %c0_100 = arith.constant 0 : index
    %157 = vector.load %arg8[%c6_98, %c0_99, %c0_100] : memref<9x28x28xf32, #tpu.memory_space<vmem>>, vector<1x28x28xf32>
    %158 = vector.shape_cast %157 : vector<1x28x28xf32> to vector<28x28xf32>
    %cst_101 = arith.constant dense<0.000000e+00> : vector<28x64xf32>
    %159 = tpu.matmul %158, %156, %cst_101 {dimension_numbers = #tpu.dot_dimension_numbers<[1], [0], [0], [1], [0, 0, 1, 1], [], []>} : vector<28x28xf32>, vector<28x64xf32>, vector<28x64xf32> -> vector<28x64xf32>
    %160 = arith.addf %155, %159 : vector<28x64xf32>
    %c56_i32 = arith.constant 56 : i32
    %161 = tpu.dynamic_rotate %127 by %c56_i32 dim 1 : vector<28x64xf32>, i32 -> vector<28x64xf32>
    %c7_102 = arith.constant 7 : index
    %c0_103 = arith.constant 0 : index
    %c0_104 = arith.constant 0 : index
    %162 = vector.load %arg8[%c7_102, %c0_103, %c0_104] : memref<9x28x28xf32, #tpu.memory_space<vmem>>, vector<1x28x28xf32>
    %163 = vector.shape_cast %162 : vector<1x28x28xf32> to vector<28x28xf32>
    %cst_105 = arith.constant dense<0.000000e+00> : vector<28x64xf32>
    %164 = tpu.matmul %163, %161, %cst_105 {dimension_numbers = #tpu.dot_dimension_numbers<[1], [0], [0], [1], [0, 0, 1, 1], [], []>} : vector<28x28xf32>, vector<28x64xf32>, vector<28x64xf32> -> vector<28x64xf32>
    %165 = arith.addf %160, %164 : vector<28x64xf32>
    %c55_i32 = arith.constant 55 : i32
    %166 = tpu.dynamic_rotate %127 by %c55_i32 dim 1 : vector<28x64xf32>, i32 -> vector<28x64xf32>
    %c8_106 = arith.constant 8 : index
    %c0_107 = arith.constant 0 : index
    %c0_108 = arith.constant 0 : index
    %167 = vector.load %arg8[%c8_106, %c0_107, %c0_108] : memref<9x28x28xf32, #tpu.memory_space<vmem>>, vector<1x28x28xf32>
    %168 = vector.shape_cast %167 : vector<1x28x28xf32> to vector<28x28xf32>
    %cst_109 = arith.constant dense<0.000000e+00> : vector<28x64xf32>
    %169 = tpu.matmul %168, %166, %cst_109 {dimension_numbers = #tpu.dot_dimension_numbers<[1], [0], [0], [1], [0, 0, 1, 1], [], []>} : vector<28x28xf32>, vector<28x64xf32>, vector<28x64xf32> -> vector<28x64xf32>
    %170 = arith.addf %165, %169 : vector<28x64xf32>
    %c0_110 = arith.constant 0 : index
    %c0_111 = arith.constant 0 : index
    %171 = vector.load %arg9[%c0_110, %c0_111] : memref<28x1xf32, #tpu.memory_space<vmem>>, vector<28x1xf32>
    %172 = vector.broadcast %171 : vector<28x1xf32> to vector<28x64xf32>
    %173 = arith.addf %170, %172 : vector<28x64xf32>
    %cst_112 = arith.constant 0.000000e+00 : f32
    %174 = vector.broadcast %cst_112 : f32 to vector<28x64xf32>
    %175 = arith.maximumf %173, %174 : vector<28x64xf32>
    %c63_i32_113 = arith.constant 63 : i32
    %176 = tpu.dynamic_rotate %175 by %c63_i32_113 dim 1 : vector<28x64xf32>, i32 -> vector<28x64xf32>
    %177 = arith.maximumf %175, %176 : vector<28x64xf32>
    %c56_i32_114 = arith.constant 56 : i32
    %178 = tpu.dynamic_rotate %177 by %c56_i32_114 dim 1 : vector<28x64xf32>, i32 -> vector<28x64xf32>
    %179 = arith.maximumf %177, %178 : vector<28x64xf32>
    %c0_115 = arith.constant 0 : index
    %c0_116 = arith.constant 0 : index
    %180 = vector.load %arg10[%c0_115, %c0_116] : memref<64x9xf32, #tpu.memory_space<vmem>>, vector<64x9xf32>
    %cst_117 = arith.constant dense<0.000000e+00> : vector<28x9xf32>
    %181 = tpu.matmul %179, %180, %cst_117 {dimension_numbers = #tpu.dot_dimension_numbers<[1], [0], [0], [1], [0, 0, 1, 1], [], []>} : vector<28x64xf32>, vector<64x9xf32>, vector<28x9xf32> -> vector<28x9xf32>
    %c0_118 = arith.constant 0 : index
    %c0_119 = arith.constant 0 : index
    %c0_120 = arith.constant 0 : index
    %182 = vector.load %arg11[%c0_118, %c0_119, %c0_120] : memref<9x168x28xf32, #tpu.memory_space<vmem>>, vector<1x168x28xf32>
    %183 = vector.shape_cast %182 : vector<1x168x28xf32> to vector<168x28xf32>
    %184 = vector.extract_strided_slice %181 {offsets = [0, 0], sizes = [28, 1], strides = [1, 1]} : vector<28x9xf32> to vector<28x1xf32>
    %cst_121 = arith.constant dense<0.000000e+00> : vector<168x1xf32>
    %185 = tpu.matmul %183, %184, %cst_121 {dimension_numbers = #tpu.dot_dimension_numbers<[1], [0], [0], [1], [0, 0, 1, 1], [], []>} : vector<168x28xf32>, vector<28x1xf32>, vector<168x1xf32> -> vector<168x1xf32>
    %c1_122 = arith.constant 1 : index
    %c0_123 = arith.constant 0 : index
    %c0_124 = arith.constant 0 : index
    %186 = vector.load %arg11[%c1_122, %c0_123, %c0_124] : memref<9x168x28xf32, #tpu.memory_space<vmem>>, vector<1x168x28xf32>
    %187 = vector.shape_cast %186 : vector<1x168x28xf32> to vector<168x28xf32>
    %188 = vector.extract_strided_slice %181 {offsets = [0, 1], sizes = [28, 1], strides = [1, 1]} : vector<28x9xf32> to vector<28x1xf32>
    %cst_125 = arith.constant dense<0.000000e+00> : vector<168x1xf32>
    %189 = tpu.matmul %187, %188, %cst_125 {dimension_numbers = #tpu.dot_dimension_numbers<[1], [0], [0], [1], [0, 0, 1, 1], [], []>} : vector<168x28xf32>, vector<28x1xf32>, vector<168x1xf32> -> vector<168x1xf32>
    %190 = arith.addf %185, %189 : vector<168x1xf32>
    %c2_126 = arith.constant 2 : index
    %c0_127 = arith.constant 0 : index
    %c0_128 = arith.constant 0 : index
    %191 = vector.load %arg11[%c2_126, %c0_127, %c0_128] : memref<9x168x28xf32, #tpu.memory_space<vmem>>, vector<1x168x28xf32>
    %192 = vector.shape_cast %191 : vector<1x168x28xf32> to vector<168x28xf32>
    %193 = vector.extract_strided_slice %181 {offsets = [0, 2], sizes = [28, 1], strides = [1, 1]} : vector<28x9xf32> to vector<28x1xf32>
    %cst_129 = arith.constant dense<0.000000e+00> : vector<168x1xf32>
    %194 = tpu.matmul %192, %193, %cst_129 {dimension_numbers = #tpu.dot_dimension_numbers<[1], [0], [0], [1], [0, 0, 1, 1], [], []>} : vector<168x28xf32>, vector<28x1xf32>, vector<168x1xf32> -> vector<168x1xf32>
    %195 = arith.addf %190, %194 : vector<168x1xf32>
    %c3_130 = arith.constant 3 : index
    %c0_131 = arith.constant 0 : index
    %c0_132 = arith.constant 0 : index
    %196 = vector.load %arg11[%c3_130, %c0_131, %c0_132] : memref<9x168x28xf32, #tpu.memory_space<vmem>>, vector<1x168x28xf32>
    %197 = vector.shape_cast %196 : vector<1x168x28xf32> to vector<168x28xf32>
    %198 = vector.extract_strided_slice %181 {offsets = [0, 3], sizes = [28, 1], strides = [1, 1]} : vector<28x9xf32> to vector<28x1xf32>
    %cst_133 = arith.constant dense<0.000000e+00> : vector<168x1xf32>
    %199 = tpu.matmul %197, %198, %cst_133 {dimension_numbers = #tpu.dot_dimension_numbers<[1], [0], [0], [1], [0, 0, 1, 1], [], []>} : vector<168x28xf32>, vector<28x1xf32>, vector<168x1xf32> -> vector<168x1xf32>
    %200 = arith.addf %195, %199 : vector<168x1xf32>
    %c4_134 = arith.constant 4 : index
    %c0_135 = arith.constant 0 : index
    %c0_136 = arith.constant 0 : index
    %201 = vector.load %arg11[%c4_134, %c0_135, %c0_136] : memref<9x168x28xf32, #tpu.memory_space<vmem>>, vector<1x168x28xf32>
    %202 = vector.shape_cast %201 : vector<1x168x28xf32> to vector<168x28xf32>
    %203 = vector.extract_strided_slice %181 {offsets = [0, 4], sizes = [28, 1], strides = [1, 1]} : vector<28x9xf32> to vector<28x1xf32>
    %cst_137 = arith.constant dense<0.000000e+00> : vector<168x1xf32>
    %204 = tpu.matmul %202, %203, %cst_137 {dimension_numbers = #tpu.dot_dimension_numbers<[1], [0], [0], [1], [0, 0, 1, 1], [], []>} : vector<168x28xf32>, vector<28x1xf32>, vector<168x1xf32> -> vector<168x1xf32>
    %205 = arith.addf %200, %204 : vector<168x1xf32>
    %c5_138 = arith.constant 5 : index
    %c0_139 = arith.constant 0 : index
    %c0_140 = arith.constant 0 : index
    %206 = vector.load %arg11[%c5_138, %c0_139, %c0_140] : memref<9x168x28xf32, #tpu.memory_space<vmem>>, vector<1x168x28xf32>
    %207 = vector.shape_cast %206 : vector<1x168x28xf32> to vector<168x28xf32>
    %208 = vector.extract_strided_slice %181 {offsets = [0, 5], sizes = [28, 1], strides = [1, 1]} : vector<28x9xf32> to vector<28x1xf32>
    %cst_141 = arith.constant dense<0.000000e+00> : vector<168x1xf32>
    %209 = tpu.matmul %207, %208, %cst_141 {dimension_numbers = #tpu.dot_dimension_numbers<[1], [0], [0], [1], [0, 0, 1, 1], [], []>} : vector<168x28xf32>, vector<28x1xf32>, vector<168x1xf32> -> vector<168x1xf32>
    %210 = arith.addf %205, %209 : vector<168x1xf32>
    %c6_142 = arith.constant 6 : index
    %c0_143 = arith.constant 0 : index
    %c0_144 = arith.constant 0 : index
    %211 = vector.load %arg11[%c6_142, %c0_143, %c0_144] : memref<9x168x28xf32, #tpu.memory_space<vmem>>, vector<1x168x28xf32>
    %212 = vector.shape_cast %211 : vector<1x168x28xf32> to vector<168x28xf32>
    %213 = vector.extract_strided_slice %181 {offsets = [0, 6], sizes = [28, 1], strides = [1, 1]} : vector<28x9xf32> to vector<28x1xf32>
    %cst_145 = arith.constant dense<0.000000e+00> : vector<168x1xf32>
    %214 = tpu.matmul %212, %213, %cst_145 {dimension_numbers = #tpu.dot_dimension_numbers<[1], [0], [0], [1], [0, 0, 1, 1], [], []>} : vector<168x28xf32>, vector<28x1xf32>, vector<168x1xf32> -> vector<168x1xf32>
    %215 = arith.addf %210, %214 : vector<168x1xf32>
    %c7_146 = arith.constant 7 : index
    %c0_147 = arith.constant 0 : index
    %c0_148 = arith.constant 0 : index
    %216 = vector.load %arg11[%c7_146, %c0_147, %c0_148] : memref<9x168x28xf32, #tpu.memory_space<vmem>>, vector<1x168x28xf32>
    %217 = vector.shape_cast %216 : vector<1x168x28xf32> to vector<168x28xf32>
    %218 = vector.extract_strided_slice %181 {offsets = [0, 7], sizes = [28, 1], strides = [1, 1]} : vector<28x9xf32> to vector<28x1xf32>
    %cst_149 = arith.constant dense<0.000000e+00> : vector<168x1xf32>
    %219 = tpu.matmul %217, %218, %cst_149 {dimension_numbers = #tpu.dot_dimension_numbers<[1], [0], [0], [1], [0, 0, 1, 1], [], []>} : vector<168x28xf32>, vector<28x1xf32>, vector<168x1xf32> -> vector<168x1xf32>
    %220 = arith.addf %215, %219 : vector<168x1xf32>
    %c8_150 = arith.constant 8 : index
    %c0_151 = arith.constant 0 : index
    %c0_152 = arith.constant 0 : index
    %221 = vector.load %arg11[%c8_150, %c0_151, %c0_152] : memref<9x168x28xf32, #tpu.memory_space<vmem>>, vector<1x168x28xf32>
    %222 = vector.shape_cast %221 : vector<1x168x28xf32> to vector<168x28xf32>
    %223 = vector.extract_strided_slice %181 {offsets = [0, 8], sizes = [28, 1], strides = [1, 1]} : vector<28x9xf32> to vector<28x1xf32>
    %cst_153 = arith.constant dense<0.000000e+00> : vector<168x1xf32>
    %224 = tpu.matmul %222, %223, %cst_153 {dimension_numbers = #tpu.dot_dimension_numbers<[1], [0], [0], [1], [0, 0, 1, 1], [], []>} : vector<168x28xf32>, vector<28x1xf32>, vector<168x1xf32> -> vector<168x1xf32>
    %225 = arith.addf %220, %224 : vector<168x1xf32>
    %c0_154 = arith.constant 0 : index
    %c0_155 = arith.constant 0 : index
    %226 = vector.load %arg12[%c0_154, %c0_155] : memref<168x1xf32, #tpu.memory_space<vmem>>, vector<168x1xf32>
    %227 = arith.addf %225, %226 : vector<168x1xf32>
    %cst_156 = arith.constant 0.000000e+00 : f32
    %228 = vector.broadcast %cst_156 : f32 to vector<168x1xf32>
    %229 = arith.maximumf %227, %228 : vector<168x1xf32>
    %c0_157 = arith.constant 0 : index
    %c0_158 = arith.constant 0 : index
    %230 = vector.load %arg13[%c0_157, %c0_158] : memref<100x168xf32, #tpu.memory_space<vmem>>, vector<100x168xf32>
    %cst_159 = arith.constant dense<0.000000e+00> : vector<100x1xf32>
    %231 = tpu.matmul %230, %229, %cst_159 {dimension_numbers = #tpu.dot_dimension_numbers<[1], [0], [0], [1], [0, 0, 1, 1], [], []>} : vector<100x168xf32>, vector<168x1xf32>, vector<100x1xf32> -> vector<100x1xf32>
    %c0_160 = arith.constant 0 : index
    %c0_161 = arith.constant 0 : index
    %232 = vector.load %arg14[%c0_160, %c0_161] : memref<100x1xf32, #tpu.memory_space<vmem>>, vector<100x1xf32>
    %233 = arith.addf %231, %232 : vector<100x1xf32>
    %cst_162 = arith.constant 0.000000e+00 : f32
    %234 = vector.broadcast %cst_162 : f32 to vector<100x1xf32>
    %235 = arith.maximumf %233, %234 : vector<100x1xf32>
    %c0_163 = arith.constant 0 : index
    %c0_164 = arith.constant 0 : index
    %c0_165 = arith.constant 0 : index
    %236 = vector.load %arg15[%c0_163, %c0_164, %c0_165] : memref<1x100x1xf32, #tpu.memory_space<vmem>>, vector<1x100x1xf32>
    %237 = vector.shape_cast %236 : vector<1x100x1xf32> to vector<100x1xf32>
    %238 = vector.shape_cast %235 : vector<100x1xf32> to vector<1x100x1xf32>
    tpu.vector_store %arg15[%c0_163, %c0_164, %c0_165], %238 {strides = array<i32>} : memref<1x100x1xf32, #tpu.memory_space<vmem>>, vector<1x100x1xf32>,
    return
  }
  func.func @transform_0(%arg0: i32) -> (i32, i32, i32) {
    %c0_i32 = arith.constant 0 : i32
    %c0_i32_0 = arith.constant 0 : i32
    %c0_i32_1 = arith.constant 0 : i32
    return %arg0, %c0_i32, %c0_i32_0 : i32, i32, i32
  }
  func.func @transform_1(%arg0: i32) -> (i32, i32, i32) {
    %c0_i32 = arith.constant 0 : i32
    %c0_i32_0 = arith.constant 0 : i32
    %c0_i32_1 = arith.constant 0 : i32
    %c0_i32_2 = arith.constant 0 : i32
    return %c0_i32, %c0_i32_0, %c0_i32_1 : i32, i32, i32
  }
  func.func @transform_2(%arg0: i32) -> (i32, i32) {
    %c0_i32 = arith.constant 0 : i32
    %c0_i32_0 = arith.constant 0 : i32
    %c0_i32_1 = arith.constant 0 : i32
    return %c0_i32, %c0_i32_0 : i32, i32
  }
  func.func @transform_3(%arg0: i32) -> (i32, i32) {
    %c0_i32 = arith.constant 0 : i32
    %c0_i32_0 = arith.constant 0 : i32
    %c0_i32_1 = arith.constant 0 : i32
    return %c0_i32, %c0_i32_0 : i32, i32
  }
  func.func @transform_4(%arg0: i32) -> (i32, i32, i32) {
    %c0_i32 = arith.constant 0 : i32
    %c0_i32_0 = arith.constant 0 : i32
    %c0_i32_1 = arith.constant 0 : i32
    %c0_i32_2 = arith.constant 0 : i32
    return %c0_i32, %c0_i32_0, %c0_i32_1 : i32, i32, i32
  }
  func.func @transform_5(%arg0: i32) -> (i32, i32) {
    %c0_i32 = arith.constant 0 : i32
    %c0_i32_0 = arith.constant 0 : i32
    %c0_i32_1 = arith.constant 0 : i32
    return %c0_i32, %c0_i32_0 : i32, i32
  }
  func.func @transform_6(%arg0: i32) -> (i32, i32) {
    %c0_i32 = arith.constant 0 : i32
    %c0_i32_0 = arith.constant 0 : i32
    %c0_i32_1 = arith.constant 0 : i32
    return %c0_i32, %c0_i32_0 : i32, i32
  }
  func.func @transform_7(%arg0: i32) -> (i32, i32, i32) {
    %c0_i32 = arith.constant 0 : i32
    %c0_i32_0 = arith.constant 0 : i32
    %c0_i32_1 = arith.constant 0 : i32
    %c0_i32_2 = arith.constant 0 : i32
    return %c0_i32, %c0_i32_0, %c0_i32_1 : i32, i32, i32
  }
  func.func @transform_8(%arg0: i32) -> (i32, i32) {
    %c0_i32 = arith.constant 0 : i32
    %c0_i32_0 = arith.constant 0 : i32
    %c0_i32_1 = arith.constant 0 : i32
    return %c0_i32, %c0_i32_0 : i32, i32
  }
  func.func @transform_9(%arg0: i32) -> (i32, i32) {
    %c0_i32 = arith.constant 0 : i32
    %c0_i32_0 = arith.constant 0 : i32
    %c0_i32_1 = arith.constant 0 : i32
    return %c0_i32, %c0_i32_0 : i32, i32
  }
  func.func @transform_10(%arg0: i32) -> (i32, i32, i32) {
    %c0_i32 = arith.constant 0 : i32
    %c0_i32_0 = arith.constant 0 : i32
    %c0_i32_1 = arith.constant 0 : i32
    %c0_i32_2 = arith.constant 0 : i32
    return %c0_i32, %c0_i32_0, %c0_i32_1 : i32, i32, i32
  }
  func.func @transform_11(%arg0: i32) -> (i32, i32) {
    %c0_i32 = arith.constant 0 : i32
    %c0_i32_0 = arith.constant 0 : i32
    %c0_i32_1 = arith.constant 0 : i32
    return %c0_i32, %c0_i32_0 : i32, i32
  }
  func.func @transform_12(%arg0: i32) -> (i32, i32) {
    %c0_i32 = arith.constant 0 : i32
    %c0_i32_0 = arith.constant 0 : i32
    %c0_i32_1 = arith.constant 0 : i32
    return %c0_i32, %c0_i32_0 : i32, i32
  }
  func.func @transform_13(%arg0: i32) -> (i32, i32) {
    %c0_i32 = arith.constant 0 : i32
    %c0_i32_0 = arith.constant 0 : i32
    %c0_i32_1 = arith.constant 0 : i32
    return %c0_i32, %c0_i32_0 : i32, i32
  }
  func.func @transform_14(%arg0: i32) -> (i32, i32, i32) {
    %c0_i32 = arith.constant 0 : i32
    %c0_i32_0 = arith.constant 0 : i32
    %c0_i32_1 = arith.constant 0 : i32
    return %arg0, %c0_i32, %c0_i32_0 : i32, i32, i32
  }
}

</mosaic_0001>

<llo_original>
// kernel: tpu_custom_call.1
$region0: #{tpu_custom_call.1}
  #allocation0 [shape = 'u32[]', space=smem, size = 0x4, offset = 0x4, fixed_abs, tag = 'smem constant byte address 0x4 - core index']
  #allocation1 [shape = 'u32[144,128]{1,0:T(1,128)}', space=vmem, size = 0x12000, scoped, tag = 'internal scratch']
  %s0 = inlined_call_operand.vmem [shape: f32[2,1,676], index: 0, kind: input, shape index: {}]
  %s1 = inlined_call_operand.vmem [shape: f32[9,10,1], index: 1, kind: input, shape index: {}]
  %s2 = inlined_call_operand.vmem [shape: f32[10,1], index: 2, kind: input, shape index: {}]
  %s3 = inlined_call_operand.vmem [shape: f32[676,196], index: 3, kind: input, shape index: {}]
  %s4 = inlined_call_operand.vmem [shape: f32[9,28,10], index: 4, kind: input, shape index: {}]
  %s5 = inlined_call_operand.vmem [shape: f32[28,1], index: 5, kind: input, shape index: {}]
  %s6 = inlined_call_operand.vmem [shape: f32[196,64], index: 6, kind: input, shape index: {}]
  %s7 = inlined_call_operand.vmem [shape: f32[9,28,28], index: 7, kind: input, shape index: {}]
  %s8 = inlined_call_operand.vmem [shape: f32[28,1], index: 8, kind: input, shape index: {}]
  %s9 = inlined_call_operand.vmem [shape: f32[64,9], index: 9, kind: input, shape index: {}]
  %s10 = inlined_call_operand.vmem [shape: f32[9,168,28], index: 10, kind: input, shape index: {}]
  %s11 = inlined_call_operand.vmem [shape: f32[168,1], index: 11, kind: input, shape index: {}]
  %s12 = inlined_call_operand.vmem [shape: f32[100,168], index: 12, kind: input, shape index: {}]
  %s13 = inlined_call_operand.vmem [shape: f32[100,1], index: 13, kind: input, shape index: {}]
  %s14 = inlined_call_operand.vmem [shape: f32[2,100,1], index: 14, kind: output, shape index: {}]
  %s15 = sld [smem:[#allocation0]]
  $region89: #{tpu_custom_call.1} parent=0
    _
  %s17 = ssub.s32 1, %s15
  %s18 = scalar_select 0, %s17, %s15
  loop: start=0, step=1, limit=4
  $region2: #{tpu_custom_call.1} parent=0 // loop_pre_header
    _
  $region3: #{tpu_custom_call.1} parent=0 // loop_header
    %s20 = sphi 0, %s24
    %p21 = scmp.ge.s32.totalorder %s20, 4
    %s30 = sphi 0, %s32
    %s33 = sphi 0, %s30
    %s34 = sphi 0, %s33
    %s50 = sphi 0, %s34
    %s54 = sphi 0, %s54
    %s56 = sphi 0, %s54
    %s57 = sphi 0, %s56
    %s71 = sphi 0, %s57
    %s75 = sphi 0, %s75
    %s77 = sphi 0, %s75
    %s78 = sphi 0, %s77
    %s92 = sphi 0, %s78
    %s96 = sphi 0, %s96
    %s98 = sphi 0, %s96
    %s99 = sphi 0, %s98
    %s113 = sphi 0, %s99
    %s117 = sphi 0, %s117
    %s119 = sphi 0, %s117
    %s120 = sphi 0, %s119
    %s134 = sphi 0, %s120
    %s138 = sphi 0, %s138
    %s140 = sphi 0, %s138
    %s141 = sphi 0, %s140
    %s155 = sphi 0, %s141
    %s159 = sphi 0, %s159
    %s161 = sphi 0, %s159
    %s162 = sphi 0, %s161
    %s176 = sphi 0, %s162
    %s180 = sphi 0, %s180
    %s182 = sphi 0, %s180
    %s183 = sphi 0, %s182
    %s197 = sphi 0, %s183
    %s201 = sphi 0, %s201
    %s203 = sphi 0, %s201
    %s204 = sphi 0, %s203
    %s218 = sphi 0, %s204
    %s222 = sphi 0, %s222
    %s224 = sphi 0, %s222
    %s225 = sphi 0, %s224
    %s239 = sphi 0, %s225
    %s243 = sphi 0, %s243
    %s245 = sphi 0, %s243
    %s246 = sphi 0, %s245
    %s260 = sphi 0, %s246
    %s264 = sphi 0, %s264
    %s266 = sphi 0, %s264
    %s267 = sphi 0, %s266
    %s281 = sphi 0, %s267
    %s285 = sphi 0, %s285
    %s287 = sphi 0, %s285
    %s288 = sphi 0, %s287
    %s302 = sphi 0, %s288
    %s306 = sphi 0, %s306
    %s308 = sphi 0, %s306
    %s309 = sphi 0, %s308
    %s323 = sphi 0, %s309
    %s329 = sphi 0, %s331
    %s332 = sphi 0, %s329
    %s333 = sphi 0, %s332
    %s349 = sphi 0, %s333
  $region4: #{tpu_custom_call.1} parent=0 // loop_header_branch
    %23 = sbr.rel (%p21) target = $region8
  $region5: #{tpu_custom_call.1} parent=0 // loop_body
    %s25 = ssub.s32 %s20, 1
    %s26 = ssub.s32 %s20, 2
    %s27 = sadd.s32 %s20, 1
    %s28 = ssub.s32 %s20, %s27
    %p29 = scmp.eq.s32.totalorder %s28, 0
    %s31 = sadd.s32 %s30, 1
    %s32 = scalar_select %p29, %s30, %s31
    %p35 = pneg %p29
    %p36 = scmp.eq.s32.totalorder %s20, 1
    %p37 = por %p35, %p36
    %p38 = scmp.ne.s32.totalorder %s30, %s33
    %p39 = scmp.eq.s32.totalorder %s20, 0
    %p40 = por %p38, %p39
    %p41 = scmp.ne.s32.totalorder %s30, %s33
    %p42 = scmp.eq.s32.totalorder %s25, 1
    %p43 = por %p41, %p42
    %p44 = scmp.ne.s32.totalorder %s33, %s34
    %p45 = scmp.eq.s32.totalorder %s25, 0
    %p46 = por %p44, %p45
    %p47 = scmp.ne.s32.totalorder %s33, %s34
    %p48 = scmp.eq.s32.totalorder %s26, 1
    %p49 = por %p47, %p48
    %p51 = scmp.ne.s32.totalorder %s34, %s50
    %p52 = scmp.eq.s32.totalorder %s26, 0
    %p53 = por %p51, %p52
    %s55 = sadd.s32 %s54, 1
    %p58 = scmp.eq.s32.totalorder %s20, 1
    %p59 = scmp.ne.s32.totalorder %s54, %s56
    %p60 = scmp.eq.s32.totalorder %s20, 0
    %p61 = por %p59, %p60
    %p62 = scmp.ne.s32.totalorder %s54, %s56
    %p63 = scmp.eq.s32.totalorder %s25, 1
    %p64 = por %p62, %p63
    %p65 = scmp.ne.s32.totalorder %s56, %s57
    %p66 = scmp.eq.s32.totalorder %s25, 0
    %p67 = por %p65, %p66
    %p68 = scmp.ne.s32.totalorder %s56, %s57
    %p69 = scmp.eq.s32.totalorder %s26, 1
    %p70 = por %p68, %p69
    %p72 = scmp.ne.s32.totalorder %s57, %s71
    %p73 = scmp.eq.s32.totalorder %s26, 0
    %p74 = por %p72, %p73
    %s76 = sadd.s32 %s75, 1
    %p79 = scmp.eq.s32.totalorder %s20, 1
    %p80 = scmp.ne.s32.totalorder %s75, %s77
    %p81 = scmp.eq.s32.totalorder %s20, 0
    %p82 = por %p80, %p81
    %p83 = scmp.ne.s32.totalorder %s75, %s77
    %p84 = scmp.eq.s32.totalorder %s25, 1
    %p85 = por %p83, %p84
    %p86 = scmp.ne.s32.totalorder %s77, %s78
    %p87 = scmp.eq.s32.totalorder %s25, 0
    %p88 = por %p86, %p87
    %p89 = scmp.ne.s32.totalorder %s77, %s78
    %p90 = scmp.eq.s32.totalorder %s26, 1
    %p91 = por %p89, %p90
    %p93 = scmp.ne.s32.totalorder %s78, %s92
    %p94 = scmp.eq.s32.totalorder %s26, 0
    %p95 = por %p93, %p94
    %s97 = sadd.s32 %s96, 1
    %p100 = scmp.eq.s32.totalorder %s20, 1
    %p101 = scmp.ne.s32.totalorder %s96, %s98
    %p102 = scmp.eq.s32.totalorder %s20, 0
    %p103 = por %p101, %p102
    %p104 = scmp.ne.s32.totalorder %s96, %s98
    %p105 = scmp.eq.s32.totalorder %s25, 1
    %p106 = por %p104, %p105
    %p107 = scmp.ne.s32.totalorder %s98, %s99
    %p108 = scmp.eq.s32.totalorder %s25, 0
    %p109 = por %p107, %p108
    %p110 = scmp.ne.s32.totalorder %s98, %s99
    %p111 = scmp.eq.s32.totalorder %s26, 1
    %p112 = por %p110, %p111
    %p114 = scmp.ne.s32.totalorder %s99, %s113
    %p115 = scmp.eq.s32.totalorder %s26, 0
    %p116 = por %p114, %p115
    %s118 = sadd.s32 %s117, 1
    %p121 = scmp.eq.s32.totalorder %s20, 1
    %p122 = scmp.ne.s32.totalorder %s117, %s119
    %p123 = scmp.eq.s32.totalorder %s20, 0
    %p124 = por %p122, %p123
    %p125 = scmp.ne.s32.totalorder %s117, %s119
    %p126 = scmp.eq.s32.totalorder %s25, 1
    %p127 = por %p125, %p126
    %p128 = scmp.ne.s32.totalorder %s119, %s120
    %p129 = scmp.eq.s32.totalorder %s25, 0
    %p130 = por %p128, %p129
    %p131 = scmp.ne.s32.totalorder %s119, %s120
    %p132 = scmp.eq.s32.totalorder %s26, 1
    %p133 = por %p131, %p132
    %p135 = scmp.ne.s32.totalorder %s120, %s134
    %p136 = scmp.eq.s32.totalorder %s26, 0
    %p137 = por %p135, %p136
    %s139 = sadd.s32 %s138, 1
    %p142 = scmp.eq.s32.totalorder %s20, 1
    %p143 = scmp.ne.s32.totalorder %s138, %s140
    %p144 = scmp.eq.s32.totalorder %s20, 0
    %p145 = por %p143, %p144
    %p146 = scmp.ne.s32.totalorder %s138, %s140
    %p147 = scmp.eq.s32.totalorder %s25, 1
    %p148 = por %p146, %p147
    %p149 = scmp.ne.s32.totalorder %s140, %s141
    %p150 = scmp.eq.s32.totalorder %s25, 0
    %p151 = por %p149, %p150
    %p152 = scmp.ne.s32.totalorder %s140, %s141
    %p153 = scmp.eq.s32.totalorder %s26, 1
    %p154 = por %p152, %p153
    %p156 = scmp.ne.s32.totalorder %s141, %s155
    %p157 = scmp.eq.s32.totalorder %s26, 0
    %p158 = por %p156, %p157
    %s160 = sadd.s32 %s159, 1
    %p163 = scmp.eq.s32.totalorder %s20, 1
    %p164 = scmp.ne.s32.totalorder %s159, %s161
    %p165 = scmp.eq.s32.totalorder %s20, 0
    %p166 = por %p164, %p165
    %p167 = scmp.ne.s32.totalorder %s159, %s161
    %p168 = scmp.eq.s32.totalorder %s25, 1
    %p169 = por %p167, %p168
    %p170 = scmp.ne.s32.totalorder %s161, %s162
    %p171 = scmp.eq.s32.totalorder %s25, 0
    %p172 = por %p170, %p171
    %p173 = scmp.ne.s32.totalorder %s161, %s162
    %p174 = scmp.eq.s32.totalorder %s26, 1
    %p175 = por %p173, %p174
    %p177 = scmp.ne.s32.totalorder %s162, %s176
    %p178 = scmp.eq.s32.totalorder %s26, 0
    %p179 = por %p177, %p178
    %s181 = sadd.s32 %s180, 1
    %p184 = scmp.eq.s32.totalorder %s20, 1
    %p185 = scmp.ne.s32.totalorder %s180, %s182
    %p186 = scmp.eq.s32.totalorder %s20, 0
    %p187 = por %p185, %p186
    %p188 = scmp.ne.s32.totalorder %s180, %s182
    %p189 = scmp.eq.s32.totalorder %s25, 1
    %p190 = por %p188, %p189
    %p191 = scmp.ne.s32.totalorder %s182, %s183
    %p192 = scmp.eq.s32.totalorder %s25, 0
    %p193 = por %p191, %p192
    %p194 = scmp.ne.s32.totalorder %s182, %s183
    %p195 = scmp.eq.s32.totalorder %s26, 1
    %p196 = por %p194, %p195
    %p198 = scmp.ne.s32.totalorder %s183, %s197
    %p199 = scmp.eq.s32.totalorder %s26, 0
    %p200 = por %p198, %p199
    %s202 = sadd.s32 %s201, 1
    %p205 = scmp.eq.s32.totalorder %s20, 1
    %p206 = scmp.ne.s32.totalorder %s201, %s203
    %p207 = scmp.eq.s32.totalorder %s20, 0
    %p208 = por %p206, %p207
    %p209 = scmp.ne.s32.totalorder %s201, %s203
    %p210 = scmp.eq.s32.totalorder %s25, 1
    %p211 = por %p209, %p210
    %p212 = scmp.ne.s32.totalorder %s203, %s204
    %p213 = scmp.eq.s32.totalorder %s25, 0
    %p214 = por %p212, %p213
    %p215 = scmp.ne.s32.totalorder %s203, %s204
    %p216 = scmp.eq.s32.totalorder %s26, 1
    %p217 = por %p215, %p216
    %p219 = scmp.ne.s32.totalorder %s204, %s218
    %p220 = scmp.eq.s32.totalorder %s26, 0
    %p221 = por %p219, %p220
    %s223 = sadd.s32 %s222, 1
    %p226 = scmp.eq.s32.totalorder %s20, 1
    %p227 = scmp.ne.s32.totalorder %s222, %s224
    %p228 = scmp.eq.s32.totalorder %s20, 0
    %p229 = por %p227, %p228
    %p230 = scmp.ne.s32.totalorder %s222, %s224
    %p231 = scmp.eq.s32.totalorder %s25, 1
    %p232 = por %p230, %p231
    %p233 = scmp.ne.s32.totalorder %s224, %s225
    %p234 = scmp.eq.s32.totalorder %s25, 0
    %p235 = por %p233, %p234
    %p236 = scmp.ne.s32.totalorder %s224, %s225
    %p237 = scmp.eq.s32.totalorder %s26, 1
    %p238 = por %p236, %p237
    %p240 = scmp.ne.s32.totalorder %s225, %s239
    %p241 = scmp.eq.s32.totalorder %s26, 0
    %p242 = por %p240, %p241
    %s244 = sadd.s32 %s243, 1
    %p247 = scmp.eq.s32.totalorder %s20, 1
    %p248 = scmp.ne.s32.totalorder %s243, %s245
    %p249 = scmp.eq.s32.totalorder %s20, 0
    %p250 = por %p248, %p249
    %p251 = scmp.ne.s32.totalorder %s243, %s245
    %p252 = scmp.eq.s32.totalorder %s25, 1
    %p253 = por %p251, %p252
    %p254 = scmp.ne.s32.totalorder %s245, %s246
    %p255 = scmp.eq.s32.totalorder %s25, 0
    %p256 = por %p254, %p255
    %p257 = scmp.ne.s32.totalorder %s245, %s246
    %p258 = scmp.eq.s32.totalorder %s26, 1
    %p259 = por %p257, %p258
    %p261 = scmp.ne.s32.totalorder %s246, %s260
    %p262 = scmp.eq.s32.totalorder %s26, 0
    %p263 = por %p261, %p262
    %s265 = sadd.s32 %s264, 1
    %p268 = scmp.eq.s32.totalorder %s20, 1
    %p269 = scmp.ne.s32.totalorder %s264, %s266
    %p270 = scmp.eq.s32.totalorder %s20, 0
    %p271 = por %p269, %p270
    %p272 = scmp.ne.s32.totalorder %s264, %s266
    %p273 = scmp.eq.s32.totalorder %s25, 1
    %p274 = por %p272, %p273
    %p275 = scmp.ne.s32.totalorder %s266, %s267
    %p276 = scmp.eq.s32.totalorder %s25, 0
    %p277 = por %p275, %p276
    %p278 = scmp.ne.s32.totalorder %s266, %s267
    %p279 = scmp.eq.s32.totalorder %s26, 1
    %p280 = por %p278, %p279
    %p282 = scmp.ne.s32.totalorder %s267, %s281
    %p283 = scmp.eq.s32.totalorder %s26, 0
    %p284 = por %p282, %p283
    %s286 = sadd.s32 %s285, 1
    %p289 = scmp.eq.s32.totalorder %s20, 1
    %p290 = scmp.ne.s32.totalorder %s285, %s287
    %p291 = scmp.eq.s32.totalorder %s20, 0
    %p292 = por %p290, %p291
    %p293 = scmp.ne.s32.totalorder %s285, %s287
    %p294 = scmp.eq.s32.totalorder %s25, 1
    %p295 = por %p293, %p294
    %p296 = scmp.ne.s32.totalorder %s287, %s288
    %p297 = scmp.eq.s32.totalorder %s25, 0
    %p298 = por %p296, %p297
    %p299 = scmp.ne.s32.totalorder %s287, %s288
    %p300 = scmp.eq.s32.totalorder %s26, 1
    %p301 = por %p299, %p300
    %p303 = scmp.ne.s32.totalorder %s288, %s302
    %p304 = scmp.eq.s32.totalorder %s26, 0
    %p305 = por %p303, %p304
    %s307 = sadd.s32 %s306, 1
    %p310 = scmp.eq.s32.totalorder %s20, 1
    %p311 = scmp.ne.s32.totalorder %s306, %s308
    %p312 = scmp.eq.s32.totalorder %s20, 0
    %p313 = por %p311, %p312
    %p314 = scmp.ne.s32.totalorder %s306, %s308
    %p315 = scmp.eq.s32.totalorder %s25, 1
    %p316 = por %p314, %p315
    %p317 = scmp.ne.s32.totalorder %s308, %s309
    %p318 = scmp.eq.s32.totalorder %s25, 0
    %p319 = por %p317, %p318
    %p320 = scmp.ne.s32.totalorder %s308, %s309
    %p321 = scmp.eq.s32.totalorder %s26, 1
    %p322 = por %p320, %p321
    %p324 = scmp.ne.s32.totalorder %s309, %s323
    %p325 = scmp.eq.s32.totalorder %s26, 0
    %p326 = por %p324, %p325
    %s327 = ssub.s32 %s20, %s27
    %p328 = scmp.eq.s32.totalorder %s327, 0
    %s330 = sadd.s32 %s329, 1
    %s331 = scalar_select %p328, %s329, %s330
    %p334 = pneg %p328
    %p335 = scmp.eq.s32.totalorder %s20, 1
    %p336 = por %p334, %p335
    %p337 = scmp.ne.s32.totalorder %s329, %s332
    %p338 = scmp.eq.s32.totalorder %s20, 0
    %p339 = por %p337, %p338
    %p340 = scmp.ne.s32.totalorder %s329, %s332
    %p341 = scmp.eq.s32.totalorder %s25, 1
    %p342 = por %p340, %p341
    %p343 = scmp.ne.s32.totalorder %s332, %s333
    %p344 = scmp.eq.s32.totalorder %s25, 0
    %p345 = por %p343, %p344
    %p346 = scmp.ne.s32.totalorder %s332, %s333
    %p347 = scmp.eq.s32.totalorder %s26, 1
    %p348 = por %p346, %p347
    %p350 = scmp.ne.s32.totalorder %s333, %s349
    %p351 = scmp.eq.s32.totalorder %s26, 0
    %p352 = por %p350, %p351
    %p353 = scmp.le.s32.totalorder 1, %s20
    %p354 = scmp.lt.s32.totalorder %s20, 3
    %p355 = pnand %p353, %p354
    %p356 = pneg %p355
    // Predicated region
    $region9: #{tpu_custom_call.1} parent=5 // pred_check
      _
    $region10: #{tpu_custom_call.1} parent=5 // pred_check_branch
      %358 = sbr.rel (%p355) target = $region12
    $region11: #{tpu_custom_call.1} parent=5 // pred_region
      %s359 = ssub.s32 %s20, 1
      // Predicated region
      $region13: #{tpu_custom_call.1} parent=11 // pred_check
        %p360 = pneg %p67
      $region14: #{tpu_custom_call.1} parent=11 // pred_check_branch
        %362 = sbr.rel (%p360) target = $region16
      $region15: #{tpu_custom_call.1} parent=11 // pred_region
        _
      $region16: #{tpu_custom_call.1} parent=11 // pred_fallthru
        _
      // Predicated region
      $region17: #{tpu_custom_call.1} parent=11 // pred_check
        %p363 = pneg %p88
      $region18: #{tpu_custom_call.1} parent=11 // pred_check_branch
        %365 = sbr.rel (%p363) target = $region20
      $region19: #{tpu_custom_call.1} parent=11 // pred_region
        _
      $region20: #{tpu_custom_call.1} parent=11 // pred_fallthru
        _
      // Predicated region
      $region21: #{tpu_custom_call.1} parent=11 // pred_check
        %p366 = pneg %p109
      $region22: #{tpu_custom_call.1} parent=11 // pred_check_branch
        %368 = sbr.rel (%p366) target = $region24
      $region23: #{tpu_custom_call.1} parent=11 // pred_region
        _
      $region24: #{tpu_custom_call.1} parent=11 // pred_fallthru
        _
      // Predicated region
      $region25: #{tpu_custom_call.1} parent=11 // pred_check
        %p369 = pneg %p130
      $region26: #{tpu_custom_call.1} parent=11 // pred_check_branch
        %371 = sbr.rel (%p369) target = $region28
      $region27: #{tpu_custom_call.1} parent=11 // pred_region
        _
      $region28: #{tpu_custom_call.1} parent=11 // pred_fallthru
        _
      // Predicated region
      $region29: #{tpu_custom_call.1} parent=11 // pred_check
        %p372 = pneg %p151
      $region30: #{tpu_custom_call.1} parent=11 // pred_check_branch
        %374 = sbr.rel (%p372) target = $region32
      $region31: #{tpu_custom_call.1} parent=11 // pred_region
        _
      $region32: #{tpu_custom_call.1} parent=11 // pred_fallthru
        _
      // Predicated region
      $region33: #{tpu_custom_call.1} parent=11 // pred_check
        %p375 = pneg %p172
      $region34: #{tpu_custom_call.1} parent=11 // pred_check_branch
        %377 = sbr.rel (%p375) target = $region36
      $region35: #{tpu_custom_call.1} parent=11 // pred_region
        _
      $region36: #{tpu_custom_call.1} parent=11 // pred_fallthru
        _
      // Predicated region
      $region37: #{tpu_custom_call.1} parent=11 // pred_check
        %p378 = pneg %p193
      $region38: #{tpu_custom_call.1} parent=11 // pred_check_branch
        %380 = sbr.rel (%p378) target = $region40
      $region39: #{tpu_custom_call.1} parent=11 // pred_region
        _
      $region40: #{tpu_custom_call.1} parent=11 // pred_fallthru
        _
      // Predicated region
      $region41: #{tpu_custom_call.1} parent=11 // pred_check
        %p381 = pneg %p214
      $region42: #{tpu_custom_call.1} parent=11 // pred_check_branch
        %383 = sbr.rel (%p381) target = $region44
      $region43: #{tpu_custom_call.1} parent=11 // pred_region
        _
      $region44: #{tpu_custom_call.1} parent=11 // pred_fallthru
        _
      // Predicated region
      $region45: #{tpu_custom_call.1} parent=11 // pred_check
        %p384 = pneg %p235
      $region46: #{tpu_custom_call.1} parent=11 // pred_check_branch
        %386 = sbr.rel (%p384) target = $region48
      $region47: #{tpu_custom_call.1} parent=11 // pred_region
        _
      $region48: #{tpu_custom_call.1} parent=11 // pred_fallthru
        _
      // Predicated region
      $region49: #{tpu_custom_call.1} parent=11 // pred_check
        %p387 = pneg %p256
      $region50: #{tpu_custom_call.1} parent=11 // pred_check_branch
        %389 = sbr.rel (%p387) target = $region52
      $region51: #{tpu_custom_call.1} parent=11 // pred_region
        _
      $region52: #{tpu_custom_call.1} parent=11 // pred_fallthru
        _
      // Predicated region
      $region53: #{tpu_custom_call.1} parent=11 // pred_check
        %p390 = pneg %p277
      $region54: #{tpu_custom_call.1} parent=11 // pred_check_branch
        %392 = sbr.rel (%p390) target = $region56
      $region55: #{tpu_custom_call.1} parent=11 // pred_region
        _
      $region56: #{tpu_custom_call.1} parent=11 // pred_fallthru
        _
      // Predicated region
      $region57: #{tpu_custom_call.1} parent=11 // pred_check
        %p393 = pneg %p298
      $region58: #{tpu_custom_call.1} parent=11 // pred_check_branch
        %395 = sbr.rel (%p393) target = $region60
      $region59: #{tpu_custom_call.1} parent=11 // pred_region
        _
      $region60: #{tpu_custom_call.1} parent=11 // pred_fallthru
        _
      // Predicated region
      $region61: #{tpu_custom_call.1} parent=11 // pred_check
        %p396 = pneg %p319
      $region62: #{tpu_custom_call.1} parent=11 // pred_check_branch
        %398 = sbr.rel (%p396) target = $region64
      $region63: #{tpu_custom_call.1} parent=11 // pred_region
        _
      $region64: #{tpu_custom_call.1} parent=11 // pred_fallthru
        _
    $region12: #{tpu_custom_call.1} parent=5 // pred_fallthru
      _
    %p399 = scmp.lt.s32.totalorder %s20, 2
    // Predicated region
    $region65: #{tpu_custom_call.1} parent=5 // pred_check
      %p400 = pneg %p399
    $region66: #{tpu_custom_call.1} parent=5 // pred_check_branch
      %402 = sbr.rel (%p400) target = $region68
    $region67: #{tpu_custom_call.1} parent=5 // pred_region
      // Predicated region
      $region69: #{tpu_custom_call.1} parent=67 // pred_check
        %p403 = pneg %p40
      $region70: #{tpu_custom_call.1} parent=67 // pred_check_branch
        %405 = sbr.rel (%p403) target = $region72
      $region71: #{tpu_custom_call.1} parent=67 // pred_region
        %p406 = scmp.lt.s32.totalorder %s20, 1
        %s407 = scalar_select %p406, %s20, 1
        %s408 = smul.addr %s407, 6
        %s409 = scalar_lea.vmem %s0, %s408
      $region72: #{tpu_custom_call.1} parent=67 // pred_fallthru
        _
    $region68: #{tpu_custom_call.1} parent=5 // pred_fallthru
      _
    %p410 = scmp.le.s32.totalorder 1, %s20
    %p411 = scmp.lt.s32.totalorder %s20, 3
    %p412 = pnand %p410, %p411
    %p413 = pneg %p412
    // Predicated region
    $region73: #{tpu_custom_call.1} parent=5 // pred_check
      _
    $region74: #{tpu_custom_call.1} parent=5 // pred_check_branch
      %415 = sbr.rel (%p412) target = $region76
    $region75: #{tpu_custom_call.1} parent=5 // pred_region
      %s416 = ssub.s32 %s20, 1
      %p417 = scmp.lt.s32.totalorder %s25, 1
      %s418 = scalar_select %p417, %s25, 1
      %s419 = smul.addr %s418, 6
      %s420 = scalar_lea.vmem %s0, %s419
      %p421 = pneg %p46
      %p422 = pneg %p43
      %p423 = pneg %p67
      %p424 = pneg %p64
      %p425 = pneg %p88
      %p426 = pneg %p85
      %p427 = pneg %p109
      %p428 = pneg %p106
      %p429 = pneg %p130
      %p430 = pneg %p127
      %p431 = pneg %p151
      %p432 = pneg %p148
      %p433 = pneg %p172
      %p434 = pneg %p169
      %p435 = pneg %p193
      %p436 = pneg %p190
      %p437 = pneg %p214
      %p438 = pneg %p211
      %p439 = pneg %p235
      %p440 = pneg %p232
      %p441 = pneg %p256
      %p442 = pneg %p253
      %p443 = pneg %p277
      %p444 = pneg %p274
      %p445 = pneg %p298
      %p446 = pneg %p295
      %p447 = pneg %p319
      %p448 = pneg %p316
      %p449 = pneg %p345
      %p450 = pneg %p342
      %p451 = scmp.lt.s32.totalorder %s25, 1
      %s452 = scalar_select %p451, %s25, 1
      %s453 = smul.addr %s452, 13
      %s454 = smul.addr %s453, 8
      %s455 = scalar_lea.vmem %s14, %s454
      %p456 = scmp.lt.s32.totalorder %s25, 1
      %s457 = scalar_select %p456, %s25, 1
      %s458 = smul.addr %s457, 6
      %s459 = scalar_lea.vmem %s0, %s458
      %p460 = scmp.lt.s32.totalorder %s25, 1
      %s461 = scalar_select %p460, %s25, 1
      %s462 = smul.addr %s461, 13
      %s463 = smul.addr %s462, 8
      %s464 = scalar_lea.vmem %s14, %s463
      %v465 = vld [vmem:[%s459] sm:$0x3f]
      %v467 = vlaneseq
      %v468 = vshrl.u32 %v467, 7
      %v469 = vsub.s32 0, %v468
      %v470 = vrot.slane %v465, %v469
      %v471 = vlaneseq
      %v472 = vshrl.u32 %v471, 7
      %v473 = vsub.s32 1, %v472
      %v474 = vrot.slane %v465, %v473
      %v475 = vlaneseq
      %v476 = vshrl.u32 %v475, 7
      %v477 = vsub.s32 2, %v476
      %v478 = vrot.slane %v465, %v477
      %v479 = vlaneseq
      %v480 = vshrl.u32 %v479, 7
      %v481 = vsub.s32 3, %v480
      %v482 = vrot.slane %v465, %v481
      %v483 = vlaneseq
      %v484 = vshrl.u32 %v483, 7
      %v485 = vsub.s32 4, %v484
      %v486 = vrot.slane %v465, %v485
      %v487 = vlaneseq
      %v488 = vshrl.u32 %v487, 7
      %v489 = vsub.s32 5, %v488
      %v490 = vrot.slane %v465, %v489
      %vm497 = vcmask 1047840
      %498 = vrot.lane.b32.xlu0 %v470, 36
      %v499 = vpop.permute.xlu0 %498
      %v500 = vsel %vm497, %v499, %v490
      %501 = vrot.lane.b32.xlu0 %v474, 36
      %v502 = vpop.permute.xlu0 %501
      %503 = vrot.lane.b32.xlu0 %v478, 36
      %v504 = vpop.permute.xlu0 %503
      %505 = vrot.lane.b32.xlu0 %v482, 36
      %v506 = vpop.permute.xlu0 %505
      %507 = vrot.lane.b32.xlu0 %v486, 36
      %v508 = vpop.permute.xlu0 %507
      %509 = vrot.lane.b32.xlu0 %v500, 36
      %v510 = vpop.permute.xlu0 %509
      %v511 = vsel %vm497, %v502, %v499
      %v512 = vsel %vm497, %v504, %v502
      %v513 = vsel %vm497, %v506, %v504
      %v514 = vsel %vm497, %v508, %v506
      %v515 = vsel %vm497, %v510, %v508
      %v516 = vld [vmem:[%s1] sm:$0xff]
      %v517 = vld [vmem:[%s1 + $0x8] sm:$0x3]
      %519 = vset.pattern.permute.xlu0 0
      %520 = vperm.xlu0 %519, %v516
      %v521 = vpop.permute.xlu0 %520
      %524 = vset.pattern.permute.xlu0 0
      %525 = vperm.xlu0 %524, %v517
      %v526 = vpop.permute.xlu0 %525
      %v528 = vlaneseq
      %v529 = vshrl.u32 %v528, 7
      %v530 = vsub.s32 0, %v529
      %v531 = vrot.slane %v500, %v530
      %v532 = vlaneseq
      %v533 = vshrl.u32 %v532, 7
      %v534 = vsub.s32 0, %v533
      %v535 = vrot.slane %v511, %v534
      %v536 = vlaneseq
      %v537 = vshrl.u32 %v536, 7
      %v538 = vsub.s32 0, %v537
      %v539 = vrot.slane %v512, %v538
      %v540 = vlaneseq
      %v541 = vshrl.u32 %v540, 7
      %v542 = vsub.s32 0, %v541
      %v543 = vrot.slane %v513, %v542
      %v544 = vlaneseq
      %v545 = vshrl.u32 %v544, 7
      %v546 = vsub.s32 0, %v545
      %v547 = vrot.slane %v514, %v546
      %v548 = vlaneseq
      %v549 = vshrl.u32 %v548, 7
      %v550 = vsub.s32 0, %v549
      %v551 = vrot.slane %v515, %v550
      %v552 = vmul.f32 %v521, %v531
      %v553 = vmul.f32 %v521, %v535
      %v554 = vmul.f32 %v521, %v539
      %v555 = vmul.f32 %v521, %v543
      %v556 = vmul.f32 %v521, %v547
      %v557 = vmul.f32 %v521, %v551
      %v558 = vmul.f32 %v526, %v531
      %v559 = vmul.f32 %v526, %v535
      %v560 = vmul.f32 %v526, %v539
      %v561 = vmul.f32 %v526, %v543
      %v562 = vmul.f32 %v526, %v547
      %v563 = vmul.f32 %v526, %v551
      %s564 = scalar_lea.vmem %s1, 16
      %v565 = vld [vmem:[%s564] sm:$0xff]
      %v566 = vld [vmem:[%s564 + $0x8] sm:$0x3]
      %568 = vset.pattern.permute.xlu0 0
      %569 = vperm.xlu0 %568, %v565
      %v570 = vpop.permute.xlu0 %569
      %573 = vset.pattern.permute.xlu0 0
      %574 = vperm.xlu0 %573, %v566
      %v575 = vpop.permute.xlu0 %574
      %v577 = vmul.f32 %v570, %v531
      %v578 = vmul.f32 %v570, %v535
      %v579 = vmul.f32 %v570, %v539
      %v580 = vmul.f32 %v570, %v543
      %v581 = vmul.f32 %v570, %v547
      %v582 = vmul.f32 %v570, %v551
      %v583 = vmul.f32 %v575, %v531
      %v584 = vmul.f32 %v575, %v535
      %v585 = vmul.f32 %v575, %v539
      %v586 = vmul.f32 %v575, %v543
      %v587 = vmul.f32 %v575, %v547
      %v588 = vmul.f32 %v575, %v551
      %601 = vrot.lane.b32.xlu0 %v577, 127
      %v602 = vpop.permute.xlu0 %601
      %603 = vrot.lane.b32.xlu0 %v578, 127
      %v604 = vpop.permute.xlu0 %603
      %605 = vrot.lane.b32.xlu0 %v579, 127
      %v606 = vpop.permute.xlu0 %605
      %607 = vrot.lane.b32.xlu0 %v580, 127
      %v608 = vpop.permute.xlu0 %607
      %609 = vrot.lane.b32.xlu0 %v581, 127
      %v610 = vpop.permute.xlu0 %609
      %611 = vrot.lane.b32.xlu0 %v582, 127
      %v612 = vpop.permute.xlu0 %611
      %613 = vrot.lane.b32.xlu0 %v583, 127
      %v614 = vpop.permute.xlu0 %613
      %615 = vrot.lane.b32.xlu0 %v584, 127
      %v616 = vpop.permute.xlu0 %615
      %617 = vrot.lane.b32.xlu0 %v585, 127
      %v618 = vpop.permute.xlu0 %617
      %619 = vrot.lane.b32.xlu0 %v586, 127
      %v620 = vpop.permute.xlu0 %619
      %621 = vrot.lane.b32.xlu0 %v587, 127
      %v622 = vpop.permute.xlu0 %621
      %623 = vrot.lane.b32.xlu0 %v588, 127
      %v624 = vpop.permute.xlu0 %623
      %vm625 = vcmask 1039360
      %v626 = vsel %vm625, %v602, %v604
      %v627 = vsel %vm625, %v604, %v606
      %v628 = vsel %vm625, %v606, %v608
      %v629 = vsel %vm625, %v608, %v610
      %v630 = vsel %vm625, %v610, %v612
      %v631 = vsel %vm625, %v614, %v616
      %v632 = vsel %vm625, %v616, %v618
      %v633 = vsel %vm625, %v618, %v620
      %v634 = vsel %vm625, %v620, %v622
      %v635 = vsel %vm625, %v622, %v624
      %v648 = vadd.f32 %v552, %v626
      %v649 = vadd.f32 %v553, %v627
      %v650 = vadd.f32 %v554, %v628
      %v651 = vadd.f32 %v555, %v629
      %v652 = vadd.f32 %v556, %v630
      %v653 = vadd.f32 %v557, %v612
      %v654 = vadd.f32 %v558, %v631
      %v655 = vadd.f32 %v559, %v632
      %v656 = vadd.f32 %v560, %v633
      %v657 = vadd.f32 %v561, %v634
      %v658 = vadd.f32 %v562, %v635
      %v659 = vadd.f32 %v563, %v624
      %s660 = scalar_lea.vmem %s1, 32
      %v661 = vld [vmem:[%s660] sm:$0xff]
      %v662 = vld [vmem:[%s660 + $0x8] sm:$0x3]
      %664 = vset.pattern.permute.xlu0 0
      %665 = vperm.xlu0 %664, %v661
      %v666 = vpop.permute.xlu0 %665
      %669 = vset.pattern.permute.xlu0 0
      %670 = vperm.xlu0 %669, %v662
      %v671 = vpop.permute.xlu0 %670
      %v673 = vmul.f32 %v666, %v531
      %v674 = vmul.f32 %v666, %v535
      %v675 = vmul.f32 %v666, %v539
      %v676 = vmul.f32 %v666, %v543
      %v677 = vmul.f32 %v666, %v547
      %v678 = vmul.f32 %v666, %v551
      %v679 = vmul.f32 %v671, %v531
      %v680 = vmul.f32 %v671, %v535
      %v681 = vmul.f32 %v671, %v539
      %v682 = vmul.f32 %v671, %v543
      %v683 = vmul.f32 %v671, %v547
      %v684 = vmul.f32 %v671, %v551
      %697 = vrot.lane.b32.xlu0 %v673, 126
      %v698 = vpop.permute.xlu0 %697
      %699 = vrot.lane.b32.xlu0 %v674, 126
      %v700 = vpop.permute.xlu0 %699
      %701 = vrot.lane.b32.xlu0 %v675, 126
      %v702 = vpop.permute.xlu0 %701
      %703 = vrot.lane.b32.xlu0 %v676, 126
      %v704 = vpop.permute.xlu0 %703
      %705 = vrot.lane.b32.xlu0 %v677, 126
      %v706 = vpop.permute.xlu0 %705
      %707 = vrot.lane.b32.xlu0 %v678, 126
      %v708 = vpop.permute.xlu0 %707
      %709 = vrot.lane.b32.xlu0 %v679, 126
      %v710 = vpop.permute.xlu0 %709
      %711 = vrot.lane.b32.xlu0 %v680, 126
      %v712 = vpop.permute.xlu0 %711
      %713 = vrot.lane.b32.xlu0 %v681, 126
      %v714 = vpop.permute.xlu0 %713
      %715 = vrot.lane.b32.xlu0 %v682, 126
      %v716 = vpop.permute.xlu0 %715
      %717 = vrot.lane.b32.xlu0 %v683, 126
      %v718 = vpop.permute.xlu0 %717
      %719 = vrot.lane.b32.xlu0 %v684, 126
      %v720 = vpop.permute.xlu0 %719
      %vm721 = vcmask 1031168
      %v722 = vsel %vm721, %v698, %v700
      %v723 = vsel %vm721, %v700, %v702
      %v724 = vsel %vm721, %v702, %v704
      %v725 = vsel %vm721, %v704, %v706
      %v726 = vsel %vm721, %v706, %v708
      %v727 = vsel %vm721, %v710, %v712
      %v728 = vsel %vm721, %v712, %v714
      %v729 = vsel %vm721, %v714, %v716
      %v730 = vsel %vm721, %v716, %v718
      %v731 = vsel %vm721, %v718, %v720
      %v744 = vadd.f32 %v648, %v722
      %v745 = vadd.f32 %v649, %v723
      %v746 = vadd.f32 %v650, %v724
      %v747 = vadd.f32 %v651, %v725
      %v748 = vadd.f32 %v652, %v726
      %v749 = vadd.f32 %v653, %v708
      %v750 = vadd.f32 %v654, %v727
      %v751 = vadd.f32 %v655, %v728
      %v752 = vadd.f32 %v656, %v729
      %v753 = vadd.f32 %v657, %v730
      %v754 = vadd.f32 %v658, %v731
      %v755 = vadd.f32 %v659, %v720
      %s756 = scalar_lea.vmem %s1, 48
      %v757 = vld [vmem:[%s756] sm:$0xff]
      %v758 = vld [vmem:[%s756 + $0x8] sm:$0x3]
      %760 = vset.pattern.permute.xlu0 0
      %761 = vperm.xlu0 %760, %v757
      %v762 = vpop.permute.xlu0 %761
      %765 = vset.pattern.permute.xlu0 0
      %766 = vperm.xlu0 %765, %v758
      %v767 = vpop.permute.xlu0 %766
      %v769 = vmul.f32 %v762, %v531
      %v770 = vmul.f32 %v762, %v535
      %v771 = vmul.f32 %v762, %v539
      %v772 = vmul.f32 %v762, %v543
      %v773 = vmul.f32 %v762, %v547
      %v774 = vmul.f32 %v762, %v551
      %v775 = vmul.f32 %v767, %v531
      %v776 = vmul.f32 %v767, %v535
      %v777 = vmul.f32 %v767, %v539
      %v778 = vmul.f32 %v767, %v543
      %v779 = vmul.f32 %v767, %v547
      %v780 = vmul.f32 %v767, %v551
      %793 = vrot.lane.b32.xlu0 %v769, 102
      %v794 = vpop.permute.xlu0 %793
      %795 = vrot.lane.b32.xlu0 %v770, 102
      %v796 = vpop.permute.xlu0 %795
      %797 = vrot.lane.b32.xlu0 %v771, 102
      %v798 = vpop.permute.xlu0 %797
      %799 = vrot.lane.b32.xlu0 %v772, 102
      %v800 = vpop.permute.xlu0 %799
      %801 = vrot.lane.b32.xlu0 %v773, 102
      %v802 = vpop.permute.xlu0 %801
      %803 = vrot.lane.b32.xlu0 %v774, 102
      %v804 = vpop.permute.xlu0 %803
      %805 = vrot.lane.b32.xlu0 %v775, 102
      %v806 = vpop.permute.xlu0 %805
      %807 = vrot.lane.b32.xlu0 %v776, 102
      %v808 = vpop.permute.xlu0 %807
      %809 = vrot.lane.b32.xlu0 %v777, 102
      %v810 = vpop.permute.xlu0 %809
      %811 = vrot.lane.b32.xlu0 %v778, 102
      %v812 = vpop.permute.xlu0 %811
      %813 = vrot.lane.b32.xlu0 %v779, 102
      %v814 = vpop.permute.xlu0 %813
      %815 = vrot.lane.b32.xlu0 %v780, 102
      %v816 = vpop.permute.xlu0 %815
      %vm817 = vcmask 834560
      %v818 = vsel %vm817, %v794, %v796
      %v819 = vsel %vm817, %v796, %v798
      %v820 = vsel %vm817, %v798, %v800
      %v821 = vsel %vm817, %v800, %v802
      %v822 = vsel %vm817, %v802, %v804
      %v823 = vsel %vm817, %v806, %v808
      %v824 = vsel %vm817, %v808, %v810
      %v825 = vsel %vm817, %v810, %v812
      %v826 = vsel %vm817, %v812, %v814
      %v827 = vsel %vm817, %v814, %v816
      %v840 = vadd.f32 %v744, %v818
      %v841 = vadd.f32 %v745, %v819
      %v842 = vadd.f32 %v746, %v820
      %v843 = vadd.f32 %v747, %v821
      %v844 = vadd.f32 %v748, %v822
      %v845 = vadd.f32 %v749, %v804
      %v846 = vadd.f32 %v750, %v823
      %v847 = vadd.f32 %v751, %v824
      %v848 = vadd.f32 %v752, %v825
      %v849 = vadd.f32 %v753, %v826
      %v850 = vadd.f32 %v754, %v827
      %v851 = vadd.f32 %v755, %v816
      %s852 = scalar_lea.vmem %s1, 64
      %v853 = vld [vmem:[%s852] sm:$0xff]
      %v854 = vld [vmem:[%s852 + $0x8] sm:$0x3]
      %856 = vset.pattern.permute.xlu0 0
      %857 = vperm.xlu0 %856, %v853
      %v858 = vpop.permute.xlu0 %857
      %861 = vset.pattern.permute.xlu0 0
      %862 = vperm.xlu0 %861, %v854
      %v863 = vpop.permute.xlu0 %862
      %v865 = vmul.f32 %v858, %v470
      %v866 = vmul.f32 %v858, %v474
      %v867 = vmul.f32 %v858, %v478
      %v868 = vmul.f32 %v858, %v482
      %v869 = vmul.f32 %v858, %v486
      %v870 = vmul.f32 %v858, %v490
      %v871 = vmul.f32 %v863, %v470
      %v872 = vmul.f32 %v863, %v474
      %v873 = vmul.f32 %v863, %v478
      %v874 = vmul.f32 %v863, %v482
      %v875 = vmul.f32 %v863, %v486
      %v876 = vmul.f32 %v863, %v490
      %889 = vrot.lane.b32.xlu0 %v865, 9
      %v890 = vpop.permute.xlu0 %889
      %891 = vrot.lane.b32.xlu0 %v866, 9
      %v892 = vpop.permute.xlu0 %891
      %893 = vrot.lane.b32.xlu0 %v867, 9
      %v894 = vpop.permute.xlu0 %893
      %895 = vrot.lane.b32.xlu0 %v868, 9
      %v896 = vpop.permute.xlu0 %895
      %897 = vrot.lane.b32.xlu0 %v869, 9
      %v898 = vpop.permute.xlu0 %897
      %899 = vrot.lane.b32.xlu0 %v870, 9
      %v900 = vpop.permute.xlu0 %899
      %901 = vrot.lane.b32.xlu0 %v871, 9
      %v902 = vpop.permute.xlu0 %901
      %903 = vrot.lane.b32.xlu0 %v872, 9
      %v904 = vpop.permute.xlu0 %903
      %905 = vrot.lane.b32.xlu0 %v873, 9
      %v906 = vpop.permute.xlu0 %905
      %907 = vrot.lane.b32.xlu0 %v874, 9
      %v908 = vpop.permute.xlu0 %907
      %909 = vrot.lane.b32.xlu0 %v875, 9
      %v910 = vpop.permute.xlu0 %909
      %911 = vrot.lane.b32.xlu0 %v876, 9
      %v912 = vpop.permute.xlu0 %911
      %vm913 = vcmask 72704
      %v914 = vsel %vm913, %v890, %v892
      %v915 = vsel %vm913, %v892, %v894
      %v916 = vsel %vm913, %v894, %v896
      %v917 = vsel %vm913, %v896, %v898
      %v918 = vsel %vm913, %v898, %v900
      %v919 = vsel %vm913, %v902, %v904
      %v920 = vsel %vm913, %v904, %v906
      %v921 = vsel %vm913, %v906, %v908
      %v922 = vsel %vm913, %v908, %v910
      %v923 = vsel %vm913, %v910, %v912
      %v936 = vadd.f32 %v840, %v890
      %v937 = vadd.f32 %v841, %v914
      %v938 = vadd.f32 %v842, %v915
      %v939 = vadd.f32 %v843, %v916
      %v940 = vadd.f32 %v844, %v917
      %v941 = vadd.f32 %v845, %v918
      %v942 = vadd.f32 %v846, %v902
      %v943 = vadd.f32 %v847, %v919
      %v944 = vadd.f32 %v848, %v920
      %v945 = vadd.f32 %v849, %v921
      %v946 = vadd.f32 %v850, %v922
      %v947 = vadd.f32 %v851, %v923
      %s948 = scalar_lea.vmem %s1, 80
      %v949 = vld [vmem:[%s948] sm:$0xff]
      %v950 = vld [vmem:[%s948 + $0x8] sm:$0x3]
      %952 = vset.pattern.permute.xlu0 0
      %953 = vperm.xlu0 %952, %v949
      %v954 = vpop.permute.xlu0 %953
      %957 = vset.pattern.permute.xlu0 0
      %958 = vperm.xlu0 %957, %v950
      %v959 = vpop.permute.xlu0 %958
      %v961 = vlaneseq
      %v962 = vshrl.u32 %v961, 7
      %v963 = vsub.s32 0, %v962
      %v964 = vrot.slane %v470, %v963
      %v965 = vlaneseq
      %v966 = vshrl.u32 %v965, 7
      %v967 = vsub.s32 0, %v966
      %v968 = vrot.slane %v474, %v967
      %v969 = vlaneseq
      %v970 = vshrl.u32 %v969, 7
      %v971 = vsub.s32 0, %v970
      %v972 = vrot.slane %v478, %v971
      %v973 = vlaneseq
      %v974 = vshrl.u32 %v973, 7
      %v975 = vsub.s32 0, %v974
      %v976 = vrot.slane %v482, %v975
      %v977 = vlaneseq
      %v978 = vshrl.u32 %v977, 7
      %v979 = vsub.s32 0, %v978
      %v980 = vrot.slane %v486, %v979
      %v981 = vmul.f32 %v954, %v964
      %v982 = vmul.f32 %v954, %v968
      %v983 = vmul.f32 %v954, %v972
      %v984 = vmul.f32 %v954, %v976
      %v985 = vmul.f32 %v954, %v980
      %v986 = vmul.f32 %v954, %v531
      %v987 = vmul.f32 %v959, %v964
      %v988 = vmul.f32 %v959, %v968
      %v989 = vmul.f32 %v959, %v972
      %v990 = vmul.f32 %v959, %v976
      %v991 = vmul.f32 %v959, %v980
      %v992 = vmul.f32 %v959, %v531
      %1005 = vrot.lane.b32.xlu0 %v981, 8
      %v1006 = vpop.permute.xlu0 %1005
      %1007 = vrot.lane.b32.xlu0 %v982, 8
      %v1008 = vpop.permute.xlu0 %1007
      %1009 = vrot.lane.b32.xlu0 %v983, 8
      %v1010 = vpop.permute.xlu0 %1009
      %1011 = vrot.lane.b32.xlu0 %v984, 8
      %v1012 = vpop.permute.xlu0 %1011
      %1013 = vrot.lane.b32.xlu0 %v985, 8
      %v1014 = vpop.permute.xlu0 %1013
      %1015 = vrot.lane.b32.xlu0 %v986, 8
      %v1016 = vpop.permute.xlu0 %1015
      %1017 = vrot.lane.b32.xlu0 %v987, 8
      %v1018 = vpop.permute.xlu0 %1017
      %1019 = vrot.lane.b32.xlu0 %v988, 8
      %v1020 = vpop.permute.xlu0 %1019
      %1021 = vrot.lane.b32.xlu0 %v989, 8
      %v1022 = vpop.permute.xlu0 %1021
      %1023 = vrot.lane.b32.xlu0 %v990, 8
      %v1024 = vpop.permute.xlu0 %1023
      %1025 = vrot.lane.b32.xlu0 %v991, 8
      %v1026 = vpop.permute.xlu0 %1025
      %1027 = vrot.lane.b32.xlu0 %v992, 8
      %v1028 = vpop.permute.xlu0 %1027
      %vm1029 = vcmask 64512
      %v1030 = vsel %vm1029, %v1006, %v1008
      %v1031 = vsel %vm1029, %v1008, %v1010
      %v1032 = vsel %vm1029, %v1010, %v1012
      %v1033 = vsel %vm1029, %v1012, %v1014
      %v1034 = vsel %vm1029, %v1014, %v1016
      %v1035 = vsel %vm1029, %v1018, %v1020
      %v1036 = vsel %vm1029, %v1020, %v1022
      %v1037 = vsel %vm1029, %v1022, %v1024
      %v1038 = vsel %vm1029, %v1024, %v1026
      %v1039 = vsel %vm1029, %v1026, %v1028
      %v1052 = vadd.f32 %v936, %v1006
      %v1053 = vadd.f32 %v937, %v1030
      %v1054 = vadd.f32 %v938, %v1031
      %v1055 = vadd.f32 %v939, %v1032
      %v1056 = vadd.f32 %v940, %v1033
      %v1057 = vadd.f32 %v941, %v1034
      %v1058 = vadd.f32 %v942, %v1018
      %v1059 = vadd.f32 %v943, %v1035
      %v1060 = vadd.f32 %v944, %v1036
      %v1061 = vadd.f32 %v945, %v1037
      %v1062 = vadd.f32 %v946, %v1038
      %v1063 = vadd.f32 %v947, %v1039
      %s1064 = scalar_lea.vmem %s1, 96
      %v1065 = vld [vmem:[%s1064] sm:$0xff]
      %v1066 = vld [vmem:[%s1064 + $0x8] sm:$0x3]
      %1068 = vset.pattern.permute.xlu0 0
      %1069 = vperm.xlu0 %1068, %v1065
      %v1070 = vpop.permute.xlu0 %1069
      %1073 = vset.pattern.permute.xlu0 0
      %1074 = vperm.xlu0 %1073, %v1066
      %v1075 = vpop.permute.xlu0 %1074
      %v1077 = vmul.f32 %v1070, %v964
      %v1078 = vmul.f32 %v1070, %v968
      %v1079 = vmul.f32 %v1070, %v972
      %v1080 = vmul.f32 %v1070, %v976
      %v1081 = vmul.f32 %v1070, %v980
      %v1082 = vmul.f32 %v1070, %v531
      %v1083 = vmul.f32 %v1075, %v964
      %v1084 = vmul.f32 %v1075, %v968
      %v1085 = vmul.f32 %v1075, %v972
      %v1086 = vmul.f32 %v1075, %v976
      %v1087 = vmul.f32 %v1075, %v980
      %v1088 = vmul.f32 %v1075, %v531
      %1101 = vrot.lane.b32.xlu0 %v1077, 112
      %v1102 = vpop.permute.xlu0 %1101
      %1103 = vrot.lane.b32.xlu0 %v1078, 112
      %v1104 = vpop.permute.xlu0 %1103
      %1105 = vrot.lane.b32.xlu0 %v1079, 112
      %v1106 = vpop.permute.xlu0 %1105
      %1107 = vrot.lane.b32.xlu0 %v1080, 112
      %v1108 = vpop.permute.xlu0 %1107
      %1109 = vrot.lane.b32.xlu0 %v1081, 112
      %v1110 = vpop.permute.xlu0 %1109
      %1111 = vrot.lane.b32.xlu0 %v1082, 112
      %v1112 = vpop.permute.xlu0 %1111
      %1113 = vrot.lane.b32.xlu0 %v1083, 112
      %v1114 = vpop.permute.xlu0 %1113
      %1115 = vrot.lane.b32.xlu0 %v1084, 112
      %v1116 = vpop.permute.xlu0 %1115
      %1117 = vrot.lane.b32.xlu0 %v1085, 112
      %v1118 = vpop.permute.xlu0 %1117
      %1119 = vrot.lane.b32.xlu0 %v1086, 112
      %v1120 = vpop.permute.xlu0 %1119
      %1121 = vrot.lane.b32.xlu0 %v1087, 112
      %v1122 = vpop.permute.xlu0 %1121
      %1123 = vrot.lane.b32.xlu0 %v1088, 112
      %v1124 = vpop.permute.xlu0 %1123
      %vm1125 = vcmask 916480
      %v1126 = vsel %vm1125, %v1102, %v1104
      %v1127 = vsel %vm1125, %v1104, %v1106
      %v1128 = vsel %vm1125, %v1106, %v1108
      %v1129 = vsel %vm1125, %v1108, %v1110
      %v1130 = vsel %vm1125, %v1110, %v1112
      %v1131 = vsel %vm1125, %v1114, %v1116
      %v1132 = vsel %vm1125, %v1116, %v1118
      %v1133 = vsel %vm1125, %v1118, %v1120
      %v1134 = vsel %vm1125, %v1120, %v1122
      %v1135 = vsel %vm1125, %v1122, %v1124
      %v1148 = vadd.f32 %v1052, %v1126
      %v1149 = vadd.f32 %v1053, %v1127
      %v1150 = vadd.f32 %v1054, %v1128
      %v1151 = vadd.f32 %v1055, %v1129
      %v1152 = vadd.f32 %v1056, %v1130
      %v1153 = vadd.f32 %v1057, %v1112
      %v1154 = vadd.f32 %v1058, %v1131
      %v1155 = vadd.f32 %v1059, %v1132
      %v1156 = vadd.f32 %v1060, %v1133
      %v1157 = vadd.f32 %v1061, %v1134
      %v1158 = vadd.f32 %v1062, %v1135
      %v1159 = vadd.f32 %v1063, %v1124
      %s1160 = scalar_lea.vmem %s1, 112
      %v1161 = vld [vmem:[%s1160] sm:$0xff]
      %v1162 = vld [vmem:[%s1160 + $0x8] sm:$0x3]
      %1164 = vset.pattern.permute.xlu0 0
      %1165 = vperm.xlu0 %1164, %v1161
      %v1166 = vpop.permute.xlu0 %1165
      %1169 = vset.pattern.permute.xlu0 0
      %1170 = vperm.xlu0 %1169, %v1162
      %v1171 = vpop.permute.xlu0 %1170
      %v1173 = vmul.f32 %v1166, %v964
      %v1174 = vmul.f32 %v1166, %v968
      %v1175 = vmul.f32 %v1166, %v972
      %v1176 = vmul.f32 %v1166, %v976
      %v1177 = vmul.f32 %v1166, %v980
      %v1178 = vmul.f32 %v1166, %v531
      %v1179 = vmul.f32 %v1171, %v964
      %v1180 = vmul.f32 %v1171, %v968
      %v1181 = vmul.f32 %v1171, %v972
      %v1182 = vmul.f32 %v1171, %v976
      %v1183 = vmul.f32 %v1171, %v980
      %v1184 = vmul.f32 %v1171, %v531
      %1197 = vrot.lane.b32.xlu0 %v1173, 111
      %v1198 = vpop.permute.xlu0 %1197
      %1199 = vrot.lane.b32.xlu0 %v1174, 111
      %v1200 = vpop.permute.xlu0 %1199
      %1201 = vrot.lane.b32.xlu0 %v1175, 111
      %v1202 = vpop.permute.xlu0 %1201
      %1203 = vrot.lane.b32.xlu0 %v1176, 111
      %v1204 = vpop.permute.xlu0 %1203
      %1205 = vrot.lane.b32.xlu0 %v1177, 111
      %v1206 = vpop.permute.xlu0 %1205
      %1207 = vrot.lane.b32.xlu0 %v1178, 111
      %v1208 = vpop.permute.xlu0 %1207
      %1209 = vrot.lane.b32.xlu0 %v1179, 111
      %v1210 = vpop.permute.xlu0 %1209
      %1211 = vrot.lane.b32.xlu0 %v1180, 111
      %v1212 = vpop.permute.xlu0 %1211
      %1213 = vrot.lane.b32.xlu0 %v1181, 111
      %v1214 = vpop.permute.xlu0 %1213
      %1215 = vrot.lane.b32.xlu0 %v1182, 111
      %v1216 = vpop.permute.xlu0 %1215
      %1217 = vrot.lane.b32.xlu0 %v1183, 111
      %v1218 = vpop.permute.xlu0 %1217
      %1219 = vrot.lane.b32.xlu0 %v1184, 111
      %v1220 = vpop.permute.xlu0 %1219
      %vm1221 = vcmask 908288
      %v1222 = vsel %vm1221, %v1198, %v1200
      %v1223 = vsel %vm1221, %v1200, %v1202
      %v1224 = vsel %vm1221, %v1202, %v1204
      %v1225 = vsel %vm1221, %v1204, %v1206
      %v1226 = vsel %vm1221, %v1206, %v1208
      %v1227 = vsel %vm1221, %v1210, %v1212
      %v1228 = vsel %vm1221, %v1212, %v1214
      %v1229 = vsel %vm1221, %v1214, %v1216
      %v1230 = vsel %vm1221, %v1216, %v1218
      %v1231 = vsel %vm1221, %v1218, %v1220
      %v1244 = vadd.f32 %v1148, %v1222
      %v1245 = vadd.f32 %v1149, %v1223
      %v1246 = vadd.f32 %v1150, %v1224
      %v1247 = vadd.f32 %v1151, %v1225
      %v1248 = vadd.f32 %v1152, %v1226
      %v1249 = vadd.f32 %v1153, %v1208
      %v1250 = vadd.f32 %v1154, %v1227
      %v1251 = vadd.f32 %v1155, %v1228
      %v1252 = vadd.f32 %v1156, %v1229
      %v1253 = vadd.f32 %v1157, %v1230
      %v1254 = vadd.f32 %v1158, %v1231
      %v1255 = vadd.f32 %v1159, %v1220
      %s1256 = scalar_lea.vmem %s1, 128
      %v1257 = vld [vmem:[%s1256] sm:$0xff]
      %v1258 = vld [vmem:[%s1256 + $0x8] sm:$0x3]
      %1260 = vset.pattern.permute.xlu0 0
      %1261 = vperm.xlu0 %1260, %v1257
      %v1262 = vpop.permute.xlu0 %1261
      %1265 = vset.pattern.permute.xlu0 0
      %1266 = vperm.xlu0 %1265, %v1258
      %v1267 = vpop.permute.xlu0 %1266
      %v1269 = vmul.f32 %v1262, %v964
      %v1270 = vmul.f32 %v1262, %v968
      %v1271 = vmul.f32 %v1262, %v972
      %v1272 = vmul.f32 %v1262, %v976
      %v1273 = vmul.f32 %v1262, %v980
      %v1274 = vmul.f32 %v1262, %v531
      %v1275 = vmul.f32 %v1267, %v964
      %v1276 = vmul.f32 %v1267, %v968
      %v1277 = vmul.f32 %v1267, %v972
      %v1278 = vmul.f32 %v1267, %v976
      %v1279 = vmul.f32 %v1267, %v980
      %v1280 = vmul.f32 %v1267, %v531
      %1293 = vrot.lane.b32.xlu0 %v1269, 110
      %v1294 = vpop.permute.xlu0 %1293
      %1295 = vrot.lane.b32.xlu0 %v1270, 110
      %v1296 = vpop.permute.xlu0 %1295
      %1297 = vrot.lane.b32.xlu0 %v1271, 110
      %v1298 = vpop.permute.xlu0 %1297
      %1299 = vrot.lane.b32.xlu0 %v1272, 110
      %v1300 = vpop.permute.xlu0 %1299
      %1301 = vrot.lane.b32.xlu0 %v1273, 110
      %v1302 = vpop.permute.xlu0 %1301
      %1303 = vrot.lane.b32.xlu0 %v1274, 110
      %v1304 = vpop.permute.xlu0 %1303
      %1305 = vrot.lane.b32.xlu0 %v1275, 110
      %v1306 = vpop.permute.xlu0 %1305
      %1307 = vrot.lane.b32.xlu0 %v1276, 110
      %v1308 = vpop.permute.xlu0 %1307
      %1309 = vrot.lane.b32.xlu0 %v1277, 110
      %v1310 = vpop.permute.xlu0 %1309
      %1311 = vrot.lane.b32.xlu0 %v1278, 110
      %v1312 = vpop.permute.xlu0 %1311
      %1313 = vrot.lane.b32.xlu0 %v1279, 110
      %v1314 = vpop.permute.xlu0 %1313
      %1315 = vrot.lane.b32.xlu0 %v1280, 110
      %v1316 = vpop.permute.xlu0 %1315
      %vm1317 = vcmask 900096
      %v1318 = vsel %vm1317, %v1294, %v1296
      %v1319 = vsel %vm1317, %v1296, %v1298
      %v1320 = vsel %vm1317, %v1298, %v1300
      %v1321 = vsel %vm1317, %v1300, %v1302
      %v1322 = vsel %vm1317, %v1302, %v1304
      %v1323 = vsel %vm1317, %v1306, %v1308
      %v1324 = vsel %vm1317, %v1308, %v1310
      %v1325 = vsel %vm1317, %v1310, %v1312
      %v1326 = vsel %vm1317, %v1312, %v1314
      %v1327 = vsel %vm1317, %v1314, %v1316
      %v1340 = vadd.f32 %v1244, %v1318
      %v1341 = vadd.f32 %v1245, %v1319
      %v1342 = vadd.f32 %v1246, %v1320
      %v1343 = vadd.f32 %v1247, %v1321
      %v1344 = vadd.f32 %v1248, %v1322
      %v1345 = vadd.f32 %v1249, %v1304
      %v1346 = vadd.f32 %v1250, %v1323
      %v1347 = vadd.f32 %v1251, %v1324
      %v1348 = vadd.f32 %v1252, %v1325
      %v1349 = vadd.f32 %v1253, %v1326
      %v1350 = vadd.f32 %v1254, %v1327
      %v1351 = vadd.f32 %v1255, %v1316
      %v1352 = vld [vmem:[%s2] sm:$0xff]
      %v1353 = vld [vmem:[%s2 + $0x8] sm:$0x3]
      %1355 = vset.pattern.permute.xlu0 0
      %1356 = vperm.xlu0 %1355, %v1352
      %v1357 = vpop.permute.xlu0 %1356
      %1360 = vset.pattern.permute.xlu0 0
      %1361 = vperm.xlu0 %1360, %v1353
      %v1362 = vpop.permute.xlu0 %1361
      %v1364 = vadd.f32 %v1340, %v1357
      %v1365 = vadd.f32 %v1341, %v1357
      %v1366 = vadd.f32 %v1342, %v1357
      %v1367 = vadd.f32 %v1343, %v1357
      %v1368 = vadd.f32 %v1344, %v1357
      %v1369 = vadd.f32 %v1345, %v1357
      %v1370 = vadd.f32 %v1346, %v1362
      %v1371 = vadd.f32 %v1347, %v1362
      %v1372 = vadd.f32 %v1348, %v1362
      %v1373 = vadd.f32 %v1349, %v1362
      %v1374 = vadd.f32 %v1350, %v1362
      %v1375 = vadd.f32 %v1351, %v1362
      %v1376 = vmax.f32 %v1364, 0.0
      %v1377 = vmax.f32 %v1365, 0.0
      %v1378 = vmax.f32 %v1366, 0.0
      %v1379 = vmax.f32 %v1367, 0.0
      %v1380 = vmax.f32 %v1368, 0.0
      %v1381 = vmax.f32 %v1369, 0.0
      %v1382 = vmax.f32 %v1370, 0.0
      %v1383 = vmax.f32 %v1371, 0.0
      %v1384 = vmax.f32 %v1372, 0.0
      %v1385 = vmax.f32 %v1373, 0.0
      %v1386 = vmax.f32 %v1374, 0.0
      %v1387 = vmax.f32 %v1375, 0.0
      %1400 = vrot.lane.b32.xlu0 %v1376, 119
      %v1401 = vpop.permute.xlu0 %1400
      %1402 = vrot.lane.b32.xlu0 %v1377, 119
      %v1403 = vpop.permute.xlu0 %1402
      %1404 = vrot.lane.b32.xlu0 %v1378, 119
      %v1405 = vpop.permute.xlu0 %1404
      %1406 = vrot.lane.b32.xlu0 %v1379, 119
      %v1407 = vpop.permute.xlu0 %1406
      %1408 = vrot.lane.b32.xlu0 %v1380, 119
      %v1409 = vpop.permute.xlu0 %1408
      %1410 = vrot.lane.b32.xlu0 %v1381, 119
      %v1411 = vpop.permute.xlu0 %1410
      %1412 = vrot.lane.b32.xlu0 %v1382, 119
      %v1413 = vpop.permute.xlu0 %1412
      %1414 = vrot.lane.b32.xlu0 %v1383, 119
      %v1415 = vpop.permute.xlu0 %1414
      %1416 = vrot.lane.b32.xlu0 %v1384, 119
      %v1417 = vpop.permute.xlu0 %1416
      %1418 = vrot.lane.b32.xlu0 %v1385, 119
      %v1419 = vpop.permute.xlu0 %1418
      %1420 = vrot.lane.b32.xlu0 %v1386, 119
      %v1421 = vpop.permute.xlu0 %1420
      %1422 = vrot.lane.b32.xlu0 %v1387, 119
      %v1423 = vpop.permute.xlu0 %1422
      %vm1424 = vcmask 973824
      %v1425 = vsel %vm1424, %v1401, %v1403
      %v1426 = vsel %vm1424, %v1403, %v1405
      %v1427 = vsel %vm1424, %v1405, %v1407
      %v1428 = vsel %vm1424, %v1407, %v1409
      %v1429 = vsel %vm1424, %v1409, %v1411
      %v1430 = vsel %vm1424, %v1413, %v1415
      %v1431 = vsel %vm1424, %v1415, %v1417
      %v1432 = vsel %vm1424, %v1417, %v1419
      %v1433 = vsel %vm1424, %v1419, %v1421
      %v1434 = vsel %vm1424, %v1421, %v1423
      %1439 = vrot.lane.b32.xlu0 %v1425, 36
      %v1440 = vpop.permute.xlu0 %1439
      %1441 = vrot.lane.b32.xlu0 %v1430, 36
      %v1442 = vpop.permute.xlu0 %1441
      %v1443 = vsel %vm497, %v1440, %v1411
      %v1444 = vsel %vm497, %v1442, %v1423
      %1447 = vrot.lane.b32.xlu0 %v1425, 8
      %v1448 = vpop.permute.xlu0 %1447
      %1449 = vrot.lane.b32.xlu0 %v1426, 8
      %v1450 = vpop.permute.xlu0 %1449
      %1451 = vrot.lane.b32.xlu0 %v1427, 8
      %v1452 = vpop.permute.xlu0 %1451
      %1453 = vrot.lane.b32.xlu0 %v1428, 8
      %v1454 = vpop.permute.xlu0 %1453
      %1455 = vrot.lane.b32.xlu0 %v1429, 8
      %v1456 = vpop.permute.xlu0 %1455
      %1457 = vrot.lane.b32.xlu0 %v1443, 8
      %v1458 = vpop.permute.xlu0 %1457
      %1459 = vrot.lane.b32.xlu0 %v1430, 8
      %v1460 = vpop.permute.xlu0 %1459
      %1461 = vrot.lane.b32.xlu0 %v1431, 8
      %v1462 = vpop.permute.xlu0 %1461
      %1463 = vrot.lane.b32.xlu0 %v1432, 8
      %v1464 = vpop.permute.xlu0 %1463
      %1465 = vrot.lane.b32.xlu0 %v1433, 8
      %v1466 = vpop.permute.xlu0 %1465
      %1467 = vrot.lane.b32.xlu0 %v1434, 8
      %v1468 = vpop.permute.xlu0 %1467
      %1469 = vrot.lane.b32.xlu0 %v1444, 8
      %v1470 = vpop.permute.xlu0 %1469
      %v1471 = vsel %vm1029, %v1448, %v1450
      %v1472 = vsel %vm1029, %v1450, %v1452
      %v1473 = vsel %vm1029, %v1452, %v1454
      %v1474 = vsel %vm1029, %v1454, %v1456
      %v1475 = vsel %vm1029, %v1456, %v1458
      %v1476 = vsel %vm1029, %v1460, %v1462
      %v1477 = vsel %vm1029, %v1462, %v1464
      %v1478 = vsel %vm1029, %v1464, %v1466
      %v1479 = vsel %vm1029, %v1466, %v1468
      %v1480 = vsel %vm1029, %v1468, %v1470
      %v1493 = vmax.f32 %v1376, %v1448
      %v1494 = vmax.f32 %v1377, %v1471
      %v1495 = vmax.f32 %v1378, %v1472
      %v1496 = vmax.f32 %v1379, %v1473
      %v1497 = vmax.f32 %v1380, %v1474
      %v1498 = vmax.f32 %v1381, %v1475
      %v1499 = vmax.f32 %v1382, %v1460
      %v1500 = vmax.f32 %v1383, %v1476
      %v1501 = vmax.f32 %v1384, %v1477
      %v1502 = vmax.f32 %v1385, %v1478
      %v1503 = vmax.f32 %v1386, %v1479
      %v1504 = vmax.f32 %v1387, %v1480
      %1517 = vrot.lane.b32.xlu0 %v1493, 119
      %v1518 = vpop.permute.xlu0 %1517
      %1519 = vrot.lane.b32.xlu0 %v1494, 119
      %v1520 = vpop.permute.xlu0 %1519
      %1521 = vrot.lane.b32.xlu0 %v1495, 119
      %v1522 = vpop.permute.xlu0 %1521
      %1523 = vrot.lane.b32.xlu0 %v1496, 119
      %v1524 = vpop.permute.xlu0 %1523
      %1525 = vrot.lane.b32.xlu0 %v1497, 119
      %v1526 = vpop.permute.xlu0 %1525
      %1527 = vrot.lane.b32.xlu0 %v1498, 119
      %v1528 = vpop.permute.xlu0 %1527
      %1529 = vrot.lane.b32.xlu0 %v1499, 119
      %v1530 = vpop.permute.xlu0 %1529
      %1531 = vrot.lane.b32.xlu0 %v1500, 119
      %v1532 = vpop.permute.xlu0 %1531
      %1533 = vrot.lane.b32.xlu0 %v1501, 119
      %v1534 = vpop.permute.xlu0 %1533
      %1535 = vrot.lane.b32.xlu0 %v1502, 119
      %v1536 = vpop.permute.xlu0 %1535
      %1537 = vrot.lane.b32.xlu0 %v1503, 119
      %v1538 = vpop.permute.xlu0 %1537
      %1539 = vrot.lane.b32.xlu0 %v1504, 119
      %v1540 = vpop.permute.xlu0 %1539
      %v1541 = vsel %vm1424, %v1518, %v1520
      %v1542 = vsel %vm1424, %v1520, %v1522
      %v1543 = vsel %vm1424, %v1522, %v1524
      %v1544 = vsel %vm1424, %v1524, %v1526
      %v1545 = vsel %vm1424, %v1526, %v1528
      %v1546 = vsel %vm1424, %v1530, %v1532
      %v1547 = vsel %vm1424, %v1532, %v1534
      %v1548 = vsel %vm1424, %v1534, %v1536
      %v1549 = vsel %vm1424, %v1536, %v1538
      %v1550 = vsel %vm1424, %v1538, %v1540
      %1555 = vrot.lane.b32.xlu0 %v1541, 36
      %v1556 = vpop.permute.xlu0 %1555
      %1557 = vrot.lane.b32.xlu0 %v1546, 36
      %v1558 = vpop.permute.xlu0 %1557
      %v1559 = vsel %vm497, %v1556, %v1528
      %v1560 = vsel %vm497, %v1558, %v1540
      %1563 = vrot.lane.b32.xlu0 %v1541, 111
      %v1564 = vpop.permute.xlu0 %1563
      %1565 = vrot.lane.b32.xlu0 %v1542, 111
      %v1566 = vpop.permute.xlu0 %1565
      %1567 = vrot.lane.b32.xlu0 %v1543, 111
      %v1568 = vpop.permute.xlu0 %1567
      %1569 = vrot.lane.b32.xlu0 %v1544, 111
      %v1570 = vpop.permute.xlu0 %1569
      %1571 = vrot.lane.b32.xlu0 %v1545, 111
      %v1572 = vpop.permute.xlu0 %1571
      %1573 = vrot.lane.b32.xlu0 %v1559, 111
      %v1574 = vpop.permute.xlu0 %1573
      %1575 = vrot.lane.b32.xlu0 %v1546, 111
      %v1576 = vpop.permute.xlu0 %1575
      %1577 = vrot.lane.b32.xlu0 %v1547, 111
      %v1578 = vpop.permute.xlu0 %1577
      %1579 = vrot.lane.b32.xlu0 %v1548, 111
      %v1580 = vpop.permute.xlu0 %1579
      %1581 = vrot.lane.b32.xlu0 %v1549, 111
      %v1582 = vpop.permute.xlu0 %1581
      %1583 = vrot.lane.b32.xlu0 %v1550, 111
      %v1584 = vpop.permute.xlu0 %1583
      %1585 = vrot.lane.b32.xlu0 %v1560, 111
      %v1586 = vpop.permute.xlu0 %1585
      %v1587 = vsel %vm1221, %v1564, %v1566
      %v1588 = vsel %vm1221, %v1566, %v1568
      %v1589 = vsel %vm1221, %v1568, %v1570
      %v1590 = vsel %vm1221, %v1570, %v1572
      %v1591 = vsel %vm1221, %v1572, %v1574
      %v1592 = vsel %vm1221, %v1576, %v1578
      %v1593 = vsel %vm1221, %v1578, %v1580
      %v1594 = vsel %vm1221, %v1580, %v1582
      %v1595 = vsel %vm1221, %v1582, %v1584
      %v1596 = vsel %vm1221, %v1584, %v1586
      %v1609 = vmax.f32 %v1493, %v1587
      %v1610 = vmax.f32 %v1494, %v1588
      %v1611 = vmax.f32 %v1495, %v1589
      %v1612 = vmax.f32 %v1496, %v1590
      %v1613 = vmax.f32 %v1497, %v1591
      %v1614 = vmax.f32 %v1498, %v1574
      %v1615 = vmax.f32 %v1499, %v1592
      %v1616 = vmax.f32 %v1500, %v1593
      %v1617 = vmax.f32 %v1501, %v1594
      %v1618 = vmax.f32 %v1502, %v1595
      %v1619 = vmax.f32 %v1503, %v1596
      %v1620 = vmax.f32 %v1504, %v1586
      %v1621 = vld [vmem:[%s3] sm:$0xff]
      %v1622 = vld [vmem:[%s3 + $0x8] sm:$0xff]
      %v1623 = vld [vmem:[%s3 + $0x10] sm:$0xff]
      %v1624 = vld [vmem:[%s3 + $0x18] sm:$0xff]
      %v1625 = vld [vmem:[%s3 + $0x20] sm:$0xff]
      %v1626 = vld [vmem:[%s3 + $0x28] sm:$0xff]
      %v1627 = vld [vmem:[%s3 + $0x30] sm:$0xff]
      %v1628 = vld [vmem:[%s3 + $0x38] sm:$0xff]
      %v1629 = vld [vmem:[%s3 + $0x40] sm:$0xff]
      %v1630 = vld [vmem:[%s3 + $0x48] sm:$0xff]
      %v1631 = vld [vmem:[%s3 + $0x50] sm:$0xff]
      %v1632 = vld [vmem:[%s3 + $0x58] sm:$0xff]
      %v1633 = vld [vmem:[%s3 + $0x60] sm:$0xff]
      %v1634 = vld [vmem:[%s3 + $0x68] sm:$0xff]
      %v1635 = vld [vmem:[%s3 + $0x70] sm:$0xff]
      %v1636 = vld [vmem:[%s3 + $0x78] sm:$0xff]
      %v1637 = vld [vmem:[%s3 + $0x80] sm:$0xff]
      %v1638 = vld [vmem:[%s3 + $0x88] sm:$0xff]
      %v1639 = vld [vmem:[%s3 + $0x90] sm:$0xff]
      %v1640 = vld [vmem:[%s3 + $0x98] sm:$0xff]
      %v1641 = vld [vmem:[%s3 + $0xa0] sm:$0xff]
      %v1642 = vld [vmem:[%s3 + $0xa8] sm:$0xff]
      %v1643 = vld [vmem:[%s3 + $0xb0] sm:$0xff]
      %v1644 = vld [vmem:[%s3 + $0xb8] sm:$0xff]
      %v1645 = vld [vmem:[%s3 + $0xc0] sm:$0xff]
      %v1646 = vld [vmem:[%s3 + $0xc8] sm:$0xff]
      %v1647 = vld [vmem:[%s3 + $0xd0] sm:$0xff]
      %v1648 = vld [vmem:[%s3 + $0xd8] sm:$0xff]
      %v1649 = vld [vmem:[%s3 + $0xe0] sm:$0xff]
      %v1650 = vld [vmem:[%s3 + $0xe8] sm:$0xff]
      %v1651 = vld [vmem:[%s3 + $0xf0] sm:$0xff]
      %v1652 = vld [vmem:[%s3 + $0xf8] sm:$0xff]
      %v1653 = vld [vmem:[%s3 + $0x100] sm:$0xff]
      %v1654 = vld [vmem:[%s3 + $0x108] sm:$0xff]
      %v1655 = vld [vmem:[%s3 + $0x110] sm:$0xff]
      %v1656 = vld [vmem:[%s3 + $0x118] sm:$0xff]
      %v1657 = vld [vmem:[%s3 + $0x120] sm:$0xff]
      %v1658 = vld [vmem:[%s3 + $0x128] sm:$0xff]
      %v1659 = vld [vmem:[%s3 + $0x130] sm:$0xff]
      %v1660 = vld [vmem:[%s3 + $0x138] sm:$0xff]
      %v1661 = vld [vmem:[%s3 + $0x140] sm:$0xff]
      %v1662 = vld [vmem:[%s3 + $0x148] sm:$0xff]
      %v1663 = vld [vmem:[%s3 + $0x150] sm:$0xff]
      %v1664 = vld [vmem:[%s3 + $0x158] sm:$0xff]
      %v1665 = vld [vmem:[%s3 + $0x160] sm:$0xff]
      %v1666 = vld [vmem:[%s3 + $0x168] sm:$0xff]
      %v1667 = vld [vmem:[%s3 + $0x170] sm:$0xff]
      %v1668 = vld [vmem:[%s3 + $0x178] sm:$0xff]
      %v1669 = vld [vmem:[%s3 + $0x180] sm:$0xff]
      %v1670 = vld [vmem:[%s3 + $0x188] sm:$0xff]
      %v1671 = vld [vmem:[%s3 + $0x190] sm:$0xff]
      %v1672 = vld [vmem:[%s3 + $0x198] sm:$0xff]
      %v1673 = vld [vmem:[%s3 + $0x1a0] sm:$0xff]
      %v1674 = vld [vmem:[%s3 + $0x1a8] sm:$0xff]
      %v1675 = vld [vmem:[%s3 + $0x1b0] sm:$0xff]
      %v1676 = vld [vmem:[%s3 + $0x1b8] sm:$0xff]
      %v1677 = vld [vmem:[%s3 + $0x1c0] sm:$0xff]
      %v1678 = vld [vmem:[%s3 + $0x1c8] sm:$0xff]
      %v1679 = vld [vmem:[%s3 + $0x1d0] sm:$0xff]
      %v1680 = vld [vmem:[%s3 + $0x1d8] sm:$0xff]
      %v1681 = vld [vmem:[%s3 + $0x1e0] sm:$0xff]
      %v1682 = vld [vmem:[%s3 + $0x1e8] sm:$0xff]
      %v1683 = vld [vmem:[%s3 + $0x1f0] sm:$0xff]
      %v1684 = vld [vmem:[%s3 + $0x1f8] sm:$0xff]
      %v1685 = vld [vmem:[%s3 + $0x200] sm:$0xff]
      %v1686 = vld [vmem:[%s3 + $0x208] sm:$0xff]
      %v1687 = vld [vmem:[%s3 + $0x210] sm:$0xff]
      %v1688 = vld [vmem:[%s3 + $0x218] sm:$0xff]
      %v1689 = vld [vmem:[%s3 + $0x220] sm:$0xff]
      %v1690 = vld [vmem:[%s3 + $0x228] sm:$0xff]
      %v1691 = vld [vmem:[%s3 + $0x230] sm:$0xff]
      %v1692 = vld [vmem:[%s3 + $0x238] sm:$0xff]
      %v1693 = vld [vmem:[%s3 + $0x240] sm:$0xff]
      %v1694 = vld [vmem:[%s3 + $0x248] sm:$0xff]
      %v1695 = vld [vmem:[%s3 + $0x250] sm:$0xff]
      %v1696 = vld [vmem:[%s3 + $0x258] sm:$0xff]
      %v1697 = vld [vmem:[%s3 + $0x260] sm:$0xff]
      %v1698 = vld [vmem:[%s3 + $0x268] sm:$0xff]
      %v1699 = vld [vmem:[%s3 + $0x270] sm:$0xff]
      %v1700 = vld [vmem:[%s3 + $0x278] sm:$0xff]
      %v1701 = vld [vmem:[%s3 + $0x280] sm:$0xff]
      %v1702 = vld [vmem:[%s3 + $0x288] sm:$0xff]
      %v1703 = vld [vmem:[%s3 + $0x290] sm:$0xff]
      %v1704 = vld [vmem:[%s3 + $0x298] sm:$0xff]
      %v1705 = vld [vmem:[%s3 + $0x2a0] sm:$0xff]
      %v1706 = vld [vmem:[%s3 + $0x2a8] sm:$0xff]
      %v1707 = vld [vmem:[%s3 + $0x2b0] sm:$0xff]
      %v1708 = vld [vmem:[%s3 + $0x2b8] sm:$0xff]
      %v1709 = vld [vmem:[%s3 + $0x2c0] sm:$0xff]
      %v1710 = vld [vmem:[%s3 + $0x2c8] sm:$0xff]
      %v1711 = vld [vmem:[%s3 + $0x2d0] sm:$0xff]
      %v1712 = vld [vmem:[%s3 + $0x2d8] sm:$0xff]
      %v1713 = vld [vmem:[%s3 + $0x2e0] sm:$0xff]
      %v1714 = vld [vmem:[%s3 + $0x2e8] sm:$0xff]
      %v1715 = vld [vmem:[%s3 + $0x2f0] sm:$0xff]
      %v1716 = vld [vmem:[%s3 + $0x2f8] sm:$0xff]
      %v1717 = vld [vmem:[%s3 + $0x300] sm:$0xff]
      %v1718 = vld [vmem:[%s3 + $0x308] sm:$0xff]
      %v1719 = vld [vmem:[%s3 + $0x310] sm:$0xff]
      %v1720 = vld [vmem:[%s3 + $0x318] sm:$0xff]
      %v1721 = vld [vmem:[%s3 + $0x320] sm:$0xff]
      %v1722 = vld [vmem:[%s3 + $0x328] sm:$0xff]
      %v1723 = vld [vmem:[%s3 + $0x330] sm:$0xff]
      %v1724 = vld [vmem:[%s3 + $0x338] sm:$0xff]
      %v1725 = vld [vmem:[%s3 + $0x340] sm:$0xff]
      %v1726 = vld [vmem:[%s3 + $0x348] sm:$0xff]
      %v1727 = vld [vmem:[%s3 + $0x350] sm:$0xff]
      %v1728 = vld [vmem:[%s3 + $0x358] sm:$0xff]
      %v1729 = vld [vmem:[%s3 + $0x360] sm:$0xff]
      %v1730 = vld [vmem:[%s3 + $0x368] sm:$0xff]
      %v1731 = vld [vmem:[%s3 + $0x370] sm:$0xff]
      %v1732 = vld [vmem:[%s3 + $0x378] sm:$0xff]
      %v1733 = vld [vmem:[%s3 + $0x380] sm:$0xff]
      %v1734 = vld [vmem:[%s3 + $0x388] sm:$0xff]
      %v1735 = vld [vmem:[%s3 + $0x390] sm:$0xff]
      %v1736 = vld [vmem:[%s3 + $0x398] sm:$0xff]
      %v1737 = vld [vmem:[%s3 + $0x3a0] sm:$0xff]
      %v1738 = vld [vmem:[%s3 + $0x3a8] sm:$0xff]
      %v1739 = vld [vmem:[%s3 + $0x3b0] sm:$0xff]
      %v1740 = vld [vmem:[%s3 + $0x3b8] sm:$0xff]
      %v1741 = vld [vmem:[%s3 + $0x3c0] sm:$0xff]
      %v1742 = vld [vmem:[%s3 + $0x3c8] sm:$0xff]
      %v1743 = vld [vmem:[%s3 + $0x3d0] sm:$0xff]
      %v1744 = vld [vmem:[%s3 + $0x3d8] sm:$0xff]
      %v1745 = vld [vmem:[%s3 + $0x3e0] sm:$0xff]
      %v1746 = vld [vmem:[%s3 + $0x3e8] sm:$0xff]
      %v1747 = vld [vmem:[%s3 + $0x3f0] sm:$0xff]
      %v1748 = vld [vmem:[%s3 + $0x3f8] sm:$0xff]
      %v1749 = vld [vmem:[%s3 + $0x400] sm:$0xff]
      %v1750 = vld [vmem:[%s3 + $0x408] sm:$0xff]
      %v1751 = vld [vmem:[%s3 + $0x410] sm:$0xff]
      %v1752 = vld [vmem:[%s3 + $0x418] sm:$0xff]
      %v1753 = vld [vmem:[%s3 + $0x420] sm:$0xff]
      %v1754 = vld [vmem:[%s3 + $0x428] sm:$0xff]
      %v1755 = vld [vmem:[%s3 + $0x430] sm:$0xff]
      %v1756 = vld [vmem:[%s3 + $0x438] sm:$0xff]
      %v1757 = vld [vmem:[%s3 + $0x440] sm:$0xff]
      %v1758 = vld [vmem:[%s3 + $0x448] sm:$0xff]
      %v1759 = vld [vmem:[%s3 + $0x450] sm:$0xff]
      %v1760 = vld [vmem:[%s3 + $0x458] sm:$0xff]
      %v1761 = vld [vmem:[%s3 + $0x460] sm:$0xff]
      %v1762 = vld [vmem:[%s3 + $0x468] sm:$0xff]
      %v1763 = vld [vmem:[%s3 + $0x470] sm:$0xff]
      %v1764 = vld [vmem:[%s3 + $0x478] sm:$0xff]
      %v1765 = vld [vmem:[%s3 + $0x480] sm:$0xff]
      %v1766 = vld [vmem:[%s3 + $0x488] sm:$0xff]
      %v1767 = vld [vmem:[%s3 + $0x490] sm:$0xff]
      %v1768 = vld [vmem:[%s3 + $0x498] sm:$0xff]
      %v1769 = vld [vmem:[%s3 + $0x4a0] sm:$0xff]
      %v1770 = vld [vmem:[%s3 + $0x4a8] sm:$0xff]
      %v1771 = vld [vmem:[%s3 + $0x4b0] sm:$0xff]
      %v1772 = vld [vmem:[%s3 + $0x4b8] sm:$0xff]
      %v1773 = vld [vmem:[%s3 + $0x4c0] sm:$0xff]
      %v1774 = vld [vmem:[%s3 + $0x4c8] sm:$0xff]
      %v1775 = vld [vmem:[%s3 + $0x4d0] sm:$0xff]
      %v1776 = vld [vmem:[%s3 + $0x4d8] sm:$0xff]
      %v1777 = vld [vmem:[%s3 + $0x4e0] sm:$0xff]
      %v1778 = vld [vmem:[%s3 + $0x4e8] sm:$0xff]
      %v1779 = vld [vmem:[%s3 + $0x4f0] sm:$0xff]
      %v1780 = vld [vmem:[%s3 + $0x4f8] sm:$0xff]
      %v1781 = vld [vmem:[%s3 + $0x500] sm:$0xff]
      %v1782 = vld [vmem:[%s3 + $0x508] sm:$0xff]
      %v1783 = vld [vmem:[%s3 + $0x510] sm:$0xff]
      %v1784 = vld [vmem:[%s3 + $0x518] sm:$0xff]
      %v1785 = vld [vmem:[%s3 + $0x520] sm:$0xff]
      %v1786 = vld [vmem:[%s3 + $0x528] sm:$0xff]
      %v1787 = vld [vmem:[%s3 + $0x530] sm:$0xff]
      %v1788 = vld [vmem:[%s3 + $0x538] sm:$0xff]
      %v1789 = vld [vmem:[%s3 + $0x540] sm:$0xf]
      %v1790 = vld [vmem:[%s3 + $0x548] sm:$0xf]
      %1803 = vrot.lane.b32.xlu0 %v1609, 119
      %v1804 = vpop.permute.xlu0 %1803
      %1805 = vrot.lane.b32.xlu0 %v1610, 119
      %v1806 = vpop.permute.xlu0 %1805
      %1807 = vrot.lane.b32.xlu0 %v1611, 119
      %v1808 = vpop.permute.xlu0 %1807
      %1809 = vrot.lane.b32.xlu0 %v1612, 119
      %v1810 = vpop.permute.xlu0 %1809
      %1811 = vrot.lane.b32.xlu0 %v1613, 119
      %v1812 = vpop.permute.xlu0 %1811
      %1813 = vrot.lane.b32.xlu0 %v1614, 119
      %v1814 = vpop.permute.xlu0 %1813
      %1815 = vrot.lane.b32.xlu0 %v1615, 119
      %v1816 = vpop.permute.xlu0 %1815
      %1817 = vrot.lane.b32.xlu0 %v1616, 119
      %v1818 = vpop.permute.xlu0 %1817
      %1819 = vrot.lane.b32.xlu0 %v1617, 119
      %v1820 = vpop.permute.xlu0 %1819
      %1821 = vrot.lane.b32.xlu0 %v1618, 119
      %v1822 = vpop.permute.xlu0 %1821
      %1823 = vrot.lane.b32.xlu0 %v1619, 119
      %v1824 = vpop.permute.xlu0 %1823
      %1825 = vrot.lane.b32.xlu0 %v1620, 119
      %v1826 = vpop.permute.xlu0 %1825
      %v1827 = vsel %vm1424, %v1804, %v1806
      %v1828 = vsel %vm1424, %v1806, %v1808
      %v1829 = vsel %vm1424, %v1808, %v1810
      %v1830 = vsel %vm1424, %v1810, %v1812
      %v1831 = vsel %vm1424, %v1812, %v1814
      %v1832 = vsel %vm1424, %v1816, %v1818
      %v1833 = vsel %vm1424, %v1818, %v1820
      %v1834 = vsel %vm1424, %v1820, %v1822
      %v1835 = vsel %vm1424, %v1822, %v1824
      %v1836 = vsel %vm1424, %v1824, %v1826
      %vm1847 = vcmask 293888
      %v1848 = vsel %vm1847, %v1814, 0
      %v1850 = vsel %vm1847, %v1826, 0
      %vm1852 = vcmask 1043456
      %v1854 = vsel %vm1852, %v1789, 0
      %v1857 = vsel %vm1852, %v1790, 0
      %1859 = vmatprep.subr.mxu0 %v1622
      %1860 = vmatpush1.msra.mxu0 %v1621
      %1861 = vmatprep.subr.mxu0 %v1624
      %1862 = vmatpush1.msra.mxu0 %v1623
      %1863 = vmatprep.subr.mxu0 %v1626
      %1864 = vmatpush1.msra.mxu0 %v1625
      %1865 = vmatprep.subr.mxu0 %v1628
      %1866 = vmatpush1.msra.mxu0 %v1627
      %1867 = vmatprep.subr.mxu0 %v1630
      %1868 = vmatpush1.msra.mxu0 %v1629
      %1869 = vmatprep.subr.mxu0 %v1632
      %1870 = vmatpush1.msra.mxu0 %v1631
      %1871 = vmatprep.subr.mxu0 %v1634
      %1872 = vmatpush1.msra.mxu0 %v1633
      %1873 = vmatprep.subr.mxu0 %v1636
      %1874 = vmatpush1.msra.mxu0 %v1635
      %1875 = vmatprep.subr.mxu0 %v1638
      %1876 = vmatpush1.msra.mxu0 %v1637
      %1877 = vmatprep.subr.mxu0 %v1640
      %1878 = vmatpush1.msra.mxu0 %v1639
      %1879 = vmatprep.subr.mxu0 %v1642
      %1880 = vmatpush1.msra.mxu0 %v1641
      %1881 = vmatprep.subr.mxu0 %v1644
      %1882 = vmatpush1.msra.mxu0 %v1643
      %1883 = vmatprep.subr.mxu0 %v1646
      %1884 = vmatpush1.msra.mxu0 %v1645
      %1885 = vmatprep.subr.mxu0 %v1648
      %1886 = vmatpush1.msra.mxu0 %v1647
      %1887 = vmatprep.subr.mxu0 %v1650
      %1888 = vmatpush1.msra.mxu0 %v1649
      %1889 = vmatprep.subr.mxu0 %v1652
      %1890 = vmatpush1.msra.mxu0 %v1651
      %1891 = vmatprep.subr.mxu0 %v1654
      %1892 = vmatpush1.msra.mxu0 %v1653
      %1893 = vmatprep.subr.mxu0 %v1656
      %1894 = vmatpush1.msra.mxu0 %v1655
      %1895 = vmatprep.subr.mxu0 %v1658
      %1896 = vmatpush1.msra.mxu0 %v1657
      %1897 = vmatprep.subr.mxu0 %v1660
      %1898 = vmatpush1.msra.mxu0 %v1659
      %1899 = vmatprep.subr.mxu0 %v1662
      %1900 = vmatpush1.msra.mxu0 %v1661
      %1901 = vmatprep.subr.mxu0 %v1664
      %1902 = vmatpush1.msra.mxu0 %v1663
      %1903 = vmatprep.subr.mxu0 %v1666
      %1904 = vmatpush1.msra.mxu0 %v1665
      %1905 = vmatprep.subr.mxu0 %v1668
      %1906 = vmatpush1.msra.mxu0 %v1667
      %1907 = vmatprep.subr.mxu0 %v1670
      %1908 = vmatpush1.msra.mxu0 %v1669
      %1909 = vmatprep.subr.mxu0 %v1672
      %1910 = vmatpush1.msra.mxu0 %v1671
      %1911 = vmatprep.subr.mxu0 %v1674
      %1912 = vmatpush1.msra.mxu0 %v1673
      %1913 = vmatprep.subr.mxu0 %v1676
      %1914 = vmatpush1.msra.mxu0 %v1675
      %1915 = vmatprep.subr.mxu0 %v1678
      %1916 = vmatpush1.msra.mxu0 %v1677
      %1917 = vmatprep.subr.mxu0 %v1680
      %1918 = vmatpush1.msra.mxu0 %v1679
      %1919 = vmatprep.subr.mxu0 %v1682
      %1920 = vmatpush1.msra.mxu0 %v1681
      %1921 = vmatprep.subr.mxu0 %v1684
      %1922 = vmatpush1.msra.mxu0 %v1683
      %1923 = vmatprep.mubr.f32.mxu0 %v1828
      %1924 = vmatmul.mubr.f32.gmra.mrb[0].mxu0 %v1827
      %v1925 = vpop.f32.mrb[0].mxu0
      %v1926 = vadd.f32 0.0, %v1925
      %v1927 = vpop.f32.mrb[0].mxu0
      %v1928 = vadd.f32 0.0, %v1927
      %1929 = vmatprep.mubr.f32.mxu0 %v1833
      %1930 = vmatmul.mubr.f32.gmra.mrb[0].mxu0 %v1832
      %v1931 = vpop.f32.mrb[0].mxu0
      %v1932 = vadd.f32 0.0, %v1931
      %v1933 = vpop.f32.mrb[0].mxu0
      %v1934 = vadd.f32 0.0, %v1933
      %1935 = vdwg.mxu0
      %1936 = vmatprep.subr.mxu0 %v1686
      %1937 = vmatpush1.msra.mxu0 %v1685
      %1938 = vmatprep.subr.mxu0 %v1688
      %1939 = vmatpush1.msra.mxu0 %v1687
      %1940 = vmatprep.subr.mxu0 %v1690
      %1941 = vmatpush1.msra.mxu0 %v1689
      %1942 = vmatprep.subr.mxu0 %v1692
      %1943 = vmatpush1.msra.mxu0 %v1691
      %1944 = vmatprep.subr.mxu0 %v1694
      %1945 = vmatpush1.msra.mxu0 %v1693
      %1946 = vmatprep.subr.mxu0 %v1696
      %1947 = vmatpush1.msra.mxu0 %v1695
      %1948 = vmatprep.subr.mxu0 %v1698
      %1949 = vmatpush1.msra.mxu0 %v1697
      %1950 = vmatprep.subr.mxu0 %v1700
      %1951 = vmatpush1.msra.mxu0 %v1699
      %1952 = vmatprep.subr.mxu0 %v1702
      %1953 = vmatpush1.msra.mxu0 %v1701
      %1954 = vmatprep.subr.mxu0 %v1704
      %1955 = vmatpush1.msra.mxu0 %v1703
      %1956 = vmatprep.subr.mxu0 %v1706
      %1957 = vmatpush1.msra.mxu0 %v1705
      %1958 = vmatprep.subr.mxu0 %v1708
      %1959 = vmatpush1.msra.mxu0 %v1707
      %1960 = vmatprep.subr.mxu0 %v1710
      %1961 = vmatpush1.msra.mxu0 %v1709
      %1962 = vmatprep.subr.mxu0 %v1712
      %1963 = vmatpush1.msra.mxu0 %v1711
      %1964 = vmatprep.subr.mxu0 %v1714
      %1965 = vmatpush1.msra.mxu0 %v1713
      %1966 = vmatprep.subr.mxu0 %v1716
      %1967 = vmatpush1.msra.mxu0 %v1715
      %1968 = vmatprep.subr.mxu0 %v1718
      %1969 = vmatpush1.msra.mxu0 %v1717
      %1970 = vmatprep.subr.mxu0 %v1720
      %1971 = vmatpush1.msra.mxu0 %v1719
      %1972 = vmatprep.subr.mxu0 %v1722
      %1973 = vmatpush1.msra.mxu0 %v1721
      %1974 = vmatprep.subr.mxu0 %v1724
      %1975 = vmatpush1.msra.mxu0 %v1723
      %1976 = vmatprep.subr.mxu0 %v1726
      %1977 = vmatpush1.msra.mxu0 %v1725
      %1978 = vmatprep.subr.mxu0 %v1728
      %1979 = vmatpush1.msra.mxu0 %v1727
      %1980 = vmatprep.subr.mxu0 %v1730
      %1981 = vmatpush1.msra.mxu0 %v1729
      %1982 = vmatprep.subr.mxu0 %v1732
      %1983 = vmatpush1.msra.mxu0 %v1731
      %1984 = vmatprep.subr.mxu0 %v1734
      %1985 = vmatpush1.msra.mxu0 %v1733
      %1986 = vmatprep.subr.mxu0 %v1736
      %1987 = vmatpush1.msra.mxu0 %v1735
      %1988 = vmatprep.subr.mxu0 %v1738
      %1989 = vmatpush1.msra.mxu0 %v1737
      %1990 = vmatprep.subr.mxu0 %v1740
      %1991 = vmatpush1.msra.mxu0 %v1739
      %1992 = vmatprep.subr.mxu0 %v1742
      %1993 = vmatpush1.msra.mxu0 %v1741
      %1994 = vmatprep.subr.mxu0 %v1744
      %1995 = vmatpush1.msra.mxu0 %v1743
      %1996 = vmatprep.subr.mxu0 %v1746
      %1997 = vmatpush1.msra.mxu0 %v1745
      %1998 = vmatprep.subr.mxu0 %v1748
      %1999 = vmatpush1.msra.mxu0 %v1747
      %2000 = vmatprep.mubr.f32.mxu0 %v1830
      %2001 = vmatmul.mubr.f32.gmra.mrb[0].mxu0 %v1829
      %v2002 = vpop.f32.mrb[0].mxu0
      %v2003 = vadd.f32 %v1926, %v2002
      %v2004 = vpop.f32.mrb[0].mxu0
      %v2005 = vadd.f32 %v1928, %v2004
      %2006 = vmatprep.mubr.f32.mxu0 %v1835
      %2007 = vmatmul.mubr.f32.gmra.mrb[0].mxu0 %v1834
      %v2008 = vpop.f32.mrb[0].mxu0
      %v2009 = vadd.f32 %v1932, %v2008
      %v2010 = vpop.f32.mrb[0].mxu0
      %v2011 = vadd.f32 %v1934, %v2010
      %2012 = vdwg.mxu0
      %2013 = vmatprep.subr.mxu0 %v1750
      %2014 = vmatpush1.msra.mxu0 %v1749
      %2015 = vmatprep.subr.mxu0 %v1752
      %2016 = vmatpush1.msra.mxu0 %v1751
      %2017 = vmatprep.subr.mxu0 %v1754
      %2018 = vmatpush1.msra.mxu0 %v1753
      %2019 = vmatprep.subr.mxu0 %v1756
      %2020 = vmatpush1.msra.mxu0 %v1755
      %2021 = vmatprep.subr.mxu0 %v1758
      %2022 = vmatpush1.msra.mxu0 %v1757
      %2023 = vmatprep.subr.mxu0 %v1760
      %2024 = vmatpush1.msra.mxu0 %v1759
      %2025 = vmatprep.subr.mxu0 %v1762
      %2026 = vmatpush1.msra.mxu0 %v1761
      %2027 = vmatprep.subr.mxu0 %v1764
      %2028 = vmatpush1.msra.mxu0 %v1763
      %2029 = vmatprep.subr.mxu0 %v1766
      %2030 = vmatpush1.msra.mxu0 %v1765
      %2031 = vmatprep.subr.mxu0 %v1768
      %2032 = vmatpush1.msra.mxu0 %v1767
      %2033 = vmatprep.subr.mxu0 %v1770
      %2034 = vmatpush1.msra.mxu0 %v1769
      %2035 = vmatprep.subr.mxu0 %v1772
      %2036 = vmatpush1.msra.mxu0 %v1771
      %2037 = vmatprep.subr.mxu0 %v1774
      %2038 = vmatpush1.msra.mxu0 %v1773
      %2039 = vmatprep.subr.mxu0 %v1776
      %2040 = vmatpush1.msra.mxu0 %v1775
      %2041 = vmatprep.subr.mxu0 %v1778
      %2042 = vmatpush1.msra.mxu0 %v1777
      %2043 = vmatprep.subr.mxu0 %v1780
      %2044 = vmatpush1.msra.mxu0 %v1779
      %2045 = vmatprep.subr.mxu0 %v1782
      %2046 = vmatpush1.msra.mxu0 %v1781
      %2047 = vmatprep.subr.mxu0 %v1784
      %2048 = vmatpush1.msra.mxu0 %v1783
      %2049 = vmatprep.subr.mxu0 %v1786
      %2050 = vmatpush1.msra.mxu0 %v1785
      %2051 = vmatprep.subr.mxu0 %v1788
      %2052 = vmatpush1.msra.mxu0 %v1787
      %2053 = vmatprep.subr.mxu0 %v1857
      %2054 = vmatpush1.msra.mxu0 %v1854
      %2055 = vmatprep.subr.mxu0 0.0
      %2056 = vmatpush1.msra.mxu0 0.0
      %2057 = vmatprep.subr.mxu0 0.0
      %2058 = vmatpush1.msra.mxu0 0.0
      %2059 = vmatprep.subr.mxu0 0.0
      %2060 = vmatpush1.msra.mxu0 0.0
      %2061 = vmatprep.subr.mxu0 0.0
      %2062 = vmatpush1.msra.mxu0 0.0
      %2063 = vmatprep.subr.mxu0 0.0
      %2064 = vmatpush1.msra.mxu0 0.0
      %2065 = vmatprep.subr.mxu0 0.0
      %2066 = vmatpush1.msra.mxu0 0.0
      %2067 = vmatprep.subr.mxu0 0.0
      %2068 = vmatpush1.msra.mxu0 0.0
      %2069 = vmatprep.subr.mxu0 0.0
      %2070 = vmatpush1.msra.mxu0 0.0
      %2071 = vmatprep.subr.mxu0 0.0
      %2072 = vmatpush1.msra.mxu0 0.0
      %2073 = vmatprep.subr.mxu0 0.0
      %2074 = vmatpush1.msra.mxu0 0.0
      %2075 = vmatprep.subr.mxu0 0.0
      %2076 = vmatpush1.msra.mxu0 0.0
      %2077 = vmatprep.mubr.f32.mxu0 %v1848
      %2078 = vmatmul.mubr.f32.gmra.mrb[0].mxu0 %v1831
      %v2079 = vpop.f32.mrb[0].mxu0
      %v2080 = vadd.f32 %v2003, %v2079
      %v2081 = vpop.f32.mrb[0].mxu0
      %v2082 = vadd.f32 %v2005, %v2081
      %2083 = vmatprep.mubr.f32.mxu0 %v1850
      %2084 = vmatmul.mubr.f32.gmra.mrb[0].mxu0 %v1836
      %v2085 = vpop.f32.mrb[0].mxu0
      %v2086 = vadd.f32 %v2009, %v2085
      %v2087 = vpop.f32.mrb[0].mxu0
      %v2088 = vadd.f32 %v2011, %v2087
      %2089 = vdwg.mxu0
      %vm2090 = vcmask 1048096
      %2091 = vrot.lane.b32.xlu0 %v2080, 68
      %v2092 = vpop.permute.xlu0 %2091
      %v2093 = vsel %vm2090, %v2092, %v2082
      %2094 = vrot.lane.b32.xlu0 %v2086, 68
      %v2095 = vpop.permute.xlu0 %2094
      %v2096 = vsel %vm2090, %v2095, %v2088
      %2097 = vrot.lane.b32.xlu0 %v2093, 68
      %v2098 = vpop.permute.xlu0 %2097
      %2099 = vrot.lane.b32.xlu0 %v2096, 68
      %v2100 = vpop.permute.xlu0 %2099
      %v2101 = vsel %vm2090, %v2098, %v2092
      %v2102 = vsel %vm2090, %v2100, %v2095
      %v2103 = vld [vmem:[%s4] sm:$0xff]
      %v2104 = vld [vmem:[%s4 + $0x8] sm:$0xff]
      %v2105 = vld [vmem:[%s4 + $0x10] sm:$0xff]
      %v2106 = vld [vmem:[%s4 + $0x18] sm:$0xf]
      %s2107 = scalar_lea.vmem %s4, 32
      %v2108 = vld [vmem:[%s2107] sm:$0xff]
      %v2109 = vld [vmem:[%s2107 + $0x8] sm:$0xff]
      %v2110 = vld [vmem:[%s2107 + $0x10] sm:$0xff]
      %v2111 = vld [vmem:[%s2107 + $0x18] sm:$0xf]
      %2116 = vrot.lane.b32.xlu0 %v2093, 74
      %v2117 = vpop.permute.xlu0 %2116
      %2118 = vrot.lane.b32.xlu0 %v2101, 74
      %v2119 = vpop.permute.xlu0 %2118
      %2120 = vrot.lane.b32.xlu0 %v2096, 74
      %v2121 = vpop.permute.xlu0 %2120
      %2122 = vrot.lane.b32.xlu0 %v2102, 74
      %v2123 = vpop.permute.xlu0 %2122
      %vm2124 = vcmask 605184
      %v2125 = vsel %vm2124, %v2117, %v2119
      %v2126 = vsel %vm2124, %v2121, %v2123
      %vm2129 = vcmask 80896
      %v2131 = vsel %vm2129, %v2108, 0
      %v2134 = vsel %vm2129, %v2109, 0
      %v2137 = vsel %vm2129, %v2110, 0
      %v2140 = vsel %vm2129, %v2111, 0
      %vm2142 = vcmask 1041408
      %v2143 = vsel %vm2142, %v2126, 0
      %v2145 = vsel %vm2142, %v2123, 0
      %2147 = vmatprep.subr.mxu0 %v2119
      %2148 = vmatpush1.msra.mxu0 %v2125
      %2149 = vmatprep.subr.mxu0 %v2145
      %2150 = vmatpush1.msra.mxu0 %v2143
      %2151 = vmatprep.subr.mxu0 0.0
      %2152 = vmatpush1.msra.mxu0 0.0
      %2153 = vmatprep.subr.mxu0 0.0
      %2154 = vmatpush1.msra.mxu0 0.0
      %2155 = vmatprep.subr.mxu0 0.0
      %2156 = vmatpush1.msra.mxu0 0.0
      %2157 = vmatprep.subr.mxu0 0.0
      %2158 = vmatpush1.msra.mxu0 0.0
      %2159 = vmatprep.subr.mxu0 0.0
      %2160 = vmatpush1.msra.mxu0 0.0
      %2161 = vmatprep.subr.mxu0 0.0
      %2162 = vmatpush1.msra.mxu0 0.0
      %2163 = vmatprep.subr.mxu0 0.0
      %2164 = vmatpush1.msra.mxu0 0.0
      %2165 = vmatprep.subr.mxu0 0.0
      %2166 = vmatpush1.msra.mxu0 0.0
      %2167 = vmatprep.subr.mxu0 0.0
      %2168 = vmatpush1.msra.mxu0 0.0
      %2169 = vmatprep.subr.mxu0 0.0
      %2170 = vmatpush1.msra.mxu0 0.0
      %2171 = vmatprep.subr.mxu0 0.0
      %2172 = vmatpush1.msra.mxu0 0.0
      %2173 = vmatprep.subr.mxu0 0.0
      %2174 = vmatpush1.msra.mxu0 0.0
      %2175 = vmatprep.subr.mxu0 0.0
      %2176 = vmatpush1.msra.mxu0 0.0
      %2177 = vmatprep.subr.mxu0 0.0
      %2178 = vmatpush1.msra.mxu0 0.0
      %2179 = vmatprep.subr.mxu0 0.0
      %2180 = vmatpush1.msra.mxu0 0.0
      %2181 = vmatprep.subr.mxu0 0.0
      %2182 = vmatpush1.msra.mxu0 0.0
      %2183 = vmatprep.subr.mxu0 0.0
      %2184 = vmatpush1.msra.mxu0 0.0
      %2185 = vmatprep.subr.mxu0 0.0
      %2186 = vmatpush1.msra.mxu0 0.0
      %2187 = vmatprep.subr.mxu0 0.0
      %2188 = vmatpush1.msra.mxu0 0.0
      %2189 = vmatprep.subr.mxu0 0.0
      %2190 = vmatpush1.msra.mxu0 0.0
      %2191 = vmatprep.subr.mxu0 0.0
      %2192 = vmatpush1.msra.mxu0 0.0
      %2193 = vmatprep.subr.mxu0 0.0
      %2194 = vmatpush1.msra.mxu0 0.0
      %2195 = vmatprep.subr.mxu0 0.0
      %2196 = vmatpush1.msra.mxu0 0.0
      %2197 = vmatprep.subr.mxu0 0.0
      %2198 = vmatpush1.msra.mxu0 0.0
      %2199 = vmatprep.subr.mxu0 0.0
      %2200 = vmatpush1.msra.mxu0 0.0
      %2201 = vmatprep.subr.mxu0 0.0
      %2202 = vmatpush1.msra.mxu0 0.0
      %2203 = vmatprep.subr.mxu0 0.0
      %2204 = vmatpush1.msra.mxu0 0.0
      %2205 = vmatprep.subr.mxu0 0.0
      %2206 = vmatpush1.msra.mxu0 0.0
      %2207 = vmatprep.subr.mxu0 0.0
      %2208 = vmatpush1.msra.mxu0 0.0
      %2209 = vmatprep.subr.mxu0 0.0
      %2210 = vmatpush1.msra.mxu0 0.0
      %2211 = vmatprep.mubr.f32.mxu0 0.0
      %2212 = vmatmul.mubr.f32.gmra.mrb[0].mxu0 %v2131
      %v2213 = vpop.f32.mrb[0].mxu0
      %v2214 = vadd.f32 0.0, %v2213
      %v2215 = vpop.f32.mrb[0].mxu0
      %v2216 = vadd.f32 0.0, %v2215
      %2217 = vmatprep.mubr.f32.mxu0 0.0
      %2218 = vmatmul.mubr.f32.gmra.mrb[0].mxu0 %v2134
      %v2219 = vpop.f32.mrb[0].mxu0
      %v2220 = vadd.f32 0.0, %v2219
      %v2221 = vpop.f32.mrb[0].mxu0
      %v2222 = vadd.f32 0.0, %v2221
      %2223 = vmatprep.mubr.f32.mxu0 0.0
      %2224 = vmatmul.mubr.f32.gmra.mrb[0].mxu0 %v2137
      %v2225 = vpop.f32.mrb[0].mxu0
      %v2226 = vadd.f32 0.0, %v2225
      %v2227 = vpop.f32.mrb[0].mxu0
      %v2228 = vadd.f32 0.0, %v2227
      %2229 = vmatprep.mubr.f32.mxu0 0.0
      %2230 = vmatmul.mubr.f32.gmra.mrb[0].mxu0 %v2140
      %v2231 = vpop.f32.mrb[0].mxu0
      %v2232 = vadd.f32 0.0, %v2231
      %v2233 = vpop.f32.mrb[0].mxu0
      %v2234 = vadd.f32 0.0, %v2233
      %2235 = vdwg.mxu0
      %2236 = vrot.lane.b32.xlu0 %v2093, 75
      %v2237 = vpop.permute.xlu0 %2236
      %2238 = vrot.lane.b32.xlu0 %v2101, 75
      %v2239 = vpop.permute.xlu0 %2238
      %2240 = vrot.lane.b32.xlu0 %v2096, 75
      %v2241 = vpop.permute.xlu0 %2240
      %2242 = vrot.lane.b32.xlu0 %v2102, 75
      %v2243 = vpop.permute.xlu0 %2242
      %vm2244 = vcmask 613376
      %v2245 = vsel %vm2244, %v2237, %v2239
      %v2246 = vsel %vm2244, %v2241, %v2243
      %v2250 = vsel %vm2129, %v2103, 0
      %v2253 = vsel %vm2129, %v2104, 0
      %v2256 = vsel %vm2129, %v2105, 0
      %v2259 = vsel %vm2129, %v2106, 0
      %v2261 = vsel %vm2142, %v2246, 0
      %v2263 = vsel %vm2142, %v2243, 0
      %2265 = vmatprep.subr.mxu0 %v2239
      %2266 = vmatpush1.msra.mxu0 %v2245
      %2267 = vmatprep.subr.mxu0 %v2263
      %2268 = vmatpush1.msra.mxu0 %v2261
      %2269 = vmatprep.subr.mxu0 0.0
      %2270 = vmatpush1.msra.mxu0 0.0
      %2271 = vmatprep.subr.mxu0 0.0
      %2272 = vmatpush1.msra.mxu0 0.0
      %2273 = vmatprep.subr.mxu0 0.0
      %2274 = vmatpush1.msra.mxu0 0.0
      %2275 = vmatprep.subr.mxu0 0.0
      %2276 = vmatpush1.msra.mxu0 0.0
      %2277 = vmatprep.subr.mxu0 0.0
      %2278 = vmatpush1.msra.mxu0 0.0
      %2279 = vmatprep.subr.mxu0 0.0
      %2280 = vmatpush1.msra.mxu0 0.0
      %2281 = vmatprep.subr.mxu0 0.0
      %2282 = vmatpush1.msra.mxu0 0.0
      %2283 = vmatprep.subr.mxu0 0.0
      %2284 = vmatpush1.msra.mxu0 0.0
      %2285 = vmatprep.subr.mxu0 0.0
      %2286 = vmatpush1.msra.mxu0 0.0
      %2287 = vmatprep.subr.mxu0 0.0
      %2288 = vmatpush1.msra.mxu0 0.0
      %2289 = vmatprep.subr.mxu0 0.0
      %2290 = vmatpush1.msra.mxu0 0.0
      %2291 = vmatprep.subr.mxu0 0.0
      %2292 = vmatpush1.msra.mxu0 0.0
      %2293 = vmatprep.subr.mxu0 0.0
      %2294 = vmatpush1.msra.mxu0 0.0
      %2295 = vmatprep.subr.mxu0 0.0
      %2296 = vmatpush1.msra.mxu0 0.0
      %2297 = vmatprep.subr.mxu0 0.0
      %2298 = vmatpush1.msra.mxu0 0.0
      %2299 = vmatprep.subr.mxu0 0.0
      %2300 = vmatpush1.msra.mxu0 0.0
      %2301 = vmatprep.subr.mxu0 0.0
      %2302 = vmatpush1.msra.mxu0 0.0
      %2303 = vmatprep.subr.mxu0 0.0
      %2304 = vmatpush1.msra.mxu0 0.0
      %2305 = vmatprep.subr.mxu0 0.0
      %2306 = vmatpush1.msra.mxu0 0.0
      %2307 = vmatprep.subr.mxu0 0.0
      %2308 = vmatpush1.msra.mxu0 0.0
      %2309 = vmatprep.subr.mxu0 0.0
      %2310 = vmatpush1.msra.mxu0 0.0
      %2311 = vmatprep.subr.mxu0 0.0
      %2312 = vmatpush1.msra.mxu0 0.0
      %2313 = vmatprep.subr.mxu0 0.0
      %2314 = vmatpush1.msra.mxu0 0.0
      %2315 = vmatprep.subr.mxu0 0.0
      %2316 = vmatpush1.msra.mxu0 0.0
      %2317 = vmatprep.subr.mxu0 0.0
      %2318 = vmatpush1.msra.mxu0 0.0
      %2319 = vmatprep.subr.mxu0 0.0
      %2320 = vmatpush1.msra.mxu0 0.0
      %2321 = vmatprep.subr.mxu0 0.0
      %2322 = vmatpush1.msra.mxu0 0.0
      %2323 = vmatprep.subr.mxu0 0.0
      %2324 = vmatpush1.msra.mxu0 0.0
      %2325 = vmatprep.subr.mxu0 0.0
      %2326 = vmatpush1.msra.mxu0 0.0
      %2327 = vmatprep.subr.mxu0 0.0
      %2328 = vmatpush1.msra.mxu0 0.0
      %2329 = vmatprep.mubr.f32.mxu0 0.0
      %2330 = vmatmul.mubr.f32.gmra.mrb[0].mxu0 %v2250
      %v2331 = vpop.f32.mrb[0].mxu0
      %v2332 = vadd.f32 %v2214, %v2331
      %v2333 = vpop.f32.mrb[0].mxu0
      %v2334 = vadd.f32 %v2216, %v2333
      %2335 = vmatprep.mubr.f32.mxu0 0.0
      %2336 = vmatmul.mubr.f32.gmra.mrb[0].mxu0 %v2253
      %v2337 = vpop.f32.mrb[0].mxu0
      %v2338 = vadd.f32 %v2220, %v2337
      %v2339 = vpop.f32.mrb[0].mxu0
      %v2340 = vadd.f32 %v2222, %v2339
      %2341 = vmatprep.mubr.f32.mxu0 0.0
      %2342 = vmatmul.mubr.f32.gmra.mrb[0].mxu0 %v2256
      %v2343 = vpop.f32.mrb[0].mxu0
      %v2344 = vadd.f32 %v2226, %v2343
      %v2345 = vpop.f32.mrb[0].mxu0
      %v2346 = vadd.f32 %v2228, %v2345
      %2347 = vmatprep.mubr.f32.mxu0 0.0
      %2348 = vmatmul.mubr.f32.gmra.mrb[0].mxu0 %v2259
      %v2349 = vpop.f32.mrb[0].mxu0
      %v2350 = vadd.f32 %v2232, %v2349
      %v2351 = vpop.f32.mrb[0].mxu0
      %v2352 = vadd.f32 %v2234, %v2351
      %2353 = vdwg.mxu0
      %s2354 = scalar_lea.vmem %s4, 64
      %v2355 = vld [vmem:[%s2354] sm:$0xff]
      %v2356 = vld [vmem:[%s2354 + $0x8] sm:$0xff]
      %v2357 = vld [vmem:[%s2354 + $0x10] sm:$0xff]
      %v2358 = vld [vmem:[%s2354 + $0x18] sm:$0xf]
      %2359 = vrot.lane.b32.xlu0 %v2093, 73
      %v2360 = vpop.permute.xlu0 %2359
      %2361 = vrot.lane.b32.xlu0 %v2101, 73
      %v2362 = vpop.permute.xlu0 %2361
      %2363 = vrot.lane.b32.xlu0 %v2096, 73
      %v2364 = vpop.permute.xlu0 %2363
      %2365 = vrot.lane.b32.xlu0 %v2102, 73
      %v2366 = vpop.permute.xlu0 %2365
      %vm2367 = vcmask 596992
      %v2368 = vsel %vm2367, %v2360, %v2362
      %v2369 = vsel %vm2367, %v2364, %v2366
      %v2373 = vsel %vm2129, %v2355, 0
      %v2376 = vsel %vm2129, %v2356, 0
      %v2379 = vsel %vm2129, %v2357, 0
      %v2382 = vsel %vm2129, %v2358, 0
      %v2384 = vsel %vm2142, %v2369, 0
      %v2386 = vsel %vm2142, %v2366, 0
      %2388 = vmatprep.subr.mxu0 %v2362
      %2389 = vmatpush1.msra.mxu0 %v2368
      %2390 = vmatprep.subr.mxu0 %v2386
      %2391 = vmatpush1.msra.mxu0 %v2384
      %2392 = vmatprep.subr.mxu0 0.0
      %2393 = vmatpush1.msra.mxu0 0.0
      %2394 = vmatprep.subr.mxu0 0.0
      %2395 = vmatpush1.msra.mxu0 0.0
      %2396 = vmatprep.subr.mxu0 0.0
      %2397 = vmatpush1.msra.mxu0 0.0
      %2398 = vmatprep.subr.mxu0 0.0
      %2399 = vmatpush1.msra.mxu0 0.0
      %2400 = vmatprep.subr.mxu0 0.0
      %2401 = vmatpush1.msra.mxu0 0.0
      %2402 = vmatprep.subr.mxu0 0.0
      %2403 = vmatpush1.msra.mxu0 0.0
      %2404 = vmatprep.subr.mxu0 0.0
      %2405 = vmatpush1.msra.mxu0 0.0
      %2406 = vmatprep.subr.mxu0 0.0
      %2407 = vmatpush1.msra.mxu0 0.0
      %2408 = vmatprep.subr.mxu0 0.0
      %2409 = vmatpush1.msra.mxu0 0.0
      %2410 = vmatprep.subr.mxu0 0.0
      %2411 = vmatpush1.msra.mxu0 0.0
      %2412 = vmatprep.subr.mxu0 0.0
      %2413 = vmatpush1.msra.mxu0 0.0
      %2414 = vmatprep.subr.mxu0 0.0
      %2415 = vmatpush1.msra.mxu0 0.0
      %2416 = vmatprep.subr.mxu0 0.0
      %2417 = vmatpush1.msra.mxu0 0.0
      %2418 = vmatprep.subr.mxu0 0.0
      %2419 = vmatpush1.msra.mxu0 0.0
      %2420 = vmatprep.subr.mxu0 0.0
      %2421 = vmatpush1.msra.mxu0 0.0
      %2422 = vmatprep.subr.mxu0 0.0
      %2423 = vmatpush1.msra.mxu0 0.0
      %2424 = vmatprep.subr.mxu0 0.0
      %2425 = vmatpush1.msra.mxu0 0.0
      %2426 = vmatprep.subr.mxu0 0.0
      %2427 = vmatpush1.msra.mxu0 0.0
      %2428 = vmatprep.subr.mxu0 0.0
      %2429 = vmatpush1.msra.mxu0 0.0
      %2430 = vmatprep.subr.mxu0 0.0
      %2431 = vmatpush1.msra.mxu0 0.0
      %2432 = vmatprep.subr.mxu0 0.0
      %2433 = vmatpush1.msra.mxu0 0.0
      %2434 = vmatprep.subr.mxu0 0.0
      %2435 = vmatpush1.msra.mxu0 0.0
      %2436 = vmatprep.subr.mxu0 0.0
      %2437 = vmatpush1.msra.mxu0 0.0
      %2438 = vmatprep.subr.mxu0 0.0
      %2439 = vmatpush1.msra.mxu0 0.0
      %2440 = vmatprep.subr.mxu0 0.0
      %2441 = vmatpush1.msra.mxu0 0.0
      %2442 = vmatprep.subr.mxu0 0.0
      %2443 = vmatpush1.msra.mxu0 0.0
      %2444 = vmatprep.subr.mxu0 0.0
      %2445 = vmatpush1.msra.mxu0 0.0
      %2446 = vmatprep.subr.mxu0 0.0
      %2447 = vmatpush1.msra.mxu0 0.0
      %2448 = vmatprep.subr.mxu0 0.0
      %2449 = vmatpush1.msra.mxu0 0.0
      %2450 = vmatprep.subr.mxu0 0.0
      %2451 = vmatpush1.msra.mxu0 0.0
      %2452 = vmatprep.mubr.f32.mxu0 0.0
      %2453 = vmatmul.mubr.f32.gmra.mrb[0].mxu0 %v2373
      %v2454 = vpop.f32.mrb[0].mxu0
      %v2455 = vadd.f32 0.0, %v2454
      %v2456 = vpop.f32.mrb[0].mxu0
      %v2457 = vadd.f32 0.0, %v2456
      %2458 = vmatprep.mubr.f32.mxu0 0.0
      %2459 = vmatmul.mubr.f32.gmra.mrb[0].mxu0 %v2376
      %v2460 = vpop.f32.mrb[0].mxu0
      %v2461 = vadd.f32 0.0, %v2460
      %v2462 = vpop.f32.mrb[0].mxu0
      %v2463 = vadd.f32 0.0, %v2462
      %2464 = vmatprep.mubr.f32.mxu0 0.0
      %2465 = vmatmul.mubr.f32.gmra.mrb[0].mxu0 %v2379
      %v2466 = vpop.f32.mrb[0].mxu0
      %v2467 = vadd.f32 0.0, %v2466
      %v2468 = vpop.f32.mrb[0].mxu0
      %v2469 = vadd.f32 0.0, %v2468
      %2470 = vmatprep.mubr.f32.mxu0 0.0
      %2471 = vmatmul.mubr.f32.gmra.mrb[0].mxu0 %v2382
      %v2472 = vpop.f32.mrb[0].mxu0
      %v2473 = vadd.f32 0.0, %v2472
      %v2474 = vpop.f32.mrb[0].mxu0
      %v2475 = vadd.f32 0.0, %v2474
      %2476 = vdwg.mxu0
      %v2477 = vadd.f32 %v2332, %v2455
      %v2478 = vadd.f32 %v2334, %v2457
      %v2479 = vadd.f32 %v2338, %v2461
      %v2480 = vadd.f32 %v2340, %v2463
      %v2481 = vadd.f32 %v2344, %v2467
      %v2482 = vadd.f32 %v2346, %v2469
      %v2483 = vadd.f32 %v2350, %v2473
      %v2484 = vadd.f32 %v2352, %v2475
      %s2485 = scalar_lea.vmem %s4, 96
      %v2486 = vld [vmem:[%s2485] sm:$0xff]
      %v2487 = vld [vmem:[%s2485 + $0x8] sm:$0xff]
      %v2488 = vld [vmem:[%s2485 + $0x10] sm:$0xff]
      %v2489 = vld [vmem:[%s2485 + $0x18] sm:$0xf]
      %2492 = vrot.lane.b32.xlu0 %v2093, 61
      %v2493 = vpop.permute.xlu0 %2492
      %2494 = vrot.lane.b32.xlu0 %v2101, 61
      %v2495 = vpop.permute.xlu0 %2494
      %2496 = vrot.lane.b32.xlu0 %v2098, 61
      %v2497 = vpop.permute.xlu0 %2496
      %2498 = vrot.lane.b32.xlu0 %v2096, 61
      %v2499 = vpop.permute.xlu0 %2498
      %2500 = vrot.lane.b32.xlu0 %v2102, 61
      %v2501 = vpop.permute.xlu0 %2500
      %2502 = vrot.lane.b32.xlu0 %v2100, 61
      %v2503 = vpop.permute.xlu0 %2502
      %vm2504 = vcmask 498688
      %v2505 = vsel %vm2504, %v2493, %v2495
      %v2506 = vsel %vm2504, %v2495, %v2497
      %v2507 = vsel %vm2504, %v2499, %v2501
      %v2508 = vsel %vm2504, %v2501, %v2503
      %v2512 = vsel %vm2129, %v2486, 0
      %v2515 = vsel %vm2129, %v2487, 0
      %v2518 = vsel %vm2129, %v2488, 0
      %v2521 = vsel %vm2129, %v2489, 0
      %v2523 = vsel %vm2142, %v2507, 0
      %v2525 = vsel %vm2142, %v2508, 0
      %2527 = vmatprep.subr.mxu0 %v2506
      %2528 = vmatpush1.msra.mxu0 %v2505
      %2529 = vmatprep.subr.mxu0 %v2525
      %2530 = vmatpush1.msra.mxu0 %v2523
      %2531 = vmatprep.subr.mxu0 0.0
      %2532 = vmatpush1.msra.mxu0 0.0
      %2533 = vmatprep.subr.mxu0 0.0
      %2534 = vmatpush1.msra.mxu0 0.0
      %2535 = vmatprep.subr.mxu0 0.0
      %2536 = vmatpush1.msra.mxu0 0.0
      %2537 = vmatprep.subr.mxu0 0.0
      %2538 = vmatpush1.msra.mxu0 0.0
      %2539 = vmatprep.subr.mxu0 0.0
      %2540 = vmatpush1.msra.mxu0 0.0
      %2541 = vmatprep.subr.mxu0 0.0
      %2542 = vmatpush1.msra.mxu0 0.0
      %2543 = vmatprep.subr.mxu0 0.0
      %2544 = vmatpush1.msra.mxu0 0.0
      %2545 = vmatprep.subr.mxu0 0.0
      %2546 = vmatpush1.msra.mxu0 0.0
      %2547 = vmatprep.subr.mxu0 0.0
      %2548 = vmatpush1.msra.mxu0 0.0
      %2549 = vmatprep.subr.mxu0 0.0
      %2550 = vmatpush1.msra.mxu0 0.0
      %2551 = vmatprep.subr.mxu0 0.0
      %2552 = vmatpush1.msra.mxu0 0.0
      %2553 = vmatprep.subr.mxu0 0.0
      %2554 = vmatpush1.msra.mxu0 0.0
      %2555 = vmatprep.subr.mxu0 0.0
      %2556 = vmatpush1.msra.mxu0 0.0
      %2557 = vmatprep.subr.mxu0 0.0
      %2558 = vmatpush1.msra.mxu0 0.0
      %2559 = vmatprep.subr.mxu0 0.0
      %2560 = vmatpush1.msra.mxu0 0.0
      %2561 = vmatprep.subr.mxu0 0.0
      %2562 = vmatpush1.msra.mxu0 0.0
      %2563 = vmatprep.subr.mxu0 0.0
      %2564 = vmatpush1.msra.mxu0 0.0
      %2565 = vmatprep.subr.mxu0 0.0
      %2566 = vmatpush1.msra.mxu0 0.0
      %2567 = vmatprep.subr.mxu0 0.0
      %2568 = vmatpush1.msra.mxu0 0.0
      %2569 = vmatprep.subr.mxu0 0.0
      %2570 = vmatpush1.msra.mxu0 0.0
      %2571 = vmatprep.subr.mxu0 0.0
      %2572 = vmatpush1.msra.mxu0 0.0
      %2573 = vmatprep.subr.mxu0 0.0
      %2574 = vmatpush1.msra.mxu0 0.0
      %2575 = vmatprep.subr.mxu0 0.0
      %2576 = vmatpush1.msra.mxu0 0.0
      %2577 = vmatprep.subr.mxu0 0.0
      %2578 = vmatpush1.msra.mxu0 0.0
      %2579 = vmatprep.subr.mxu0 0.0
      %2580 = vmatpush1.msra.mxu0 0.0
      %2581 = vmatprep.subr.mxu0 0.0
      %2582 = vmatpush1.msra.mxu0 0.0
      %2583 = vmatprep.subr.mxu0 0.0
      %2584 = vmatpush1.msra.mxu0 0.0
      %2585 = vmatprep.subr.mxu0 0.0
      %2586 = vmatpush1.msra.mxu0 0.0
      %2587 = vmatprep.subr.mxu0 0.0
      %2588 = vmatpush1.msra.mxu0 0.0
      %2589 = vmatprep.subr.mxu0 0.0
      %2590 = vmatpush1.msra.mxu0 0.0
      %2591 = vmatprep.mubr.f32.mxu0 0.0
      %2592 = vmatmul.mubr.f32.gmra.mrb[0].mxu0 %v2512
      %v2593 = vpop.f32.mrb[0].mxu0
      %v2594 = vadd.f32 0.0, %v2593
      %v2595 = vpop.f32.mrb[0].mxu0
      %v2596 = vadd.f32 0.0, %v2595
      %2597 = vmatprep.mubr.f32.mxu0 0.0
      %2598 = vmatmul.mubr.f32.gmra.mrb[0].mxu0 %v2515
      %v2599 = vpop.f32.mrb[0].mxu0
      %v2600 = vadd.f32 0.0, %v2599
      %v2601 = vpop.f32.mrb[0].mxu0
      %v2602 = vadd.f32 0.0, %v2601
      %2603 = vmatprep.mubr.f32.mxu0 0.0
      %2604 = vmatmul.mubr.f32.gmra.mrb[0].mxu0 %v2518
      %v2605 = vpop.f32.mrb[0].mxu0
      %v2606 = vadd.f32 0.0, %v2605
      %v2607 = vpop.f32.mrb[0].mxu0
      %v2608 = vadd.f32 0.0, %v2607
      %2609 = vmatprep.mubr.f32.mxu0 0.0
      %2610 = vmatmul.mubr.f32.gmra.mrb[0].mxu0 %v2521
      %v2611 = vpop.f32.mrb[0].mxu0
      %v2612 = vadd.f32 0.0, %v2611
      %v2613 = vpop.f32.mrb[0].mxu0
      %v2614 = vadd.f32 0.0, %v2613
      %2615 = vdwg.mxu0
      %v2616 = vadd.f32 %v2477, %v2594
      %v2617 = vadd.f32 %v2478, %v2596
      %v2618 = vadd.f32 %v2479, %v2600
      %v2619 = vadd.f32 %v2480, %v2602
      %v2620 = vadd.f32 %v2481, %v2606
      %v2621 = vadd.f32 %v2482, %v2608
      %v2622 = vadd.f32 %v2483, %v2612
      %v2623 = vadd.f32 %v2484, %v2614
      %s2624 = scalar_lea.vmem %s4, 128
      %v2625 = vld [vmem:[%s2624] sm:$0xff]
      %v2626 = vld [vmem:[%s2624 + $0x8] sm:$0xff]
      %v2627 = vld [vmem:[%s2624 + $0x10] sm:$0xff]
      %v2628 = vld [vmem:[%s2624 + $0x18] sm:$0xf]
      %v2630 = vsel %vm2129, %v2625, 0
      %v2633 = vsel %vm2129, %v2626, 0
      %v2636 = vsel %vm2129, %v2627, 0
      %v2639 = vsel %vm2129, %v2628, 0
      %v2642 = vsel %vm2142, %v2086, 0
      %v2645 = vsel %vm2142, %v2088, 0
      %2647 = vmatprep.subr.mxu0 %v2082
      %2648 = vmatpush1.msra.mxu0 %v2080
      %2649 = vmatprep.subr.mxu0 %v2645
      %2650 = vmatpush1.msra.mxu0 %v2642
      %2651 = vmatprep.subr.mxu0 0.0
      %2652 = vmatpush1.msra.mxu0 0.0
      %2653 = vmatprep.subr.mxu0 0.0
      %2654 = vmatpush1.msra.mxu0 0.0
      %2655 = vmatprep.subr.mxu0 0.0
      %2656 = vmatpush1.msra.mxu0 0.0
      %2657 = vmatprep.subr.mxu0 0.0
      %2658 = vmatpush1.msra.mxu0 0.0
      %2659 = vmatprep.subr.mxu0 0.0
      %2660 = vmatpush1.msra.mxu0 0.0
      %2661 = vmatprep.subr.mxu0 0.0
      %2662 = vmatpush1.msra.mxu0 0.0
      %2663 = vmatprep.subr.mxu0 0.0
      %2664 = vmatpush1.msra.mxu0 0.0
      %2665 = vmatprep.subr.mxu0 0.0
      %2666 = vmatpush1.msra.mxu0 0.0
      %2667 = vmatprep.subr.mxu0 0.0
      %2668 = vmatpush1.msra.mxu0 0.0
      %2669 = vmatprep.subr.mxu0 0.0
      %2670 = vmatpush1.msra.mxu0 0.0
      %2671 = vmatprep.subr.mxu0 0.0
      %2672 = vmatpush1.msra.mxu0 0.0
      %2673 = vmatprep.subr.mxu0 0.0
      %2674 = vmatpush1.msra.mxu0 0.0
      %2675 = vmatprep.subr.mxu0 0.0
      %2676 = vmatpush1.msra.mxu0 0.0
      %2677 = vmatprep.subr.mxu0 0.0
      %2678 = vmatpush1.msra.mxu0 0.0
      %2679 = vmatprep.subr.mxu0 0.0
      %2680 = vmatpush1.msra.mxu0 0.0
      %2681 = vmatprep.subr.mxu0 0.0
      %2682 = vmatpush1.msra.mxu0 0.0
      %2683 = vmatprep.subr.mxu0 0.0
      %2684 = vmatpush1.msra.mxu0 0.0
      %2685 = vmatprep.subr.mxu0 0.0
      %2686 = vmatpush1.msra.mxu0 0.0
      %2687 = vmatprep.subr.mxu0 0.0
      %2688 = vmatpush1.msra.mxu0 0.0
      %2689 = vmatprep.subr.mxu0 0.0
      %2690 = vmatpush1.msra.mxu0 0.0
      %2691 = vmatprep.subr.mxu0 0.0
      %2692 = vmatpush1.msra.mxu0 0.0
      %2693 = vmatprep.subr.mxu0 0.0
      %2694 = vmatpush1.msra.mxu0 0.0
      %2695 = vmatprep.subr.mxu0 0.0
      %2696 = vmatpush1.msra.mxu0 0.0
      %2697 = vmatprep.subr.mxu0 0.0
      %2698 = vmatpush1.msra.mxu0 0.0
      %2699 = vmatprep.subr.mxu0 0.0
      %2700 = vmatpush1.msra.mxu0 0.0
      %2701 = vmatprep.subr.mxu0 0.0
      %2702 = vmatpush1.msra.mxu0 0.0
      %2703 = vmatprep.subr.mxu0 0.0
      %2704 = vmatpush1.msra.mxu0 0.0
      %2705 = vmatprep.subr.mxu0 0.0
      %2706 = vmatpush1.msra.mxu0 0.0
      %2707 = vmatprep.subr.mxu0 0.0
      %2708 = vmatpush1.msra.mxu0 0.0
      %2709 = vmatprep.subr.mxu0 0.0
      %2710 = vmatpush1.msra.mxu0 0.0
      %2711 = vmatprep.mubr.f32.mxu0 0.0
      %2712 = vmatmul.mubr.f32.gmra.mrb[0].mxu0 %v2630
      %v2713 = vpop.f32.mrb[0].mxu0
      %v2714 = vadd.f32 0.0, %v2713
      %v2715 = vpop.f32.mrb[0].mxu0
      %v2716 = vadd.f32 0.0, %v2715
      %2717 = vmatprep.mubr.f32.mxu0 0.0
      %2718 = vmatmul.mubr.f32.gmra.mrb[0].mxu0 %v2633
      %v2719 = vpop.f32.mrb[0].mxu0
      %v2720 = vadd.f32 0.0, %v2719
      %v2721 = vpop.f32.mrb[0].mxu0
      %v2722 = vadd.f32 0.0, %v2721
      %2723 = vmatprep.mubr.f32.mxu0 0.0
      %2724 = vmatmul.mubr.f32.gmra.mrb[0].mxu0 %v2636
      %v2725 = vpop.f32.mrb[0].mxu0
      %v2726 = vadd.f32 0.0, %v2725
      %v2727 = vpop.f32.mrb[0].mxu0
      %v2728 = vadd.f32 0.0, %v2727
      %2729 = vmatprep.mubr.f32.mxu0 0.0
      %2730 = vmatmul.mubr.f32.gmra.mrb[0].mxu0 %v2639
      %v2731 = vpop.f32.mrb[0].mxu0
      %v2732 = vadd.f32 0.0, %v2731
      %v2733 = vpop.f32.mrb[0].mxu0
      %v2734 = vadd.f32 0.0, %v2733
      %2735 = vdwg.mxu0
      %v2736 = vadd.f32 %v2616, %v2714
      %v2737 = vadd.f32 %v2617, %v2716
      %v2738 = vadd.f32 %v2618, %v2720
      %v2739 = vadd.f32 %v2619, %v2722
      %v2740 = vadd.f32 %v2620, %v2726
      %v2741 = vadd.f32 %v2621, %v2728
      %v2742 = vadd.f32 %v2622, %v2732
      %v2743 = vadd.f32 %v2623, %v2734
      %s2744 = scalar_lea.vmem %s4, 160
      %v2745 = vld [vmem:[%s2744] sm:$0xff]
      %v2746 = vld [vmem:[%s2744 + $0x8] sm:$0xff]
      %v2747 = vld [vmem:[%s2744 + $0x10] sm:$0xff]
      %v2748 = vld [vmem:[%s2744 + $0x18] sm:$0xf]
      %2750 = vrot.lane.b32.xlu0 %v2080, 127
      %v2751 = vpop.permute.xlu0 %2750
      %2752 = vrot.lane.b32.xlu0 %v2093, 127
      %v2753 = vpop.permute.xlu0 %2752
      %2754 = vrot.lane.b32.xlu0 %v2086, 127
      %v2755 = vpop.permute.xlu0 %2754
      %2756 = vrot.lane.b32.xlu0 %v2096, 127
      %v2757 = vpop.permute.xlu0 %2756
      %v2758 = vsel %vm625, %v2751, %v2753
      %v2759 = vsel %vm625, %v2755, %v2757
      %v2763 = vsel %vm2129, %v2745, 0
      %v2766 = vsel %vm2129, %v2746, 0
      %v2769 = vsel %vm2129, %v2747, 0
      %v2772 = vsel %vm2129, %v2748, 0
      %v2774 = vsel %vm2142, %v2759, 0
      %v2776 = vsel %vm2142, %v2757, 0
      %2778 = vmatprep.subr.mxu0 %v2753
      %2779 = vmatpush1.msra.mxu0 %v2758
      %2780 = vmatprep.subr.mxu0 %v2776
      %2781 = vmatpush1.msra.mxu0 %v2774
      %2782 = vmatprep.subr.mxu0 0.0
      %2783 = vmatpush1.msra.mxu0 0.0
      %2784 = vmatprep.subr.mxu0 0.0
      %2785 = vmatpush1.msra.mxu0 0.0
      %2786 = vmatprep.subr.mxu0 0.0
      %2787 = vmatpush1.msra.mxu0 0.0
      %2788 = vmatprep.subr.mxu0 0.0
      %2789 = vmatpush1.msra.mxu0 0.0
      %2790 = vmatprep.subr.mxu0 0.0
      %2791 = vmatpush1.msra.mxu0 0.0
      %2792 = vmatprep.subr.mxu0 0.0
      %2793 = vmatpush1.msra.mxu0 0.0
      %2794 = vmatprep.subr.mxu0 0.0
      %2795 = vmatpush1.msra.mxu0 0.0
      %2796 = vmatprep.subr.mxu0 0.0
      %2797 = vmatpush1.msra.mxu0 0.0
      %2798 = vmatprep.subr.mxu0 0.0
      %2799 = vmatpush1.msra.mxu0 0.0
      %2800 = vmatprep.subr.mxu0 0.0
      %2801 = vmatpush1.msra.mxu0 0.0
      %2802 = vmatprep.subr.mxu0 0.0
      %2803 = vmatpush1.msra.mxu0 0.0
      %2804 = vmatprep.subr.mxu0 0.0
      %2805 = vmatpush1.msra.mxu0 0.0
      %2806 = vmatprep.subr.mxu0 0.0
      %2807 = vmatpush1.msra.mxu0 0.0
      %2808 = vmatprep.subr.mxu0 0.0
      %2809 = vmatpush1.msra.mxu0 0.0
      %2810 = vmatprep.subr.mxu0 0.0
      %2811 = vmatpush1.msra.mxu0 0.0
      %2812 = vmatprep.subr.mxu0 0.0
      %2813 = vmatpush1.msra.mxu0 0.0
      %2814 = vmatprep.subr.mxu0 0.0
      %2815 = vmatpush1.msra.mxu0 0.0
      %2816 = vmatprep.subr.mxu0 0.0
      %2817 = vmatpush1.msra.mxu0 0.0
      %2818 = vmatprep.subr.mxu0 0.0
      %2819 = vmatpush1.msra.mxu0 0.0
      %2820 = vmatprep.subr.mxu0 0.0
      %2821 = vmatpush1.msra.mxu0 0.0
      %2822 = vmatprep.subr.mxu0 0.0
      %2823 = vmatpush1.msra.mxu0 0.0
      %2824 = vmatprep.subr.mxu0 0.0
      %2825 = vmatpush1.msra.mxu0 0.0
      %2826 = vmatprep.subr.mxu0 0.0
      %2827 = vmatpush1.msra.mxu0 0.0
      %2828 = vmatprep.subr.mxu0 0.0
      %2829 = vmatpush1.msra.mxu0 0.0
      %2830 = vmatprep.subr.mxu0 0.0
      %2831 = vmatpush1.msra.mxu0 0.0
      %2832 = vmatprep.subr.mxu0 0.0
      %2833 = vmatpush1.msra.mxu0 0.0
      %2834 = vmatprep.subr.mxu0 0.0
      %2835 = vmatpush1.msra.mxu0 0.0
      %2836 = vmatprep.subr.mxu0 0.0
      %2837 = vmatpush1.msra.mxu0 0.0
      %2838 = vmatprep.subr.mxu0 0.0
      %2839 = vmatpush1.msra.mxu0 0.0
      %2840 = vmatprep.subr.mxu0 0.0
      %2841 = vmatpush1.msra.mxu0 0.0
      %2842 = vmatprep.mubr.f32.mxu0 0.0
      %2843 = vmatmul.mubr.f32.gmra.mrb[0].mxu0 %v2763
      %v2844 = vpop.f32.mrb[0].mxu0
      %v2845 = vadd.f32 0.0, %v2844
      %v2846 = vpop.f32.mrb[0].mxu0
      %v2847 = vadd.f32 0.0, %v2846
      %2848 = vmatprep.mubr.f32.mxu0 0.0
      %2849 = vmatmul.mubr.f32.gmra.mrb[0].mxu0 %v2766
      %v2850 = vpop.f32.mrb[0].mxu0
      %v2851 = vadd.f32 0.0, %v2850
      %v2852 = vpop.f32.mrb[0].mxu0
      %v2853 = vadd.f32 0.0, %v2852
      %2854 = vmatprep.mubr.f32.mxu0 0.0
      %2855 = vmatmul.mubr.f32.gmra.mrb[0].mxu0 %v2769
      %v2856 = vpop.f32.mrb[0].mxu0
      %v2857 = vadd.f32 0.0, %v2856
      %v2858 = vpop.f32.mrb[0].mxu0
      %v2859 = vadd.f32 0.0, %v2858
      %2860 = vmatprep.mubr.f32.mxu0 0.0
      %2861 = vmatmul.mubr.f32.gmra.mrb[0].mxu0 %v2772
      %v2862 = vpop.f32.mrb[0].mxu0
      %v2863 = vadd.f32 0.0, %v2862
      %v2864 = vpop.f32.mrb[0].mxu0
      %v2865 = vadd.f32 0.0, %v2864
      %2866 = vdwg.mxu0
      %v2867 = vadd.f32 %v2736, %v2845
      %v2868 = vadd.f32 %v2737, %v2847
      %v2869 = vadd.f32 %v2738, %v2851
      %v2870 = vadd.f32 %v2739, %v2853
      %v2871 = vadd.f32 %v2740, %v2857
      %v2872 = vadd.f32 %v2741, %v2859
      %v2873 = vadd.f32 %v2742, %v2863
      %v2874 = vadd.f32 %v2743, %v2865
      %s2875 = scalar_lea.vmem %s4, 192
      %v2876 = vld [vmem:[%s2875] sm:$0xff]
      %v2877 = vld [vmem:[%s2875 + $0x8] sm:$0xff]
      %v2878 = vld [vmem:[%s2875 + $0x10] sm:$0xff]
      %v2879 = vld [vmem:[%s2875 + $0x18] sm:$0xf]
      %2880 = vrot.lane.b32.xlu0 %v2080, 115
      %v2881 = vpop.permute.xlu0 %2880
      %2882 = vrot.lane.b32.xlu0 %v2093, 115
      %v2883 = vpop.permute.xlu0 %2882
      %2884 = vrot.lane.b32.xlu0 %v2086, 115
      %v2885 = vpop.permute.xlu0 %2884
      %2886 = vrot.lane.b32.xlu0 %v2096, 115
      %v2887 = vpop.permute.xlu0 %2886
      %vm2888 = vcmask 941056
      %v2889 = vsel %vm2888, %v2881, %v2883
      %v2890 = vsel %vm2888, %v2885, %v2887
      %v2894 = vsel %vm2129, %v2876, 0
      %v2897 = vsel %vm2129, %v2877, 0
      %v2900 = vsel %vm2129, %v2878, 0
      %v2903 = vsel %vm2129, %v2879, 0
      %v2905 = vsel %vm2142, %v2890, 0
      %v2907 = vsel %vm2142, %v2887, 0
      %2909 = vmatprep.subr.mxu0 %v2883
      %2910 = vmatpush1.msra.mxu0 %v2889
      %2911 = vmatprep.subr.mxu0 %v2907
      %2912 = vmatpush1.msra.mxu0 %v2905
      %2913 = vmatprep.subr.mxu0 0.0
      %2914 = vmatpush1.msra.mxu0 0.0
      %2915 = vmatprep.subr.mxu0 0.0
      %2916 = vmatpush1.msra.mxu0 0.0
      %2917 = vmatprep.subr.mxu0 0.0
      %2918 = vmatpush1.msra.mxu0 0.0
      %2919 = vmatprep.subr.mxu0 0.0
      %2920 = vmatpush1.msra.mxu0 0.0
      %2921 = vmatprep.subr.mxu0 0.0
      %2922 = vmatpush1.msra.mxu0 0.0
      %2923 = vmatprep.subr.mxu0 0.0
      %2924 = vmatpush1.msra.mxu0 0.0
      %2925 = vmatprep.subr.mxu0 0.0
      %2926 = vmatpush1.msra.mxu0 0.0
      %2927 = vmatprep.subr.mxu0 0.0
      %2928 = vmatpush1.msra.mxu0 0.0
      %2929 = vmatprep.subr.mxu0 0.0
      %2930 = vmatpush1.msra.mxu0 0.0
      %2931 = vmatprep.subr.mxu0 0.0
      %2932 = vmatpush1.msra.mxu0 0.0
      %2933 = vmatprep.subr.mxu0 0.0
      %2934 = vmatpush1.msra.mxu0 0.0
      %2935 = vmatprep.subr.mxu0 0.0
      %2936 = vmatpush1.msra.mxu0 0.0
      %2937 = vmatprep.subr.mxu0 0.0
      %2938 = vmatpush1.msra.mxu0 0.0
      %2939 = vmatprep.subr.mxu0 0.0
      %2940 = vmatpush1.msra.mxu0 0.0
      %2941 = vmatprep.subr.mxu0 0.0
      %2942 = vmatpush1.msra.mxu0 0.0
      %2943 = vmatprep.subr.mxu0 0.0
      %2944 = vmatpush1.msra.mxu0 0.0
      %2945 = vmatprep.subr.mxu0 0.0
      %2946 = vmatpush1.msra.mxu0 0.0
      %2947 = vmatprep.subr.mxu0 0.0
      %2948 = vmatpush1.msra.mxu0 0.0
      %2949 = vmatprep.subr.mxu0 0.0
      %2950 = vmatpush1.msra.mxu0 0.0
      %2951 = vmatprep.subr.mxu0 0.0
      %2952 = vmatpush1.msra.mxu0 0.0
      %2953 = vmatprep.subr.mxu0 0.0
      %2954 = vmatpush1.msra.mxu0 0.0
      %2955 = vmatprep.subr.mxu0 0.0
      %2956 = vmatpush1.msra.mxu0 0.0
      %2957 = vmatprep.subr.mxu0 0.0
      %2958 = vmatpush1.msra.mxu0 0.0
      %2959 = vmatprep.subr.mxu0 0.0
      %2960 = vmatpush1.msra.mxu0 0.0
      %2961 = vmatprep.subr.mxu0 0.0
      %2962 = vmatpush1.msra.mxu0 0.0
      %2963 = vmatprep.subr.mxu0 0.0
      %2964 = vmatpush1.msra.mxu0 0.0
      %2965 = vmatprep.subr.mxu0 0.0
      %2966 = vmatpush1.msra.mxu0 0.0
      %2967 = vmatprep.subr.mxu0 0.0
      %2968 = vmatpush1.msra.mxu0 0.0
      %2969 = vmatprep.subr.mxu0 0.0
      %2970 = vmatpush1.msra.mxu0 0.0
      %2971 = vmatprep.subr.mxu0 0.0
      %2972 = vmatpush1.msra.mxu0 0.0
      %2973 = vmatprep.mubr.f32.mxu0 0.0
      %2974 = vmatmul.mubr.f32.gmra.mrb[0].mxu0 %v2894
      %v2975 = vpop.f32.mrb[0].mxu0
      %v2976 = vadd.f32 0.0, %v2975
      %v2977 = vpop.f32.mrb[0].mxu0
      %v2978 = vadd.f32 0.0, %v2977
      %2979 = vmatprep.mubr.f32.mxu0 0.0
      %2980 = vmatmul.mubr.f32.gmra.mrb[0].mxu0 %v2897
      %v2981 = vpop.f32.mrb[0].mxu0
      %v2982 = vadd.f32 0.0, %v2981
      %v2983 = vpop.f32.mrb[0].mxu0
      %v2984 = vadd.f32 0.0, %v2983
      %2985 = vmatprep.mubr.f32.mxu0 0.0
      %2986 = vmatmul.mubr.f32.gmra.mrb[0].mxu0 %v2900
      %v2987 = vpop.f32.mrb[0].mxu0
      %v2988 = vadd.f32 0.0, %v2987
      %v2989 = vpop.f32.mrb[0].mxu0
      %v2990 = vadd.f32 0.0, %v2989
      %2991 = vmatprep.mubr.f32.mxu0 0.0
      %2992 = vmatmul.mubr.f32.gmra.mrb[0].mxu0 %v2903
      %v2993 = vpop.f32.mrb[0].mxu0
      %v2994 = vadd.f32 0.0, %v2993
      %v2995 = vpop.f32.mrb[0].mxu0
      %v2996 = vadd.f32 0.0, %v2995
      %2997 = vdwg.mxu0
      %v2998 = vadd.f32 %v2867, %v2976
      %v2999 = vadd.f32 %v2868, %v2978
      %v3000 = vadd.f32 %v2869, %v2982
      %v3001 = vadd.f32 %v2870, %v2984
      %v3002 = vadd.f32 %v2871, %v2988
      %v3003 = vadd.f32 %v2872, %v2990
      %v3004 = vadd.f32 %v2873, %v2994
      %v3005 = vadd.f32 %v2874, %v2996
      %s3006 = scalar_lea.vmem %s4, 224
      %v3007 = vld [vmem:[%s3006] sm:$0xff]
      %v3008 = vld [vmem:[%s3006 + $0x8] sm:$0xff]
      %v3009 = vld [vmem:[%s3006 + $0x10] sm:$0xff]
      %v3010 = vld [vmem:[%s3006 + $0x18] sm:$0xf]
      %3011 = vrot.lane.b32.xlu0 %v2080, 114
      %v3012 = vpop.permute.xlu0 %3011
      %3013 = vrot.lane.b32.xlu0 %v2093, 114
      %v3014 = vpop.permute.xlu0 %3013
      %3015 = vrot.lane.b32.xlu0 %v2086, 114
      %v3016 = vpop.permute.xlu0 %3015
      %3017 = vrot.lane.b32.xlu0 %v2096, 114
      %v3018 = vpop.permute.xlu0 %3017
      %vm3019 = vcmask 932864
      %v3020 = vsel %vm3019, %v3012, %v3014
      %v3021 = vsel %vm3019, %v3016, %v3018
      %v3025 = vsel %vm2129, %v3007, 0
      %v3028 = vsel %vm2129, %v3008, 0
      %v3031 = vsel %vm2129, %v3009, 0
      %v3034 = vsel %vm2129, %v3010, 0
      %v3036 = vsel %vm2142, %v3021, 0
      %v3038 = vsel %vm2142, %v3018, 0
      %3040 = vmatprep.subr.mxu0 %v3014
      %3041 = vmatpush1.msra.mxu0 %v3020
      %3042 = vmatprep.subr.mxu0 %v3038
      %3043 = vmatpush1.msra.mxu0 %v3036
      %3044 = vmatprep.subr.mxu0 0.0
      %3045 = vmatpush1.msra.mxu0 0.0
      %3046 = vmatprep.subr.mxu0 0.0
      %3047 = vmatpush1.msra.mxu0 0.0
      %3048 = vmatprep.subr.mxu0 0.0
      %3049 = vmatpush1.msra.mxu0 0.0
      %3050 = vmatprep.subr.mxu0 0.0
      %3051 = vmatpush1.msra.mxu0 0.0
      %3052 = vmatprep.subr.mxu0 0.0
      %3053 = vmatpush1.msra.mxu0 0.0
      %3054 = vmatprep.subr.mxu0 0.0
      %3055 = vmatpush1.msra.mxu0 0.0
      %3056 = vmatprep.subr.mxu0 0.0
      %3057 = vmatpush1.msra.mxu0 0.0
      %3058 = vmatprep.subr.mxu0 0.0
      %3059 = vmatpush1.msra.mxu0 0.0
      %3060 = vmatprep.subr.mxu0 0.0
      %3061 = vmatpush1.msra.mxu0 0.0
      %3062 = vmatprep.subr.mxu0 0.0
      %3063 = vmatpush1.msra.mxu0 0.0
      %3064 = vmatprep.subr.mxu0 0.0
      %3065 = vmatpush1.msra.mxu0 0.0
      %3066 = vmatprep.subr.mxu0 0.0
      %3067 = vmatpush1.msra.mxu0 0.0
      %3068 = vmatprep.subr.mxu0 0.0
      %3069 = vmatpush1.msra.mxu0 0.0
      %3070 = vmatprep.subr.mxu0 0.0
      %3071 = vmatpush1.msra.mxu0 0.0
      %3072 = vmatprep.subr.mxu0 0.0
      %3073 = vmatpush1.msra.mxu0 0.0
      %3074 = vmatprep.subr.mxu0 0.0
      %3075 = vmatpush1.msra.mxu0 0.0
      %3076 = vmatprep.subr.mxu0 0.0
      %3077 = vmatpush1.msra.mxu0 0.0
      %3078 = vmatprep.subr.mxu0 0.0
      %3079 = vmatpush1.msra.mxu0 0.0
      %3080 = vmatprep.subr.mxu0 0.0
      %3081 = vmatpush1.msra.mxu0 0.0
      %3082 = vmatprep.subr.mxu0 0.0
      %3083 = vmatpush1.msra.mxu0 0.0
      %3084 = vmatprep.subr.mxu0 0.0
      %3085 = vmatpush1.msra.mxu0 0.0
      %3086 = vmatprep.subr.mxu0 0.0
      %3087 = vmatpush1.msra.mxu0 0.0
      %3088 = vmatprep.subr.mxu0 0.0
      %3089 = vmatpush1.msra.mxu0 0.0
      %3090 = vmatprep.subr.mxu0 0.0
      %3091 = vmatpush1.msra.mxu0 0.0
      %3092 = vmatprep.subr.mxu0 0.0
      %3093 = vmatpush1.msra.mxu0 0.0
      %3094 = vmatprep.subr.mxu0 0.0
      %3095 = vmatpush1.msra.mxu0 0.0
      %3096 = vmatprep.subr.mxu0 0.0
      %3097 = vmatpush1.msra.mxu0 0.0
      %3098 = vmatprep.subr.mxu0 0.0
      %3099 = vmatpush1.msra.mxu0 0.0
      %3100 = vmatprep.subr.mxu0 0.0
      %3101 = vmatpush1.msra.mxu0 0.0
      %3102 = vmatprep.subr.mxu0 0.0
      %3103 = vmatpush1.msra.mxu0 0.0
      %3104 = vmatprep.mubr.f32.mxu0 0.0
      %3105 = vmatmul.mubr.f32.gmra.mrb[0].mxu0 %v3025
      %v3106 = vpop.f32.mrb[0].mxu0
      %v3107 = vadd.f32 0.0, %v3106
      %v3108 = vpop.f32.mrb[0].mxu0
      %v3109 = vadd.f32 0.0, %v3108
      %3110 = vmatprep.mubr.f32.mxu0 0.0
      %3111 = vmatmul.mubr.f32.gmra.mrb[0].mxu0 %v3028
      %v3112 = vpop.f32.mrb[0].mxu0
      %v3113 = vadd.f32 0.0, %v3112
      %v3114 = vpop.f32.mrb[0].mxu0
      %v3115 = vadd.f32 0.0, %v3114
      %3116 = vmatprep.mubr.f32.mxu0 0.0
      %3117 = vmatmul.mubr.f32.gmra.mrb[0].mxu0 %v3031
      %v3118 = vpop.f32.mrb[0].mxu0
      %v3119 = vadd.f32 0.0, %v3118
      %v3120 = vpop.f32.mrb[0].mxu0
      %v3121 = vadd.f32 0.0, %v3120
      %3122 = vmatprep.mubr.f32.mxu0 0.0
      %3123 = vmatmul.mubr.f32.gmra.mrb[0].mxu0 %v3034
      %v3124 = vpop.f32.mrb[0].mxu0
      %v3125 = vadd.f32 0.0, %v3124
      %v3126 = vpop.f32.mrb[0].mxu0
      %v3127 = vadd.f32 0.0, %v3126
      %3128 = vdwg.mxu0
      %v3129 = vadd.f32 %v2998, %v3107
      %v3130 = vadd.f32 %v2999, %v3109
      %v3131 = vadd.f32 %v3000, %v3113
      %v3132 = vadd.f32 %v3001, %v3115
      %v3133 = vadd.f32 %v3002, %v3119
      %v3134 = vadd.f32 %v3003, %v3121
      %v3135 = vadd.f32 %v3004, %v3125
      %v3136 = vadd.f32 %v3005, %v3127
      %s3137 = scalar_lea.vmem %s4, 256
      %v3138 = vld [vmem:[%s3137] sm:$0xff]
      %v3139 = vld [vmem:[%s3137 + $0x8] sm:$0xff]
      %v3140 = vld [vmem:[%s3137 + $0x10] sm:$0xff]
      %v3141 = vld [vmem:[%s3137 + $0x18] sm:$0xf]
      %3142 = vrot.lane.b32.xlu0 %v2080, 113
      %v3143 = vpop.permute.xlu0 %3142
      %3144 = vrot.lane.b32.xlu0 %v2093, 113
      %v3145 = vpop.permute.xlu0 %3144
      %3146 = vrot.lane.b32.xlu0 %v2086, 113
      %v3147 = vpop.permute.xlu0 %3146
      %3148 = vrot.lane.b32.xlu0 %v2096, 113
      %v3149 = vpop.permute.xlu0 %3148
      %vm3150 = vcmask 924672
      %v3151 = vsel %vm3150, %v3143, %v3145
      %v3152 = vsel %vm3150, %v3147, %v3149
      %v3156 = vsel %vm2129, %v3138, 0
      %v3159 = vsel %vm2129, %v3139, 0
      %v3162 = vsel %vm2129, %v3140, 0
      %v3165 = vsel %vm2129, %v3141, 0
      %v3167 = vsel %vm2142, %v3152, 0
      %v3169 = vsel %vm2142, %v3149, 0
      %3171 = vmatprep.subr.mxu0 %v3145
      %3172 = vmatpush1.msra.mxu0 %v3151
      %3173 = vmatprep.subr.mxu0 %v3169
      %3174 = vmatpush1.msra.mxu0 %v3167
      %3175 = vmatprep.subr.mxu0 0.0
      %3176 = vmatpush1.msra.mxu0 0.0
      %3177 = vmatprep.subr.mxu0 0.0
      %3178 = vmatpush1.msra.mxu0 0.0
      %3179 = vmatprep.subr.mxu0 0.0
      %3180 = vmatpush1.msra.mxu0 0.0
      %3181 = vmatprep.subr.mxu0 0.0
      %3182 = vmatpush1.msra.mxu0 0.0
      %3183 = vmatprep.subr.mxu0 0.0
      %3184 = vmatpush1.msra.mxu0 0.0
      %3185 = vmatprep.subr.mxu0 0.0
      %3186 = vmatpush1.msra.mxu0 0.0
      %3187 = vmatprep.subr.mxu0 0.0
      %3188 = vmatpush1.msra.mxu0 0.0
      %3189 = vmatprep.subr.mxu0 0.0
      %3190 = vmatpush1.msra.mxu0 0.0
      %3191 = vmatprep.subr.mxu0 0.0
      %3192 = vmatpush1.msra.mxu0 0.0
      %3193 = vmatprep.subr.mxu0 0.0
      %3194 = vmatpush1.msra.mxu0 0.0
      %3195 = vmatprep.subr.mxu0 0.0
      %3196 = vmatpush1.msra.mxu0 0.0
      %3197 = vmatprep.subr.mxu0 0.0
      %3198 = vmatpush1.msra.mxu0 0.0
      %3199 = vmatprep.subr.mxu0 0.0
      %3200 = vmatpush1.msra.mxu0 0.0
      %3201 = vmatprep.subr.mxu0 0.0
      %3202 = vmatpush1.msra.mxu0 0.0
      %3203 = vmatprep.subr.mxu0 0.0
      %3204 = vmatpush1.msra.mxu0 0.0
      %3205 = vmatprep.subr.mxu0 0.0
      %3206 = vmatpush1.msra.mxu0 0.0
      %3207 = vmatprep.subr.mxu0 0.0
      %3208 = vmatpush1.msra.mxu0 0.0
      %3209 = vmatprep.subr.mxu0 0.0
      %3210 = vmatpush1.msra.mxu0 0.0
      %3211 = vmatprep.subr.mxu0 0.0
      %3212 = vmatpush1.msra.mxu0 0.0
      %3213 = vmatprep.subr.mxu0 0.0
      %3214 = vmatpush1.msra.mxu0 0.0
      %3215 = vmatprep.subr.mxu0 0.0
      %3216 = vmatpush1.msra.mxu0 0.0
      %3217 = vmatprep.subr.mxu0 0.0
      %3218 = vmatpush1.msra.mxu0 0.0
      %3219 = vmatprep.subr.mxu0 0.0
      %3220 = vmatpush1.msra.mxu0 0.0
      %3221 = vmatprep.subr.mxu0 0.0
      %3222 = vmatpush1.msra.mxu0 0.0
      %3223 = vmatprep.subr.mxu0 0.0
      %3224 = vmatpush1.msra.mxu0 0.0
      %3225 = vmatprep.subr.mxu0 0.0
      %3226 = vmatpush1.msra.mxu0 0.0
      %3227 = vmatprep.subr.mxu0 0.0
      %3228 = vmatpush1.msra.mxu0 0.0
      %3229 = vmatprep.subr.mxu0 0.0
      %3230 = vmatpush1.msra.mxu0 0.0
      %3231 = vmatprep.subr.mxu0 0.0
      %3232 = vmatpush1.msra.mxu0 0.0
      %3233 = vmatprep.subr.mxu0 0.0
      %3234 = vmatpush1.msra.mxu0 0.0
      %3235 = vmatprep.mubr.f32.mxu0 0.0
      %3236 = vmatmul.mubr.f32.gmra.mrb[0].mxu0 %v3156
      %v3237 = vpop.f32.mrb[0].mxu0
      %v3238 = vadd.f32 0.0, %v3237
      %v3239 = vpop.f32.mrb[0].mxu0
      %v3240 = vadd.f32 0.0, %v3239
      %3241 = vmatprep.mubr.f32.mxu0 0.0
      %3242 = vmatmul.mubr.f32.gmra.mrb[0].mxu0 %v3159
      %v3243 = vpop.f32.mrb[0].mxu0
      %v3244 = vadd.f32 0.0, %v3243
      %v3245 = vpop.f32.mrb[0].mxu0
      %v3246 = vadd.f32 0.0, %v3245
      %3247 = vmatprep.mubr.f32.mxu0 0.0
      %3248 = vmatmul.mubr.f32.gmra.mrb[0].mxu0 %v3162
      %v3249 = vpop.f32.mrb[0].mxu0
      %v3250 = vadd.f32 0.0, %v3249
      %v3251 = vpop.f32.mrb[0].mxu0
      %v3252 = vadd.f32 0.0, %v3251
      %3253 = vmatprep.mubr.f32.mxu0 0.0
      %3254 = vmatmul.mubr.f32.gmra.mrb[0].mxu0 %v3165
      %v3255 = vpop.f32.mrb[0].mxu0
      %v3256 = vadd.f32 0.0, %v3255
      %v3257 = vpop.f32.mrb[0].mxu0
      %v3258 = vadd.f32 0.0, %v3257
      %3259 = vdwg.mxu0
      %v3260 = vadd.f32 %v3129, %v3238
      %v3261 = vadd.f32 %v3130, %v3240
      %v3262 = vadd.f32 %v3131, %v3244
      %v3263 = vadd.f32 %v3132, %v3246
      %v3264 = vadd.f32 %v3133, %v3250
      %v3265 = vadd.f32 %v3134, %v3252
      %v3266 = vadd.f32 %v3135, %v3256
      %v3267 = vadd.f32 %v3136, %v3258
      %v3268 = vld [vmem:[%s5] sm:$0xff]
      %v3269 = vld [vmem:[%s5 + $0x8] sm:$0xff]
      %v3270 = vld [vmem:[%s5 + $0x10] sm:$0xff]
      %v3271 = vld [vmem:[%s5 + $0x18] sm:$0xf]
      %3273 = vset.pattern.permute.xlu0 0
      %3274 = vperm.xlu0 %3273, %v3268
      %v3275 = vpop.permute.xlu0 %3274
      %3278 = vset.pattern.permute.xlu0 0
      %3279 = vperm.xlu0 %3278, %v3269
      %v3280 = vpop.permute.xlu0 %3279
      %3283 = vset.pattern.permute.xlu0 0
      %3284 = vperm.xlu0 %3283, %v3270
      %v3285 = vpop.permute.xlu0 %3284
      %3288 = vset.pattern.permute.xlu0 0
      %3289 = vperm.xlu0 %3288, %v3271
      %v3290 = vpop.permute.xlu0 %3289
      %v3292 = vadd.f32 %v3260, %v3275
      %v3293 = vadd.f32 %v3261, %v3275
      %v3294 = vadd.f32 %v3262, %v3280
      %v3295 = vadd.f32 %v3263, %v3280
      %v3296 = vadd.f32 %v3264, %v3285
      %v3297 = vadd.f32 %v3265, %v3285
      %v3298 = vadd.f32 %v3266, %v3290
      %v3299 = vadd.f32 %v3267, %v3290
      %v3300 = vmax.f32 %v3292, 0.0
      %v3301 = vmax.f32 %v3293, 0.0
      %v3302 = vmax.f32 %v3294, 0.0
      %v3303 = vmax.f32 %v3295, 0.0
      %v3304 = vmax.f32 %v3296, 0.0
      %v3305 = vmax.f32 %v3297, 0.0
      %v3306 = vmax.f32 %v3298, 0.0
      %v3307 = vmax.f32 %v3299, 0.0
      %3308 = vrot.lane.b32.xlu0 %v3300, 68
      %v3309 = vpop.permute.xlu0 %3308
      %3310 = vrot.lane.b32.xlu0 %v3302, 68
      %v3311 = vpop.permute.xlu0 %3310
      %3312 = vrot.lane.b32.xlu0 %v3304, 68
      %v3313 = vpop.permute.xlu0 %3312
      %3314 = vrot.lane.b32.xlu0 %v3306, 68
      %v3315 = vpop.permute.xlu0 %3314
      %v3316 = vsel %vm2090, %v3309, %v3301
      %v3317 = vsel %vm2090, %v3311, %v3303
      %v3318 = vsel %vm2090, %v3313, %v3305
      %v3319 = vsel %vm2090, %v3315, %v3307
      %3328 = vrot.lane.b32.xlu0 %v3300, 127
      %v3329 = vpop.permute.xlu0 %3328
      %3330 = vrot.lane.b32.xlu0 %v3316, 127
      %v3331 = vpop.permute.xlu0 %3330
      %3332 = vrot.lane.b32.xlu0 %v3302, 127
      %v3333 = vpop.permute.xlu0 %3332
      %3334 = vrot.lane.b32.xlu0 %v3317, 127
      %v3335 = vpop.permute.xlu0 %3334
      %3336 = vrot.lane.b32.xlu0 %v3304, 127
      %v3337 = vpop.permute.xlu0 %3336
      %3338 = vrot.lane.b32.xlu0 %v3318, 127
      %v3339 = vpop.permute.xlu0 %3338
      %3340 = vrot.lane.b32.xlu0 %v3306, 127
      %v3341 = vpop.permute.xlu0 %3340
      %3342 = vrot.lane.b32.xlu0 %v3319, 127
      %v3343 = vpop.permute.xlu0 %3342
      %v3344 = vsel %vm625, %v3329, %v3331
      %v3345 = vsel %vm625, %v3333, %v3335
      %v3346 = vsel %vm625, %v3337, %v3339
      %v3347 = vsel %vm625, %v3341, %v3343
      %v3356 = vmax.f32 %v3300, %v3344
      %v3357 = vmax.f32 %v3301, %v3331
      %v3358 = vmax.f32 %v3302, %v3345
      %v3359 = vmax.f32 %v3303, %v3335
      %v3360 = vmax.f32 %v3304, %v3346
      %v3361 = vmax.f32 %v3305, %v3339
      %v3362 = vmax.f32 %v3306, %v3347
      %v3363 = vmax.f32 %v3307, %v3343
      %3364 = vrot.lane.b32.xlu0 %v3356, 68
      %v3365 = vpop.permute.xlu0 %3364
      %3366 = vrot.lane.b32.xlu0 %v3358, 68
      %v3367 = vpop.permute.xlu0 %3366
      %3368 = vrot.lane.b32.xlu0 %v3360, 68
      %v3369 = vpop.permute.xlu0 %3368
      %3370 = vrot.lane.b32.xlu0 %v3362, 68
      %v3371 = vpop.permute.xlu0 %3370
      %v3372 = vsel %vm2090, %v3365, %v3357
      %v3373 = vsel %vm2090, %v3367, %v3359
      %v3374 = vsel %vm2090, %v3369, %v3361
      %v3375 = vsel %vm2090, %v3371, %v3363
      %3384 = vrot.lane.b32.xlu0 %v3356, 114
      %v3385 = vpop.permute.xlu0 %3384
      %3386 = vrot.lane.b32.xlu0 %v3372, 114
      %v3387 = vpop.permute.xlu0 %3386
      %3388 = vrot.lane.b32.xlu0 %v3358, 114
      %v3389 = vpop.permute.xlu0 %3388
      %3390 = vrot.lane.b32.xlu0 %v3373, 114
      %v3391 = vpop.permute.xlu0 %3390
      %3392 = vrot.lane.b32.xlu0 %v3360, 114
      %v3393 = vpop.permute.xlu0 %3392
      %3394 = vrot.lane.b32.xlu0 %v3374, 114
      %v3395 = vpop.permute.xlu0 %3394
      %3396 = vrot.lane.b32.xlu0 %v3362, 114
      %v3397 = vpop.permute.xlu0 %3396
      %3398 = vrot.lane.b32.xlu0 %v3375, 114
      %v3399 = vpop.permute.xlu0 %3398
      %v3400 = vsel %vm3019, %v3385, %v3387
      %v3401 = vsel %vm3019, %v3389, %v3391
      %v3402 = vsel %vm3019, %v3393, %v3395
      %v3403 = vsel %vm3019, %v3397, %v3399
      %v3412 = vmax.f32 %v3356, %v3400
      %v3413 = vmax.f32 %v3357, %v3387
      %v3414 = vmax.f32 %v3358, %v3401
      %v3415 = vmax.f32 %v3359, %v3391
      %v3416 = vmax.f32 %v3360, %v3402
      %v3417 = vmax.f32 %v3361, %v3395
      %v3418 = vmax.f32 %v3362, %v3403
      %v3419 = vmax.f32 %v3363, %v3399
      %v3420 = vld [vmem:[%s6] sm:$0xff]
      %v3421 = vld [vmem:[%s6 + $0x8] sm:$0xff]
      %v3422 = vld [vmem:[%s6 + $0x10] sm:$0xff]
      %v3423 = vld [vmem:[%s6 + $0x18] sm:$0xff]
      %v3424 = vld [vmem:[%s6 + $0x20] sm:$0xff]
      %v3425 = vld [vmem:[%s6 + $0x28] sm:$0xff]
      %v3426 = vld [vmem:[%s6 + $0x30] sm:$0xff]
      %v3427 = vld [vmem:[%s6 + $0x38] sm:$0xff]
      %v3428 = vld [vmem:[%s6 + $0x40] sm:$0xff]
      %v3429 = vld [vmem:[%s6 + $0x48] sm:$0xff]
      %v3430 = vld [vmem:[%s6 + $0x50] sm:$0xff]
      %v3431 = vld [vmem:[%s6 + $0x58] sm:$0xff]
      %v3432 = vld [vmem:[%s6 + $0x60] sm:$0xff]
      %v3433 = vld [vmem:[%s6 + $0x68] sm:$0xff]
      %v3434 = vld [vmem:[%s6 + $0x70] sm:$0xff]
      %v3435 = vld [vmem:[%s6 + $0x78] sm:$0xff]
      %v3436 = vld [vmem:[%s6 + $0x80] sm:$0xff]
      %v3437 = vld [vmem:[%s6 + $0x88] sm:$0xff]
      %v3438 = vld [vmem:[%s6 + $0x90] sm:$0xff]
      %v3439 = vld [vmem:[%s6 + $0x98] sm:$0xff]
      %v3440 = vld [vmem:[%s6 + $0xa0] sm:$0xff]
      %v3441 = vld [vmem:[%s6 + $0xa8] sm:$0xff]
      %v3442 = vld [vmem:[%s6 + $0xb0] sm:$0xff]
      %v3443 = vld [vmem:[%s6 + $0xb8] sm:$0xff]
      %v3444 = vld [vmem:[%s6 + $0xc0] sm:$0xf]
      %vm3445 = vcmask 556032
      %v3447 = vsel %vm3445, %v3413, 0
      %v3450 = vsel %vm3445, %v3415, 0
      %v3453 = vsel %vm3445, %v3417, 0
      %v3456 = vsel %vm3445, %v3419, 0
      %v3459 = vsel %vm1852, %v3444, 0
      %3461 = vmatprep.subr.mxu0 0.0
      %3462 = vmatpush1.msra.mxu0 %v3420
      %3463 = vmatprep.subr.mxu0 0.0
      %3464 = vmatpush1.msra.mxu0 %v3421
      %3465 = vmatprep.subr.mxu0 0.0
      %3466 = vmatpush1.msra.mxu0 %v3422
      %3467 = vmatprep.subr.mxu0 0.0
      %3468 = vmatpush1.msra.mxu0 %v3423
      %3469 = vmatprep.subr.mxu0 0.0
      %3470 = vmatpush1.msra.mxu0 %v3424
      %3471 = vmatprep.subr.mxu0 0.0
      %3472 = vmatpush1.msra.mxu0 %v3425
      %3473 = vmatprep.subr.mxu0 0.0
      %3474 = vmatpush1.msra.mxu0 %v3426
      %3475 = vmatprep.subr.mxu0 0.0
      %3476 = vmatpush1.msra.mxu0 %v3427
      %3477 = vmatprep.subr.mxu0 0.0
      %3478 = vmatpush1.msra.mxu0 %v3428
      %3479 = vmatprep.subr.mxu0 0.0
      %3480 = vmatpush1.msra.mxu0 %v3429
      %3481 = vmatprep.subr.mxu0 0.0
      %3482 = vmatpush1.msra.mxu0 %v3430
      %3483 = vmatprep.subr.mxu0 0.0
      %3484 = vmatpush1.msra.mxu0 %v3431
      %3485 = vmatprep.subr.mxu0 0.0
      %3486 = vmatpush1.msra.mxu0 %v3432
      %3487 = vmatprep.subr.mxu0 0.0
      %3488 = vmatpush1.msra.mxu0 %v3433
      %3489 = vmatprep.subr.mxu0 0.0
      %3490 = vmatpush1.msra.mxu0 %v3434
      %3491 = vmatprep.subr.mxu0 0.0
      %3492 = vmatpush1.msra.mxu0 %v3435
      %3493 = vmatprep.subr.mxu0 0.0
      %3494 = vmatpush1.msra.mxu0 %v3436
      %3495 = vmatprep.subr.mxu0 0.0
      %3496 = vmatpush1.msra.mxu0 %v3437
      %3497 = vmatprep.subr.mxu0 0.0
      %3498 = vmatpush1.msra.mxu0 %v3438
      %3499 = vmatprep.subr.mxu0 0.0
      %3500 = vmatpush1.msra.mxu0 %v3439
      %3501 = vmatprep.subr.mxu0 0.0
      %3502 = vmatpush1.msra.mxu0 %v3440
      %3503 = vmatprep.subr.mxu0 0.0
      %3504 = vmatpush1.msra.mxu0 %v3441
      %3505 = vmatprep.subr.mxu0 0.0
      %3506 = vmatpush1.msra.mxu0 %v3442
      %3507 = vmatprep.subr.mxu0 0.0
      %3508 = vmatpush1.msra.mxu0 %v3443
      %3509 = vmatprep.subr.mxu0 0.0
      %3510 = vmatpush1.msra.mxu0 %v3459
      %3511 = vmatprep.subr.mxu0 0.0
      %3512 = vmatpush1.msra.mxu0 0.0
      %3513 = vmatprep.subr.mxu0 0.0
      %3514 = vmatpush1.msra.mxu0 0.0
      %3515 = vmatprep.subr.mxu0 0.0
      %3516 = vmatpush1.msra.mxu0 0.0
      %3517 = vmatprep.subr.mxu0 0.0
      %3518 = vmatpush1.msra.mxu0 0.0
      %3519 = vmatprep.subr.mxu0 0.0
      %3520 = vmatpush1.msra.mxu0 0.0
      %3521 = vmatprep.subr.mxu0 0.0
      %3522 = vmatpush1.msra.mxu0 0.0
      %3523 = vmatprep.subr.mxu0 0.0
      %3524 = vmatpush1.msra.mxu0 0.0
      %3525 = vmatprep.mubr.f32.mxu0 %v3447
      %3526 = vmatmul.mubr.f32.gmra.mrb[0].mxu0 %v3412
      %v3527 = vpop.f32.mrb[0].mxu0
      %v3528 = vadd.f32 0.0, %v3527
      %v3529 = vpop.f32.mrb[0].mxu0
      %3530 = vmatprep.mubr.f32.mxu0 %v3450
      %3531 = vmatmul.mubr.f32.gmra.mrb[0].mxu0 %v3414
      %v3532 = vpop.f32.mrb[0].mxu0
      %v3533 = vadd.f32 0.0, %v3532
      %v3534 = vpop.f32.mrb[0].mxu0
      %3535 = vmatprep.mubr.f32.mxu0 %v3453
      %3536 = vmatmul.mubr.f32.gmra.mrb[0].mxu0 %v3416
      %v3537 = vpop.f32.mrb[0].mxu0
      %v3538 = vadd.f32 0.0, %v3537
      %v3539 = vpop.f32.mrb[0].mxu0
      %3540 = vmatprep.mubr.f32.mxu0 %v3456
      %3541 = vmatmul.mubr.f32.gmra.mrb[0].mxu0 %v3418
      %v3542 = vpop.f32.mrb[0].mxu0
      %v3543 = vadd.f32 0.0, %v3542
      %v3544 = vpop.f32.mrb[0].mxu0
      %3545 = vdwg.mxu0
      %vm3546 = vcmask 1048064
      %3547 = vrot.lane.b32.xlu0 %v3528, 64
      %v3548 = vpop.permute.xlu0 %3547
      %v3549 = vsel %vm3546, %v3548, %v3528
      %3550 = vrot.lane.b32.xlu0 %v3533, 64
      %v3551 = vpop.permute.xlu0 %3550
      %v3552 = vsel %vm3546, %v3551, %v3533
      %3553 = vrot.lane.b32.xlu0 %v3538, 64
      %v3554 = vpop.permute.xlu0 %3553
      %v3555 = vsel %vm3546, %v3554, %v3538
      %3556 = vrot.lane.b32.xlu0 %v3543, 64
      %v3557 = vpop.permute.xlu0 %3556
      %v3558 = vsel %vm3546, %v3557, %v3543
      %3559 = vrot.lane.b32.xlu0 %v3549, 64
      %v3560 = vpop.permute.xlu0 %3559
      %3561 = vrot.lane.b32.xlu0 %v3552, 64
      %v3562 = vpop.permute.xlu0 %3561
      %3563 = vrot.lane.b32.xlu0 %v3555, 64
      %v3564 = vpop.permute.xlu0 %3563
      %3565 = vrot.lane.b32.xlu0 %v3558, 64
      %v3566 = vpop.permute.xlu0 %3565
      %v3567 = vsel %vm3546, %v3560, %v3528
      %v3568 = vsel %vm3546, %v3562, %v3533
      %v3569 = vsel %vm3546, %v3564, %v3538
      %v3570 = vsel %vm3546, %v3566, %v3543
      %v3571 = vld [vmem:[%s7] sm:$0xff]
      %v3572 = vld [vmem:[%s7 + $0x8] sm:$0xff]
      %v3573 = vld [vmem:[%s7 + $0x10] sm:$0xff]
      %v3574 = vld [vmem:[%s7 + $0x18] sm:$0xf]
      %s3575 = scalar_lea.vmem %s7, 32
      %v3576 = vld [vmem:[%s3575] sm:$0xff]
      %v3577 = vld [vmem:[%s3575 + $0x8] sm:$0xff]
      %v3578 = vld [vmem:[%s3575 + $0x10] sm:$0xff]
      %v3579 = vld [vmem:[%s3575 + $0x18] sm:$0xf]
      %3584 = vrot.lane.b32.xlu0 %v3567, 72
      %v3585 = vpop.permute.xlu0 %3584
      %3586 = vrot.lane.b32.xlu0 %v3568, 72
      %v3587 = vpop.permute.xlu0 %3586
      %3588 = vrot.lane.b32.xlu0 %v3569, 72
      %v3589 = vpop.permute.xlu0 %3588
      %3590 = vrot.lane.b32.xlu0 %v3570, 72
      %v3591 = vpop.permute.xlu0 %3590
      %vm3595 = vcmask 228352
      %v3597 = vsel %vm3595, %v3576, 0
      %v3600 = vsel %vm3595, %v3577, 0
      %v3603 = vsel %vm3595, %v3578, 0
      %v3606 = vsel %vm3595, %v3579, 0
      %v3608 = vsel %vm1852, %v3591, 0
      %3610 = vmatprep.subr.mxu0 0.0
      %3611 = vmatpush1.msra.mxu0 %v3585
      %3612 = vmatprep.subr.mxu0 0.0
      %3613 = vmatpush1.msra.mxu0 %v3587
      %3614 = vmatprep.subr.mxu0 0.0
      %3615 = vmatpush1.msra.mxu0 %v3589
      %3616 = vmatprep.subr.mxu0 0.0
      %3617 = vmatpush1.msra.mxu0 %v3608
      %3618 = vmatprep.subr.mxu0 0.0
      %3619 = vmatpush1.msra.mxu0 0.0
      %3620 = vmatprep.subr.mxu0 0.0
      %3621 = vmatpush1.msra.mxu0 0.0
      %3622 = vmatprep.subr.mxu0 0.0
      %3623 = vmatpush1.msra.mxu0 0.0
      %3624 = vmatprep.subr.mxu0 0.0
      %3625 = vmatpush1.msra.mxu0 0.0
      %3626 = vmatprep.subr.mxu0 0.0
      %3627 = vmatpush1.msra.mxu0 0.0
      %3628 = vmatprep.subr.mxu0 0.0
      %3629 = vmatpush1.msra.mxu0 0.0
      %3630 = vmatprep.subr.mxu0 0.0
      %3631 = vmatpush1.msra.mxu0 0.0
      %3632 = vmatprep.subr.mxu0 0.0
      %3633 = vmatpush1.msra.mxu0 0.0
      %3634 = vmatprep.subr.mxu0 0.0
      %3635 = vmatpush1.msra.mxu0 0.0
      %3636 = vmatprep.subr.mxu0 0.0
      %3637 = vmatpush1.msra.mxu0 0.0
      %3638 = vmatprep.subr.mxu0 0.0
      %3639 = vmatpush1.msra.mxu0 0.0
      %3640 = vmatprep.subr.mxu0 0.0
      %3641 = vmatpush1.msra.mxu0 0.0
      %3642 = vmatprep.subr.mxu0 0.0
      %3643 = vmatpush1.msra.mxu0 0.0
      %3644 = vmatprep.subr.mxu0 0.0
      %3645 = vmatpush1.msra.mxu0 0.0
      %3646 = vmatprep.subr.mxu0 0.0
      %3647 = vmatpush1.msra.mxu0 0.0
      %3648 = vmatprep.subr.mxu0 0.0
      %3649 = vmatpush1.msra.mxu0 0.0
      %3650 = vmatprep.subr.mxu0 0.0
      %3651 = vmatpush1.msra.mxu0 0.0
      %3652 = vmatprep.subr.mxu0 0.0
      %3653 = vmatpush1.msra.mxu0 0.0
      %3654 = vmatprep.subr.mxu0 0.0
      %3655 = vmatpush1.msra.mxu0 0.0
      %3656 = vmatprep.subr.mxu0 0.0
      %3657 = vmatpush1.msra.mxu0 0.0
      %3658 = vmatprep.subr.mxu0 0.0
      %3659 = vmatpush1.msra.mxu0 0.0
      %3660 = vmatprep.subr.mxu0 0.0
      %3661 = vmatpush1.msra.mxu0 0.0
      %3662 = vmatprep.subr.mxu0 0.0
      %3663 = vmatpush1.msra.mxu0 0.0
      %3664 = vmatprep.subr.mxu0 0.0
      %3665 = vmatpush1.msra.mxu0 0.0
      %3666 = vmatprep.subr.mxu0 0.0
      %3667 = vmatpush1.msra.mxu0 0.0
      %3668 = vmatprep.subr.mxu0 0.0
      %3669 = vmatpush1.msra.mxu0 0.0
      %3670 = vmatprep.subr.mxu0 0.0
      %3671 = vmatpush1.msra.mxu0 0.0
      %3672 = vmatprep.subr.mxu0 0.0
      %3673 = vmatpush1.msra.mxu0 0.0
      %3674 = vmatprep.mubr.f32.mxu0 0.0
      %3675 = vmatmul.mubr.f32.gmra.mrb[0].mxu0 %v3597
      %v3676 = vpop.f32.mrb[0].mxu0
      %v3677 = vadd.f32 0.0, %v3676
      %v3678 = vpop.f32.mrb[0].mxu0
      %3679 = vmatprep.mubr.f32.mxu0 0.0
      %3680 = vmatmul.mubr.f32.gmra.mrb[0].mxu0 %v3600
      %v3681 = vpop.f32.mrb[0].mxu0
      %v3682 = vadd.f32 0.0, %v3681
      %v3683 = vpop.f32.mrb[0].mxu0
      %3684 = vmatprep.mubr.f32.mxu0 0.0
      %3685 = vmatmul.mubr.f32.gmra.mrb[0].mxu0 %v3603
      %v3686 = vpop.f32.mrb[0].mxu0
      %v3687 = vadd.f32 0.0, %v3686
      %v3688 = vpop.f32.mrb[0].mxu0
      %3689 = vmatprep.mubr.f32.mxu0 0.0
      %3690 = vmatmul.mubr.f32.gmra.mrb[0].mxu0 %v3606
      %v3691 = vpop.f32.mrb[0].mxu0
      %v3692 = vadd.f32 0.0, %v3691
      %v3693 = vpop.f32.mrb[0].mxu0
      %3694 = vdwg.mxu0
      %3695 = vrot.lane.b32.xlu0 %v3567, 73
      %v3696 = vpop.permute.xlu0 %3695
      %3697 = vrot.lane.b32.xlu0 %v3568, 73
      %v3698 = vpop.permute.xlu0 %3697
      %3699 = vrot.lane.b32.xlu0 %v3569, 73
      %v3700 = vpop.permute.xlu0 %3699
      %3701 = vrot.lane.b32.xlu0 %v3570, 73
      %v3702 = vpop.permute.xlu0 %3701
      %v3707 = vsel %vm3595, %v3571, 0
      %v3710 = vsel %vm3595, %v3572, 0
      %v3713 = vsel %vm3595, %v3573, 0
      %v3716 = vsel %vm3595, %v3574, 0
      %v3718 = vsel %vm1852, %v3702, 0
      %3720 = vmatprep.subr.mxu0 0.0
      %3721 = vmatpush1.msra.mxu0 %v3696
      %3722 = vmatprep.subr.mxu0 0.0
      %3723 = vmatpush1.msra.mxu0 %v3698
      %3724 = vmatprep.subr.mxu0 0.0
      %3725 = vmatpush1.msra.mxu0 %v3700
      %3726 = vmatprep.subr.mxu0 0.0
      %3727 = vmatpush1.msra.mxu0 %v3718
      %3728 = vmatprep.subr.mxu0 0.0
      %3729 = vmatpush1.msra.mxu0 0.0
      %3730 = vmatprep.subr.mxu0 0.0
      %3731 = vmatpush1.msra.mxu0 0.0
      %3732 = vmatprep.subr.mxu0 0.0
      %3733 = vmatpush1.msra.mxu0 0.0
      %3734 = vmatprep.subr.mxu0 0.0
      %3735 = vmatpush1.msra.mxu0 0.0
      %3736 = vmatprep.subr.mxu0 0.0
      %3737 = vmatpush1.msra.mxu0 0.0
      %3738 = vmatprep.subr.mxu0 0.0
      %3739 = vmatpush1.msra.mxu0 0.0
      %3740 = vmatprep.subr.mxu0 0.0
      %3741 = vmatpush1.msra.mxu0 0.0
      %3742 = vmatprep.subr.mxu0 0.0
      %3743 = vmatpush1.msra.mxu0 0.0
      %3744 = vmatprep.subr.mxu0 0.0
      %3745 = vmatpush1.msra.mxu0 0.0
      %3746 = vmatprep.subr.mxu0 0.0
      %3747 = vmatpush1.msra.mxu0 0.0
      %3748 = vmatprep.subr.mxu0 0.0
      %3749 = vmatpush1.msra.mxu0 0.0
      %3750 = vmatprep.subr.mxu0 0.0
      %3751 = vmatpush1.msra.mxu0 0.0
      %3752 = vmatprep.subr.mxu0 0.0
      %3753 = vmatpush1.msra.mxu0 0.0
      %3754 = vmatprep.subr.mxu0 0.0
      %3755 = vmatpush1.msra.mxu0 0.0
      %3756 = vmatprep.subr.mxu0 0.0
      %3757 = vmatpush1.msra.mxu0 0.0
      %3758 = vmatprep.subr.mxu0 0.0
      %3759 = vmatpush1.msra.mxu0 0.0
      %3760 = vmatprep.subr.mxu0 0.0
      %3761 = vmatpush1.msra.mxu0 0.0
      %3762 = vmatprep.subr.mxu0 0.0
      %3763 = vmatpush1.msra.mxu0 0.0
      %3764 = vmatprep.subr.mxu0 0.0
      %3765 = vmatpush1.msra.mxu0 0.0
      %3766 = vmatprep.subr.mxu0 0.0
      %3767 = vmatpush1.msra.mxu0 0.0
      %3768 = vmatprep.subr.mxu0 0.0
      %3769 = vmatpush1.msra.mxu0 0.0
      %3770 = vmatprep.subr.mxu0 0.0
      %3771 = vmatpush1.msra.mxu0 0.0
      %3772 = vmatprep.subr.mxu0 0.0
      %3773 = vmatpush1.msra.mxu0 0.0
      %3774 = vmatprep.subr.mxu0 0.0
      %3775 = vmatpush1.msra.mxu0 0.0
      %3776 = vmatprep.subr.mxu0 0.0
      %3777 = vmatpush1.msra.mxu0 0.0
      %3778 = vmatprep.subr.mxu0 0.0
      %3779 = vmatpush1.msra.mxu0 0.0
      %3780 = vmatprep.subr.mxu0 0.0
      %3781 = vmatpush1.msra.mxu0 0.0
      %3782 = vmatprep.subr.mxu0 0.0
      %3783 = vmatpush1.msra.mxu0 0.0
      %3784 = vmatprep.mubr.f32.mxu0 0.0
      %3785 = vmatmul.mubr.f32.gmra.mrb[0].mxu0 %v3707
      %v3786 = vpop.f32.mrb[0].mxu0
      %v3787 = vadd.f32 %v3677, %v3786
      %v3788 = vpop.f32.mrb[0].mxu0
      %3789 = vmatprep.mubr.f32.mxu0 0.0
      %3790 = vmatmul.mubr.f32.gmra.mrb[0].mxu0 %v3710
      %v3791 = vpop.f32.mrb[0].mxu0
      %v3792 = vadd.f32 %v3682, %v3791
      %v3793 = vpop.f32.mrb[0].mxu0
      %3794 = vmatprep.mubr.f32.mxu0 0.0
      %3795 = vmatmul.mubr.f32.gmra.mrb[0].mxu0 %v3713
      %v3796 = vpop.f32.mrb[0].mxu0
      %v3797 = vadd.f32 %v3687, %v3796
      %v3798 = vpop.f32.mrb[0].mxu0
      %3799 = vmatprep.mubr.f32.mxu0 0.0
      %3800 = vmatmul.mubr.f32.gmra.mrb[0].mxu0 %v3716
      %v3801 = vpop.f32.mrb[0].mxu0
      %v3802 = vadd.f32 %v3692, %v3801
      %v3803 = vpop.f32.mrb[0].mxu0
      %3804 = vdwg.mxu0
      %s3805 = scalar_lea.vmem %s7, 64
      %v3806 = vld [vmem:[%s3805] sm:$0xff]
      %v3807 = vld [vmem:[%s3805 + $0x8] sm:$0xff]
      %v3808 = vld [vmem:[%s3805 + $0x10] sm:$0xff]
      %v3809 = vld [vmem:[%s3805 + $0x18] sm:$0xf]
      %3810 = vrot.lane.b32.xlu0 %v3567, 71
      %v3811 = vpop.permute.xlu0 %3810
      %3812 = vrot.lane.b32.xlu0 %v3568, 71
      %v3813 = vpop.permute.xlu0 %3812
      %3814 = vrot.lane.b32.xlu0 %v3569, 71
      %v3815 = vpop.permute.xlu0 %3814
      %3816 = vrot.lane.b32.xlu0 %v3570, 71
      %v3817 = vpop.permute.xlu0 %3816
      %v3822 = vsel %vm3595, %v3806, 0
      %v3825 = vsel %vm3595, %v3807, 0
      %v3828 = vsel %vm3595, %v3808, 0
      %v3831 = vsel %vm3595, %v3809, 0
      %v3833 = vsel %vm1852, %v3817, 0
      %3835 = vmatprep.subr.mxu0 0.0
      %3836 = vmatpush1.msra.mxu0 %v3811
      %3837 = vmatprep.subr.mxu0 0.0
      %3838 = vmatpush1.msra.mxu0 %v3813
      %3839 = vmatprep.subr.mxu0 0.0
      %3840 = vmatpush1.msra.mxu0 %v3815
      %3841 = vmatprep.subr.mxu0 0.0
      %3842 = vmatpush1.msra.mxu0 %v3833
      %3843 = vmatprep.subr.mxu0 0.0
      %3844 = vmatpush1.msra.mxu0 0.0
      %3845 = vmatprep.subr.mxu0 0.0
      %3846 = vmatpush1.msra.mxu0 0.0
      %3847 = vmatprep.subr.mxu0 0.0
      %3848 = vmatpush1.msra.mxu0 0.0
      %3849 = vmatprep.subr.mxu0 0.0
      %3850 = vmatpush1.msra.mxu0 0.0
      %3851 = vmatprep.subr.mxu0 0.0
      %3852 = vmatpush1.msra.mxu0 0.0
      %3853 = vmatprep.subr.mxu0 0.0
      %3854 = vmatpush1.msra.mxu0 0.0
      %3855 = vmatprep.subr.mxu0 0.0
      %3856 = vmatpush1.msra.mxu0 0.0
      %3857 = vmatprep.subr.mxu0 0.0
      %3858 = vmatpush1.msra.mxu0 0.0
      %3859 = vmatprep.subr.mxu0 0.0
      %3860 = vmatpush1.msra.mxu0 0.0
      %3861 = vmatprep.subr.mxu0 0.0
      %3862 = vmatpush1.msra.mxu0 0.0
      %3863 = vmatprep.subr.mxu0 0.0
      %3864 = vmatpush1.msra.mxu0 0.0
      %3865 = vmatprep.subr.mxu0 0.0
      %3866 = vmatpush1.msra.mxu0 0.0
      %3867 = vmatprep.subr.mxu0 0.0
      %3868 = vmatpush1.msra.mxu0 0.0
      %3869 = vmatprep.subr.mxu0 0.0
      %3870 = vmatpush1.msra.mxu0 0.0
      %3871 = vmatprep.subr.mxu0 0.0
      %3872 = vmatpush1.msra.mxu0 0.0
      %3873 = vmatprep.subr.mxu0 0.0
      %3874 = vmatpush1.msra.mxu0 0.0
      %3875 = vmatprep.subr.mxu0 0.0
      %3876 = vmatpush1.msra.mxu0 0.0
      %3877 = vmatprep.subr.mxu0 0.0
      %3878 = vmatpush1.msra.mxu0 0.0
      %3879 = vmatprep.subr.mxu0 0.0
      %3880 = vmatpush1.msra.mxu0 0.0
      %3881 = vmatprep.subr.mxu0 0.0
      %3882 = vmatpush1.msra.mxu0 0.0
      %3883 = vmatprep.subr.mxu0 0.0
      %3884 = vmatpush1.msra.mxu0 0.0
      %3885 = vmatprep.subr.mxu0 0.0
      %3886 = vmatpush1.msra.mxu0 0.0
      %3887 = vmatprep.subr.mxu0 0.0
      %3888 = vmatpush1.msra.mxu0 0.0
      %3889 = vmatprep.subr.mxu0 0.0
      %3890 = vmatpush1.msra.mxu0 0.0
      %3891 = vmatprep.subr.mxu0 0.0
      %3892 = vmatpush1.msra.mxu0 0.0
      %3893 = vmatprep.subr.mxu0 0.0
      %3894 = vmatpush1.msra.mxu0 0.0
      %3895 = vmatprep.subr.mxu0 0.0
      %3896 = vmatpush1.msra.mxu0 0.0
      %3897 = vmatprep.subr.mxu0 0.0
      %3898 = vmatpush1.msra.mxu0 0.0
      %3899 = vmatprep.mubr.f32.mxu0 0.0
      %3900 = vmatmul.mubr.f32.gmra.mrb[0].mxu0 %v3822
      %v3901 = vpop.f32.mrb[0].mxu0
      %v3902 = vadd.f32 0.0, %v3901
      %v3903 = vpop.f32.mrb[0].mxu0
      %3904 = vmatprep.mubr.f32.mxu0 0.0
      %3905 = vmatmul.mubr.f32.gmra.mrb[0].mxu0 %v3825
      %v3906 = vpop.f32.mrb[0].mxu0
      %v3907 = vadd.f32 0.0, %v3906
      %v3908 = vpop.f32.mrb[0].mxu0
      %3909 = vmatprep.mubr.f32.mxu0 0.0
      %3910 = vmatmul.mubr.f32.gmra.mrb[0].mxu0 %v3828
      %v3911 = vpop.f32.mrb[0].mxu0
      %v3912 = vadd.f32 0.0, %v3911
      %v3913 = vpop.f32.mrb[0].mxu0
      %3914 = vmatprep.mubr.f32.mxu0 0.0
      %3915 = vmatmul.mubr.f32.gmra.mrb[0].mxu0 %v3831
      %v3916 = vpop.f32.mrb[0].mxu0
      %v3917 = vadd.f32 0.0, %v3916
      %v3918 = vpop.f32.mrb[0].mxu0
      %3919 = vdwg.mxu0
      %v3920 = vadd.f32 %v3787, %v3902
      %v3921 = vadd.f32 %v3792, %v3907
      %v3922 = vadd.f32 %v3797, %v3912
      %v3923 = vadd.f32 %v3802, %v3917
      %s3924 = scalar_lea.vmem %s7, 96
      %v3925 = vld [vmem:[%s3924] sm:$0xff]
      %v3926 = vld [vmem:[%s3924 + $0x8] sm:$0xff]
      %v3927 = vld [vmem:[%s3924 + $0x10] sm:$0xff]
      %v3928 = vld [vmem:[%s3924 + $0x18] sm:$0xf]
      %3929 = vrot.lane.b32.xlu0 %v3567, 65
      %v3930 = vpop.permute.xlu0 %3929
      %3931 = vrot.lane.b32.xlu0 %v3568, 65
      %v3932 = vpop.permute.xlu0 %3931
      %3933 = vrot.lane.b32.xlu0 %v3569, 65
      %v3934 = vpop.permute.xlu0 %3933
      %3935 = vrot.lane.b32.xlu0 %v3570, 65
      %v3936 = vpop.permute.xlu0 %3935
      %v3941 = vsel %vm3595, %v3925, 0
      %v3944 = vsel %vm3595, %v3926, 0
      %v3947 = vsel %vm3595, %v3927, 0
      %v3950 = vsel %vm3595, %v3928, 0
      %v3952 = vsel %vm1852, %v3936, 0
      %3954 = vmatprep.subr.mxu0 0.0
      %3955 = vmatpush1.msra.mxu0 %v3930
      %3956 = vmatprep.subr.mxu0 0.0
      %3957 = vmatpush1.msra.mxu0 %v3932
      %3958 = vmatprep.subr.mxu0 0.0
      %3959 = vmatpush1.msra.mxu0 %v3934
      %3960 = vmatprep.subr.mxu0 0.0
      %3961 = vmatpush1.msra.mxu0 %v3952
      %3962 = vmatprep.subr.mxu0 0.0
      %3963 = vmatpush1.msra.mxu0 0.0
      %3964 = vmatprep.subr.mxu0 0.0
      %3965 = vmatpush1.msra.mxu0 0.0
      %3966 = vmatprep.subr.mxu0 0.0
      %3967 = vmatpush1.msra.mxu0 0.0
      %3968 = vmatprep.subr.mxu0 0.0
      %3969 = vmatpush1.msra.mxu0 0.0
      %3970 = vmatprep.subr.mxu0 0.0
      %3971 = vmatpush1.msra.mxu0 0.0
      %3972 = vmatprep.subr.mxu0 0.0
      %3973 = vmatpush1.msra.mxu0 0.0
      %3974 = vmatprep.subr.mxu0 0.0
      %3975 = vmatpush1.msra.mxu0 0.0
      %3976 = vmatprep.subr.mxu0 0.0
      %3977 = vmatpush1.msra.mxu0 0.0
      %3978 = vmatprep.subr.mxu0 0.0
      %3979 = vmatpush1.msra.mxu0 0.0
      %3980 = vmatprep.subr.mxu0 0.0
      %3981 = vmatpush1.msra.mxu0 0.0
      %3982 = vmatprep.subr.mxu0 0.0
      %3983 = vmatpush1.msra.mxu0 0.0
      %3984 = vmatprep.subr.mxu0 0.0
      %3985 = vmatpush1.msra.mxu0 0.0
      %3986 = vmatprep.subr.mxu0 0.0
      %3987 = vmatpush1.msra.mxu0 0.0
      %3988 = vmatprep.subr.mxu0 0.0
      %3989 = vmatpush1.msra.mxu0 0.0
      %3990 = vmatprep.subr.mxu0 0.0
      %3991 = vmatpush1.msra.mxu0 0.0
      %3992 = vmatprep.subr.mxu0 0.0
      %3993 = vmatpush1.msra.mxu0 0.0
      %3994 = vmatprep.subr.mxu0 0.0
      %3995 = vmatpush1.msra.mxu0 0.0
      %3996 = vmatprep.subr.mxu0 0.0
      %3997 = vmatpush1.msra.mxu0 0.0
      %3998 = vmatprep.subr.mxu0 0.0
      %3999 = vmatpush1.msra.mxu0 0.0
      %4000 = vmatprep.subr.mxu0 0.0
      %4001 = vmatpush1.msra.mxu0 0.0
      %4002 = vmatprep.subr.mxu0 0.0
      %4003 = vmatpush1.msra.mxu0 0.0
      %4004 = vmatprep.subr.mxu0 0.0
      %4005 = vmatpush1.msra.mxu0 0.0
      %4006 = vmatprep.subr.mxu0 0.0
      %4007 = vmatpush1.msra.mxu0 0.0
      %4008 = vmatprep.subr.mxu0 0.0
      %4009 = vmatpush1.msra.mxu0 0.0
      %4010 = vmatprep.subr.mxu0 0.0
      %4011 = vmatpush1.msra.mxu0 0.0
      %4012 = vmatprep.subr.mxu0 0.0
      %4013 = vmatpush1.msra.mxu0 0.0
      %4014 = vmatprep.subr.mxu0 0.0
      %4015 = vmatpush1.msra.mxu0 0.0
      %4016 = vmatprep.subr.mxu0 0.0
      %4017 = vmatpush1.msra.mxu0 0.0
      %4018 = vmatprep.mubr.f32.mxu0 0.0
      %4019 = vmatmul.mubr.f32.gmra.mrb[0].mxu0 %v3941
      %v4020 = vpop.f32.mrb[0].mxu0
      %v4021 = vadd.f32 0.0, %v4020
      %v4022 = vpop.f32.mrb[0].mxu0
      %4023 = vmatprep.mubr.f32.mxu0 0.0
      %4024 = vmatmul.mubr.f32.gmra.mrb[0].mxu0 %v3944
      %v4025 = vpop.f32.mrb[0].mxu0
      %v4026 = vadd.f32 0.0, %v4025
      %v4027 = vpop.f32.mrb[0].mxu0
      %4028 = vmatprep.mubr.f32.mxu0 0.0
      %4029 = vmatmul.mubr.f32.gmra.mrb[0].mxu0 %v3947
      %v4030 = vpop.f32.mrb[0].mxu0
      %v4031 = vadd.f32 0.0, %v4030
      %v4032 = vpop.f32.mrb[0].mxu0
      %4033 = vmatprep.mubr.f32.mxu0 0.0
      %4034 = vmatmul.mubr.f32.gmra.mrb[0].mxu0 %v3950
      %v4035 = vpop.f32.mrb[0].mxu0
      %v4036 = vadd.f32 0.0, %v4035
      %v4037 = vpop.f32.mrb[0].mxu0
      %4038 = vdwg.mxu0
      %v4039 = vadd.f32 %v3920, %v4021
      %v4040 = vadd.f32 %v3921, %v4026
      %v4041 = vadd.f32 %v3922, %v4031
      %v4042 = vadd.f32 %v3923, %v4036
      %s4043 = scalar_lea.vmem %s7, 128
      %v4044 = vld [vmem:[%s4043] sm:$0xff]
      %v4045 = vld [vmem:[%s4043 + $0x8] sm:$0xff]
      %v4046 = vld [vmem:[%s4043 + $0x10] sm:$0xff]
      %v4047 = vld [vmem:[%s4043 + $0x18] sm:$0xf]
      %v4049 = vsel %vm3595, %v4044, 0
      %v4052 = vsel %vm3595, %v4045, 0
      %v4055 = vsel %vm3595, %v4046, 0
      %v4058 = vsel %vm3595, %v4047, 0
      %v4061 = vsel %vm1852, %v3543, 0
      %4063 = vmatprep.subr.mxu0 0.0
      %4064 = vmatpush1.msra.mxu0 %v3528
      %4065 = vmatprep.subr.mxu0 0.0
      %4066 = vmatpush1.msra.mxu0 %v3533
      %4067 = vmatprep.subr.mxu0 0.0
      %4068 = vmatpush1.msra.mxu0 %v3538
      %4069 = vmatprep.subr.mxu0 0.0
      %4070 = vmatpush1.msra.mxu0 %v4061
      %4071 = vmatprep.subr.mxu0 0.0
      %4072 = vmatpush1.msra.mxu0 0.0
      %4073 = vmatprep.subr.mxu0 0.0
      %4074 = vmatpush1.msra.mxu0 0.0
      %4075 = vmatprep.subr.mxu0 0.0
      %4076 = vmatpush1.msra.mxu0 0.0
      %4077 = vmatprep.subr.mxu0 0.0
      %4078 = vmatpush1.msra.mxu0 0.0
      %4079 = vmatprep.subr.mxu0 0.0
      %4080 = vmatpush1.msra.mxu0 0.0
      %4081 = vmatprep.subr.mxu0 0.0
      %4082 = vmatpush1.msra.mxu0 0.0
      %4083 = vmatprep.subr.mxu0 0.0
      %4084 = vmatpush1.msra.mxu0 0.0
      %4085 = vmatprep.subr.mxu0 0.0
      %4086 = vmatpush1.msra.mxu0 0.0
      %4087 = vmatprep.subr.mxu0 0.0
      %4088 = vmatpush1.msra.mxu0 0.0
      %4089 = vmatprep.subr.mxu0 0.0
      %4090 = vmatpush1.msra.mxu0 0.0
      %4091 = vmatprep.subr.mxu0 0.0
      %4092 = vmatpush1.msra.mxu0 0.0
      %4093 = vmatprep.subr.mxu0 0.0
      %4094 = vmatpush1.msra.mxu0 0.0
      %4095 = vmatprep.subr.mxu0 0.0
      %4096 = vmatpush1.msra.mxu0 0.0
      %4097 = vmatprep.subr.mxu0 0.0
      %4098 = vmatpush1.msra.mxu0 0.0
      %4099 = vmatprep.subr.mxu0 0.0
      %4100 = vmatpush1.msra.mxu0 0.0
      %4101 = vmatprep.subr.mxu0 0.0
      %4102 = vmatpush1.msra.mxu0 0.0
      %4103 = vmatprep.subr.mxu0 0.0
      %4104 = vmatpush1.msra.mxu0 0.0
      %4105 = vmatprep.subr.mxu0 0.0
      %4106 = vmatpush1.msra.mxu0 0.0
      %4107 = vmatprep.subr.mxu0 0.0
      %4108 = vmatpush1.msra.mxu0 0.0
      %4109 = vmatprep.subr.mxu0 0.0
      %4110 = vmatpush1.msra.mxu0 0.0
      %4111 = vmatprep.subr.mxu0 0.0
      %4112 = vmatpush1.msra.mxu0 0.0
      %4113 = vmatprep.subr.mxu0 0.0
      %4114 = vmatpush1.msra.mxu0 0.0
      %4115 = vmatprep.subr.mxu0 0.0
      %4116 = vmatpush1.msra.mxu0 0.0
      %4117 = vmatprep.subr.mxu0 0.0
      %4118 = vmatpush1.msra.mxu0 0.0
      %4119 = vmatprep.subr.mxu0 0.0
      %4120 = vmatpush1.msra.mxu0 0.0
      %4121 = vmatprep.subr.mxu0 0.0
      %4122 = vmatpush1.msra.mxu0 0.0
      %4123 = vmatprep.subr.mxu0 0.0
      %4124 = vmatpush1.msra.mxu0 0.0
      %4125 = vmatprep.subr.mxu0 0.0
      %4126 = vmatpush1.msra.mxu0 0.0
      %4127 = vmatprep.mubr.f32.mxu0 0.0
      %4128 = vmatmul.mubr.f32.gmra.mrb[0].mxu0 %v4049
      %v4129 = vpop.f32.mrb[0].mxu0
      %v4130 = vadd.f32 0.0, %v4129
      %v4131 = vpop.f32.mrb[0].mxu0
      %4132 = vmatprep.mubr.f32.mxu0 0.0
      %4133 = vmatmul.mubr.f32.gmra.mrb[0].mxu0 %v4052
      %v4134 = vpop.f32.mrb[0].mxu0
      %v4135 = vadd.f32 0.0, %v4134
      %v4136 = vpop.f32.mrb[0].mxu0
      %4137 = vmatprep.mubr.f32.mxu0 0.0
      %4138 = vmatmul.mubr.f32.gmra.mrb[0].mxu0 %v4055
      %v4139 = vpop.f32.mrb[0].mxu0
      %v4140 = vadd.f32 0.0, %v4139
      %v4141 = vpop.f32.mrb[0].mxu0
      %4142 = vmatprep.mubr.f32.mxu0 0.0
      %4143 = vmatmul.mubr.f32.gmra.mrb[0].mxu0 %v4058
      %v4144 = vpop.f32.mrb[0].mxu0
      %v4145 = vadd.f32 0.0, %v4144
      %v4146 = vpop.f32.mrb[0].mxu0
      %4147 = vdwg.mxu0
      %v4148 = vadd.f32 %v4039, %v4130
      %v4149 = vadd.f32 %v4040, %v4135
      %v4150 = vadd.f32 %v4041, %v4140
      %v4151 = vadd.f32 %v4042, %v4145
      %s4152 = scalar_lea.vmem %s7, 160
      %v4153 = vld [vmem:[%s4152] sm:$0xff]
      %v4154 = vld [vmem:[%s4152 + $0x8] sm:$0xff]
      %v4155 = vld [vmem:[%s4152 + $0x10] sm:$0xff]
      %v4156 = vld [vmem:[%s4152 + $0x18] sm:$0xf]
      %4157 = vrot.lane.b32.xlu0 %v3567, 127
      %v4158 = vpop.permute.xlu0 %4157
      %4159 = vrot.lane.b32.xlu0 %v3568, 127
      %v4160 = vpop.permute.xlu0 %4159
      %4161 = vrot.lane.b32.xlu0 %v3569, 127
      %v4162 = vpop.permute.xlu0 %4161
      %4163 = vrot.lane.b32.xlu0 %v3570, 127
      %v4164 = vpop.permute.xlu0 %4163
      %v4169 = vsel %vm3595, %v4153, 0
      %v4172 = vsel %vm3595, %v4154, 0
      %v4175 = vsel %vm3595, %v4155, 0
      %v4178 = vsel %vm3595, %v4156, 0
      %v4180 = vsel %vm1852, %v4164, 0
      %4182 = vmatprep.subr.mxu0 0.0
      %4183 = vmatpush1.msra.mxu0 %v4158
      %4184 = vmatprep.subr.mxu0 0.0
      %4185 = vmatpush1.msra.mxu0 %v4160
      %4186 = vmatprep.subr.mxu0 0.0
      %4187 = vmatpush1.msra.mxu0 %v4162
      %4188 = vmatprep.subr.mxu0 0.0
      %4189 = vmatpush1.msra.mxu0 %v4180
      %4190 = vmatprep.subr.mxu0 0.0
      %4191 = vmatpush1.msra.mxu0 0.0
      %4192 = vmatprep.subr.mxu0 0.0
      %4193 = vmatpush1.msra.mxu0 0.0
      %4194 = vmatprep.subr.mxu0 0.0
      %4195 = vmatpush1.msra.mxu0 0.0
      %4196 = vmatprep.subr.mxu0 0.0
      %4197 = vmatpush1.msra.mxu0 0.0
      %4198 = vmatprep.subr.mxu0 0.0
      %4199 = vmatpush1.msra.mxu0 0.0
      %4200 = vmatprep.subr.mxu0 0.0
      %4201 = vmatpush1.msra.mxu0 0.0
      %4202 = vmatprep.subr.mxu0 0.0
      %4203 = vmatpush1.msra.mxu0 0.0
      %4204 = vmatprep.subr.mxu0 0.0
      %4205 = vmatpush1.msra.mxu0 0.0
      %4206 = vmatprep.subr.mxu0 0.0
      %4207 = vmatpush1.msra.mxu0 0.0
      %4208 = vmatprep.subr.mxu0 0.0
      %4209 = vmatpush1.msra.mxu0 0.0
      %4210 = vmatprep.subr.mxu0 0.0
      %4211 = vmatpush1.msra.mxu0 0.0
      %4212 = vmatprep.subr.mxu0 0.0
      %4213 = vmatpush1.msra.mxu0 0.0
      %4214 = vmatprep.subr.mxu0 0.0
      %4215 = vmatpush1.msra.mxu0 0.0
      %4216 = vmatprep.subr.mxu0 0.0
      %4217 = vmatpush1.msra.mxu0 0.0
      %4218 = vmatprep.subr.mxu0 0.0
      %4219 = vmatpush1.msra.mxu0 0.0
      %4220 = vmatprep.subr.mxu0 0.0
      %4221 = vmatpush1.msra.mxu0 0.0
      %4222 = vmatprep.subr.mxu0 0.0
      %4223 = vmatpush1.msra.mxu0 0.0
      %4224 = vmatprep.subr.mxu0 0.0
      %4225 = vmatpush1.msra.mxu0 0.0
      %4226 = vmatprep.subr.mxu0 0.0
      %4227 = vmatpush1.msra.mxu0 0.0
      %4228 = vmatprep.subr.mxu0 0.0
      %4229 = vmatpush1.msra.mxu0 0.0
      %4230 = vmatprep.subr.mxu0 0.0
      %4231 = vmatpush1.msra.mxu0 0.0
      %4232 = vmatprep.subr.mxu0 0.0
      %4233 = vmatpush1.msra.mxu0 0.0
      %4234 = vmatprep.subr.mxu0 0.0
      %4235 = vmatpush1.msra.mxu0 0.0
      %4236 = vmatprep.subr.mxu0 0.0
      %4237 = vmatpush1.msra.mxu0 0.0
      %4238 = vmatprep.subr.mxu0 0.0
      %4239 = vmatpush1.msra.mxu0 0.0
      %4240 = vmatprep.subr.mxu0 0.0
      %4241 = vmatpush1.msra.mxu0 0.0
      %4242 = vmatprep.subr.mxu0 0.0
      %4243 = vmatpush1.msra.mxu0 0.0
      %4244 = vmatprep.subr.mxu0 0.0
      %4245 = vmatpush1.msra.mxu0 0.0
      %4246 = vmatprep.mubr.f32.mxu0 0.0
      %4247 = vmatmul.mubr.f32.gmra.mrb[0].mxu0 %v4169
      %v4248 = vpop.f32.mrb[0].mxu0
      %v4249 = vadd.f32 0.0, %v4248
      %v4250 = vpop.f32.mrb[0].mxu0
      %4251 = vmatprep.mubr.f32.mxu0 0.0
      %4252 = vmatmul.mubr.f32.gmra.mrb[0].mxu0 %v4172
      %v4253 = vpop.f32.mrb[0].mxu0
      %v4254 = vadd.f32 0.0, %v4253
      %v4255 = vpop.f32.mrb[0].mxu0
      %4256 = vmatprep.mubr.f32.mxu0 0.0
      %4257 = vmatmul.mubr.f32.gmra.mrb[0].mxu0 %v4175
      %v4258 = vpop.f32.mrb[0].mxu0
      %v4259 = vadd.f32 0.0, %v4258
      %v4260 = vpop.f32.mrb[0].mxu0
      %4261 = vmatprep.mubr.f32.mxu0 0.0
      %4262 = vmatmul.mubr.f32.gmra.mrb[0].mxu0 %v4178
      %v4263 = vpop.f32.mrb[0].mxu0
      %v4264 = vadd.f32 0.0, %v4263
      %v4265 = vpop.f32.mrb[0].mxu0
      %4266 = vdwg.mxu0
      %v4267 = vadd.f32 %v4148, %v4249
      %v4268 = vadd.f32 %v4149, %v4254
      %v4269 = vadd.f32 %v4150, %v4259
      %v4270 = vadd.f32 %v4151, %v4264
      %s4271 = scalar_lea.vmem %s7, 192
      %v4272 = vld [vmem:[%s4271] sm:$0xff]
      %v4273 = vld [vmem:[%s4271 + $0x8] sm:$0xff]
      %v4274 = vld [vmem:[%s4271 + $0x10] sm:$0xff]
      %v4275 = vld [vmem:[%s4271 + $0x18] sm:$0xf]
      %4276 = vrot.lane.b32.xlu0 %v3567, 121
      %v4277 = vpop.permute.xlu0 %4276
      %4278 = vrot.lane.b32.xlu0 %v3568, 121
      %v4279 = vpop.permute.xlu0 %4278
      %4280 = vrot.lane.b32.xlu0 %v3569, 121
      %v4281 = vpop.permute.xlu0 %4280
      %4282 = vrot.lane.b32.xlu0 %v3570, 121
      %v4283 = vpop.permute.xlu0 %4282
      %v4288 = vsel %vm3595, %v4272, 0
      %v4291 = vsel %vm3595, %v4273, 0
      %v4294 = vsel %vm3595, %v4274, 0
      %v4297 = vsel %vm3595, %v4275, 0
      %v4299 = vsel %vm1852, %v4283, 0
      %4301 = vmatprep.subr.mxu0 0.0
      %4302 = vmatpush1.msra.mxu0 %v4277
      %4303 = vmatprep.subr.mxu0 0.0
      %4304 = vmatpush1.msra.mxu0 %v4279
      %4305 = vmatprep.subr.mxu0 0.0
      %4306 = vmatpush1.msra.mxu0 %v4281
      %4307 = vmatprep.subr.mxu0 0.0
      %4308 = vmatpush1.msra.mxu0 %v4299
      %4309 = vmatprep.subr.mxu0 0.0
      %4310 = vmatpush1.msra.mxu0 0.0
      %4311 = vmatprep.subr.mxu0 0.0
      %4312 = vmatpush1.msra.mxu0 0.0
      %4313 = vmatprep.subr.mxu0 0.0
      %4314 = vmatpush1.msra.mxu0 0.0
      %4315 = vmatprep.subr.mxu0 0.0
      %4316 = vmatpush1.msra.mxu0 0.0
      %4317 = vmatprep.subr.mxu0 0.0
      %4318 = vmatpush1.msra.mxu0 0.0
      %4319 = vmatprep.subr.mxu0 0.0
      %4320 = vmatpush1.msra.mxu0 0.0
      %4321 = vmatprep.subr.mxu0 0.0
      %4322 = vmatpush1.msra.mxu0 0.0
      %4323 = vmatprep.subr.mxu0 0.0
      %4324 = vmatpush1.msra.mxu0 0.0
      %4325 = vmatprep.subr.mxu0 0.0
      %4326 = vmatpush1.msra.mxu0 0.0
      %4327 = vmatprep.subr.mxu0 0.0
      %4328 = vmatpush1.msra.mxu0 0.0
      %4329 = vmatprep.subr.mxu0 0.0
      %4330 = vmatpush1.msra.mxu0 0.0
      %4331 = vmatprep.subr.mxu0 0.0
      %4332 = vmatpush1.msra.mxu0 0.0
      %4333 = vmatprep.subr.mxu0 0.0
      %4334 = vmatpush1.msra.mxu0 0.0
      %4335 = vmatprep.subr.mxu0 0.0
      %4336 = vmatpush1.msra.mxu0 0.0
      %4337 = vmatprep.subr.mxu0 0.0
      %4338 = vmatpush1.msra.mxu0 0.0
      %4339 = vmatprep.subr.mxu0 0.0
      %4340 = vmatpush1.msra.mxu0 0.0
      %4341 = vmatprep.subr.mxu0 0.0
      %4342 = vmatpush1.msra.mxu0 0.0
      %4343 = vmatprep.subr.mxu0 0.0
      %4344 = vmatpush1.msra.mxu0 0.0
      %4345 = vmatprep.subr.mxu0 0.0
      %4346 = vmatpush1.msra.mxu0 0.0
      %4347 = vmatprep.subr.mxu0 0.0
      %4348 = vmatpush1.msra.mxu0 0.0
      %4349 = vmatprep.subr.mxu0 0.0
      %4350 = vmatpush1.msra.mxu0 0.0
      %4351 = vmatprep.subr.mxu0 0.0
      %4352 = vmatpush1.msra.mxu0 0.0
      %4353 = vmatprep.subr.mxu0 0.0
      %4354 = vmatpush1.msra.mxu0 0.0
      %4355 = vmatprep.subr.mxu0 0.0
      %4356 = vmatpush1.msra.mxu0 0.0
      %4357 = vmatprep.subr.mxu0 0.0
      %4358 = vmatpush1.msra.mxu0 0.0
      %4359 = vmatprep.subr.mxu0 0.0
      %4360 = vmatpush1.msra.mxu0 0.0
      %4361 = vmatprep.subr.mxu0 0.0
      %4362 = vmatpush1.msra.mxu0 0.0
      %4363 = vmatprep.subr.mxu0 0.0
      %4364 = vmatpush1.msra.mxu0 0.0
      %4365 = vmatprep.mubr.f32.mxu0 0.0
      %4366 = vmatmul.mubr.f32.gmra.mrb[0].mxu0 %v4288
      %v4367 = vpop.f32.mrb[0].mxu0
      %v4368 = vadd.f32 0.0, %v4367
      %v4369 = vpop.f32.mrb[0].mxu0
      %4370 = vmatprep.mubr.f32.mxu0 0.0
      %4371 = vmatmul.mubr.f32.gmra.mrb[0].mxu0 %v4291
      %v4372 = vpop.f32.mrb[0].mxu0
      %v4373 = vadd.f32 0.0, %v4372
      %v4374 = vpop.f32.mrb[0].mxu0
      %4375 = vmatprep.mubr.f32.mxu0 0.0
      %4376 = vmatmul.mubr.f32.gmra.mrb[0].mxu0 %v4294
      %v4377 = vpop.f32.mrb[0].mxu0
      %v4378 = vadd.f32 0.0, %v4377
      %v4379 = vpop.f32.mrb[0].mxu0
      %4380 = vmatprep.mubr.f32.mxu0 0.0
      %4381 = vmatmul.mubr.f32.gmra.mrb[0].mxu0 %v4297
      %v4382 = vpop.f32.mrb[0].mxu0
      %v4383 = vadd.f32 0.0, %v4382
      %v4384 = vpop.f32.mrb[0].mxu0
      %4385 = vdwg.mxu0
      %v4386 = vadd.f32 %v4267, %v4368
      %v4387 = vadd.f32 %v4268, %v4373
      %v4388 = vadd.f32 %v4269, %v4378
      %v4389 = vadd.f32 %v4270, %v4383
      %s4390 = scalar_lea.vmem %s7, 224
      %v4391 = vld [vmem:[%s4390] sm:$0xff]
      %v4392 = vld [vmem:[%s4390 + $0x8] sm:$0xff]
      %v4393 = vld [vmem:[%s4390 + $0x10] sm:$0xff]
      %v4394 = vld [vmem:[%s4390 + $0x18] sm:$0xf]
      %4395 = vrot.lane.b32.xlu0 %v3567, 120
      %v4396 = vpop.permute.xlu0 %4395
      %4397 = vrot.lane.b32.xlu0 %v3568, 120
      %v4398 = vpop.permute.xlu0 %4397
      %4399 = vrot.lane.b32.xlu0 %v3569, 120
      %v4400 = vpop.permute.xlu0 %4399
      %4401 = vrot.lane.b32.xlu0 %v3570, 120
      %v4402 = vpop.permute.xlu0 %4401
      %v4407 = vsel %vm3595, %v4391, 0
      %v4410 = vsel %vm3595, %v4392, 0
      %v4413 = vsel %vm3595, %v4393, 0
      %v4416 = vsel %vm3595, %v4394, 0
      %v4418 = vsel %vm1852, %v4402, 0
      %4420 = vmatprep.subr.mxu0 0.0
      %4421 = vmatpush1.msra.mxu0 %v4396
      %4422 = vmatprep.subr.mxu0 0.0
      %4423 = vmatpush1.msra.mxu0 %v4398
      %4424 = vmatprep.subr.mxu0 0.0
      %4425 = vmatpush1.msra.mxu0 %v4400
      %4426 = vmatprep.subr.mxu0 0.0
      %4427 = vmatpush1.msra.mxu0 %v4418
      %4428 = vmatprep.subr.mxu0 0.0
      %4429 = vmatpush1.msra.mxu0 0.0
      %4430 = vmatprep.subr.mxu0 0.0
      %4431 = vmatpush1.msra.mxu0 0.0
      %4432 = vmatprep.subr.mxu0 0.0
      %4433 = vmatpush1.msra.mxu0 0.0
      %4434 = vmatprep.subr.mxu0 0.0
      %4435 = vmatpush1.msra.mxu0 0.0
      %4436 = vmatprep.subr.mxu0 0.0
      %4437 = vmatpush1.msra.mxu0 0.0
      %4438 = vmatprep.subr.mxu0 0.0
      %4439 = vmatpush1.msra.mxu0 0.0
      %4440 = vmatprep.subr.mxu0 0.0
      %4441 = vmatpush1.msra.mxu0 0.0
      %4442 = vmatprep.subr.mxu0 0.0
      %4443 = vmatpush1.msra.mxu0 0.0
      %4444 = vmatprep.subr.mxu0 0.0
      %4445 = vmatpush1.msra.mxu0 0.0
      %4446 = vmatprep.subr.mxu0 0.0
      %4447 = vmatpush1.msra.mxu0 0.0
      %4448 = vmatprep.subr.mxu0 0.0
      %4449 = vmatpush1.msra.mxu0 0.0
      %4450 = vmatprep.subr.mxu0 0.0
      %4451 = vmatpush1.msra.mxu0 0.0
      %4452 = vmatprep.subr.mxu0 0.0
      %4453 = vmatpush1.msra.mxu0 0.0
      %4454 = vmatprep.subr.mxu0 0.0
      %4455 = vmatpush1.msra.mxu0 0.0
      %4456 = vmatprep.subr.mxu0 0.0
      %4457 = vmatpush1.msra.mxu0 0.0
      %4458 = vmatprep.subr.mxu0 0.0
      %4459 = vmatpush1.msra.mxu0 0.0
      %4460 = vmatprep.subr.mxu0 0.0
      %4461 = vmatpush1.msra.mxu0 0.0
      %4462 = vmatprep.subr.mxu0 0.0
      %4463 = vmatpush1.msra.mxu0 0.0
      %4464 = vmatprep.subr.mxu0 0.0
      %4465 = vmatpush1.msra.mxu0 0.0
      %4466 = vmatprep.subr.mxu0 0.0
      %4467 = vmatpush1.msra.mxu0 0.0
      %4468 = vmatprep.subr.mxu0 0.0
      %4469 = vmatpush1.msra.mxu0 0.0
      %4470 = vmatprep.subr.mxu0 0.0
      %4471 = vmatpush1.msra.mxu0 0.0
      %4472 = vmatprep.subr.mxu0 0.0
      %4473 = vmatpush1.msra.mxu0 0.0
      %4474 = vmatprep.subr.mxu0 0.0
      %4475 = vmatpush1.msra.mxu0 0.0
      %4476 = vmatprep.subr.mxu0 0.0
      %4477 = vmatpush1.msra.mxu0 0.0
      %4478 = vmatprep.subr.mxu0 0.0
      %4479 = vmatpush1.msra.mxu0 0.0
      %4480 = vmatprep.subr.mxu0 0.0
      %4481 = vmatpush1.msra.mxu0 0.0
      %4482 = vmatprep.subr.mxu0 0.0
      %4483 = vmatpush1.msra.mxu0 0.0
      %4484 = vmatprep.mubr.f32.mxu0 0.0
      %4485 = vmatmul.mubr.f32.gmra.mrb[0].mxu0 %v4407
      %v4486 = vpop.f32.mrb[0].mxu0
      %v4487 = vadd.f32 0.0, %v4486
      %v4488 = vpop.f32.mrb[0].mxu0
      %4489 = vmatprep.mubr.f32.mxu0 0.0
      %4490 = vmatmul.mubr.f32.gmra.mrb[0].mxu0 %v4410
      %v4491 = vpop.f32.mrb[0].mxu0
      %v4492 = vadd.f32 0.0, %v4491
      %v4493 = vpop.f32.mrb[0].mxu0
      %4494 = vmatprep.mubr.f32.mxu0 0.0
      %4495 = vmatmul.mubr.f32.gmra.mrb[0].mxu0 %v4413
      %v4496 = vpop.f32.mrb[0].mxu0
      %v4497 = vadd.f32 0.0, %v4496
      %v4498 = vpop.f32.mrb[0].mxu0
      %4499 = vmatprep.mubr.f32.mxu0 0.0
      %4500 = vmatmul.mubr.f32.gmra.mrb[0].mxu0 %v4416
      %v4501 = vpop.f32.mrb[0].mxu0
      %v4502 = vadd.f32 0.0, %v4501
      %v4503 = vpop.f32.mrb[0].mxu0
      %4504 = vdwg.mxu0
      %v4505 = vadd.f32 %v4386, %v4487
      %v4506 = vadd.f32 %v4387, %v4492
      %v4507 = vadd.f32 %v4388, %v4497
      %v4508 = vadd.f32 %v4389, %v4502
      %s4509 = scalar_lea.vmem %s7, 256
      %v4510 = vld [vmem:[%s4509] sm:$0xff]
      %v4511 = vld [vmem:[%s4509 + $0x8] sm:$0xff]
      %v4512 = vld [vmem:[%s4509 + $0x10] sm:$0xff]
      %v4513 = vld [vmem:[%s4509 + $0x18] sm:$0xf]
      %4514 = vrot.lane.b32.xlu0 %v3567, 119
      %v4515 = vpop.permute.xlu0 %4514
      %4516 = vrot.lane.b32.xlu0 %v3568, 119
      %v4517 = vpop.permute.xlu0 %4516
      %4518 = vrot.lane.b32.xlu0 %v3569, 119
      %v4519 = vpop.permute.xlu0 %4518
      %4520 = vrot.lane.b32.xlu0 %v3570, 119
      %v4521 = vpop.permute.xlu0 %4520
      %v4526 = vsel %vm3595, %v4510, 0
      %v4529 = vsel %vm3595, %v4511, 0
      %v4532 = vsel %vm3595, %v4512, 0
      %v4535 = vsel %vm3595, %v4513, 0
      %v4537 = vsel %vm1852, %v4521, 0
      %4539 = vmatprep.subr.mxu0 0.0
      %4540 = vmatpush1.msra.mxu0 %v4515
      %4541 = vmatprep.subr.mxu0 0.0
      %4542 = vmatpush1.msra.mxu0 %v4517
      %4543 = vmatprep.subr.mxu0 0.0
      %4544 = vmatpush1.msra.mxu0 %v4519
      %4545 = vmatprep.subr.mxu0 0.0
      %4546 = vmatpush1.msra.mxu0 %v4537
      %4547 = vmatprep.subr.mxu0 0.0
      %4548 = vmatpush1.msra.mxu0 0.0
      %4549 = vmatprep.subr.mxu0 0.0
      %4550 = vmatpush1.msra.mxu0 0.0
      %4551 = vmatprep.subr.mxu0 0.0
      %4552 = vmatpush1.msra.mxu0 0.0
      %4553 = vmatprep.subr.mxu0 0.0
      %4554 = vmatpush1.msra.mxu0 0.0
      %4555 = vmatprep.subr.mxu0 0.0
      %4556 = vmatpush1.msra.mxu0 0.0
      %4557 = vmatprep.subr.mxu0 0.0
      %4558 = vmatpush1.msra.mxu0 0.0
      %4559 = vmatprep.subr.mxu0 0.0
      %4560 = vmatpush1.msra.mxu0 0.0
      %4561 = vmatprep.subr.mxu0 0.0
      %4562 = vmatpush1.msra.mxu0 0.0
      %4563 = vmatprep.subr.mxu0 0.0
      %4564 = vmatpush1.msra.mxu0 0.0
      %4565 = vmatprep.subr.mxu0 0.0
      %4566 = vmatpush1.msra.mxu0 0.0
      %4567 = vmatprep.subr.mxu0 0.0
      %4568 = vmatpush1.msra.mxu0 0.0
      %4569 = vmatprep.subr.mxu0 0.0
      %4570 = vmatpush1.msra.mxu0 0.0
      %4571 = vmatprep.subr.mxu0 0.0
      %4572 = vmatpush1.msra.mxu0 0.0
      %4573 = vmatprep.subr.mxu0 0.0
      %4574 = vmatpush1.msra.mxu0 0.0
      %4575 = vmatprep.subr.mxu0 0.0
      %4576 = vmatpush1.msra.mxu0 0.0
      %4577 = vmatprep.subr.mxu0 0.0
      %4578 = vmatpush1.msra.mxu0 0.0
      %4579 = vmatprep.subr.mxu0 0.0
      %4580 = vmatpush1.msra.mxu0 0.0
      %4581 = vmatprep.subr.mxu0 0.0
      %4582 = vmatpush1.msra.mxu0 0.0
      %4583 = vmatprep.subr.mxu0 0.0
      %4584 = vmatpush1.msra.mxu0 0.0
      %4585 = vmatprep.subr.mxu0 0.0
      %4586 = vmatpush1.msra.mxu0 0.0
      %4587 = vmatprep.subr.mxu0 0.0
      %4588 = vmatpush1.msra.mxu0 0.0
      %4589 = vmatprep.subr.mxu0 0.0
      %4590 = vmatpush1.msra.mxu0 0.0
      %4591 = vmatprep.subr.mxu0 0.0
      %4592 = vmatpush1.msra.mxu0 0.0
      %4593 = vmatprep.subr.mxu0 0.0
      %4594 = vmatpush1.msra.mxu0 0.0
      %4595 = vmatprep.subr.mxu0 0.0
      %4596 = vmatpush1.msra.mxu0 0.0
      %4597 = vmatprep.subr.mxu0 0.0
      %4598 = vmatpush1.msra.mxu0 0.0
      %4599 = vmatprep.subr.mxu0 0.0
      %4600 = vmatpush1.msra.mxu0 0.0
      %4601 = vmatprep.subr.mxu0 0.0
      %4602 = vmatpush1.msra.mxu0 0.0
      %4603 = vmatprep.mubr.f32.mxu0 0.0
      %4604 = vmatmul.mubr.f32.gmra.mrb[0].mxu0 %v4526
      %v4605 = vpop.f32.mrb[0].mxu0
      %v4606 = vadd.f32 0.0, %v4605
      %v4607 = vpop.f32.mrb[0].mxu0
      %4608 = vmatprep.mubr.f32.mxu0 0.0
      %4609 = vmatmul.mubr.f32.gmra.mrb[0].mxu0 %v4529
      %v4610 = vpop.f32.mrb[0].mxu0
      %v4611 = vadd.f32 0.0, %v4610
      %v4612 = vpop.f32.mrb[0].mxu0
      %4613 = vmatprep.mubr.f32.mxu0 0.0
      %4614 = vmatmul.mubr.f32.gmra.mrb[0].mxu0 %v4532
      %v4615 = vpop.f32.mrb[0].mxu0
      %v4616 = vadd.f32 0.0, %v4615
      %v4617 = vpop.f32.mrb[0].mxu0
      %4618 = vmatprep.mubr.f32.mxu0 0.0
      %4619 = vmatmul.mubr.f32.gmra.mrb[0].mxu0 %v4535
      %v4620 = vpop.f32.mrb[0].mxu0
      %v4621 = vadd.f32 0.0, %v4620
      %v4622 = vpop.f32.mrb[0].mxu0
      %4623 = vdwg.mxu0
      %v4624 = vadd.f32 %v4505, %v4606
      %v4625 = vadd.f32 %v4506, %v4611
      %v4626 = vadd.f32 %v4507, %v4616
      %v4627 = vadd.f32 %v4508, %v4621
      %v4628 = vld [vmem:[%s8] sm:$0xff]
      %v4629 = vld [vmem:[%s8 + $0x8] sm:$0xff]
      %v4630 = vld [vmem:[%s8 + $0x10] sm:$0xff]
      %v4631 = vld [vmem:[%s8 + $0x18] sm:$0xf]
      %4633 = vset.pattern.permute.xlu0 0
      %4634 = vperm.xlu0 %4633, %v4628
      %v4635 = vpop.permute.xlu0 %4634
      %4638 = vset.pattern.permute.xlu0 0
      %4639 = vperm.xlu0 %4638, %v4629
      %v4640 = vpop.permute.xlu0 %4639
      %4643 = vset.pattern.permute.xlu0 0
      %4644 = vperm.xlu0 %4643, %v4630
      %v4645 = vpop.permute.xlu0 %4644
      %4648 = vset.pattern.permute.xlu0 0
      %4649 = vperm.xlu0 %4648, %v4631
      %v4650 = vpop.permute.xlu0 %4649
      %v4652 = vadd.f32 %v4624, %v4635
      %v4653 = vadd.f32 %v4625, %v4640
      %v4654 = vadd.f32 %v4626, %v4645
      %v4655 = vadd.f32 %v4627, %v4650
      %v4656 = vmax.f32 %v4652, 0.0
      %v4657 = vmax.f32 %v4653, 0.0
      %v4658 = vmax.f32 %v4654, 0.0
      %v4659 = vmax.f32 %v4655, 0.0
      %4660 = vrot.lane.b32.xlu0 %v4656, 64
      %v4661 = vpop.permute.xlu0 %4660
      %v4662 = vsel %vm3546, %v4661, %v4656
      %4663 = vrot.lane.b32.xlu0 %v4657, 64
      %v4664 = vpop.permute.xlu0 %4663
      %v4665 = vsel %vm3546, %v4664, %v4657
      %4666 = vrot.lane.b32.xlu0 %v4658, 64
      %v4667 = vpop.permute.xlu0 %4666
      %v4668 = vsel %vm3546, %v4667, %v4658
      %4669 = vrot.lane.b32.xlu0 %v4659, 64
      %v4670 = vpop.permute.xlu0 %4669
      %v4671 = vsel %vm3546, %v4670, %v4659
      %4672 = vrot.lane.b32.xlu0 %v4662, 64
      %v4673 = vpop.permute.xlu0 %4672
      %4674 = vrot.lane.b32.xlu0 %v4665, 64
      %v4675 = vpop.permute.xlu0 %4674
      %4676 = vrot.lane.b32.xlu0 %v4668, 64
      %v4677 = vpop.permute.xlu0 %4676
      %4678 = vrot.lane.b32.xlu0 %v4671, 64
      %v4679 = vpop.permute.xlu0 %4678
      %v4680 = vsel %vm3546, %v4673, %v4656
      %v4681 = vsel %vm3546, %v4675, %v4657
      %v4682 = vsel %vm3546, %v4677, %v4658
      %v4683 = vsel %vm3546, %v4679, %v4659
      %4688 = vrot.lane.b32.xlu0 %v4680, 127
      %v4689 = vpop.permute.xlu0 %4688
      %4690 = vrot.lane.b32.xlu0 %v4681, 127
      %v4691 = vpop.permute.xlu0 %4690
      %4692 = vrot.lane.b32.xlu0 %v4682, 127
      %v4693 = vpop.permute.xlu0 %4692
      %4694 = vrot.lane.b32.xlu0 %v4683, 127
      %v4695 = vpop.permute.xlu0 %4694
      %v4700 = vmax.f32 %v4656, %v4689
      %v4701 = vmax.f32 %v4657, %v4691
      %v4702 = vmax.f32 %v4658, %v4693
      %v4703 = vmax.f32 %v4659, %v4695
      %4704 = vrot.lane.b32.xlu0 %v4700, 64
      %v4705 = vpop.permute.xlu0 %4704
      %v4706 = vsel %vm3546, %v4705, %v4700
      %4707 = vrot.lane.b32.xlu0 %v4701, 64
      %v4708 = vpop.permute.xlu0 %4707
      %v4709 = vsel %vm3546, %v4708, %v4701
      %4710 = vrot.lane.b32.xlu0 %v4702, 64
      %v4711 = vpop.permute.xlu0 %4710
      %v4712 = vsel %vm3546, %v4711, %v4702
      %4713 = vrot.lane.b32.xlu0 %v4703, 64
      %v4714 = vpop.permute.xlu0 %4713
      %v4715 = vsel %vm3546, %v4714, %v4703
      %4716 = vrot.lane.b32.xlu0 %v4706, 64
      %v4717 = vpop.permute.xlu0 %4716
      %4718 = vrot.lane.b32.xlu0 %v4709, 64
      %v4719 = vpop.permute.xlu0 %4718
      %4720 = vrot.lane.b32.xlu0 %v4712, 64
      %v4721 = vpop.permute.xlu0 %4720
      %4722 = vrot.lane.b32.xlu0 %v4715, 64
      %v4723 = vpop.permute.xlu0 %4722
      %v4724 = vsel %vm3546, %v4717, %v4700
      %v4725 = vsel %vm3546, %v4719, %v4701
      %v4726 = vsel %vm3546, %v4721, %v4702
      %v4727 = vsel %vm3546, %v4723, %v4703
      %4732 = vrot.lane.b32.xlu0 %v4724, 120
      %v4733 = vpop.permute.xlu0 %4732
      %4734 = vrot.lane.b32.xlu0 %v4725, 120
      %v4735 = vpop.permute.xlu0 %4734
      %4736 = vrot.lane.b32.xlu0 %v4726, 120
      %v4737 = vpop.permute.xlu0 %4736
      %4738 = vrot.lane.b32.xlu0 %v4727, 120
      %v4739 = vpop.permute.xlu0 %4738
      %v4744 = vmax.f32 %v4700, %v4733
      %v4745 = vmax.f32 %v4701, %v4735
      %v4746 = vmax.f32 %v4702, %v4737
      %v4747 = vmax.f32 %v4703, %v4739
      %v4748 = vld [vmem:[%s9] sm:$0xff]
      %v4749 = vld [vmem:[%s9 + $0x8] sm:$0xff]
      %v4750 = vld [vmem:[%s9 + $0x10] sm:$0xff]
      %v4751 = vld [vmem:[%s9 + $0x18] sm:$0xff]
      %v4752 = vld [vmem:[%s9 + $0x20] sm:$0xff]
      %v4753 = vld [vmem:[%s9 + $0x28] sm:$0xff]
      %v4754 = vld [vmem:[%s9 + $0x30] sm:$0xff]
      %v4755 = vld [vmem:[%s9 + $0x38] sm:$0xff]
      %vm4756 = vcmask 523264
      %v4758 = vsel %vm4756, %v4744, 0
      %v4761 = vsel %vm4756, %v4745, 0
      %v4764 = vsel %vm4756, %v4746, 0
      %v4767 = vsel %vm4756, %v4747, 0
      %4769 = vmatprep.subr.mxu0 0.0
      %4770 = vmatpush1.msra.mxu0 %v4748
      %4771 = vmatprep.subr.mxu0 0.0
      %4772 = vmatpush1.msra.mxu0 %v4749
      %4773 = vmatprep.subr.mxu0 0.0
      %4774 = vmatpush1.msra.mxu0 %v4750
      %4775 = vmatprep.subr.mxu0 0.0
      %4776 = vmatpush1.msra.mxu0 %v4751
      %4777 = vmatprep.subr.mxu0 0.0
      %4778 = vmatpush1.msra.mxu0 %v4752
      %4779 = vmatprep.subr.mxu0 0.0
      %4780 = vmatpush1.msra.mxu0 %v4753
      %4781 = vmatprep.subr.mxu0 0.0
      %4782 = vmatpush1.msra.mxu0 %v4754
      %4783 = vmatprep.subr.mxu0 0.0
      %4784 = vmatpush1.msra.mxu0 %v4755
      %4785 = vmatprep.subr.mxu0 0.0
      %4786 = vmatpush1.msra.mxu0 0.0
      %4787 = vmatprep.subr.mxu0 0.0
      %4788 = vmatpush1.msra.mxu0 0.0
      %4789 = vmatprep.subr.mxu0 0.0
      %4790 = vmatpush1.msra.mxu0 0.0
      %4791 = vmatprep.subr.mxu0 0.0
      %4792 = vmatpush1.msra.mxu0 0.0
      %4793 = vmatprep.subr.mxu0 0.0
      %4794 = vmatpush1.msra.mxu0 0.0
      %4795 = vmatprep.subr.mxu0 0.0
      %4796 = vmatpush1.msra.mxu0 0.0
      %4797 = vmatprep.subr.mxu0 0.0
      %4798 = vmatpush1.msra.mxu0 0.0
      %4799 = vmatprep.subr.mxu0 0.0
      %4800 = vmatpush1.msra.mxu0 0.0
      %4801 = vmatprep.subr.mxu0 0.0
      %4802 = vmatpush1.msra.mxu0 0.0
      %4803 = vmatprep.subr.mxu0 0.0
      %4804 = vmatpush1.msra.mxu0 0.0
      %4805 = vmatprep.subr.mxu0 0.0
      %4806 = vmatpush1.msra.mxu0 0.0
      %4807 = vmatprep.subr.mxu0 0.0
      %4808 = vmatpush1.msra.mxu0 0.0
      %4809 = vmatprep.subr.mxu0 0.0
      %4810 = vmatpush1.msra.mxu0 0.0
      %4811 = vmatprep.subr.mxu0 0.0
      %4812 = vmatpush1.msra.mxu0 0.0
      %4813 = vmatprep.subr.mxu0 0.0
      %4814 = vmatpush1.msra.mxu0 0.0
      %4815 = vmatprep.subr.mxu0 0.0
      %4816 = vmatpush1.msra.mxu0 0.0
      %4817 = vmatprep.subr.mxu0 0.0
      %4818 = vmatpush1.msra.mxu0 0.0
      %4819 = vmatprep.subr.mxu0 0.0
      %4820 = vmatpush1.msra.mxu0 0.0
      %4821 = vmatprep.subr.mxu0 0.0
      %4822 = vmatpush1.msra.mxu0 0.0
      %4823 = vmatprep.subr.mxu0 0.0
      %4824 = vmatpush1.msra.mxu0 0.0
      %4825 = vmatprep.subr.mxu0 0.0
      %4826 = vmatpush1.msra.mxu0 0.0
      %4827 = vmatprep.subr.mxu0 0.0
      %4828 = vmatpush1.msra.mxu0 0.0
      %4829 = vmatprep.subr.mxu0 0.0
      %4830 = vmatpush1.msra.mxu0 0.0
      %4831 = vmatprep.subr.mxu0 0.0
      %4832 = vmatpush1.msra.mxu0 0.0
      %4833 = vmatprep.mubr.f32.mxu0 0.0
      %4834 = vmatmul.mubr.f32.gmra.mrb[0].mxu0 %v4758
      %v4835 = vpop.f32.mrb[0].mxu0
      %v4836 = vadd.f32 0.0, %v4835
      %v4837 = vpop.f32.mrb[0].mxu0
      %4838 = vmatprep.mubr.f32.mxu0 0.0
      %4839 = vmatmul.mubr.f32.gmra.mrb[0].mxu0 %v4761
      %v4840 = vpop.f32.mrb[0].mxu0
      %v4841 = vadd.f32 0.0, %v4840
      %v4842 = vpop.f32.mrb[0].mxu0
      %4843 = vmatprep.mubr.f32.mxu0 0.0
      %4844 = vmatmul.mubr.f32.gmra.mrb[0].mxu0 %v4764
      %v4845 = vpop.f32.mrb[0].mxu0
      %v4846 = vadd.f32 0.0, %v4845
      %v4847 = vpop.f32.mrb[0].mxu0
      %4848 = vmatprep.mubr.f32.mxu0 0.0
      %4849 = vmatmul.mubr.f32.gmra.mrb[0].mxu0 %v4767
      %v4850 = vpop.f32.mrb[0].mxu0
      %v4851 = vadd.f32 0.0, %v4850
      %v4852 = vpop.f32.mrb[0].mxu0
      %4853 = vdwg.mxu0
      %v4854 = vld [vmem:[%s10] sm:$0xff]
      %v4855 = vld [vmem:[%s10 + $0x8] sm:$0xff]
      %v4856 = vld [vmem:[%s10 + $0x10] sm:$0xff]
      %v4857 = vld [vmem:[%s10 + $0x18] sm:$0xff]
      %v4858 = vld [vmem:[%s10 + $0x20] sm:$0xff]
      %v4859 = vld [vmem:[%s10 + $0x28] sm:$0xff]
      %v4860 = vld [vmem:[%s10 + $0x30] sm:$0xff]
      %v4861 = vld [vmem:[%s10 + $0x38] sm:$0xff]
      %v4862 = vld [vmem:[%s10 + $0x40] sm:$0xff]
      %v4863 = vld [vmem:[%s10 + $0x48] sm:$0xff]
      %v4864 = vld [vmem:[%s10 + $0x50] sm:$0xff]
      %v4865 = vld [vmem:[%s10 + $0x58] sm:$0xff]
      %v4866 = vld [vmem:[%s10 + $0x60] sm:$0xff]
      %v4867 = vld [vmem:[%s10 + $0x68] sm:$0xff]
      %v4868 = vld [vmem:[%s10 + $0x70] sm:$0xff]
      %v4869 = vld [vmem:[%s10 + $0x78] sm:$0xff]
      %v4870 = vld [vmem:[%s10 + $0x80] sm:$0xff]
      %v4871 = vld [vmem:[%s10 + $0x88] sm:$0xff]
      %v4872 = vld [vmem:[%s10 + $0x90] sm:$0xff]
      %v4873 = vld [vmem:[%s10 + $0x98] sm:$0xff]
      %v4874 = vld [vmem:[%s10 + $0xa0] sm:$0xff]
      %s4875 = scalar_lea.vmem %s10, 168
      %v4876 = vld [vmem:[%s4875] sm:$0xff]
      %v4877 = vld [vmem:[%s4875 + $0x8] sm:$0xff]
      %v4878 = vld [vmem:[%s4875 + $0x10] sm:$0xff]
      %v4879 = vld [vmem:[%s4875 + $0x18] sm:$0xff]
      %v4880 = vld [vmem:[%s4875 + $0x20] sm:$0xff]
      %v4881 = vld [vmem:[%s4875 + $0x28] sm:$0xff]
      %v4882 = vld [vmem:[%s4875 + $0x30] sm:$0xff]
      %v4883 = vld [vmem:[%s4875 + $0x38] sm:$0xff]
      %v4884 = vld [vmem:[%s4875 + $0x40] sm:$0xff]
      %v4885 = vld [vmem:[%s4875 + $0x48] sm:$0xff]
      %v4886 = vld [vmem:[%s4875 + $0x50] sm:$0xff]
      %v4887 = vld [vmem:[%s4875 + $0x58] sm:$0xff]
      %v4888 = vld [vmem:[%s4875 + $0x60] sm:$0xff]
      %v4889 = vld [vmem:[%s4875 + $0x68] sm:$0xff]
      %v4890 = vld [vmem:[%s4875 + $0x70] sm:$0xff]
      %v4891 = vld [vmem:[%s4875 + $0x78] sm:$0xff]
      %v4892 = vld [vmem:[%s4875 + $0x80] sm:$0xff]
      %v4893 = vld [vmem:[%s4875 + $0x88] sm:$0xff]
      %v4894 = vld [vmem:[%s4875 + $0x90] sm:$0xff]
      %v4895 = vld [vmem:[%s4875 + $0x98] sm:$0xff]
      %v4896 = vld [vmem:[%s4875 + $0xa0] sm:$0xff]
      %4901 = vrot.lane.b32.xlu0 %v4836, 127
      %v4902 = vpop.permute.xlu0 %4901
      %4903 = vrot.lane.b32.xlu0 %v4841, 127
      %v4904 = vpop.permute.xlu0 %4903
      %4905 = vrot.lane.b32.xlu0 %v4846, 127
      %v4906 = vpop.permute.xlu0 %4905
      %4907 = vrot.lane.b32.xlu0 %v4851, 127
      %v4908 = vpop.permute.xlu0 %4907
      %v4913 = vsel %vm3595, %v4876, 0
      %v4916 = vsel %vm3595, %v4877, 0
      %v4919 = vsel %vm3595, %v4878, 0
      %v4922 = vsel %vm3595, %v4879, 0
      %v4925 = vsel %vm3595, %v4880, 0
      %v4928 = vsel %vm3595, %v4881, 0
      %v4931 = vsel %vm3595, %v4882, 0
      %v4934 = vsel %vm3595, %v4883, 0
      %v4937 = vsel %vm3595, %v4884, 0
      %v4940 = vsel %vm3595, %v4885, 0
      %v4943 = vsel %vm3595, %v4886, 0
      %v4946 = vsel %vm3595, %v4887, 0
      %v4949 = vsel %vm3595, %v4888, 0
      %v4952 = vsel %vm3595, %v4889, 0
      %v4955 = vsel %vm3595, %v4890, 0
      %v4958 = vsel %vm3595, %v4891, 0
      %v4961 = vsel %vm3595, %v4892, 0
      %v4964 = vsel %vm3595, %v4893, 0
      %v4967 = vsel %vm3595, %v4894, 0
      %v4970 = vsel %vm3595, %v4895, 0
      %v4973 = vsel %vm3595, %v4896, 0
      %v4975 = vsel %vm1852, %v4908, 0
      %4977 = vmatprep.subr.mxu0 0.0
      %4978 = vmatpush1.msra.mxu0 %v4902
      %4979 = vmatprep.subr.mxu0 0.0
      %4980 = vmatpush1.msra.mxu0 %v4904
      %4981 = vmatprep.subr.mxu0 0.0
      %4982 = vmatpush1.msra.mxu0 %v4906
      %4983 = vmatprep.subr.mxu0 0.0
      %4984 = vmatpush1.msra.mxu0 %v4975
      %4985 = vmatprep.subr.mxu0 0.0
      %4986 = vmatpush1.msra.mxu0 0.0
      %4987 = vmatprep.subr.mxu0 0.0
      %4988 = vmatpush1.msra.mxu0 0.0
      %4989 = vmatprep.subr.mxu0 0.0
      %4990 = vmatpush1.msra.mxu0 0.0
      %4991 = vmatprep.subr.mxu0 0.0
      %4992 = vmatpush1.msra.mxu0 0.0
      %4993 = vmatprep.subr.mxu0 0.0
      %4994 = vmatpush1.msra.mxu0 0.0
      %4995 = vmatprep.subr.mxu0 0.0
      %4996 = vmatpush1.msra.mxu0 0.0
      %4997 = vmatprep.subr.mxu0 0.0
      %4998 = vmatpush1.msra.mxu0 0.0
      %4999 = vmatprep.subr.mxu0 0.0
      %5000 = vmatpush1.msra.mxu0 0.0
      %5001 = vmatprep.subr.mxu0 0.0
      %5002 = vmatpush1.msra.mxu0 0.0
      %5003 = vmatprep.subr.mxu0 0.0
      %5004 = vmatpush1.msra.mxu0 0.0
      %5005 = vmatprep.subr.mxu0 0.0
      %5006 = vmatpush1.msra.mxu0 0.0
      %5007 = vmatprep.subr.mxu0 0.0
      %5008 = vmatpush1.msra.mxu0 0.0
      %5009 = vmatprep.subr.mxu0 0.0
      %5010 = vmatpush1.msra.mxu0 0.0
      %5011 = vmatprep.subr.mxu0 0.0
      %5012 = vmatpush1.msra.mxu0 0.0
      %5013 = vmatprep.subr.mxu0 0.0
      %5014 = vmatpush1.msra.mxu0 0.0
      %5015 = vmatprep.subr.mxu0 0.0
      %5016 = vmatpush1.msra.mxu0 0.0
      %5017 = vmatprep.subr.mxu0 0.0
      %5018 = vmatpush1.msra.mxu0 0.0
      %5019 = vmatprep.subr.mxu0 0.0
      %5020 = vmatpush1.msra.mxu0 0.0
      %5021 = vmatprep.subr.mxu0 0.0
      %5022 = vmatpush1.msra.mxu0 0.0
      %5023 = vmatprep.subr.mxu0 0.0
      %5024 = vmatpush1.msra.mxu0 0.0
      %5025 = vmatprep.subr.mxu0 0.0
      %5026 = vmatpush1.msra.mxu0 0.0
      %5027 = vmatprep.subr.mxu0 0.0
      %5028 = vmatpush1.msra.mxu0 0.0
      %5029 = vmatprep.subr.mxu0 0.0
      %5030 = vmatpush1.msra.mxu0 0.0
      %5031 = vmatprep.subr.mxu0 0.0
      %5032 = vmatpush1.msra.mxu0 0.0
      %5033 = vmatprep.subr.mxu0 0.0
      %5034 = vmatpush1.msra.mxu0 0.0
      %5035 = vmatprep.subr.mxu0 0.0
      %5036 = vmatpush1.msra.mxu0 0.0
      %5037 = vmatprep.subr.mxu0 0.0
      %5038 = vmatpush1.msra.mxu0 0.0
      %5039 = vmatprep.subr.mxu0 0.0
      %5040 = vmatpush1.msra.mxu0 0.0
      %5041 = vmatprep.mubr.f32.mxu0 0.0
      %5042 = vmatmul.mubr.f32.gmra.mrb[0].mxu0 %v4913
      %v5043 = vpop.f32.mrb[0].mxu0
      %v5044 = vadd.f32 0.0, %v5043
      %v5045 = vpop.f32.mrb[0].mxu0
      %5046 = vmatprep.mubr.f32.mxu0 0.0
      %5047 = vmatmul.mubr.f32.gmra.mrb[0].mxu0 %v4916
      %v5048 = vpop.f32.mrb[0].mxu0
      %v5049 = vadd.f32 0.0, %v5048
      %v5050 = vpop.f32.mrb[0].mxu0
      %5051 = vmatprep.mubr.f32.mxu0 0.0
      %5052 = vmatmul.mubr.f32.gmra.mrb[0].mxu0 %v4919
      %v5053 = vpop.f32.mrb[0].mxu0
      %v5054 = vadd.f32 0.0, %v5053
      %v5055 = vpop.f32.mrb[0].mxu0
      %5056 = vmatprep.mubr.f32.mxu0 0.0
      %5057 = vmatmul.mubr.f32.gmra.mrb[0].mxu0 %v4922
      %v5058 = vpop.f32.mrb[0].mxu0
      %v5059 = vadd.f32 0.0, %v5058
      %v5060 = vpop.f32.mrb[0].mxu0
      %5061 = vmatprep.mubr.f32.mxu0 0.0
      %5062 = vmatmul.mubr.f32.gmra.mrb[0].mxu0 %v4925
      %v5063 = vpop.f32.mrb[0].mxu0
      %v5064 = vadd.f32 0.0, %v5063
      %v5065 = vpop.f32.mrb[0].mxu0
      %5066 = vmatprep.mubr.f32.mxu0 0.0
      %5067 = vmatmul.mubr.f32.gmra.mrb[0].mxu0 %v4928
      %v5068 = vpop.f32.mrb[0].mxu0
      %v5069 = vadd.f32 0.0, %v5068
      %v5070 = vpop.f32.mrb[0].mxu0
      %5071 = vmatprep.mubr.f32.mxu0 0.0
      %5072 = vmatmul.mubr.f32.gmra.mrb[0].mxu0 %v4931
      %v5073 = vpop.f32.mrb[0].mxu0
      %v5074 = vadd.f32 0.0, %v5073
      %v5075 = vpop.f32.mrb[0].mxu0
      %5076 = vmatprep.mubr.f32.mxu0 0.0
      %5077 = vmatmul.mubr.f32.gmra.mrb[0].mxu0 %v4934
      %v5078 = vpop.f32.mrb[0].mxu0
      %v5079 = vadd.f32 0.0, %v5078
      %v5080 = vpop.f32.mrb[0].mxu0
      %5081 = vmatprep.mubr.f32.mxu0 0.0
      %5082 = vmatmul.mubr.f32.gmra.mrb[0].mxu0 %v4937
      %v5083 = vpop.f32.mrb[0].mxu0
      %v5084 = vadd.f32 0.0, %v5083
      %v5085 = vpop.f32.mrb[0].mxu0
      %5086 = vmatprep.mubr.f32.mxu0 0.0
      %5087 = vmatmul.mubr.f32.gmra.mrb[0].mxu0 %v4940
      %v5088 = vpop.f32.mrb[0].mxu0
      %v5089 = vadd.f32 0.0, %v5088
      %v5090 = vpop.f32.mrb[0].mxu0
      %5091 = vmatprep.mubr.f32.mxu0 0.0
      %5092 = vmatmul.mubr.f32.gmra.mrb[0].mxu0 %v4943
      %v5093 = vpop.f32.mrb[0].mxu0
      %v5094 = vadd.f32 0.0, %v5093
      %v5095 = vpop.f32.mrb[0].mxu0
      %5096 = vmatprep.mubr.f32.mxu0 0.0
      %5097 = vmatmul.mubr.f32.gmra.mrb[0].mxu0 %v4946
      %v5098 = vpop.f32.mrb[0].mxu0
      %v5099 = vadd.f32 0.0, %v5098
      %v5100 = vpop.f32.mrb[0].mxu0
      %5101 = vmatprep.mubr.f32.mxu0 0.0
      %5102 = vmatmul.mubr.f32.gmra.mrb[0].mxu0 %v4949
      %v5103 = vpop.f32.mrb[0].mxu0
      %v5104 = vadd.f32 0.0, %v5103
      %v5105 = vpop.f32.mrb[0].mxu0
      %5106 = vmatprep.mubr.f32.mxu0 0.0
      %5107 = vmatmul.mubr.f32.gmra.mrb[0].mxu0 %v4952
      %v5108 = vpop.f32.mrb[0].mxu0
      %v5109 = vadd.f32 0.0, %v5108
      %v5110 = vpop.f32.mrb[0].mxu0
      %5111 = vmatprep.mubr.f32.mxu0 0.0
      %5112 = vmatmul.mubr.f32.gmra.mrb[0].mxu0 %v4955
      %v5113 = vpop.f32.mrb[0].mxu0
      %v5114 = vadd.f32 0.0, %v5113
      %v5115 = vpop.f32.mrb[0].mxu0
      %5116 = vmatprep.mubr.f32.mxu0 0.0
      %5117 = vmatmul.mubr.f32.gmra.mrb[0].mxu0 %v4958
      %v5118 = vpop.f32.mrb[0].mxu0
      %v5119 = vadd.f32 0.0, %v5118
      %v5120 = vpop.f32.mrb[0].mxu0
      %5121 = vmatprep.mubr.f32.mxu0 0.0
      %5122 = vmatmul.mubr.f32.gmra.mrb[0].mxu0 %v4961
      %v5123 = vpop.f32.mrb[0].mxu0
      %v5124 = vadd.f32 0.0, %v5123
      %v5125 = vpop.f32.mrb[0].mxu0
      %5126 = vmatprep.mubr.f32.mxu0 0.0
      %5127 = vmatmul.mubr.f32.gmra.mrb[0].mxu0 %v4964
      %v5128 = vpop.f32.mrb[0].mxu0
      %v5129 = vadd.f32 0.0, %v5128
      %v5130 = vpop.f32.mrb[0].mxu0
      %5131 = vmatprep.mubr.f32.mxu0 0.0
      %5132 = vmatmul.mubr.f32.gmra.mrb[0].mxu0 %v4967
      %v5133 = vpop.f32.mrb[0].mxu0
      %v5134 = vadd.f32 0.0, %v5133
      %v5135 = vpop.f32.mrb[0].mxu0
      %5136 = vmatprep.mubr.f32.mxu0 0.0
      %5137 = vmatmul.mubr.f32.gmra.mrb[0].mxu0 %v4970
      %v5138 = vpop.f32.mrb[0].mxu0
      %v5139 = vadd.f32 0.0, %v5138
      %v5140 = vpop.f32.mrb[0].mxu0
      %5141 = vmatprep.mubr.f32.mxu0 0.0
      %5142 = vmatmul.mubr.f32.gmra.mrb[0].mxu0 %v4973
      %v5143 = vpop.f32.mrb[0].mxu0
      %v5144 = vadd.f32 0.0, %v5143
      %v5145 = vpop.f32.mrb[0].mxu0
      %5146 = vdwg.mxu0
      %v5148 = vsel %vm3595, %v4854, 0
      %v5151 = vsel %vm3595, %v4855, 0
      %v5154 = vsel %vm3595, %v4856, 0
      %v5157 = vsel %vm3595, %v4857, 0
      %v5160 = vsel %vm3595, %v4858, 0
      %v5163 = vsel %vm3595, %v4859, 0
      %v5166 = vsel %vm3595, %v4860, 0
      %v5169 = vsel %vm3595, %v4861, 0
      %v5172 = vsel %vm3595, %v4862, 0
      %v5175 = vsel %vm3595, %v4863, 0
      %v5178 = vsel %vm3595, %v4864, 0
      %v5181 = vsel %vm3595, %v4865, 0
      %v5184 = vsel %vm3595, %v4866, 0
      %v5187 = vsel %vm3595, %v4867, 0
      %v5190 = vsel %vm3595, %v4868, 0
      %v5193 = vsel %vm3595, %v4869, 0
      %v5196 = vsel %vm3595, %v4870, 0
      %v5199 = vsel %vm3595, %v4871, 0
      %v5202 = vsel %vm3595, %v4872, 0
      %v5205 = vsel %vm3595, %v4873, 0
      %v5208 = vsel %vm3595, %v4874, 0
      %v5210 = vsel %vm1852, %v4851, 0
      %5212 = vmatprep.subr.mxu0 0.0
      %5213 = vmatpush1.msra.mxu0 %v4836
      %5214 = vmatprep.subr.mxu0 0.0
      %5215 = vmatpush1.msra.mxu0 %v4841
      %5216 = vmatprep.subr.mxu0 0.0
      %5217 = vmatpush1.msra.mxu0 %v4846
      %5218 = vmatprep.subr.mxu0 0.0
      %5219 = vmatpush1.msra.mxu0 %v5210
      %5220 = vmatprep.subr.mxu0 0.0
      %5221 = vmatpush1.msra.mxu0 0.0
      %5222 = vmatprep.subr.mxu0 0.0
      %5223 = vmatpush1.msra.mxu0 0.0
      %5224 = vmatprep.subr.mxu0 0.0
      %5225 = vmatpush1.msra.mxu0 0.0
      %5226 = vmatprep.subr.mxu0 0.0
      %5227 = vmatpush1.msra.mxu0 0.0
      %5228 = vmatprep.subr.mxu0 0.0
      %5229 = vmatpush1.msra.mxu0 0.0
      %5230 = vmatprep.subr.mxu0 0.0
      %5231 = vmatpush1.msra.mxu0 0.0
      %5232 = vmatprep.subr.mxu0 0.0
      %5233 = vmatpush1.msra.mxu0 0.0
      %5234 = vmatprep.subr.mxu0 0.0
      %5235 = vmatpush1.msra.mxu0 0.0
      %5236 = vmatprep.subr.mxu0 0.0
      %5237 = vmatpush1.msra.mxu0 0.0
      %5238 = vmatprep.subr.mxu0 0.0
      %5239 = vmatpush1.msra.mxu0 0.0
      %5240 = vmatprep.subr.mxu0 0.0
      %5241 = vmatpush1.msra.mxu0 0.0
      %5242 = vmatprep.subr.mxu0 0.0
      %5243 = vmatpush1.msra.mxu0 0.0
      %5244 = vmatprep.subr.mxu0 0.0
      %5245 = vmatpush1.msra.mxu0 0.0
      %5246 = vmatprep.subr.mxu0 0.0
      %5247 = vmatpush1.msra.mxu0 0.0
      %5248 = vmatprep.subr.mxu0 0.0
      %5249 = vmatpush1.msra.mxu0 0.0
      %5250 = vmatprep.subr.mxu0 0.0
      %5251 = vmatpush1.msra.mxu0 0.0
      %5252 = vmatprep.subr.mxu0 0.0
      %5253 = vmatpush1.msra.mxu0 0.0
      %5254 = vmatprep.subr.mxu0 0.0
      %5255 = vmatpush1.msra.mxu0 0.0
      %5256 = vmatprep.subr.mxu0 0.0
      %5257 = vmatpush1.msra.mxu0 0.0
      %5258 = vmatprep.subr.mxu0 0.0
      %5259 = vmatpush1.msra.mxu0 0.0
      %5260 = vmatprep.subr.mxu0 0.0
      %5261 = vmatpush1.msra.mxu0 0.0
      %5262 = vmatprep.subr.mxu0 0.0
      %5263 = vmatpush1.msra.mxu0 0.0
      %5264 = vmatprep.subr.mxu0 0.0
      %5265 = vmatpush1.msra.mxu0 0.0
      %5266 = vmatprep.subr.mxu0 0.0
      %5267 = vmatpush1.msra.mxu0 0.0
      %5268 = vmatprep.subr.mxu0 0.0
      %5269 = vmatpush1.msra.mxu0 0.0
      %5270 = vmatprep.subr.mxu0 0.0
      %5271 = vmatpush1.msra.mxu0 0.0
      %5272 = vmatprep.subr.mxu0 0.0
      %5273 = vmatpush1.msra.mxu0 0.0
      %5274 = vmatprep.subr.mxu0 0.0
      %5275 = vmatpush1.msra.mxu0 0.0
      %5276 = vmatprep.mubr.f32.mxu0 0.0
      %5277 = vmatmul.mubr.f32.gmra.mrb[0].mxu0 %v5148
      %v5278 = vpop.f32.mrb[0].mxu0
      %v5279 = vadd.f32 %v5044, %v5278
      %v5280 = vpop.f32.mrb[0].mxu0
      %5281 = vmatprep.mubr.f32.mxu0 0.0
      %5282 = vmatmul.mubr.f32.gmra.mrb[0].mxu0 %v5151
      %v5283 = vpop.f32.mrb[0].mxu0
      %v5284 = vadd.f32 %v5049, %v5283
      %v5285 = vpop.f32.mrb[0].mxu0
      %5286 = vmatprep.mubr.f32.mxu0 0.0
      %5287 = vmatmul.mubr.f32.gmra.mrb[0].mxu0 %v5154
      %v5288 = vpop.f32.mrb[0].mxu0
      %v5289 = vadd.f32 %v5054, %v5288
      %v5290 = vpop.f32.mrb[0].mxu0
      %5291 = vmatprep.mubr.f32.mxu0 0.0
      %5292 = vmatmul.mubr.f32.gmra.mrb[0].mxu0 %v5157
      %v5293 = vpop.f32.mrb[0].mxu0
      %v5294 = vadd.f32 %v5059, %v5293
      %v5295 = vpop.f32.mrb[0].mxu0
      %5296 = vmatprep.mubr.f32.mxu0 0.0
      %5297 = vmatmul.mubr.f32.gmra.mrb[0].mxu0 %v5160
      %v5298 = vpop.f32.mrb[0].mxu0
      %v5299 = vadd.f32 %v5064, %v5298
      %v5300 = vpop.f32.mrb[0].mxu0
      %5301 = vmatprep.mubr.f32.mxu0 0.0
      %5302 = vmatmul.mubr.f32.gmra.mrb[0].mxu0 %v5163
      %v5303 = vpop.f32.mrb[0].mxu0
      %v5304 = vadd.f32 %v5069, %v5303
      %v5305 = vpop.f32.mrb[0].mxu0
      %5306 = vmatprep.mubr.f32.mxu0 0.0
      %5307 = vmatmul.mubr.f32.gmra.mrb[0].mxu0 %v5166
      %v5308 = vpop.f32.mrb[0].mxu0
      %v5309 = vadd.f32 %v5074, %v5308
      %v5310 = vpop.f32.mrb[0].mxu0
      %5311 = vmatprep.mubr.f32.mxu0 0.0
      %5312 = vmatmul.mubr.f32.gmra.mrb[0].mxu0 %v5169
      %v5313 = vpop.f32.mrb[0].mxu0
      %v5314 = vadd.f32 %v5079, %v5313
      %v5315 = vpop.f32.mrb[0].mxu0
      %5316 = vmatprep.mubr.f32.mxu0 0.0
      %5317 = vmatmul.mubr.f32.gmra.mrb[0].mxu0 %v5172
      %v5318 = vpop.f32.mrb[0].mxu0
      %v5319 = vadd.f32 %v5084, %v5318
      %v5320 = vpop.f32.mrb[0].mxu0
      %5321 = vmatprep.mubr.f32.mxu0 0.0
      %5322 = vmatmul.mubr.f32.gmra.mrb[0].mxu0 %v5175
      %v5323 = vpop.f32.mrb[0].mxu0
      %v5324 = vadd.f32 %v5089, %v5323
      %v5325 = vpop.f32.mrb[0].mxu0
      %5326 = vmatprep.mubr.f32.mxu0 0.0
      %5327 = vmatmul.mubr.f32.gmra.mrb[0].mxu0 %v5178
      %v5328 = vpop.f32.mrb[0].mxu0
      %v5329 = vadd.f32 %v5094, %v5328
      %v5330 = vpop.f32.mrb[0].mxu0
      %5331 = vmatprep.mubr.f32.mxu0 0.0
      %5332 = vmatmul.mubr.f32.gmra.mrb[0].mxu0 %v5181
      %v5333 = vpop.f32.mrb[0].mxu0
      %v5334 = vadd.f32 %v5099, %v5333
      %v5335 = vpop.f32.mrb[0].mxu0
      %5336 = vmatprep.mubr.f32.mxu0 0.0
      %5337 = vmatmul.mubr.f32.gmra.mrb[0].mxu0 %v5184
      %v5338 = vpop.f32.mrb[0].mxu0
      %v5339 = vadd.f32 %v5104, %v5338
      %v5340 = vpop.f32.mrb[0].mxu0
      %5341 = vmatprep.mubr.f32.mxu0 0.0
      %5342 = vmatmul.mubr.f32.gmra.mrb[0].mxu0 %v5187
      %v5343 = vpop.f32.mrb[0].mxu0
      %v5344 = vadd.f32 %v5109, %v5343
      %v5345 = vpop.f32.mrb[0].mxu0
      %5346 = vmatprep.mubr.f32.mxu0 0.0
      %5347 = vmatmul.mubr.f32.gmra.mrb[0].mxu0 %v5190
      %v5348 = vpop.f32.mrb[0].mxu0
      %v5349 = vadd.f32 %v5114, %v5348
      %v5350 = vpop.f32.mrb[0].mxu0
      %5351 = vmatprep.mubr.f32.mxu0 0.0
      %5352 = vmatmul.mubr.f32.gmra.mrb[0].mxu0 %v5193
      %v5353 = vpop.f32.mrb[0].mxu0
      %v5354 = vadd.f32 %v5119, %v5353
      %v5355 = vpop.f32.mrb[0].mxu0
      %5356 = vmatprep.mubr.f32.mxu0 0.0
      %5357 = vmatmul.mubr.f32.gmra.mrb[0].mxu0 %v5196
      %v5358 = vpop.f32.mrb[0].mxu0
      %v5359 = vadd.f32 %v5124, %v5358
      %v5360 = vpop.f32.mrb[0].mxu0
      %5361 = vmatprep.mubr.f32.mxu0 0.0
      %5362 = vmatmul.mubr.f32.gmra.mrb[0].mxu0 %v5199
      %v5363 = vpop.f32.mrb[0].mxu0
      %v5364 = vadd.f32 %v5129, %v5363
      %v5365 = vpop.f32.mrb[0].mxu0
      %5366 = vmatprep.mubr.f32.mxu0 0.0
      %5367 = vmatmul.mubr.f32.gmra.mrb[0].mxu0 %v5202
      %v5368 = vpop.f32.mrb[0].mxu0
      %v5369 = vadd.f32 %v5134, %v5368
      %v5370 = vpop.f32.mrb[0].mxu0
      %5371 = vmatprep.mubr.f32.mxu0 0.0
      %5372 = vmatmul.mubr.f32.gmra.mrb[0].mxu0 %v5205
      %v5373 = vpop.f32.mrb[0].mxu0
      %v5374 = vadd.f32 %v5139, %v5373
      %v5375 = vpop.f32.mrb[0].mxu0
      %5376 = vmatprep.mubr.f32.mxu0 0.0
      %5377 = vmatmul.mubr.f32.gmra.mrb[0].mxu0 %v5208
      %v5378 = vpop.f32.mrb[0].mxu0
      %v5379 = vadd.f32 %v5144, %v5378
      %v5380 = vpop.f32.mrb[0].mxu0
      %5381 = vdwg.mxu0
      %s5382 = scalar_lea.vmem %s10, 336
      %v5383 = vld [vmem:[%s5382] sm:$0xff]
      %v5384 = vld [vmem:[%s5382 + $0x8] sm:$0xff]
      %v5385 = vld [vmem:[%s5382 + $0x10] sm:$0xff]
      %v5386 = vld [vmem:[%s5382 + $0x18] sm:$0xff]
      %v5387 = vld [vmem:[%s5382 + $0x20] sm:$0xff]
      %v5388 = vld [vmem:[%s5382 + $0x28] sm:$0xff]
      %v5389 = vld [vmem:[%s5382 + $0x30] sm:$0xff]
      %v5390 = vld [vmem:[%s5382 + $0x38] sm:$0xff]
      %v5391 = vld [vmem:[%s5382 + $0x40] sm:$0xff]
      %v5392 = vld [vmem:[%s5382 + $0x48] sm:$0xff]
      %v5393 = vld [vmem:[%s5382 + $0x50] sm:$0xff]
      %v5394 = vld [vmem:[%s5382 + $0x58] sm:$0xff]
      %v5395 = vld [vmem:[%s5382 + $0x60] sm:$0xff]
      %v5396 = vld [vmem:[%s5382 + $0x68] sm:$0xff]
      %v5397 = vld [vmem:[%s5382 + $0x70] sm:$0xff]
      %v5398 = vld [vmem:[%s5382 + $0x78] sm:$0xff]
      %v5399 = vld [vmem:[%s5382 + $0x80] sm:$0xff]
      %v5400 = vld [vmem:[%s5382 + $0x88] sm:$0xff]
      %v5401 = vld [vmem:[%s5382 + $0x90] sm:$0xff]
      %v5402 = vld [vmem:[%s5382 + $0x98] sm:$0xff]
      %v5403 = vld [vmem:[%s5382 + $0xa0] sm:$0xff]
      %5404 = vrot.lane.b32.xlu0 %v4836, 126
      %v5405 = vpop.permute.xlu0 %5404
      %5406 = vrot.lane.b32.xlu0 %v4841, 126
      %v5407 = vpop.permute.xlu0 %5406
      %5408 = vrot.lane.b32.xlu0 %v4846, 126
      %v5409 = vpop.permute.xlu0 %5408
      %5410 = vrot.lane.b32.xlu0 %v4851, 126
      %v5411 = vpop.permute.xlu0 %5410
      %v5416 = vsel %vm3595, %v5383, 0
      %v5419 = vsel %vm3595, %v5384, 0
      %v5422 = vsel %vm3595, %v5385, 0
      %v5425 = vsel %vm3595, %v5386, 0
      %v5428 = vsel %vm3595, %v5387, 0
      %v5431 = vsel %vm3595, %v5388, 0
      %v5434 = vsel %vm3595, %v5389, 0
      %v5437 = vsel %vm3595, %v5390, 0
      %v5440 = vsel %vm3595, %v5391, 0
      %v5443 = vsel %vm3595, %v5392, 0
      %v5446 = vsel %vm3595, %v5393, 0
      %v5449 = vsel %vm3595, %v5394, 0
      %v5452 = vsel %vm3595, %v5395, 0
      %v5455 = vsel %vm3595, %v5396, 0
      %v5458 = vsel %vm3595, %v5397, 0
      %v5461 = vsel %vm3595, %v5398, 0
      %v5464 = vsel %vm3595, %v5399, 0
      %v5467 = vsel %vm3595, %v5400, 0
      %v5470 = vsel %vm3595, %v5401, 0
      %v5473 = vsel %vm3595, %v5402, 0
      %v5476 = vsel %vm3595, %v5403, 0
      %v5478 = vsel %vm1852, %v5411, 0
      %5480 = vmatprep.subr.mxu0 0.0
      %5481 = vmatpush1.msra.mxu0 %v5405
      %5482 = vmatprep.subr.mxu0 0.0
      %5483 = vmatpush1.msra.mxu0 %v5407
      %5484 = vmatprep.subr.mxu0 0.0
      %5485 = vmatpush1.msra.mxu0 %v5409
      %5486 = vmatprep.subr.mxu0 0.0
      %5487 = vmatpush1.msra.mxu0 %v5478
      %5488 = vmatprep.subr.mxu0 0.0
      %5489 = vmatpush1.msra.mxu0 0.0
      %5490 = vmatprep.subr.mxu0 0.0
      %5491 = vmatpush1.msra.mxu0 0.0
      %5492 = vmatprep.subr.mxu0 0.0
      %5493 = vmatpush1.msra.mxu0 0.0
      %5494 = vmatprep.subr.mxu0 0.0
      %5495 = vmatpush1.msra.mxu0 0.0
      %5496 = vmatprep.subr.mxu0 0.0
      %5497 = vmatpush1.msra.mxu0 0.0
      %5498 = vmatprep.subr.mxu0 0.0
      %5499 = vmatpush1.msra.mxu0 0.0
      %5500 = vmatprep.subr.mxu0 0.0
      %5501 = vmatpush1.msra.mxu0 0.0
      %5502 = vmatprep.subr.mxu0 0.0
      %5503 = vmatpush1.msra.mxu0 0.0
      %5504 = vmatprep.subr.mxu0 0.0
      %5505 = vmatpush1.msra.mxu0 0.0
      %5506 = vmatprep.subr.mxu0 0.0
      %5507 = vmatpush1.msra.mxu0 0.0
      %5508 = vmatprep.subr.mxu0 0.0
      %5509 = vmatpush1.msra.mxu0 0.0
      %5510 = vmatprep.subr.mxu0 0.0
      %5511 = vmatpush1.msra.mxu0 0.0
      %5512 = vmatprep.subr.mxu0 0.0
      %5513 = vmatpush1.msra.mxu0 0.0
      %5514 = vmatprep.subr.mxu0 0.0
      %5515 = vmatpush1.msra.mxu0 0.0
      %5516 = vmatprep.subr.mxu0 0.0
      %5517 = vmatpush1.msra.mxu0 0.0
      %5518 = vmatprep.subr.mxu0 0.0
      %5519 = vmatpush1.msra.mxu0 0.0
      %5520 = vmatprep.subr.mxu0 0.0
      %5521 = vmatpush1.msra.mxu0 0.0
      %5522 = vmatprep.subr.mxu0 0.0
      %5523 = vmatpush1.msra.mxu0 0.0
      %5524 = vmatprep.subr.mxu0 0.0
      %5525 = vmatpush1.msra.mxu0 0.0
      %5526 = vmatprep.subr.mxu0 0.0
      %5527 = vmatpush1.msra.mxu0 0.0
      %5528 = vmatprep.subr.mxu0 0.0
      %5529 = vmatpush1.msra.mxu0 0.0
      %5530 = vmatprep.subr.mxu0 0.0
      %5531 = vmatpush1.msra.mxu0 0.0
      %5532 = vmatprep.subr.mxu0 0.0
      %5533 = vmatpush1.msra.mxu0 0.0
      %5534 = vmatprep.subr.mxu0 0.0
      %5535 = vmatpush1.msra.mxu0 0.0
      %5536 = vmatprep.subr.mxu0 0.0
      %5537 = vmatpush1.msra.mxu0 0.0
      %5538 = vmatprep.subr.mxu0 0.0
      %5539 = vmatpush1.msra.mxu0 0.0
      %5540 = vmatprep.subr.mxu0 0.0
      %5541 = vmatpush1.msra.mxu0 0.0
      %5542 = vmatprep.subr.mxu0 0.0
      %5543 = vmatpush1.msra.mxu0 0.0
      %5544 = vmatprep.mubr.f32.mxu0 0.0
      %5545 = vmatmul.mubr.f32.gmra.mrb[0].mxu0 %v5416
      %v5546 = vpop.f32.mrb[0].mxu0
      %v5547 = vadd.f32 0.0, %v5546
      %v5548 = vpop.f32.mrb[0].mxu0
      %5549 = vmatprep.mubr.f32.mxu0 0.0
      %5550 = vmatmul.mubr.f32.gmra.mrb[0].mxu0 %v5419
      %v5551 = vpop.f32.mrb[0].mxu0
      %v5552 = vadd.f32 0.0, %v5551
      %v5553 = vpop.f32.mrb[0].mxu0
      %5554 = vmatprep.mubr.f32.mxu0 0.0
      %5555 = vmatmul.mubr.f32.gmra.mrb[0].mxu0 %v5422
      %v5556 = vpop.f32.mrb[0].mxu0
      %v5557 = vadd.f32 0.0, %v5556
      %v5558 = vpop.f32.mrb[0].mxu0
      %5559 = vmatprep.mubr.f32.mxu0 0.0
      %5560 = vmatmul.mubr.f32.gmra.mrb[0].mxu0 %v5425
      %v5561 = vpop.f32.mrb[0].mxu0
      %v5562 = vadd.f32 0.0, %v5561
      %v5563 = vpop.f32.mrb[0].mxu0
      %5564 = vmatprep.mubr.f32.mxu0 0.0
      %5565 = vmatmul.mubr.f32.gmra.mrb[0].mxu0 %v5428
      %v5566 = vpop.f32.mrb[0].mxu0
      %v5567 = vadd.f32 0.0, %v5566
      %v5568 = vpop.f32.mrb[0].mxu0
      %5569 = vmatprep.mubr.f32.mxu0 0.0
      %5570 = vmatmul.mubr.f32.gmra.mrb[0].mxu0 %v5431
      %v5571 = vpop.f32.mrb[0].mxu0
      %v5572 = vadd.f32 0.0, %v5571
      %v5573 = vpop.f32.mrb[0].mxu0
      %5574 = vmatprep.mubr.f32.mxu0 0.0
      %5575 = vmatmul.mubr.f32.gmra.mrb[0].mxu0 %v5434
      %v5576 = vpop.f32.mrb[0].mxu0
      %v5577 = vadd.f32 0.0, %v5576
      %v5578 = vpop.f32.mrb[0].mxu0
      %5579 = vmatprep.mubr.f32.mxu0 0.0
      %5580 = vmatmul.mubr.f32.gmra.mrb[0].mxu0 %v5437
      %v5581 = vpop.f32.mrb[0].mxu0
      %v5582 = vadd.f32 0.0, %v5581
      %v5583 = vpop.f32.mrb[0].mxu0
      %5584 = vmatprep.mubr.f32.mxu0 0.0
      %5585 = vmatmul.mubr.f32.gmra.mrb[0].mxu0 %v5440
      %v5586 = vpop.f32.mrb[0].mxu0
      %v5587 = vadd.f32 0.0, %v5586
      %v5588 = vpop.f32.mrb[0].mxu0
      %5589 = vmatprep.mubr.f32.mxu0 0.0
      %5590 = vmatmul.mubr.f32.gmra.mrb[0].mxu0 %v5443
      %v5591 = vpop.f32.mrb[0].mxu0
      %v5592 = vadd.f32 0.0, %v5591
      %v5593 = vpop.f32.mrb[0].mxu0
      %5594 = vmatprep.mubr.f32.mxu0 0.0
      %5595 = vmatmul.mubr.f32.gmra.mrb[0].mxu0 %v5446
      %v5596 = vpop.f32.mrb[0].mxu0
      %v5597 = vadd.f32 0.0, %v5596
      %v5598 = vpop.f32.mrb[0].mxu0
      %5599 = vmatprep.mubr.f32.mxu0 0.0
      %5600 = vmatmul.mubr.f32.gmra.mrb[0].mxu0 %v5449
      %v5601 = vpop.f32.mrb[0].mxu0
      %v5602 = vadd.f32 0.0, %v5601
      %v5603 = vpop.f32.mrb[0].mxu0
      %5604 = vmatprep.mubr.f32.mxu0 0.0
      %5605 = vmatmul.mubr.f32.gmra.mrb[0].mxu0 %v5452
      %v5606 = vpop.f32.mrb[0].mxu0
      %v5607 = vadd.f32 0.0, %v5606
      %v5608 = vpop.f32.mrb[0].mxu0
      %5609 = vmatprep.mubr.f32.mxu0 0.0
      %5610 = vmatmul.mubr.f32.gmra.mrb[0].mxu0 %v5455
      %v5611 = vpop.f32.mrb[0].mxu0
      %v5612 = vadd.f32 0.0, %v5611
      %v5613 = vpop.f32.mrb[0].mxu0
      %5614 = vmatprep.mubr.f32.mxu0 0.0
      %5615 = vmatmul.mubr.f32.gmra.mrb[0].mxu0 %v5458
      %v5616 = vpop.f32.mrb[0].mxu0
      %v5617 = vadd.f32 0.0, %v5616
      %v5618 = vpop.f32.mrb[0].mxu0
      %5619 = vmatprep.mubr.f32.mxu0 0.0
      %5620 = vmatmul.mubr.f32.gmra.mrb[0].mxu0 %v5461
      %v5621 = vpop.f32.mrb[0].mxu0
      %v5622 = vadd.f32 0.0, %v5621
      %v5623 = vpop.f32.mrb[0].mxu0
      %5624 = vmatprep.mubr.f32.mxu0 0.0
      %5625 = vmatmul.mubr.f32.gmra.mrb[0].mxu0 %v5464
      %v5626 = vpop.f32.mrb[0].mxu0
      %v5627 = vadd.f32 0.0, %v5626
      %v5628 = vpop.f32.mrb[0].mxu0
      %5629 = vmatprep.mubr.f32.mxu0 0.0
      %5630 = vmatmul.mubr.f32.gmra.mrb[0].mxu0 %v5467
      %v5631 = vpop.f32.mrb[0].mxu0
      %v5632 = vadd.f32 0.0, %v5631
      %v5633 = vpop.f32.mrb[0].mxu0
      %5634 = vmatprep.mubr.f32.mxu0 0.0
      %5635 = vmatmul.mubr.f32.gmra.mrb[0].mxu0 %v5470
      %v5636 = vpop.f32.mrb[0].mxu0
      %v5637 = vadd.f32 0.0, %v5636
      %v5638 = vpop.f32.mrb[0].mxu0
      %5639 = vmatprep.mubr.f32.mxu0 0.0
      %5640 = vmatmul.mubr.f32.gmra.mrb[0].mxu0 %v5473
      %v5641 = vpop.f32.mrb[0].mxu0
      %v5642 = vadd.f32 0.0, %v5641
      %v5643 = vpop.f32.mrb[0].mxu0
      %5644 = vmatprep.mubr.f32.mxu0 0.0
      %5645 = vmatmul.mubr.f32.gmra.mrb[0].mxu0 %v5476
      %v5646 = vpop.f32.mrb[0].mxu0
      %v5647 = vadd.f32 0.0, %v5646
      %v5648 = vpop.f32.mrb[0].mxu0
      %5649 = vdwg.mxu0
      %v5650 = vadd.f32 %v5279, %v5547
      %v5651 = vadd.f32 %v5284, %v5552
      %v5652 = vadd.f32 %v5289, %v5557
      %v5653 = vadd.f32 %v5294, %v5562
      %v5654 = vadd.f32 %v5299, %v5567
      %v5655 = vadd.f32 %v5304, %v5572
      %v5656 = vadd.f32 %v5309, %v5577
      %v5657 = vadd.f32 %v5314, %v5582
      %v5658 = vadd.f32 %v5319, %v5587
      %v5659 = vadd.f32 %v5324, %v5592
      %v5660 = vadd.f32 %v5329, %v5597
      %v5661 = vadd.f32 %v5334, %v5602
      %v5662 = vadd.f32 %v5339, %v5607
      %v5663 = vadd.f32 %v5344, %v5612
      %v5664 = vadd.f32 %v5349, %v5617
      %v5665 = vadd.f32 %v5354, %v5622
      %v5666 = vadd.f32 %v5359, %v5627
      %v5667 = vadd.f32 %v5364, %v5632
      %v5668 = vadd.f32 %v5369, %v5637
      %v5669 = vadd.f32 %v5374, %v5642
      %v5670 = vadd.f32 %v5379, %v5647
      %s5671 = scalar_lea.vmem %s10, 504
      %v5672 = vld [vmem:[%s5671] sm:$0xff]
      %v5673 = vld [vmem:[%s5671 + $0x8] sm:$0xff]
      %v5674 = vld [vmem:[%s5671 + $0x10] sm:$0xff]
      %v5675 = vld [vmem:[%s5671 + $0x18] sm:$0xff]
      %v5676 = vld [vmem:[%s5671 + $0x20] sm:$0xff]
      %v5677 = vld [vmem:[%s5671 + $0x28] sm:$0xff]
      %v5678 = vld [vmem:[%s5671 + $0x30] sm:$0xff]
      %v5679 = vld [vmem:[%s5671 + $0x38] sm:$0xff]
      %v5680 = vld [vmem:[%s5671 + $0x40] sm:$0xff]
      %v5681 = vld [vmem:[%s5671 + $0x48] sm:$0xff]
      %v5682 = vld [vmem:[%s5671 + $0x50] sm:$0xff]
      %v5683 = vld [vmem:[%s5671 + $0x58] sm:$0xff]
      %v5684 = vld [vmem:[%s5671 + $0x60] sm:$0xff]
      %v5685 = vld [vmem:[%s5671 + $0x68] sm:$0xff]
      %v5686 = vld [vmem:[%s5671 + $0x70] sm:$0xff]
      %v5687 = vld [vmem:[%s5671 + $0x78] sm:$0xff]
      %v5688 = vld [vmem:[%s5671 + $0x80] sm:$0xff]
      %v5689 = vld [vmem:[%s5671 + $0x88] sm:$0xff]
      %v5690 = vld [vmem:[%s5671 + $0x90] sm:$0xff]
      %v5691 = vld [vmem:[%s5671 + $0x98] sm:$0xff]
      %v5692 = vld [vmem:[%s5671 + $0xa0] sm:$0xff]
      %5693 = vrot.lane.b32.xlu0 %v4836, 125
      %v5694 = vpop.permute.xlu0 %5693
      %5695 = vrot.lane.b32.xlu0 %v4841, 125
      %v5696 = vpop.permute.xlu0 %5695
      %5697 = vrot.lane.b32.xlu0 %v4846, 125
      %v5698 = vpop.permute.xlu0 %5697
      %5699 = vrot.lane.b32.xlu0 %v4851, 125
      %v5700 = vpop.permute.xlu0 %5699
      %v5705 = vsel %vm3595, %v5672, 0
      %v5708 = vsel %vm3595, %v5673, 0
      %v5711 = vsel %vm3595, %v5674, 0
      %v5714 = vsel %vm3595, %v5675, 0
      %v5717 = vsel %vm3595, %v5676, 0
      %v5720 = vsel %vm3595, %v5677, 0
      %v5723 = vsel %vm3595, %v5678, 0
      %v5726 = vsel %vm3595, %v5679, 0
      %v5729 = vsel %vm3595, %v5680, 0
      %v5732 = vsel %vm3595, %v5681, 0
      %v5735 = vsel %vm3595, %v5682, 0
      %v5738 = vsel %vm3595, %v5683, 0
      %v5741 = vsel %vm3595, %v5684, 0
      %v5744 = vsel %vm3595, %v5685, 0
      %v5747 = vsel %vm3595, %v5686, 0
      %v5750 = vsel %vm3595, %v5687, 0
      %v5753 = vsel %vm3595, %v5688, 0
      %v5756 = vsel %vm3595, %v5689, 0
      %v5759 = vsel %vm3595, %v5690, 0
      %v5762 = vsel %vm3595, %v5691, 0
      %v5765 = vsel %vm3595, %v5692, 0
      %v5767 = vsel %vm1852, %v5700, 0
      %5769 = vmatprep.subr.mxu0 0.0
      %5770 = vmatpush1.msra.mxu0 %v5694
      %5771 = vmatprep.subr.mxu0 0.0
      %5772 = vmatpush1.msra.mxu0 %v5696
      %5773 = vmatprep.subr.mxu0 0.0
      %5774 = vmatpush1.msra.mxu0 %v5698
      %5775 = vmatprep.subr.mxu0 0.0
      %5776 = vmatpush1.msra.mxu0 %v5767
      %5777 = vmatprep.subr.mxu0 0.0
      %5778 = vmatpush1.msra.mxu0 0.0
      %5779 = vmatprep.subr.mxu0 0.0
      %5780 = vmatpush1.msra.mxu0 0.0
      %5781 = vmatprep.subr.mxu0 0.0
      %5782 = vmatpush1.msra.mxu0 0.0
      %5783 = vmatprep.subr.mxu0 0.0
      %5784 = vmatpush1.msra.mxu0 0.0
      %5785 = vmatprep.subr.mxu0 0.0
      %5786 = vmatpush1.msra.mxu0 0.0
      %5787 = vmatprep.subr.mxu0 0.0
      %5788 = vmatpush1.msra.mxu0 0.0
      %5789 = vmatprep.subr.mxu0 0.0
      %5790 = vmatpush1.msra.mxu0 0.0
      %5791 = vmatprep.subr.mxu0 0.0
      %5792 = vmatpush1.msra.mxu0 0.0
      %5793 = vmatprep.subr.mxu0 0.0
      %5794 = vmatpush1.msra.mxu0 0.0
      %5795 = vmatprep.subr.mxu0 0.0
      %5796 = vmatpush1.msra.mxu0 0.0
      %5797 = vmatprep.subr.mxu0 0.0
      %5798 = vmatpush1.msra.mxu0 0.0
      %5799 = vmatprep.subr.mxu0 0.0
      %5800 = vmatpush1.msra.mxu0 0.0
      %5801 = vmatprep.subr.mxu0 0.0
      %5802 = vmatpush1.msra.mxu0 0.0
      %5803 = vmatprep.subr.mxu0 0.0
      %5804 = vmatpush1.msra.mxu0 0.0
      %5805 = vmatprep.subr.mxu0 0.0
      %5806 = vmatpush1.msra.mxu0 0.0
      %5807 = vmatprep.subr.mxu0 0.0
      %5808 = vmatpush1.msra.mxu0 0.0
      %5809 = vmatprep.subr.mxu0 0.0
      %5810 = vmatpush1.msra.mxu0 0.0
      %5811 = vmatprep.subr.mxu0 0.0
      %5812 = vmatpush1.msra.mxu0 0.0
      %5813 = vmatprep.subr.mxu0 0.0
      %5814 = vmatpush1.msra.mxu0 0.0
      %5815 = vmatprep.subr.mxu0 0.0
      %5816 = vmatpush1.msra.mxu0 0.0
      %5817 = vmatprep.subr.mxu0 0.0
      %5818 = vmatpush1.msra.mxu0 0.0
      %5819 = vmatprep.subr.mxu0 0.0
      %5820 = vmatpush1.msra.mxu0 0.0
      %5821 = vmatprep.subr.mxu0 0.0
      %5822 = vmatpush1.msra.mxu0 0.0
      %5823 = vmatprep.subr.mxu0 0.0
      %5824 = vmatpush1.msra.mxu0 0.0
      %5825 = vmatprep.subr.mxu0 0.0
      %5826 = vmatpush1.msra.mxu0 0.0
      %5827 = vmatprep.subr.mxu0 0.0
      %5828 = vmatpush1.msra.mxu0 0.0
      %5829 = vmatprep.subr.mxu0 0.0
      %5830 = vmatpush1.msra.mxu0 0.0
      %5831 = vmatprep.subr.mxu0 0.0
      %5832 = vmatpush1.msra.mxu0 0.0
      %5833 = vmatprep.mubr.f32.mxu0 0.0
      %5834 = vmatmul.mubr.f32.gmra.mrb[0].mxu0 %v5705
      %v5835 = vpop.f32.mrb[0].mxu0
      %v5836 = vadd.f32 0.0, %v5835
      %v5837 = vpop.f32.mrb[0].mxu0
      %5838 = vmatprep.mubr.f32.mxu0 0.0
      %5839 = vmatmul.mubr.f32.gmra.mrb[0].mxu0 %v5708
      %v5840 = vpop.f32.mrb[0].mxu0
      %v5841 = vadd.f32 0.0, %v5840
      %v5842 = vpop.f32.mrb[0].mxu0
      %5843 = vmatprep.mubr.f32.mxu0 0.0
      %5844 = vmatmul.mubr.f32.gmra.mrb[0].mxu0 %v5711
      %v5845 = vpop.f32.mrb[0].mxu0
      %v5846 = vadd.f32 0.0, %v5845
      %v5847 = vpop.f32.mrb[0].mxu0
      %5848 = vmatprep.mubr.f32.mxu0 0.0
      %5849 = vmatmul.mubr.f32.gmra.mrb[0].mxu0 %v5714
      %v5850 = vpop.f32.mrb[0].mxu0
      %v5851 = vadd.f32 0.0, %v5850
      %v5852 = vpop.f32.mrb[0].mxu0
      %5853 = vmatprep.mubr.f32.mxu0 0.0
      %5854 = vmatmul.mubr.f32.gmra.mrb[0].mxu0 %v5717
      %v5855 = vpop.f32.mrb[0].mxu0
      %v5856 = vadd.f32 0.0, %v5855
      %v5857 = vpop.f32.mrb[0].mxu0
      %5858 = vmatprep.mubr.f32.mxu0 0.0
      %5859 = vmatmul.mubr.f32.gmra.mrb[0].mxu0 %v5720
      %v5860 = vpop.f32.mrb[0].mxu0
      %v5861 = vadd.f32 0.0, %v5860
      %v5862 = vpop.f32.mrb[0].mxu0
      %5863 = vmatprep.mubr.f32.mxu0 0.0
      %5864 = vmatmul.mubr.f32.gmra.mrb[0].mxu0 %v5723
      %v5865 = vpop.f32.mrb[0].mxu0
      %v5866 = vadd.f32 0.0, %v5865
      %v5867 = vpop.f32.mrb[0].mxu0
      %5868 = vmatprep.mubr.f32.mxu0 0.0
      %5869 = vmatmul.mubr.f32.gmra.mrb[0].mxu0 %v5726
      %v5870 = vpop.f32.mrb[0].mxu0
      %v5871 = vadd.f32 0.0, %v5870
      %v5872 = vpop.f32.mrb[0].mxu0
      %5873 = vmatprep.mubr.f32.mxu0 0.0
      %5874 = vmatmul.mubr.f32.gmra.mrb[0].mxu0 %v5729
      %v5875 = vpop.f32.mrb[0].mxu0
      %v5876 = vadd.f32 0.0, %v5875
      %v5877 = vpop.f32.mrb[0].mxu0
      %5878 = vmatprep.mubr.f32.mxu0 0.0
      %5879 = vmatmul.mubr.f32.gmra.mrb[0].mxu0 %v5732
      %v5880 = vpop.f32.mrb[0].mxu0
      %v5881 = vadd.f32 0.0, %v5880
      %v5882 = vpop.f32.mrb[0].mxu0
      %5883 = vmatprep.mubr.f32.mxu0 0.0
      %5884 = vmatmul.mubr.f32.gmra.mrb[0].mxu0 %v5735
      %v5885 = vpop.f32.mrb[0].mxu0
      %v5886 = vadd.f32 0.0, %v5885
      %v5887 = vpop.f32.mrb[0].mxu0
      %5888 = vmatprep.mubr.f32.mxu0 0.0
      %5889 = vmatmul.mubr.f32.gmra.mrb[0].mxu0 %v5738
      %v5890 = vpop.f32.mrb[0].mxu0
      %v5891 = vadd.f32 0.0, %v5890
      %v5892 = vpop.f32.mrb[0].mxu0
      %5893 = vmatprep.mubr.f32.mxu0 0.0
      %5894 = vmatmul.mubr.f32.gmra.mrb[0].mxu0 %v5741
      %v5895 = vpop.f32.mrb[0].mxu0
      %v5896 = vadd.f32 0.0, %v5895
      %v5897 = vpop.f32.mrb[0].mxu0
      %5898 = vmatprep.mubr.f32.mxu0 0.0
      %5899 = vmatmul.mubr.f32.gmra.mrb[0].mxu0 %v5744
      %v5900 = vpop.f32.mrb[0].mxu0
      %v5901 = vadd.f32 0.0, %v5900
      %v5902 = vpop.f32.mrb[0].mxu0
      %5903 = vmatprep.mubr.f32.mxu0 0.0
      %5904 = vmatmul.mubr.f32.gmra.mrb[0].mxu0 %v5747
      %v5905 = vpop.f32.mrb[0].mxu0
      %v5906 = vadd.f32 0.0, %v5905
      %v5907 = vpop.f32.mrb[0].mxu0
      %5908 = vmatprep.mubr.f32.mxu0 0.0
      %5909 = vmatmul.mubr.f32.gmra.mrb[0].mxu0 %v5750
      %v5910 = vpop.f32.mrb[0].mxu0
      %v5911 = vadd.f32 0.0, %v5910
      %v5912 = vpop.f32.mrb[0].mxu0
      %5913 = vmatprep.mubr.f32.mxu0 0.0
      %5914 = vmatmul.mubr.f32.gmra.mrb[0].mxu0 %v5753
      %v5915 = vpop.f32.mrb[0].mxu0
      %v5916 = vadd.f32 0.0, %v5915
      %v5917 = vpop.f32.mrb[0].mxu0
      %5918 = vmatprep.mubr.f32.mxu0 0.0
      %5919 = vmatmul.mubr.f32.gmra.mrb[0].mxu0 %v5756
      %v5920 = vpop.f32.mrb[0].mxu0
      %v5921 = vadd.f32 0.0, %v5920
      %v5922 = vpop.f32.mrb[0].mxu0
      %5923 = vmatprep.mubr.f32.mxu0 0.0
      %5924 = vmatmul.mubr.f32.gmra.mrb[0].mxu0 %v5759
      %v5925 = vpop.f32.mrb[0].mxu0
      %v5926 = vadd.f32 0.0, %v5925
      %v5927 = vpop.f32.mrb[0].mxu0
      %5928 = vmatprep.mubr.f32.mxu0 0.0
      %5929 = vmatmul.mubr.f32.gmra.mrb[0].mxu0 %v5762
      %v5930 = vpop.f32.mrb[0].mxu0
      %v5931 = vadd.f32 0.0, %v5930
      %v5932 = vpop.f32.mrb[0].mxu0
      %5933 = vmatprep.mubr.f32.mxu0 0.0
      %5934 = vmatmul.mubr.f32.gmra.mrb[0].mxu0 %v5765
      %v5935 = vpop.f32.mrb[0].mxu0
      %v5936 = vadd.f32 0.0, %v5935
      %v5937 = vpop.f32.mrb[0].mxu0
      %5938 = vdwg.mxu0
      %v5939 = vadd.f32 %v5650, %v5836
      %v5940 = vadd.f32 %v5651, %v5841
      %v5941 = vadd.f32 %v5652, %v5846
      %v5942 = vadd.f32 %v5653, %v5851
      %v5943 = vadd.f32 %v5654, %v5856
      %v5944 = vadd.f32 %v5655, %v5861
      %v5945 = vadd.f32 %v5656, %v5866
      %v5946 = vadd.f32 %v5657, %v5871
      %v5947 = vadd.f32 %v5658, %v5876
      %v5948 = vadd.f32 %v5659, %v5881
      %v5949 = vadd.f32 %v5660, %v5886
      %v5950 = vadd.f32 %v5661, %v5891
      %v5951 = vadd.f32 %v5662, %v5896
      %v5952 = vadd.f32 %v5663, %v5901
      %v5953 = vadd.f32 %v5664, %v5906
      %v5954 = vadd.f32 %v5665, %v5911
      %v5955 = vadd.f32 %v5666, %v5916
      %v5956 = vadd.f32 %v5667, %v5921
      %v5957 = vadd.f32 %v5668, %v5926
      %v5958 = vadd.f32 %v5669, %v5931
      %v5959 = vadd.f32 %v5670, %v5936
      %s5960 = scalar_lea.vmem %s10, 672
      %v5961 = vld [vmem:[%s5960] sm:$0xff]
      %v5962 = vld [vmem:[%s5960 + $0x8] sm:$0xff]
      %v5963 = vld [vmem:[%s5960 + $0x10] sm:$0xff]
      %v5964 = vld [vmem:[%s5960 + $0x18] sm:$0xff]
      %v5965 = vld [vmem:[%s5960 + $0x20] sm:$0xff]
      %v5966 = vld [vmem:[%s5960 + $0x28] sm:$0xff]
      %v5967 = vld [vmem:[%s5960 + $0x30] sm:$0xff]
      %v5968 = vld [vmem:[%s5960 + $0x38] sm:$0xff]
      %v5969 = vld [vmem:[%s5960 + $0x40] sm:$0xff]
      %v5970 = vld [vmem:[%s5960 + $0x48] sm:$0xff]
      %v5971 = vld [vmem:[%s5960 + $0x50] sm:$0xff]
      %v5972 = vld [vmem:[%s5960 + $0x58] sm:$0xff]
      %v5973 = vld [vmem:[%s5960 + $0x60] sm:$0xff]
      %v5974 = vld [vmem:[%s5960 + $0x68] sm:$0xff]
      %v5975 = vld [vmem:[%s5960 + $0x70] sm:$0xff]
      %v5976 = vld [vmem:[%s5960 + $0x78] sm:$0xff]
      %v5977 = vld [vmem:[%s5960 + $0x80] sm:$0xff]
      %v5978 = vld [vmem:[%s5960 + $0x88] sm:$0xff]
      %v5979 = vld [vmem:[%s5960 + $0x90] sm:$0xff]
      %v5980 = vld [vmem:[%s5960 + $0x98] sm:$0xff]
      %v5981 = vld [vmem:[%s5960 + $0xa0] sm:$0xff]
      %5982 = vrot.lane.b32.xlu0 %v4836, 124
      %v5983 = vpop.permute.xlu0 %5982
      %5984 = vrot.lane.b32.xlu0 %v4841, 124
      %v5985 = vpop.permute.xlu0 %5984
      %5986 = vrot.lane.b32.xlu0 %v4846, 124
      %v5987 = vpop.permute.xlu0 %5986
      %5988 = vrot.lane.b32.xlu0 %v4851, 124
      %v5989 = vpop.permute.xlu0 %5988
      %v5994 = vsel %vm3595, %v5961, 0
      %v5997 = vsel %vm3595, %v5962, 0
      %v6000 = vsel %vm3595, %v5963, 0
      %v6003 = vsel %vm3595, %v5964, 0
      %v6006 = vsel %vm3595, %v5965, 0
      %v6009 = vsel %vm3595, %v5966, 0
      %v6012 = vsel %vm3595, %v5967, 0
      %v6015 = vsel %vm3595, %v5968, 0
      %v6018 = vsel %vm3595, %v5969, 0
      %v6021 = vsel %vm3595, %v5970, 0
      %v6024 = vsel %vm3595, %v5971, 0
      %v6027 = vsel %vm3595, %v5972, 0
      %v6030 = vsel %vm3595, %v5973, 0
      %v6033 = vsel %vm3595, %v5974, 0
      %v6036 = vsel %vm3595, %v5975, 0
      %v6039 = vsel %vm3595, %v5976, 0
      %v6042 = vsel %vm3595, %v5977, 0
      %v6045 = vsel %vm3595, %v5978, 0
      %v6048 = vsel %vm3595, %v5979, 0
      %v6051 = vsel %vm3595, %v5980, 0
      %v6054 = vsel %vm3595, %v5981, 0
      %v6056 = vsel %vm1852, %v5989, 0
      %6058 = vmatprep.subr.mxu0 0.0
      %6059 = vmatpush1.msra.mxu0 %v5983
      %6060 = vmatprep.subr.mxu0 0.0
      %6061 = vmatpush1.msra.mxu0 %v5985
      %6062 = vmatprep.subr.mxu0 0.0
      %6063 = vmatpush1.msra.mxu0 %v5987
      %6064 = vmatprep.subr.mxu0 0.0
      %6065 = vmatpush1.msra.mxu0 %v6056
      %6066 = vmatprep.subr.mxu0 0.0
      %6067 = vmatpush1.msra.mxu0 0.0
      %6068 = vmatprep.subr.mxu0 0.0
      %6069 = vmatpush1.msra.mxu0 0.0
      %6070 = vmatprep.subr.mxu0 0.0
      %6071 = vmatpush1.msra.mxu0 0.0
      %6072 = vmatprep.subr.mxu0 0.0
      %6073 = vmatpush1.msra.mxu0 0.0
      %6074 = vmatprep.subr.mxu0 0.0
      %6075 = vmatpush1.msra.mxu0 0.0
      %6076 = vmatprep.subr.mxu0 0.0
      %6077 = vmatpush1.msra.mxu0 0.0
      %6078 = vmatprep.subr.mxu0 0.0
      %6079 = vmatpush1.msra.mxu0 0.0
      %6080 = vmatprep.subr.mxu0 0.0
      %6081 = vmatpush1.msra.mxu0 0.0
      %6082 = vmatprep.subr.mxu0 0.0
      %6083 = vmatpush1.msra.mxu0 0.0
      %6084 = vmatprep.subr.mxu0 0.0
      %6085 = vmatpush1.msra.mxu0 0.0
      %6086 = vmatprep.subr.mxu0 0.0
      %6087 = vmatpush1.msra.mxu0 0.0
      %6088 = vmatprep.subr.mxu0 0.0
      %6089 = vmatpush1.msra.mxu0 0.0
      %6090 = vmatprep.subr.mxu0 0.0
      %6091 = vmatpush1.msra.mxu0 0.0
      %6092 = vmatprep.subr.mxu0 0.0
      %6093 = vmatpush1.msra.mxu0 0.0
      %6094 = vmatprep.subr.mxu0 0.0
      %6095 = vmatpush1.msra.mxu0 0.0
      %6096 = vmatprep.subr.mxu0 0.0
      %6097 = vmatpush1.msra.mxu0 0.0
      %6098 = vmatprep.subr.mxu0 0.0
      %6099 = vmatpush1.msra.mxu0 0.0
      %6100 = vmatprep.subr.mxu0 0.0
      %6101 = vmatpush1.msra.mxu0 0.0
      %6102 = vmatprep.subr.mxu0 0.0
      %6103 = vmatpush1.msra.mxu0 0.0
      %6104 = vmatprep.subr.mxu0 0.0
      %6105 = vmatpush1.msra.mxu0 0.0
      %6106 = vmatprep.subr.mxu0 0.0
      %6107 = vmatpush1.msra.mxu0 0.0
      %6108 = vmatprep.subr.mxu0 0.0
      %6109 = vmatpush1.msra.mxu0 0.0
      %6110 = vmatprep.subr.mxu0 0.0
      %6111 = vmatpush1.msra.mxu0 0.0
      %6112 = vmatprep.subr.mxu0 0.0
      %6113 = vmatpush1.msra.mxu0 0.0
      %6114 = vmatprep.subr.mxu0 0.0
      %6115 = vmatpush1.msra.mxu0 0.0
      %6116 = vmatprep.subr.mxu0 0.0
      %6117 = vmatpush1.msra.mxu0 0.0
      %6118 = vmatprep.subr.mxu0 0.0
      %6119 = vmatpush1.msra.mxu0 0.0
      %6120 = vmatprep.subr.mxu0 0.0
      %6121 = vmatpush1.msra.mxu0 0.0
      %6122 = vmatprep.mubr.f32.mxu0 0.0
      %6123 = vmatmul.mubr.f32.gmra.mrb[0].mxu0 %v5994
      %v6124 = vpop.f32.mrb[0].mxu0
      %v6125 = vadd.f32 0.0, %v6124
      %v6126 = vpop.f32.mrb[0].mxu0
      %6127 = vmatprep.mubr.f32.mxu0 0.0
      %6128 = vmatmul.mubr.f32.gmra.mrb[0].mxu0 %v5997
      %v6129 = vpop.f32.mrb[0].mxu0
      %v6130 = vadd.f32 0.0, %v6129
      %v6131 = vpop.f32.mrb[0].mxu0
      %6132 = vmatprep.mubr.f32.mxu0 0.0
      %6133 = vmatmul.mubr.f32.gmra.mrb[0].mxu0 %v6000
      %v6134 = vpop.f32.mrb[0].mxu0
      %v6135 = vadd.f32 0.0, %v6134
      %v6136 = vpop.f32.mrb[0].mxu0
      %6137 = vmatprep.mubr.f32.mxu0 0.0
      %6138 = vmatmul.mubr.f32.gmra.mrb[0].mxu0 %v6003
      %v6139 = vpop.f32.mrb[0].mxu0
      %v6140 = vadd.f32 0.0, %v6139
      %v6141 = vpop.f32.mrb[0].mxu0
      %6142 = vmatprep.mubr.f32.mxu0 0.0
      %6143 = vmatmul.mubr.f32.gmra.mrb[0].mxu0 %v6006
      %v6144 = vpop.f32.mrb[0].mxu0
      %v6145 = vadd.f32 0.0, %v6144
      %v6146 = vpop.f32.mrb[0].mxu0
      %6147 = vmatprep.mubr.f32.mxu0 0.0
      %6148 = vmatmul.mubr.f32.gmra.mrb[0].mxu0 %v6009
      %v6149 = vpop.f32.mrb[0].mxu0
      %v6150 = vadd.f32 0.0, %v6149
      %v6151 = vpop.f32.mrb[0].mxu0
      %6152 = vmatprep.mubr.f32.mxu0 0.0
      %6153 = vmatmul.mubr.f32.gmra.mrb[0].mxu0 %v6012
      %v6154 = vpop.f32.mrb[0].mxu0
      %v6155 = vadd.f32 0.0, %v6154
      %v6156 = vpop.f32.mrb[0].mxu0
      %6157 = vmatprep.mubr.f32.mxu0 0.0
      %6158 = vmatmul.mubr.f32.gmra.mrb[0].mxu0 %v6015
      %v6159 = vpop.f32.mrb[0].mxu0
      %v6160 = vadd.f32 0.0, %v6159
      %v6161 = vpop.f32.mrb[0].mxu0
      %6162 = vmatprep.mubr.f32.mxu0 0.0
      %6163 = vmatmul.mubr.f32.gmra.mrb[0].mxu0 %v6018
      %v6164 = vpop.f32.mrb[0].mxu0
      %v6165 = vadd.f32 0.0, %v6164
      %v6166 = vpop.f32.mrb[0].mxu0
      %6167 = vmatprep.mubr.f32.mxu0 0.0
      %6168 = vmatmul.mubr.f32.gmra.mrb[0].mxu0 %v6021
      %v6169 = vpop.f32.mrb[0].mxu0
      %v6170 = vadd.f32 0.0, %v6169
      %v6171 = vpop.f32.mrb[0].mxu0
      %6172 = vmatprep.mubr.f32.mxu0 0.0
      %6173 = vmatmul.mubr.f32.gmra.mrb[0].mxu0 %v6024
      %v6174 = vpop.f32.mrb[0].mxu0
      %v6175 = vadd.f32 0.0, %v6174
      %v6176 = vpop.f32.mrb[0].mxu0
      %6177 = vmatprep.mubr.f32.mxu0 0.0
      %6178 = vmatmul.mubr.f32.gmra.mrb[0].mxu0 %v6027
      %v6179 = vpop.f32.mrb[0].mxu0
      %v6180 = vadd.f32 0.0, %v6179
      %v6181 = vpop.f32.mrb[0].mxu0
      %6182 = vmatprep.mubr.f32.mxu0 0.0
      %6183 = vmatmul.mubr.f32.gmra.mrb[0].mxu0 %v6030
      %v6184 = vpop.f32.mrb[0].mxu0
      %v6185 = vadd.f32 0.0, %v6184
      %v6186 = vpop.f32.mrb[0].mxu0
      %6187 = vmatprep.mubr.f32.mxu0 0.0
      %6188 = vmatmul.mubr.f32.gmra.mrb[0].mxu0 %v6033
      %v6189 = vpop.f32.mrb[0].mxu0
      %v6190 = vadd.f32 0.0, %v6189
      %v6191 = vpop.f32.mrb[0].mxu0
      %6192 = vmatprep.mubr.f32.mxu0 0.0
      %6193 = vmatmul.mubr.f32.gmra.mrb[0].mxu0 %v6036
      %v6194 = vpop.f32.mrb[0].mxu0
      %v6195 = vadd.f32 0.0, %v6194
      %v6196 = vpop.f32.mrb[0].mxu0
      %6197 = vmatprep.mubr.f32.mxu0 0.0
      %6198 = vmatmul.mubr.f32.gmra.mrb[0].mxu0 %v6039
      %v6199 = vpop.f32.mrb[0].mxu0
      %v6200 = vadd.f32 0.0, %v6199
      %v6201 = vpop.f32.mrb[0].mxu0
      %6202 = vmatprep.mubr.f32.mxu0 0.0
      %6203 = vmatmul.mubr.f32.gmra.mrb[0].mxu0 %v6042
      %v6204 = vpop.f32.mrb[0].mxu0
      %v6205 = vadd.f32 0.0, %v6204
      %v6206 = vpop.f32.mrb[0].mxu0
      %6207 = vmatprep.mubr.f32.mxu0 0.0
      %6208 = vmatmul.mubr.f32.gmra.mrb[0].mxu0 %v6045
      %v6209 = vpop.f32.mrb[0].mxu0
      %v6210 = vadd.f32 0.0, %v6209
      %v6211 = vpop.f32.mrb[0].mxu0
      %6212 = vmatprep.mubr.f32.mxu0 0.0
      %6213 = vmatmul.mubr.f32.gmra.mrb[0].mxu0 %v6048
      %v6214 = vpop.f32.mrb[0].mxu0
      %v6215 = vadd.f32 0.0, %v6214
      %v6216 = vpop.f32.mrb[0].mxu0
      %6217 = vmatprep.mubr.f32.mxu0 0.0
      %6218 = vmatmul.mubr.f32.gmra.mrb[0].mxu0 %v6051
      %v6219 = vpop.f32.mrb[0].mxu0
      %v6220 = vadd.f32 0.0, %v6219
      %v6221 = vpop.f32.mrb[0].mxu0
      %6222 = vmatprep.mubr.f32.mxu0 0.0
      %6223 = vmatmul.mubr.f32.gmra.mrb[0].mxu0 %v6054
      %v6224 = vpop.f32.mrb[0].mxu0
      %v6225 = vadd.f32 0.0, %v6224
      %v6226 = vpop.f32.mrb[0].mxu0
      %6227 = vdwg.mxu0
      %v6228 = vadd.f32 %v5939, %v6125
      %v6229 = vadd.f32 %v5940, %v6130
      %v6230 = vadd.f32 %v5941, %v6135
      %v6231 = vadd.f32 %v5942, %v6140
      %v6232 = vadd.f32 %v5943, %v6145
      %v6233 = vadd.f32 %v5944, %v6150
      %v6234 = vadd.f32 %v5945, %v6155
      %v6235 = vadd.f32 %v5946, %v6160
      %v6236 = vadd.f32 %v5947, %v6165
      %v6237 = vadd.f32 %v5948, %v6170
      %v6238 = vadd.f32 %v5949, %v6175
      %v6239 = vadd.f32 %v5950, %v6180
      %v6240 = vadd.f32 %v5951, %v6185
      %v6241 = vadd.f32 %v5952, %v6190
      %v6242 = vadd.f32 %v5953, %v6195
      %v6243 = vadd.f32 %v5954, %v6200
      %v6244 = vadd.f32 %v5955, %v6205
      %v6245 = vadd.f32 %v5956, %v6210
      %v6246 = vadd.f32 %v5957, %v6215
      %v6247 = vadd.f32 %v5958, %v6220
      %v6248 = vadd.f32 %v5959, %v6225
      %s6249 = scalar_lea.vmem %s10, 840
      %v6250 = vld [vmem:[%s6249] sm:$0xff]
      %v6251 = vld [vmem:[%s6249 + $0x8] sm:$0xff]
      %v6252 = vld [vmem:[%s6249 + $0x10] sm:$0xff]
      %v6253 = vld [vmem:[%s6249 + $0x18] sm:$0xff]
      %v6254 = vld [vmem:[%s6249 + $0x20] sm:$0xff]
      %v6255 = vld [vmem:[%s6249 + $0x28] sm:$0xff]
      %v6256 = vld [vmem:[%s6249 + $0x30] sm:$0xff]
      %v6257 = vld [vmem:[%s6249 + $0x38] sm:$0xff]
      %v6258 = vld [vmem:[%s6249 + $0x40] sm:$0xff]
      %v6259 = vld [vmem:[%s6249 + $0x48] sm:$0xff]
      %v6260 = vld [vmem:[%s6249 + $0x50] sm:$0xff]
      %v6261 = vld [vmem:[%s6249 + $0x58] sm:$0xff]
      %v6262 = vld [vmem:[%s6249 + $0x60] sm:$0xff]
      %v6263 = vld [vmem:[%s6249 + $0x68] sm:$0xff]
      %v6264 = vld [vmem:[%s6249 + $0x70] sm:$0xff]
      %v6265 = vld [vmem:[%s6249 + $0x78] sm:$0xff]
      %v6266 = vld [vmem:[%s6249 + $0x80] sm:$0xff]
      %v6267 = vld [vmem:[%s6249 + $0x88] sm:$0xff]
      %v6268 = vld [vmem:[%s6249 + $0x90] sm:$0xff]
      %v6269 = vld [vmem:[%s6249 + $0x98] sm:$0xff]
      %v6270 = vld [vmem:[%s6249 + $0xa0] sm:$0xff]
      %6271 = vrot.lane.b32.xlu0 %v4836, 123
      %v6272 = vpop.permute.xlu0 %6271
      %6273 = vrot.lane.b32.xlu0 %v4841, 123
      %v6274 = vpop.permute.xlu0 %6273
      %6275 = vrot.lane.b32.xlu0 %v4846, 123
      %v6276 = vpop.permute.xlu0 %6275
      %6277 = vrot.lane.b32.xlu0 %v4851, 123
      %v6278 = vpop.permute.xlu0 %6277
      %v6283 = vsel %vm3595, %v6250, 0
      %v6286 = vsel %vm3595, %v6251, 0
      %v6289 = vsel %vm3595, %v6252, 0
      %v6292 = vsel %vm3595, %v6253, 0
      %v6295 = vsel %vm3595, %v6254, 0
      %v6298 = vsel %vm3595, %v6255, 0
      %v6301 = vsel %vm3595, %v6256, 0
      %v6304 = vsel %vm3595, %v6257, 0
      %v6307 = vsel %vm3595, %v6258, 0
      %v6310 = vsel %vm3595, %v6259, 0
      %v6313 = vsel %vm3595, %v6260, 0
      %v6316 = vsel %vm3595, %v6261, 0
      %v6319 = vsel %vm3595, %v6262, 0
      %v6322 = vsel %vm3595, %v6263, 0
      %v6325 = vsel %vm3595, %v6264, 0
      %v6328 = vsel %vm3595, %v6265, 0
      %v6331 = vsel %vm3595, %v6266, 0
      %v6334 = vsel %vm3595, %v6267, 0
      %v6337 = vsel %vm3595, %v6268, 0
      %v6340 = vsel %vm3595, %v6269, 0
      %v6343 = vsel %vm3595, %v6270, 0
      %v6345 = vsel %vm1852, %v6278, 0
      %6347 = vmatprep.subr.mxu0 0.0
      %6348 = vmatpush1.msra.mxu0 %v6272
      %6349 = vmatprep.subr.mxu0 0.0
      %6350 = vmatpush1.msra.mxu0 %v6274
      %6351 = vmatprep.subr.mxu0 0.0
      %6352 = vmatpush1.msra.mxu0 %v6276
      %6353 = vmatprep.subr.mxu0 0.0
      %6354 = vmatpush1.msra.mxu0 %v6345
      %6355 = vmatprep.subr.mxu0 0.0
      %6356 = vmatpush1.msra.mxu0 0.0
      %6357 = vmatprep.subr.mxu0 0.0
      %6358 = vmatpush1.msra.mxu0 0.0
      %6359 = vmatprep.subr.mxu0 0.0
      %6360 = vmatpush1.msra.mxu0 0.0
      %6361 = vmatprep.subr.mxu0 0.0
      %6362 = vmatpush1.msra.mxu0 0.0
      %6363 = vmatprep.subr.mxu0 0.0
      %6364 = vmatpush1.msra.mxu0 0.0
      %6365 = vmatprep.subr.mxu0 0.0
      %6366 = vmatpush1.msra.mxu0 0.0
      %6367 = vmatprep.subr.mxu0 0.0
      %6368 = vmatpush1.msra.mxu0 0.0
      %6369 = vmatprep.subr.mxu0 0.0
      %6370 = vmatpush1.msra.mxu0 0.0
      %6371 = vmatprep.subr.mxu0 0.0
      %6372 = vmatpush1.msra.mxu0 0.0
      %6373 = vmatprep.subr.mxu0 0.0
      %6374 = vmatpush1.msra.mxu0 0.0
      %6375 = vmatprep.subr.mxu0 0.0
      %6376 = vmatpush1.msra.mxu0 0.0
      %6377 = vmatprep.subr.mxu0 0.0
      %6378 = vmatpush1.msra.mxu0 0.0
      %6379 = vmatprep.subr.mxu0 0.0
      %6380 = vmatpush1.msra.mxu0 0.0
      %6381 = vmatprep.subr.mxu0 0.0
      %6382 = vmatpush1.msra.mxu0 0.0
      %6383 = vmatprep.subr.mxu0 0.0
      %6384 = vmatpush1.msra.mxu0 0.0
      %6385 = vmatprep.subr.mxu0 0.0
      %6386 = vmatpush1.msra.mxu0 0.0
      %6387 = vmatprep.subr.mxu0 0.0
      %6388 = vmatpush1.msra.mxu0 0.0
      %6389 = vmatprep.subr.mxu0 0.0
      %6390 = vmatpush1.msra.mxu0 0.0
      %6391 = vmatprep.subr.mxu0 0.0
      %6392 = vmatpush1.msra.mxu0 0.0
      %6393 = vmatprep.subr.mxu0 0.0
      %6394 = vmatpush1.msra.mxu0 0.0
      %6395 = vmatprep.subr.mxu0 0.0
      %6396 = vmatpush1.msra.mxu0 0.0
      %6397 = vmatprep.subr.mxu0 0.0
      %6398 = vmatpush1.msra.mxu0 0.0
      %6399 = vmatprep.subr.mxu0 0.0
      %6400 = vmatpush1.msra.mxu0 0.0
      %6401 = vmatprep.subr.mxu0 0.0
      %6402 = vmatpush1.msra.mxu0 0.0
      %6403 = vmatprep.subr.mxu0 0.0
      %6404 = vmatpush1.msra.mxu0 0.0
      %6405 = vmatprep.subr.mxu0 0.0
      %6406 = vmatpush1.msra.mxu0 0.0
      %6407 = vmatprep.subr.mxu0 0.0
      %6408 = vmatpush1.msra.mxu0 0.0
      %6409 = vmatprep.subr.mxu0 0.0
      %6410 = vmatpush1.msra.mxu0 0.0
      %6411 = vmatprep.mubr.f32.mxu0 0.0
      %6412 = vmatmul.mubr.f32.gmra.mrb[0].mxu0 %v6283
      %v6413 = vpop.f32.mrb[0].mxu0
      %v6414 = vadd.f32 0.0, %v6413
      %v6415 = vpop.f32.mrb[0].mxu0
      %6416 = vmatprep.mubr.f32.mxu0 0.0
      %6417 = vmatmul.mubr.f32.gmra.mrb[0].mxu0 %v6286
      %v6418 = vpop.f32.mrb[0].mxu0
      %v6419 = vadd.f32 0.0, %v6418
      %v6420 = vpop.f32.mrb[0].mxu0
      %6421 = vmatprep.mubr.f32.mxu0 0.0
      %6422 = vmatmul.mubr.f32.gmra.mrb[0].mxu0 %v6289
      %v6423 = vpop.f32.mrb[0].mxu0
      %v6424 = vadd.f32 0.0, %v6423
      %v6425 = vpop.f32.mrb[0].mxu0
      %6426 = vmatprep.mubr.f32.mxu0 0.0
      %6427 = vmatmul.mubr.f32.gmra.mrb[0].mxu0 %v6292
      %v6428 = vpop.f32.mrb[0].mxu0
      %v6429 = vadd.f32 0.0, %v6428
      %v6430 = vpop.f32.mrb[0].mxu0
      %6431 = vmatprep.mubr.f32.mxu0 0.0
      %6432 = vmatmul.mubr.f32.gmra.mrb[0].mxu0 %v6295
      %v6433 = vpop.f32.mrb[0].mxu0
      %v6434 = vadd.f32 0.0, %v6433
      %v6435 = vpop.f32.mrb[0].mxu0
      %6436 = vmatprep.mubr.f32.mxu0 0.0
      %6437 = vmatmul.mubr.f32.gmra.mrb[0].mxu0 %v6298
      %v6438 = vpop.f32.mrb[0].mxu0
      %v6439 = vadd.f32 0.0, %v6438
      %v6440 = vpop.f32.mrb[0].mxu0
      %6441 = vmatprep.mubr.f32.mxu0 0.0
      %6442 = vmatmul.mubr.f32.gmra.mrb[0].mxu0 %v6301
      %v6443 = vpop.f32.mrb[0].mxu0
      %v6444 = vadd.f32 0.0, %v6443
      %v6445 = vpop.f32.mrb[0].mxu0
      %6446 = vmatprep.mubr.f32.mxu0 0.0
      %6447 = vmatmul.mubr.f32.gmra.mrb[0].mxu0 %v6304
      %v6448 = vpop.f32.mrb[0].mxu0
      %v6449 = vadd.f32 0.0, %v6448
      %v6450 = vpop.f32.mrb[0].mxu0
      %6451 = vmatprep.mubr.f32.mxu0 0.0
      %6452 = vmatmul.mubr.f32.gmra.mrb[0].mxu0 %v6307
      %v6453 = vpop.f32.mrb[0].mxu0
      %v6454 = vadd.f32 0.0, %v6453
      %v6455 = vpop.f32.mrb[0].mxu0
      %6456 = vmatprep.mubr.f32.mxu0 0.0
      %6457 = vmatmul.mubr.f32.gmra.mrb[0].mxu0 %v6310
      %v6458 = vpop.f32.mrb[0].mxu0
      %v6459 = vadd.f32 0.0, %v6458
      %v6460 = vpop.f32.mrb[0].mxu0
      %6461 = vmatprep.mubr.f32.mxu0 0.0
      %6462 = vmatmul.mubr.f32.gmra.mrb[0].mxu0 %v6313
      %v6463 = vpop.f32.mrb[0].mxu0
      %v6464 = vadd.f32 0.0, %v6463
      %v6465 = vpop.f32.mrb[0].mxu0
      %6466 = vmatprep.mubr.f32.mxu0 0.0
      %6467 = vmatmul.mubr.f32.gmra.mrb[0].mxu0 %v6316
      %v6468 = vpop.f32.mrb[0].mxu0
      %v6469 = vadd.f32 0.0, %v6468
      %v6470 = vpop.f32.mrb[0].mxu0
      %6471 = vmatprep.mubr.f32.mxu0 0.0
      %6472 = vmatmul.mubr.f32.gmra.mrb[0].mxu0 %v6319
      %v6473 = vpop.f32.mrb[0].mxu0
      %v6474 = vadd.f32 0.0, %v6473
      %v6475 = vpop.f32.mrb[0].mxu0
      %6476 = vmatprep.mubr.f32.mxu0 0.0
      %6477 = vmatmul.mubr.f32.gmra.mrb[0].mxu0 %v6322
      %v6478 = vpop.f32.mrb[0].mxu0
      %v6479 = vadd.f32 0.0, %v6478
      %v6480 = vpop.f32.mrb[0].mxu0
      %6481 = vmatprep.mubr.f32.mxu0 0.0
      %6482 = vmatmul.mubr.f32.gmra.mrb[0].mxu0 %v6325
      %v6483 = vpop.f32.mrb[0].mxu0
      %v6484 = vadd.f32 0.0, %v6483
      %v6485 = vpop.f32.mrb[0].mxu0
      %6486 = vmatprep.mubr.f32.mxu0 0.0
      %6487 = vmatmul.mubr.f32.gmra.mrb[0].mxu0 %v6328
      %v6488 = vpop.f32.mrb[0].mxu0
      %v6489 = vadd.f32 0.0, %v6488
      %v6490 = vpop.f32.mrb[0].mxu0
      %6491 = vmatprep.mubr.f32.mxu0 0.0
      %6492 = vmatmul.mubr.f32.gmra.mrb[0].mxu0 %v6331
      %v6493 = vpop.f32.mrb[0].mxu0
      %v6494 = vadd.f32 0.0, %v6493
      %v6495 = vpop.f32.mrb[0].mxu0
      %6496 = vmatprep.mubr.f32.mxu0 0.0
      %6497 = vmatmul.mubr.f32.gmra.mrb[0].mxu0 %v6334
      %v6498 = vpop.f32.mrb[0].mxu0
      %v6499 = vadd.f32 0.0, %v6498
      %v6500 = vpop.f32.mrb[0].mxu0
      %6501 = vmatprep.mubr.f32.mxu0 0.0
      %6502 = vmatmul.mubr.f32.gmra.mrb[0].mxu0 %v6337
      %v6503 = vpop.f32.mrb[0].mxu0
      %v6504 = vadd.f32 0.0, %v6503
      %v6505 = vpop.f32.mrb[0].mxu0
      %6506 = vmatprep.mubr.f32.mxu0 0.0
      %6507 = vmatmul.mubr.f32.gmra.mrb[0].mxu0 %v6340
      %v6508 = vpop.f32.mrb[0].mxu0
      %v6509 = vadd.f32 0.0, %v6508
      %v6510 = vpop.f32.mrb[0].mxu0
      %6511 = vmatprep.mubr.f32.mxu0 0.0
      %6512 = vmatmul.mubr.f32.gmra.mrb[0].mxu0 %v6343
      %v6513 = vpop.f32.mrb[0].mxu0
      %v6514 = vadd.f32 0.0, %v6513
      %v6515 = vpop.f32.mrb[0].mxu0
      %6516 = vdwg.mxu0
      %v6517 = vadd.f32 %v6228, %v6414
      %v6518 = vadd.f32 %v6229, %v6419
      %v6519 = vadd.f32 %v6230, %v6424
      %v6520 = vadd.f32 %v6231, %v6429
      %v6521 = vadd.f32 %v6232, %v6434
      %v6522 = vadd.f32 %v6233, %v6439
      %v6523 = vadd.f32 %v6234, %v6444
      %v6524 = vadd.f32 %v6235, %v6449
      %v6525 = vadd.f32 %v6236, %v6454
      %v6526 = vadd.f32 %v6237, %v6459
      %v6527 = vadd.f32 %v6238, %v6464
      %v6528 = vadd.f32 %v6239, %v6469
      %v6529 = vadd.f32 %v6240, %v6474
      %v6530 = vadd.f32 %v6241, %v6479
      %v6531 = vadd.f32 %v6242, %v6484
      %v6532 = vadd.f32 %v6243, %v6489
      %v6533 = vadd.f32 %v6244, %v6494
      %v6534 = vadd.f32 %v6245, %v6499
      %v6535 = vadd.f32 %v6246, %v6504
      %v6536 = vadd.f32 %v6247, %v6509
      %v6537 = vadd.f32 %v6248, %v6514
      %s6538 = scalar_lea.vmem %s10, 1008
      %v6539 = vld [vmem:[%s6538] sm:$0xff]
      %v6540 = vld [vmem:[%s6538 + $0x8] sm:$0xff]
      %v6541 = vld [vmem:[%s6538 + $0x10] sm:$0xff]
      %v6542 = vld [vmem:[%s6538 + $0x18] sm:$0xff]
      %v6543 = vld [vmem:[%s6538 + $0x20] sm:$0xff]
      %v6544 = vld [vmem:[%s6538 + $0x28] sm:$0xff]
      %v6545 = vld [vmem:[%s6538 + $0x30] sm:$0xff]
      %v6546 = vld [vmem:[%s6538 + $0x38] sm:$0xff]
      %v6547 = vld [vmem:[%s6538 + $0x40] sm:$0xff]
      %v6548 = vld [vmem:[%s6538 + $0x48] sm:$0xff]
      %v6549 = vld [vmem:[%s6538 + $0x50] sm:$0xff]
      %v6550 = vld [vmem:[%s6538 + $0x58] sm:$0xff]
      %v6551 = vld [vmem:[%s6538 + $0x60] sm:$0xff]
      %v6552 = vld [vmem:[%s6538 + $0x68] sm:$0xff]
      %v6553 = vld [vmem:[%s6538 + $0x70] sm:$0xff]
      %v6554 = vld [vmem:[%s6538 + $0x78] sm:$0xff]
      %v6555 = vld [vmem:[%s6538 + $0x80] sm:$0xff]
      %v6556 = vld [vmem:[%s6538 + $0x88] sm:$0xff]
      %v6557 = vld [vmem:[%s6538 + $0x90] sm:$0xff]
      %v6558 = vld [vmem:[%s6538 + $0x98] sm:$0xff]
      %v6559 = vld [vmem:[%s6538 + $0xa0] sm:$0xff]
      %6560 = vrot.lane.b32.xlu0 %v4836, 122
      %v6561 = vpop.permute.xlu0 %6560
      %6562 = vrot.lane.b32.xlu0 %v4841, 122
      %v6563 = vpop.permute.xlu0 %6562
      %6564 = vrot.lane.b32.xlu0 %v4846, 122
      %v6565 = vpop.permute.xlu0 %6564
      %6566 = vrot.lane.b32.xlu0 %v4851, 122
      %v6567 = vpop.permute.xlu0 %6566
      %v6572 = vsel %vm3595, %v6539, 0
      %v6575 = vsel %vm3595, %v6540, 0
      %v6578 = vsel %vm3595, %v6541, 0
      %v6581 = vsel %vm3595, %v6542, 0
      %v6584 = vsel %vm3595, %v6543, 0
      %v6587 = vsel %vm3595, %v6544, 0
      %v6590 = vsel %vm3595, %v6545, 0
      %v6593 = vsel %vm3595, %v6546, 0
      %v6596 = vsel %vm3595, %v6547, 0
      %v6599 = vsel %vm3595, %v6548, 0
      %v6602 = vsel %vm3595, %v6549, 0
      %v6605 = vsel %vm3595, %v6550, 0
      %v6608 = vsel %vm3595, %v6551, 0
      %v6611 = vsel %vm3595, %v6552, 0
      %v6614 = vsel %vm3595, %v6553, 0
      %v6617 = vsel %vm3595, %v6554, 0
      %v6620 = vsel %vm3595, %v6555, 0
      %v6623 = vsel %vm3595, %v6556, 0
      %v6626 = vsel %vm3595, %v6557, 0
      %v6629 = vsel %vm3595, %v6558, 0
      %v6632 = vsel %vm3595, %v6559, 0
      %v6634 = vsel %vm1852, %v6567, 0
      %6636 = vmatprep.subr.mxu0 0.0
      %6637 = vmatpush1.msra.mxu0 %v6561
      %6638 = vmatprep.subr.mxu0 0.0
      %6639 = vmatpush1.msra.mxu0 %v6563
      %6640 = vmatprep.subr.mxu0 0.0
      %6641 = vmatpush1.msra.mxu0 %v6565
      %6642 = vmatprep.subr.mxu0 0.0
      %6643 = vmatpush1.msra.mxu0 %v6634
      %6644 = vmatprep.subr.mxu0 0.0
      %6645 = vmatpush1.msra.mxu0 0.0
      %6646 = vmatprep.subr.mxu0 0.0
      %6647 = vmatpush1.msra.mxu0 0.0
      %6648 = vmatprep.subr.mxu0 0.0
      %6649 = vmatpush1.msra.mxu0 0.0
      %6650 = vmatprep.subr.mxu0 0.0
      %6651 = vmatpush1.msra.mxu0 0.0
      %6652 = vmatprep.subr.mxu0 0.0
      %6653 = vmatpush1.msra.mxu0 0.0
      %6654 = vmatprep.subr.mxu0 0.0
      %6655 = vmatpush1.msra.mxu0 0.0
      %6656 = vmatprep.subr.mxu0 0.0
      %6657 = vmatpush1.msra.mxu0 0.0
      %6658 = vmatprep.subr.mxu0 0.0
      %6659 = vmatpush1.msra.mxu0 0.0
      %6660 = vmatprep.subr.mxu0 0.0
      %6661 = vmatpush1.msra.mxu0 0.0
      %6662 = vmatprep.subr.mxu0 0.0
      %6663 = vmatpush1.msra.mxu0 0.0
      %6664 = vmatprep.subr.mxu0 0.0
      %6665 = vmatpush1.msra.mxu0 0.0
      %6666 = vmatprep.subr.mxu0 0.0
      %6667 = vmatpush1.msra.mxu0 0.0
      %6668 = vmatprep.subr.mxu0 0.0
      %6669 = vmatpush1.msra.mxu0 0.0
      %6670 = vmatprep.subr.mxu0 0.0
      %6671 = vmatpush1.msra.mxu0 0.0
      %6672 = vmatprep.subr.mxu0 0.0
      %6673 = vmatpush1.msra.mxu0 0.0
      %6674 = vmatprep.subr.mxu0 0.0
      %6675 = vmatpush1.msra.mxu0 0.0
      %6676 = vmatprep.subr.mxu0 0.0
      %6677 = vmatpush1.msra.mxu0 0.0
      %6678 = vmatprep.subr.mxu0 0.0
      %6679 = vmatpush1.msra.mxu0 0.0
      %6680 = vmatprep.subr.mxu0 0.0
      %6681 = vmatpush1.msra.mxu0 0.0
      %6682 = vmatprep.subr.mxu0 0.0
      %6683 = vmatpush1.msra.mxu0 0.0
      %6684 = vmatprep.subr.mxu0 0.0
      %6685 = vmatpush1.msra.mxu0 0.0
      %6686 = vmatprep.subr.mxu0 0.0
      %6687 = vmatpush1.msra.mxu0 0.0
      %6688 = vmatprep.subr.mxu0 0.0
      %6689 = vmatpush1.msra.mxu0 0.0
      %6690 = vmatprep.subr.mxu0 0.0
      %6691 = vmatpush1.msra.mxu0 0.0
      %6692 = vmatprep.subr.mxu0 0.0
      %6693 = vmatpush1.msra.mxu0 0.0
      %6694 = vmatprep.subr.mxu0 0.0
      %6695 = vmatpush1.msra.mxu0 0.0
      %6696 = vmatprep.subr.mxu0 0.0
      %6697 = vmatpush1.msra.mxu0 0.0
      %6698 = vmatprep.subr.mxu0 0.0
      %6699 = vmatpush1.msra.mxu0 0.0
      %6700 = vmatprep.mubr.f32.mxu0 0.0
      %6701 = vmatmul.mubr.f32.gmra.mrb[0].mxu0 %v6572
      %v6702 = vpop.f32.mrb[0].mxu0
      %v6703 = vadd.f32 0.0, %v6702
      %v6704 = vpop.f32.mrb[0].mxu0
      %6705 = vmatprep.mubr.f32.mxu0 0.0
      %6706 = vmatmul.mubr.f32.gmra.mrb[0].mxu0 %v6575
      %v6707 = vpop.f32.mrb[0].mxu0
      %v6708 = vadd.f32 0.0, %v6707
      %v6709 = vpop.f32.mrb[0].mxu0
      %6710 = vmatprep.mubr.f32.mxu0 0.0
      %6711 = vmatmul.mubr.f32.gmra.mrb[0].mxu0 %v6578
      %v6712 = vpop.f32.mrb[0].mxu0
      %v6713 = vadd.f32 0.0, %v6712
      %v6714 = vpop.f32.mrb[0].mxu0
      %6715 = vmatprep.mubr.f32.mxu0 0.0
      %6716 = vmatmul.mubr.f32.gmra.mrb[0].mxu0 %v6581
      %v6717 = vpop.f32.mrb[0].mxu0
      %v6718 = vadd.f32 0.0, %v6717
      %v6719 = vpop.f32.mrb[0].mxu0
      %6720 = vmatprep.mubr.f32.mxu0 0.0
      %6721 = vmatmul.mubr.f32.gmra.mrb[0].mxu0 %v6584
      %v6722 = vpop.f32.mrb[0].mxu0
      %v6723 = vadd.f32 0.0, %v6722
      %v6724 = vpop.f32.mrb[0].mxu0
      %6725 = vmatprep.mubr.f32.mxu0 0.0
      %6726 = vmatmul.mubr.f32.gmra.mrb[0].mxu0 %v6587
      %v6727 = vpop.f32.mrb[0].mxu0
      %v6728 = vadd.f32 0.0, %v6727
      %v6729 = vpop.f32.mrb[0].mxu0
      %6730 = vmatprep.mubr.f32.mxu0 0.0
      %6731 = vmatmul.mubr.f32.gmra.mrb[0].mxu0 %v6590
      %v6732 = vpop.f32.mrb[0].mxu0
      %v6733 = vadd.f32 0.0, %v6732
      %v6734 = vpop.f32.mrb[0].mxu0
      %6735 = vmatprep.mubr.f32.mxu0 0.0
      %6736 = vmatmul.mubr.f32.gmra.mrb[0].mxu0 %v6593
      %v6737 = vpop.f32.mrb[0].mxu0
      %v6738 = vadd.f32 0.0, %v6737
      %v6739 = vpop.f32.mrb[0].mxu0
      %6740 = vmatprep.mubr.f32.mxu0 0.0
      %6741 = vmatmul.mubr.f32.gmra.mrb[0].mxu0 %v6596
      %v6742 = vpop.f32.mrb[0].mxu0
      %v6743 = vadd.f32 0.0, %v6742
      %v6744 = vpop.f32.mrb[0].mxu0
      %6745 = vmatprep.mubr.f32.mxu0 0.0
      %6746 = vmatmul.mubr.f32.gmra.mrb[0].mxu0 %v6599
      %v6747 = vpop.f32.mrb[0].mxu0
      %v6748 = vadd.f32 0.0, %v6747
      %v6749 = vpop.f32.mrb[0].mxu0
      %6750 = vmatprep.mubr.f32.mxu0 0.0
      %6751 = vmatmul.mubr.f32.gmra.mrb[0].mxu0 %v6602
      %v6752 = vpop.f32.mrb[0].mxu0
      %v6753 = vadd.f32 0.0, %v6752
      %v6754 = vpop.f32.mrb[0].mxu0
      %6755 = vmatprep.mubr.f32.mxu0 0.0
      %6756 = vmatmul.mubr.f32.gmra.mrb[0].mxu0 %v6605
      %v6757 = vpop.f32.mrb[0].mxu0
      %v6758 = vadd.f32 0.0, %v6757
      %v6759 = vpop.f32.mrb[0].mxu0
      %6760 = vmatprep.mubr.f32.mxu0 0.0
      %6761 = vmatmul.mubr.f32.gmra.mrb[0].mxu0 %v6608
      %v6762 = vpop.f32.mrb[0].mxu0
      %v6763 = vadd.f32 0.0, %v6762
      %v6764 = vpop.f32.mrb[0].mxu0
      %6765 = vmatprep.mubr.f32.mxu0 0.0
      %6766 = vmatmul.mubr.f32.gmra.mrb[0].mxu0 %v6611
      %v6767 = vpop.f32.mrb[0].mxu0
      %v6768 = vadd.f32 0.0, %v6767
      %v6769 = vpop.f32.mrb[0].mxu0
      %6770 = vmatprep.mubr.f32.mxu0 0.0
      %6771 = vmatmul.mubr.f32.gmra.mrb[0].mxu0 %v6614
      %v6772 = vpop.f32.mrb[0].mxu0
      %v6773 = vadd.f32 0.0, %v6772
      %v6774 = vpop.f32.mrb[0].mxu0
      %6775 = vmatprep.mubr.f32.mxu0 0.0
      %6776 = vmatmul.mubr.f32.gmra.mrb[0].mxu0 %v6617
      %v6777 = vpop.f32.mrb[0].mxu0
      %v6778 = vadd.f32 0.0, %v6777
      %v6779 = vpop.f32.mrb[0].mxu0
      %6780 = vmatprep.mubr.f32.mxu0 0.0
      %6781 = vmatmul.mubr.f32.gmra.mrb[0].mxu0 %v6620
      %v6782 = vpop.f32.mrb[0].mxu0
      %v6783 = vadd.f32 0.0, %v6782
      %v6784 = vpop.f32.mrb[0].mxu0
      %6785 = vmatprep.mubr.f32.mxu0 0.0
      %6786 = vmatmul.mubr.f32.gmra.mrb[0].mxu0 %v6623
      %v6787 = vpop.f32.mrb[0].mxu0
      %v6788 = vadd.f32 0.0, %v6787
      %v6789 = vpop.f32.mrb[0].mxu0
      %6790 = vmatprep.mubr.f32.mxu0 0.0
      %6791 = vmatmul.mubr.f32.gmra.mrb[0].mxu0 %v6626
      %v6792 = vpop.f32.mrb[0].mxu0
      %v6793 = vadd.f32 0.0, %v6792
      %v6794 = vpop.f32.mrb[0].mxu0
      %6795 = vmatprep.mubr.f32.mxu0 0.0
      %6796 = vmatmul.mubr.f32.gmra.mrb[0].mxu0 %v6629
      %v6797 = vpop.f32.mrb[0].mxu0
      %v6798 = vadd.f32 0.0, %v6797
      %v6799 = vpop.f32.mrb[0].mxu0
      %6800 = vmatprep.mubr.f32.mxu0 0.0
      %6801 = vmatmul.mubr.f32.gmra.mrb[0].mxu0 %v6632
      %v6802 = vpop.f32.mrb[0].mxu0
      %v6803 = vadd.f32 0.0, %v6802
      %v6804 = vpop.f32.mrb[0].mxu0
      %6805 = vdwg.mxu0
      %v6806 = vadd.f32 %v6517, %v6703
      %v6807 = vadd.f32 %v6518, %v6708
      %v6808 = vadd.f32 %v6519, %v6713
      %v6809 = vadd.f32 %v6520, %v6718
      %v6810 = vadd.f32 %v6521, %v6723
      %v6811 = vadd.f32 %v6522, %v6728
      %v6812 = vadd.f32 %v6523, %v6733
      %v6813 = vadd.f32 %v6524, %v6738
      %v6814 = vadd.f32 %v6525, %v6743
      %v6815 = vadd.f32 %v6526, %v6748
      %v6816 = vadd.f32 %v6527, %v6753
      %v6817 = vadd.f32 %v6528, %v6758
      %v6818 = vadd.f32 %v6529, %v6763
      %v6819 = vadd.f32 %v6530, %v6768
      %v6820 = vadd.f32 %v6531, %v6773
      %v6821 = vadd.f32 %v6532, %v6778
      %v6822 = vadd.f32 %v6533, %v6783
      %v6823 = vadd.f32 %v6534, %v6788
      %v6824 = vadd.f32 %v6535, %v6793
      %v6825 = vadd.f32 %v6536, %v6798
      %v6826 = vadd.f32 %v6537, %v6803
      %s6827 = scalar_lea.vmem %s10, 1176
      %v6828 = vld [vmem:[%s6827] sm:$0xff]
      %v6829 = vld [vmem:[%s6827 + $0x8] sm:$0xff]
      %v6830 = vld [vmem:[%s6827 + $0x10] sm:$0xff]
      %v6831 = vld [vmem:[%s6827 + $0x18] sm:$0xff]
      %v6832 = vld [vmem:[%s6827 + $0x20] sm:$0xff]
      %v6833 = vld [vmem:[%s6827 + $0x28] sm:$0xff]
      %v6834 = vld [vmem:[%s6827 + $0x30] sm:$0xff]
      %v6835 = vld [vmem:[%s6827 + $0x38] sm:$0xff]
      %v6836 = vld [vmem:[%s6827 + $0x40] sm:$0xff]
      %v6837 = vld [vmem:[%s6827 + $0x48] sm:$0xff]
      %v6838 = vld [vmem:[%s6827 + $0x50] sm:$0xff]
      %v6839 = vld [vmem:[%s6827 + $0x58] sm:$0xff]
      %v6840 = vld [vmem:[%s6827 + $0x60] sm:$0xff]
      %v6841 = vld [vmem:[%s6827 + $0x68] sm:$0xff]
      %v6842 = vld [vmem:[%s6827 + $0x70] sm:$0xff]
      %v6843 = vld [vmem:[%s6827 + $0x78] sm:$0xff]
      %v6844 = vld [vmem:[%s6827 + $0x80] sm:$0xff]
      %v6845 = vld [vmem:[%s6827 + $0x88] sm:$0xff]
      %v6846 = vld [vmem:[%s6827 + $0x90] sm:$0xff]
      %v6847 = vld [vmem:[%s6827 + $0x98] sm:$0xff]
      %v6848 = vld [vmem:[%s6827 + $0xa0] sm:$0xff]
      %6849 = vrot.lane.b32.xlu0 %v4836, 121
      %v6850 = vpop.permute.xlu0 %6849
      %6851 = vrot.lane.b32.xlu0 %v4841, 121
      %v6852 = vpop.permute.xlu0 %6851
      %6853 = vrot.lane.b32.xlu0 %v4846, 121
      %v6854 = vpop.permute.xlu0 %6853
      %6855 = vrot.lane.b32.xlu0 %v4851, 121
      %v6856 = vpop.permute.xlu0 %6855
      %v6861 = vsel %vm3595, %v6828, 0
      %v6864 = vsel %vm3595, %v6829, 0
      %v6867 = vsel %vm3595, %v6830, 0
      %v6870 = vsel %vm3595, %v6831, 0
      %v6873 = vsel %vm3595, %v6832, 0
      %v6876 = vsel %vm3595, %v6833, 0
      %v6879 = vsel %vm3595, %v6834, 0
      %v6882 = vsel %vm3595, %v6835, 0
      %v6885 = vsel %vm3595, %v6836, 0
      %v6888 = vsel %vm3595, %v6837, 0
      %v6891 = vsel %vm3595, %v6838, 0
      %v6894 = vsel %vm3595, %v6839, 0
      %v6897 = vsel %vm3595, %v6840, 0
      %v6900 = vsel %vm3595, %v6841, 0
      %v6903 = vsel %vm3595, %v6842, 0
      %v6906 = vsel %vm3595, %v6843, 0
      %v6909 = vsel %vm3595, %v6844, 0
      %v6912 = vsel %vm3595, %v6845, 0
      %v6915 = vsel %vm3595, %v6846, 0
      %v6918 = vsel %vm3595, %v6847, 0
      %v6921 = vsel %vm3595, %v6848, 0
      %v6923 = vsel %vm1852, %v6856, 0
      %6925 = vmatprep.subr.mxu0 0.0
      %6926 = vmatpush1.msra.mxu0 %v6850
      %6927 = vmatprep.subr.mxu0 0.0
      %6928 = vmatpush1.msra.mxu0 %v6852
      %6929 = vmatprep.subr.mxu0 0.0
      %6930 = vmatpush1.msra.mxu0 %v6854
      %6931 = vmatprep.subr.mxu0 0.0
      %6932 = vmatpush1.msra.mxu0 %v6923
      %6933 = vmatprep.subr.mxu0 0.0
      %6934 = vmatpush1.msra.mxu0 0.0
      %6935 = vmatprep.subr.mxu0 0.0
      %6936 = vmatpush1.msra.mxu0 0.0
      %6937 = vmatprep.subr.mxu0 0.0
      %6938 = vmatpush1.msra.mxu0 0.0
      %6939 = vmatprep.subr.mxu0 0.0
      %6940 = vmatpush1.msra.mxu0 0.0
      %6941 = vmatprep.subr.mxu0 0.0
      %6942 = vmatpush1.msra.mxu0 0.0
      %6943 = vmatprep.subr.mxu0 0.0
      %6944 = vmatpush1.msra.mxu0 0.0
      %6945 = vmatprep.subr.mxu0 0.0
      %6946 = vmatpush1.msra.mxu0 0.0
      %6947 = vmatprep.subr.mxu0 0.0
      %6948 = vmatpush1.msra.mxu0 0.0
      %6949 = vmatprep.subr.mxu0 0.0
      %6950 = vmatpush1.msra.mxu0 0.0
      %6951 = vmatprep.subr.mxu0 0.0
      %6952 = vmatpush1.msra.mxu0 0.0
      %6953 = vmatprep.subr.mxu0 0.0
      %6954 = vmatpush1.msra.mxu0 0.0
      %6955 = vmatprep.subr.mxu0 0.0
      %6956 = vmatpush1.msra.mxu0 0.0
      %6957 = vmatprep.subr.mxu0 0.0
      %6958 = vmatpush1.msra.mxu0 0.0
      %6959 = vmatprep.subr.mxu0 0.0
      %6960 = vmatpush1.msra.mxu0 0.0
      %6961 = vmatprep.subr.mxu0 0.0
      %6962 = vmatpush1.msra.mxu0 0.0
      %6963 = vmatprep.subr.mxu0 0.0
      %6964 = vmatpush1.msra.mxu0 0.0
      %6965 = vmatprep.subr.mxu0 0.0
      %6966 = vmatpush1.msra.mxu0 0.0
      %6967 = vmatprep.subr.mxu0 0.0
      %6968 = vmatpush1.msra.mxu0 0.0
      %6969 = vmatprep.subr.mxu0 0.0
      %6970 = vmatpush1.msra.mxu0 0.0
      %6971 = vmatprep.subr.mxu0 0.0
      %6972 = vmatpush1.msra.mxu0 0.0
      %6973 = vmatprep.subr.mxu0 0.0
      %6974 = vmatpush1.msra.mxu0 0.0
      %6975 = vmatprep.subr.mxu0 0.0
      %6976 = vmatpush1.msra.mxu0 0.0
      %6977 = vmatprep.subr.mxu0 0.0
      %6978 = vmatpush1.msra.mxu0 0.0
      %6979 = vmatprep.subr.mxu0 0.0
      %6980 = vmatpush1.msra.mxu0 0.0
      %6981 = vmatprep.subr.mxu0 0.0
      %6982 = vmatpush1.msra.mxu0 0.0
      %6983 = vmatprep.subr.mxu0 0.0
      %6984 = vmatpush1.msra.mxu0 0.0
      %6985 = vmatprep.subr.mxu0 0.0
      %6986 = vmatpush1.msra.mxu0 0.0
      %6987 = vmatprep.subr.mxu0 0.0
      %6988 = vmatpush1.msra.mxu0 0.0
      %6989 = vmatprep.mubr.f32.mxu0 0.0
      %6990 = vmatmul.mubr.f32.gmra.mrb[0].mxu0 %v6861
      %v6991 = vpop.f32.mrb[0].mxu0
      %v6992 = vadd.f32 0.0, %v6991
      %v6993 = vpop.f32.mrb[0].mxu0
      %6994 = vmatprep.mubr.f32.mxu0 0.0
      %6995 = vmatmul.mubr.f32.gmra.mrb[0].mxu0 %v6864
      %v6996 = vpop.f32.mrb[0].mxu0
      %v6997 = vadd.f32 0.0, %v6996
      %v6998 = vpop.f32.mrb[0].mxu0
      %6999 = vmatprep.mubr.f32.mxu0 0.0
      %7000 = vmatmul.mubr.f32.gmra.mrb[0].mxu0 %v6867
      %v7001 = vpop.f32.mrb[0].mxu0
      %v7002 = vadd.f32 0.0, %v7001
      %v7003 = vpop.f32.mrb[0].mxu0
      %7004 = vmatprep.mubr.f32.mxu0 0.0
      %7005 = vmatmul.mubr.f32.gmra.mrb[0].mxu0 %v6870
      %v7006 = vpop.f32.mrb[0].mxu0
      %v7007 = vadd.f32 0.0, %v7006
      %v7008 = vpop.f32.mrb[0].mxu0
      %7009 = vmatprep.mubr.f32.mxu0 0.0
      %7010 = vmatmul.mubr.f32.gmra.mrb[0].mxu0 %v6873
      %v7011 = vpop.f32.mrb[0].mxu0
      %v7012 = vadd.f32 0.0, %v7011
      %v7013 = vpop.f32.mrb[0].mxu0
      %7014 = vmatprep.mubr.f32.mxu0 0.0
      %7015 = vmatmul.mubr.f32.gmra.mrb[0].mxu0 %v6876
      %v7016 = vpop.f32.mrb[0].mxu0
      %v7017 = vadd.f32 0.0, %v7016
      %v7018 = vpop.f32.mrb[0].mxu0
      %7019 = vmatprep.mubr.f32.mxu0 0.0
      %7020 = vmatmul.mubr.f32.gmra.mrb[0].mxu0 %v6879
      %v7021 = vpop.f32.mrb[0].mxu0
      %v7022 = vadd.f32 0.0, %v7021
      %v7023 = vpop.f32.mrb[0].mxu0
      %7024 = vmatprep.mubr.f32.mxu0 0.0
      %7025 = vmatmul.mubr.f32.gmra.mrb[0].mxu0 %v6882
      %v7026 = vpop.f32.mrb[0].mxu0
      %v7027 = vadd.f32 0.0, %v7026
      %v7028 = vpop.f32.mrb[0].mxu0
      %7029 = vmatprep.mubr.f32.mxu0 0.0
      %7030 = vmatmul.mubr.f32.gmra.mrb[0].mxu0 %v6885
      %v7031 = vpop.f32.mrb[0].mxu0
      %v7032 = vadd.f32 0.0, %v7031
      %v7033 = vpop.f32.mrb[0].mxu0
      %7034 = vmatprep.mubr.f32.mxu0 0.0
      %7035 = vmatmul.mubr.f32.gmra.mrb[0].mxu0 %v6888
      %v7036 = vpop.f32.mrb[0].mxu0
      %v7037 = vadd.f32 0.0, %v7036
      %v7038 = vpop.f32.mrb[0].mxu0
      %7039 = vmatprep.mubr.f32.mxu0 0.0
      %7040 = vmatmul.mubr.f32.gmra.mrb[0].mxu0 %v6891
      %v7041 = vpop.f32.mrb[0].mxu0
      %v7042 = vadd.f32 0.0, %v7041
      %v7043 = vpop.f32.mrb[0].mxu0
      %7044 = vmatprep.mubr.f32.mxu0 0.0
      %7045 = vmatmul.mubr.f32.gmra.mrb[0].mxu0 %v6894
      %v7046 = vpop.f32.mrb[0].mxu0
      %v7047 = vadd.f32 0.0, %v7046
      %v7048 = vpop.f32.mrb[0].mxu0
      %7049 = vmatprep.mubr.f32.mxu0 0.0
      %7050 = vmatmul.mubr.f32.gmra.mrb[0].mxu0 %v6897
      %v7051 = vpop.f32.mrb[0].mxu0
      %v7052 = vadd.f32 0.0, %v7051
      %v7053 = vpop.f32.mrb[0].mxu0
      %7054 = vmatprep.mubr.f32.mxu0 0.0
      %7055 = vmatmul.mubr.f32.gmra.mrb[0].mxu0 %v6900
      %v7056 = vpop.f32.mrb[0].mxu0
      %v7057 = vadd.f32 0.0, %v7056
      %v7058 = vpop.f32.mrb[0].mxu0
      %7059 = vmatprep.mubr.f32.mxu0 0.0
      %7060 = vmatmul.mubr.f32.gmra.mrb[0].mxu0 %v6903
      %v7061 = vpop.f32.mrb[0].mxu0
      %v7062 = vadd.f32 0.0, %v7061
      %v7063 = vpop.f32.mrb[0].mxu0
      %7064 = vmatprep.mubr.f32.mxu0 0.0
      %7065 = vmatmul.mubr.f32.gmra.mrb[0].mxu0 %v6906
      %v7066 = vpop.f32.mrb[0].mxu0
      %v7067 = vadd.f32 0.0, %v7066
      %v7068 = vpop.f32.mrb[0].mxu0
      %7069 = vmatprep.mubr.f32.mxu0 0.0
      %7070 = vmatmul.mubr.f32.gmra.mrb[0].mxu0 %v6909
      %v7071 = vpop.f32.mrb[0].mxu0
      %v7072 = vadd.f32 0.0, %v7071
      %v7073 = vpop.f32.mrb[0].mxu0
      %7074 = vmatprep.mubr.f32.mxu0 0.0
      %7075 = vmatmul.mubr.f32.gmra.mrb[0].mxu0 %v6912
      %v7076 = vpop.f32.mrb[0].mxu0
      %v7077 = vadd.f32 0.0, %v7076
      %v7078 = vpop.f32.mrb[0].mxu0
      %7079 = vmatprep.mubr.f32.mxu0 0.0
      %7080 = vmatmul.mubr.f32.gmra.mrb[0].mxu0 %v6915
      %v7081 = vpop.f32.mrb[0].mxu0
      %v7082 = vadd.f32 0.0, %v7081
      %v7083 = vpop.f32.mrb[0].mxu0
      %7084 = vmatprep.mubr.f32.mxu0 0.0
      %7085 = vmatmul.mubr.f32.gmra.mrb[0].mxu0 %v6918
      %v7086 = vpop.f32.mrb[0].mxu0
      %v7087 = vadd.f32 0.0, %v7086
      %v7088 = vpop.f32.mrb[0].mxu0
      %7089 = vmatprep.mubr.f32.mxu0 0.0
      %7090 = vmatmul.mubr.f32.gmra.mrb[0].mxu0 %v6921
      %v7091 = vpop.f32.mrb[0].mxu0
      %v7092 = vadd.f32 0.0, %v7091
      %v7093 = vpop.f32.mrb[0].mxu0
      %7094 = vdwg.mxu0
      %v7095 = vadd.f32 %v6806, %v6992
      %v7096 = vadd.f32 %v6807, %v6997
      %v7097 = vadd.f32 %v6808, %v7002
      %v7098 = vadd.f32 %v6809, %v7007
      %v7099 = vadd.f32 %v6810, %v7012
      %v7100 = vadd.f32 %v6811, %v7017
      %v7101 = vadd.f32 %v6812, %v7022
      %v7102 = vadd.f32 %v6813, %v7027
      %v7103 = vadd.f32 %v6814, %v7032
      %v7104 = vadd.f32 %v6815, %v7037
      %v7105 = vadd.f32 %v6816, %v7042
      %v7106 = vadd.f32 %v6817, %v7047
      %v7107 = vadd.f32 %v6818, %v7052
      %v7108 = vadd.f32 %v6819, %v7057
      %v7109 = vadd.f32 %v6820, %v7062
      %v7110 = vadd.f32 %v6821, %v7067
      %v7111 = vadd.f32 %v6822, %v7072
      %v7112 = vadd.f32 %v6823, %v7077
      %v7113 = vadd.f32 %v6824, %v7082
      %v7114 = vadd.f32 %v6825, %v7087
      %v7115 = vadd.f32 %v6826, %v7092
      %s7116 = scalar_lea.vmem %s10, 1344
      %v7117 = vld [vmem:[%s7116] sm:$0xff]
      %v7118 = vld [vmem:[%s7116 + $0x8] sm:$0xff]
      %v7119 = vld [vmem:[%s7116 + $0x10] sm:$0xff]
      %v7120 = vld [vmem:[%s7116 + $0x18] sm:$0xff]
      %v7121 = vld [vmem:[%s7116 + $0x20] sm:$0xff]
      %v7122 = vld [vmem:[%s7116 + $0x28] sm:$0xff]
      %v7123 = vld [vmem:[%s7116 + $0x30] sm:$0xff]
      %v7124 = vld [vmem:[%s7116 + $0x38] sm:$0xff]
      %v7125 = vld [vmem:[%s7116 + $0x40] sm:$0xff]
      %v7126 = vld [vmem:[%s7116 + $0x48] sm:$0xff]
      %v7127 = vld [vmem:[%s7116 + $0x50] sm:$0xff]
      %v7128 = vld [vmem:[%s7116 + $0x58] sm:$0xff]
      %v7129 = vld [vmem:[%s7116 + $0x60] sm:$0xff]
      %v7130 = vld [vmem:[%s7116 + $0x68] sm:$0xff]
      %v7131 = vld [vmem:[%s7116 + $0x70] sm:$0xff]
      %v7132 = vld [vmem:[%s7116 + $0x78] sm:$0xff]
      %v7133 = vld [vmem:[%s7116 + $0x80] sm:$0xff]
      %v7134 = vld [vmem:[%s7116 + $0x88] sm:$0xff]
      %v7135 = vld [vmem:[%s7116 + $0x90] sm:$0xff]
      %v7136 = vld [vmem:[%s7116 + $0x98] sm:$0xff]
      %v7137 = vld [vmem:[%s7116 + $0xa0] sm:$0xff]
      %7138 = vrot.lane.b32.xlu0 %v4836, 120
      %v7139 = vpop.permute.xlu0 %7138
      %7140 = vrot.lane.b32.xlu0 %v4841, 120
      %v7141 = vpop.permute.xlu0 %7140
      %7142 = vrot.lane.b32.xlu0 %v4846, 120
      %v7143 = vpop.permute.xlu0 %7142
      %7144 = vrot.lane.b32.xlu0 %v4851, 120
      %v7145 = vpop.permute.xlu0 %7144
      %v7150 = vsel %vm3595, %v7117, 0
      %v7153 = vsel %vm3595, %v7118, 0
      %v7156 = vsel %vm3595, %v7119, 0
      %v7159 = vsel %vm3595, %v7120, 0
      %v7162 = vsel %vm3595, %v7121, 0
      %v7165 = vsel %vm3595, %v7122, 0
      %v7168 = vsel %vm3595, %v7123, 0
      %v7171 = vsel %vm3595, %v7124, 0
      %v7174 = vsel %vm3595, %v7125, 0
      %v7177 = vsel %vm3595, %v7126, 0
      %v7180 = vsel %vm3595, %v7127, 0
      %v7183 = vsel %vm3595, %v7128, 0
      %v7186 = vsel %vm3595, %v7129, 0
      %v7189 = vsel %vm3595, %v7130, 0
      %v7192 = vsel %vm3595, %v7131, 0
      %v7195 = vsel %vm3595, %v7132, 0
      %v7198 = vsel %vm3595, %v7133, 0
      %v7201 = vsel %vm3595, %v7134, 0
      %v7204 = vsel %vm3595, %v7135, 0
      %v7207 = vsel %vm3595, %v7136, 0
      %v7210 = vsel %vm3595, %v7137, 0
      %v7212 = vsel %vm1852, %v7145, 0
      %7214 = vmatprep.subr.mxu0 0.0
      %7215 = vmatpush1.msra.mxu0 %v7139
      %7216 = vmatprep.subr.mxu0 0.0
      %7217 = vmatpush1.msra.mxu0 %v7141
      %7218 = vmatprep.subr.mxu0 0.0
      %7219 = vmatpush1.msra.mxu0 %v7143
      %7220 = vmatprep.subr.mxu0 0.0
      %7221 = vmatpush1.msra.mxu0 %v7212
      %7222 = vmatprep.subr.mxu0 0.0
      %7223 = vmatpush1.msra.mxu0 0.0
      %7224 = vmatprep.subr.mxu0 0.0
      %7225 = vmatpush1.msra.mxu0 0.0
      %7226 = vmatprep.subr.mxu0 0.0
      %7227 = vmatpush1.msra.mxu0 0.0
      %7228 = vmatprep.subr.mxu0 0.0
      %7229 = vmatpush1.msra.mxu0 0.0
      %7230 = vmatprep.subr.mxu0 0.0
      %7231 = vmatpush1.msra.mxu0 0.0
      %7232 = vmatprep.subr.mxu0 0.0
      %7233 = vmatpush1.msra.mxu0 0.0
      %7234 = vmatprep.subr.mxu0 0.0
      %7235 = vmatpush1.msra.mxu0 0.0
      %7236 = vmatprep.subr.mxu0 0.0
      %7237 = vmatpush1.msra.mxu0 0.0
      %7238 = vmatprep.subr.mxu0 0.0
      %7239 = vmatpush1.msra.mxu0 0.0
      %7240 = vmatprep.subr.mxu0 0.0
      %7241 = vmatpush1.msra.mxu0 0.0
      %7242 = vmatprep.subr.mxu0 0.0
      %7243 = vmatpush1.msra.mxu0 0.0
      %7244 = vmatprep.subr.mxu0 0.0
      %7245 = vmatpush1.msra.mxu0 0.0
      %7246 = vmatprep.subr.mxu0 0.0
      %7247 = vmatpush1.msra.mxu0 0.0
      %7248 = vmatprep.subr.mxu0 0.0
      %7249 = vmatpush1.msra.mxu0 0.0
      %7250 = vmatprep.subr.mxu0 0.0
      %7251 = vmatpush1.msra.mxu0 0.0
      %7252 = vmatprep.subr.mxu0 0.0
      %7253 = vmatpush1.msra.mxu0 0.0
      %7254 = vmatprep.subr.mxu0 0.0
      %7255 = vmatpush1.msra.mxu0 0.0
      %7256 = vmatprep.subr.mxu0 0.0
      %7257 = vmatpush1.msra.mxu0 0.0
      %7258 = vmatprep.subr.mxu0 0.0
      %7259 = vmatpush1.msra.mxu0 0.0
      %7260 = vmatprep.subr.mxu0 0.0
      %7261 = vmatpush1.msra.mxu0 0.0
      %7262 = vmatprep.subr.mxu0 0.0
      %7263 = vmatpush1.msra.mxu0 0.0
      %7264 = vmatprep.subr.mxu0 0.0
      %7265 = vmatpush1.msra.mxu0 0.0
      %7266 = vmatprep.subr.mxu0 0.0
      %7267 = vmatpush1.msra.mxu0 0.0
      %7268 = vmatprep.subr.mxu0 0.0
      %7269 = vmatpush1.msra.mxu0 0.0
      %7270 = vmatprep.subr.mxu0 0.0
      %7271 = vmatpush1.msra.mxu0 0.0
      %7272 = vmatprep.subr.mxu0 0.0
      %7273 = vmatpush1.msra.mxu0 0.0
      %7274 = vmatprep.subr.mxu0 0.0
      %7275 = vmatpush1.msra.mxu0 0.0
      %7276 = vmatprep.subr.mxu0 0.0
      %7277 = vmatpush1.msra.mxu0 0.0
      %7278 = vmatprep.mubr.f32.mxu0 0.0
      %7279 = vmatmul.mubr.f32.gmra.mrb[0].mxu0 %v7150
      %v7280 = vpop.f32.mrb[0].mxu0
      %v7281 = vadd.f32 0.0, %v7280
      %v7282 = vpop.f32.mrb[0].mxu0
      %7283 = vmatprep.mubr.f32.mxu0 0.0
      %7284 = vmatmul.mubr.f32.gmra.mrb[0].mxu0 %v7153
      %v7285 = vpop.f32.mrb[0].mxu0
      %v7286 = vadd.f32 0.0, %v7285
      %v7287 = vpop.f32.mrb[0].mxu0
      %7288 = vmatprep.mubr.f32.mxu0 0.0
      %7289 = vmatmul.mubr.f32.gmra.mrb[0].mxu0 %v7156
      %v7290 = vpop.f32.mrb[0].mxu0
      %v7291 = vadd.f32 0.0, %v7290
      %v7292 = vpop.f32.mrb[0].mxu0
      %7293 = vmatprep.mubr.f32.mxu0 0.0
      %7294 = vmatmul.mubr.f32.gmra.mrb[0].mxu0 %v7159
      %v7295 = vpop.f32.mrb[0].mxu0
      %v7296 = vadd.f32 0.0, %v7295
      %v7297 = vpop.f32.mrb[0].mxu0
      %7298 = vmatprep.mubr.f32.mxu0 0.0
      %7299 = vmatmul.mubr.f32.gmra.mrb[0].mxu0 %v7162
      %v7300 = vpop.f32.mrb[0].mxu0
      %v7301 = vadd.f32 0.0, %v7300
      %v7302 = vpop.f32.mrb[0].mxu0
      %7303 = vmatprep.mubr.f32.mxu0 0.0
      %7304 = vmatmul.mubr.f32.gmra.mrb[0].mxu0 %v7165
      %v7305 = vpop.f32.mrb[0].mxu0
      %v7306 = vadd.f32 0.0, %v7305
      %v7307 = vpop.f32.mrb[0].mxu0
      %7308 = vmatprep.mubr.f32.mxu0 0.0
      %7309 = vmatmul.mubr.f32.gmra.mrb[0].mxu0 %v7168
      %v7310 = vpop.f32.mrb[0].mxu0
      %v7311 = vadd.f32 0.0, %v7310
      %v7312 = vpop.f32.mrb[0].mxu0
      %7313 = vmatprep.mubr.f32.mxu0 0.0
      %7314 = vmatmul.mubr.f32.gmra.mrb[0].mxu0 %v7171
      %v7315 = vpop.f32.mrb[0].mxu0
      %v7316 = vadd.f32 0.0, %v7315
      %v7317 = vpop.f32.mrb[0].mxu0
      %7318 = vmatprep.mubr.f32.mxu0 0.0
      %7319 = vmatmul.mubr.f32.gmra.mrb[0].mxu0 %v7174
      %v7320 = vpop.f32.mrb[0].mxu0
      %v7321 = vadd.f32 0.0, %v7320
      %v7322 = vpop.f32.mrb[0].mxu0
      %7323 = vmatprep.mubr.f32.mxu0 0.0
      %7324 = vmatmul.mubr.f32.gmra.mrb[0].mxu0 %v7177
      %v7325 = vpop.f32.mrb[0].mxu0
      %v7326 = vadd.f32 0.0, %v7325
      %v7327 = vpop.f32.mrb[0].mxu0
      %7328 = vmatprep.mubr.f32.mxu0 0.0
      %7329 = vmatmul.mubr.f32.gmra.mrb[0].mxu0 %v7180
      %v7330 = vpop.f32.mrb[0].mxu0
      %v7331 = vadd.f32 0.0, %v7330
      %v7332 = vpop.f32.mrb[0].mxu0
      %7333 = vmatprep.mubr.f32.mxu0 0.0
      %7334 = vmatmul.mubr.f32.gmra.mrb[0].mxu0 %v7183
      %v7335 = vpop.f32.mrb[0].mxu0
      %v7336 = vadd.f32 0.0, %v7335
      %v7337 = vpop.f32.mrb[0].mxu0
      %7338 = vmatprep.mubr.f32.mxu0 0.0
      %7339 = vmatmul.mubr.f32.gmra.mrb[0].mxu0 %v7186
      %v7340 = vpop.f32.mrb[0].mxu0
      %v7341 = vadd.f32 0.0, %v7340
      %v7342 = vpop.f32.mrb[0].mxu0
      %7343 = vmatprep.mubr.f32.mxu0 0.0
      %7344 = vmatmul.mubr.f32.gmra.mrb[0].mxu0 %v7189
      %v7345 = vpop.f32.mrb[0].mxu0
      %v7346 = vadd.f32 0.0, %v7345
      %v7347 = vpop.f32.mrb[0].mxu0
      %7348 = vmatprep.mubr.f32.mxu0 0.0
      %7349 = vmatmul.mubr.f32.gmra.mrb[0].mxu0 %v7192
      %v7350 = vpop.f32.mrb[0].mxu0
      %v7351 = vadd.f32 0.0, %v7350
      %v7352 = vpop.f32.mrb[0].mxu0
      %7353 = vmatprep.mubr.f32.mxu0 0.0
      %7354 = vmatmul.mubr.f32.gmra.mrb[0].mxu0 %v7195
      %v7355 = vpop.f32.mrb[0].mxu0
      %v7356 = vadd.f32 0.0, %v7355
      %v7357 = vpop.f32.mrb[0].mxu0
      %7358 = vmatprep.mubr.f32.mxu0 0.0
      %7359 = vmatmul.mubr.f32.gmra.mrb[0].mxu0 %v7198
      %v7360 = vpop.f32.mrb[0].mxu0
      %v7361 = vadd.f32 0.0, %v7360
      %v7362 = vpop.f32.mrb[0].mxu0
      %7363 = vmatprep.mubr.f32.mxu0 0.0
      %7364 = vmatmul.mubr.f32.gmra.mrb[0].mxu0 %v7201
      %v7365 = vpop.f32.mrb[0].mxu0
      %v7366 = vadd.f32 0.0, %v7365
      %v7367 = vpop.f32.mrb[0].mxu0
      %7368 = vmatprep.mubr.f32.mxu0 0.0
      %7369 = vmatmul.mubr.f32.gmra.mrb[0].mxu0 %v7204
      %v7370 = vpop.f32.mrb[0].mxu0
      %v7371 = vadd.f32 0.0, %v7370
      %v7372 = vpop.f32.mrb[0].mxu0
      %7373 = vmatprep.mubr.f32.mxu0 0.0
      %7374 = vmatmul.mubr.f32.gmra.mrb[0].mxu0 %v7207
      %v7375 = vpop.f32.mrb[0].mxu0
      %v7376 = vadd.f32 0.0, %v7375
      %v7377 = vpop.f32.mrb[0].mxu0
      %7378 = vmatprep.mubr.f32.mxu0 0.0
      %7379 = vmatmul.mubr.f32.gmra.mrb[0].mxu0 %v7210
      %v7380 = vpop.f32.mrb[0].mxu0
      %v7381 = vadd.f32 0.0, %v7380
      %v7382 = vpop.f32.mrb[0].mxu0
      %7383 = vdwg.mxu0
      %v7384 = vadd.f32 %v7095, %v7281
      %v7385 = vadd.f32 %v7096, %v7286
      %v7386 = vadd.f32 %v7097, %v7291
      %v7387 = vadd.f32 %v7098, %v7296
      %v7388 = vadd.f32 %v7099, %v7301
      %v7389 = vadd.f32 %v7100, %v7306
      %v7390 = vadd.f32 %v7101, %v7311
      %v7391 = vadd.f32 %v7102, %v7316
      %v7392 = vadd.f32 %v7103, %v7321
      %v7393 = vadd.f32 %v7104, %v7326
      %v7394 = vadd.f32 %v7105, %v7331
      %v7395 = vadd.f32 %v7106, %v7336
      %v7396 = vadd.f32 %v7107, %v7341
      %v7397 = vadd.f32 %v7108, %v7346
      %v7398 = vadd.f32 %v7109, %v7351
      %v7399 = vadd.f32 %v7110, %v7356
      %v7400 = vadd.f32 %v7111, %v7361
      %v7401 = vadd.f32 %v7112, %v7366
      %v7402 = vadd.f32 %v7113, %v7371
      %v7403 = vadd.f32 %v7114, %v7376
      %v7404 = vadd.f32 %v7115, %v7381
      %v7405 = vld [vmem:[%s11] sm:$0xff]
      %v7406 = vld [vmem:[%s11 + $0x8] sm:$0xff]
      %v7407 = vld [vmem:[%s11 + $0x10] sm:$0xff]
      %v7408 = vld [vmem:[%s11 + $0x18] sm:$0xff]
      %v7409 = vld [vmem:[%s11 + $0x20] sm:$0xff]
      %v7410 = vld [vmem:[%s11 + $0x28] sm:$0xff]
      %v7411 = vld [vmem:[%s11 + $0x30] sm:$0xff]
      %v7412 = vld [vmem:[%s11 + $0x38] sm:$0xff]
      %v7413 = vld [vmem:[%s11 + $0x40] sm:$0xff]
      %v7414 = vld [vmem:[%s11 + $0x48] sm:$0xff]
      %v7415 = vld [vmem:[%s11 + $0x50] sm:$0xff]
      %v7416 = vld [vmem:[%s11 + $0x58] sm:$0xff]
      %v7417 = vld [vmem:[%s11 + $0x60] sm:$0xff]
      %v7418 = vld [vmem:[%s11 + $0x68] sm:$0xff]
      %v7419 = vld [vmem:[%s11 + $0x70] sm:$0xff]
      %v7420 = vld [vmem:[%s11 + $0x78] sm:$0xff]
      %v7421 = vld [vmem:[%s11 + $0x80] sm:$0xff]
      %v7422 = vld [vmem:[%s11 + $0x88] sm:$0xff]
      %v7423 = vld [vmem:[%s11 + $0x90] sm:$0xff]
      %v7424 = vld [vmem:[%s11 + $0x98] sm:$0xff]
      %v7425 = vld [vmem:[%s11 + $0xa0] sm:$0xff]
      %v7426 = vadd.f32 %v7384, %v7405
      %v7427 = vadd.f32 %v7385, %v7406
      %v7428 = vadd.f32 %v7386, %v7407
      %v7429 = vadd.f32 %v7387, %v7408
      %v7430 = vadd.f32 %v7388, %v7409
      %v7431 = vadd.f32 %v7389, %v7410
      %v7432 = vadd.f32 %v7390, %v7411
      %v7433 = vadd.f32 %v7391, %v7412
      %v7434 = vadd.f32 %v7392, %v7413
      %v7435 = vadd.f32 %v7393, %v7414
      %v7436 = vadd.f32 %v7394, %v7415
      %v7437 = vadd.f32 %v7395, %v7416
      %v7438 = vadd.f32 %v7396, %v7417
      %v7439 = vadd.f32 %v7397, %v7418
      %v7440 = vadd.f32 %v7398, %v7419
      %v7441 = vadd.f32 %v7399, %v7420
      %v7442 = vadd.f32 %v7400, %v7421
      %v7443 = vadd.f32 %v7401, %v7422
      %v7444 = vadd.f32 %v7402, %v7423
      %v7445 = vadd.f32 %v7403, %v7424
      %v7446 = vadd.f32 %v7404, %v7425
      %v7447 = vmax.f32 %v7426, 0.0
      %v7448 = vmax.f32 %v7427, 0.0
      %v7449 = vmax.f32 %v7428, 0.0
      %v7450 = vmax.f32 %v7429, 0.0
      %v7451 = vmax.f32 %v7430, 0.0
      %v7452 = vmax.f32 %v7431, 0.0
      %v7453 = vmax.f32 %v7432, 0.0
      %v7454 = vmax.f32 %v7433, 0.0
      %v7455 = vmax.f32 %v7434, 0.0
      %v7456 = vmax.f32 %v7435, 0.0
      %v7457 = vmax.f32 %v7436, 0.0
      %v7458 = vmax.f32 %v7437, 0.0
      %v7459 = vmax.f32 %v7438, 0.0
      %v7460 = vmax.f32 %v7439, 0.0
      %v7461 = vmax.f32 %v7440, 0.0
      %v7462 = vmax.f32 %v7441, 0.0
      %v7463 = vmax.f32 %v7442, 0.0
      %v7464 = vmax.f32 %v7443, 0.0
      %v7465 = vmax.f32 %v7444, 0.0
      %v7466 = vmax.f32 %v7445, 0.0
      %v7467 = vmax.f32 %v7446, 0.0
      %v7468 = vld [vmem:[%s12] sm:$0xff]
      %v7469 = vld [vmem:[%s12 + $0x8] sm:$0xff]
      %v7470 = vld [vmem:[%s12 + $0x10] sm:$0xff]
      %v7471 = vld [vmem:[%s12 + $0x18] sm:$0xff]
      %v7472 = vld [vmem:[%s12 + $0x20] sm:$0xff]
      %v7473 = vld [vmem:[%s12 + $0x28] sm:$0xff]
      %v7474 = vld [vmem:[%s12 + $0x30] sm:$0xff]
      %v7475 = vld [vmem:[%s12 + $0x38] sm:$0xff]
      %v7476 = vld [vmem:[%s12 + $0x40] sm:$0xff]
      %v7477 = vld [vmem:[%s12 + $0x48] sm:$0xff]
      %v7478 = vld [vmem:[%s12 + $0x50] sm:$0xff]
      %v7479 = vld [vmem:[%s12 + $0x58] sm:$0xff]
      %v7480 = vld [vmem:[%s12 + $0x60] sm:$0xff]
      %v7481 = vld [vmem:[%s12 + $0x68] sm:$0xff]
      %v7482 = vld [vmem:[%s12 + $0x70] sm:$0xff]
      %v7483 = vld [vmem:[%s12 + $0x78] sm:$0xff]
      %v7484 = vld [vmem:[%s12 + $0x80] sm:$0xff]
      %v7485 = vld [vmem:[%s12 + $0x88] sm:$0xff]
      %v7486 = vld [vmem:[%s12 + $0x90] sm:$0xff]
      %v7487 = vld [vmem:[%s12 + $0x98] sm:$0xff]
      %v7488 = vld [vmem:[%s12 + $0xa0] sm:$0xff]
      %v7489 = vld [vmem:[%s12 + $0xa8] sm:$0xff]
      %v7490 = vld [vmem:[%s12 + $0xb0] sm:$0xff]
      %v7491 = vld [vmem:[%s12 + $0xb8] sm:$0xff]
      %v7492 = vld [vmem:[%s12 + $0xc0] sm:$0xf]
      %v7493 = vld [vmem:[%s12 + $0xc8] sm:$0xf]
      %v7494 = vld [vmem:[%s13] sm:$0xff]
      %v7495 = vld [vmem:[%s13 + $0x8] sm:$0xff]
      %v7496 = vld [vmem:[%s13 + $0x10] sm:$0xff]
      %v7497 = vld [vmem:[%s13 + $0x18] sm:$0xff]
      %v7498 = vld [vmem:[%s13 + $0x20] sm:$0xff]
      %v7499 = vld [vmem:[%s13 + $0x28] sm:$0xff]
      %v7500 = vld [vmem:[%s13 + $0x30] sm:$0xff]
      %v7501 = vld [vmem:[%s13 + $0x38] sm:$0xff]
      %v7502 = vld [vmem:[%s13 + $0x40] sm:$0xff]
      %v7503 = vld [vmem:[%s13 + $0x48] sm:$0xff]
      %v7504 = vld [vmem:[%s13 + $0x50] sm:$0xff]
      %v7505 = vld [vmem:[%s13 + $0x58] sm:$0xff]
      %v7506 = vld [vmem:[%s13 + $0x60] sm:$0xf]
      %vm7507 = vcmask 326656
      %v7509 = vsel %vm7507, %v7469, 0
      %v7512 = vsel %vm7507, %v7471, 0
      %v7515 = vsel %vm7507, %v7473, 0
      %v7518 = vsel %vm7507, %v7475, 0
      %v7521 = vsel %vm7507, %v7477, 0
      %v7524 = vsel %vm7507, %v7479, 0
      %v7527 = vsel %vm7507, %v7481, 0
      %v7530 = vsel %vm7507, %v7483, 0
      %v7533 = vsel %vm7507, %v7485, 0
      %v7536 = vsel %vm7507, %v7487, 0
      %v7539 = vsel %vm7507, %v7489, 0
      %v7542 = vsel %vm7507, %v7491, 0
      %v7545 = vsel %vm7507, %v7493, 0
      %7547 = vmatprep.subr.mxu0 0.0
      %7548 = vmatpush1.msra.mxu0 %v7447
      %7549 = vmatprep.subr.mxu0 0.0
      %7550 = vmatpush1.msra.mxu0 %v7448
      %7551 = vmatprep.subr.mxu0 0.0
      %7552 = vmatpush1.msra.mxu0 %v7449
      %7553 = vmatprep.subr.mxu0 0.0
      %7554 = vmatpush1.msra.mxu0 %v7450
      %7555 = vmatprep.subr.mxu0 0.0
      %7556 = vmatpush1.msra.mxu0 %v7451
      %7557 = vmatprep.subr.mxu0 0.0
      %7558 = vmatpush1.msra.mxu0 %v7452
      %7559 = vmatprep.subr.mxu0 0.0
      %7560 = vmatpush1.msra.mxu0 %v7453
      %7561 = vmatprep.subr.mxu0 0.0
      %7562 = vmatpush1.msra.mxu0 %v7454
      %7563 = vmatprep.subr.mxu0 0.0
      %7564 = vmatpush1.msra.mxu0 %v7455
      %7565 = vmatprep.subr.mxu0 0.0
      %7566 = vmatpush1.msra.mxu0 %v7456
      %7567 = vmatprep.subr.mxu0 0.0
      %7568 = vmatpush1.msra.mxu0 %v7457
      %7569 = vmatprep.subr.mxu0 0.0
      %7570 = vmatpush1.msra.mxu0 %v7458
      %7571 = vmatprep.subr.mxu0 0.0
      %7572 = vmatpush1.msra.mxu0 %v7459
      %7573 = vmatprep.subr.mxu0 0.0
      %7574 = vmatpush1.msra.mxu0 %v7460
      %7575 = vmatprep.subr.mxu0 0.0
      %7576 = vmatpush1.msra.mxu0 %v7461
      %7577 = vmatprep.subr.mxu0 0.0
      %7578 = vmatpush1.msra.mxu0 %v7462
      %7579 = vmatprep.subr.mxu0 0.0
      %7580 = vmatpush1.msra.mxu0 %v7463
      %7581 = vmatprep.subr.mxu0 0.0
      %7582 = vmatpush1.msra.mxu0 %v7464
      %7583 = vmatprep.subr.mxu0 0.0
      %7584 = vmatpush1.msra.mxu0 %v7465
      %7585 = vmatprep.subr.mxu0 0.0
      %7586 = vmatpush1.msra.mxu0 %v7466
      %7587 = vmatprep.subr.mxu0 0.0
      %7588 = vmatpush1.msra.mxu0 %v7467
      %7589 = vmatprep.subr.mxu0 0.0
      %7590 = vmatpush1.msra.mxu0 0.0
      %7591 = vmatprep.subr.mxu0 0.0
      %7592 = vmatpush1.msra.mxu0 0.0
      %7593 = vmatprep.subr.mxu0 0.0
      %7594 = vmatpush1.msra.mxu0 0.0
      %7595 = vmatprep.subr.mxu0 0.0
      %7596 = vmatpush1.msra.mxu0 0.0
      %7597 = vmatprep.subr.mxu0 0.0
      %7598 = vmatpush1.msra.mxu0 0.0
      %7599 = vmatprep.subr.mxu0 0.0
      %7600 = vmatpush1.msra.mxu0 0.0
      %7601 = vmatprep.subr.mxu0 0.0
      %7602 = vmatpush1.msra.mxu0 0.0
      %7603 = vmatprep.subr.mxu0 0.0
      %7604 = vmatpush1.msra.mxu0 0.0
      %7605 = vmatprep.subr.mxu0 0.0
      %7606 = vmatpush1.msra.mxu0 0.0
      %7607 = vmatprep.subr.mxu0 0.0
      %7608 = vmatpush1.msra.mxu0 0.0
      %7609 = vmatprep.subr.mxu0 0.0
      %7610 = vmatpush1.msra.mxu0 0.0
      %7611 = vmatprep.mubr.f32.mxu0 %v7509
      %7612 = vmatmul.mubr.f32.gmra.mrb[0].mxu0 %v7468
      %v7613 = vpop.f32.mrb[0].mxu0
      %v7614 = vadd.f32 %v7494, %v7613
      %v7615 = vpop.f32.mrb[0].mxu0
      %7616 = vmatprep.mubr.f32.mxu0 %v7512
      %7617 = vmatmul.mubr.f32.gmra.mrb[0].mxu0 %v7470
      %v7618 = vpop.f32.mrb[0].mxu0
      %v7619 = vadd.f32 %v7495, %v7618
      %v7620 = vpop.f32.mrb[0].mxu0
      %7621 = vmatprep.mubr.f32.mxu0 %v7515
      %7622 = vmatmul.mubr.f32.gmra.mrb[0].mxu0 %v7472
      %v7623 = vpop.f32.mrb[0].mxu0
      %v7624 = vadd.f32 %v7496, %v7623
      %v7625 = vpop.f32.mrb[0].mxu0
      %7626 = vmatprep.mubr.f32.mxu0 %v7518
      %7627 = vmatmul.mubr.f32.gmra.mrb[0].mxu0 %v7474
      %v7628 = vpop.f32.mrb[0].mxu0
      %v7629 = vadd.f32 %v7497, %v7628
      %v7630 = vpop.f32.mrb[0].mxu0
      %7631 = vmatprep.mubr.f32.mxu0 %v7521
      %7632 = vmatmul.mubr.f32.gmra.mrb[0].mxu0 %v7476
      %v7633 = vpop.f32.mrb[0].mxu0
      %v7634 = vadd.f32 %v7498, %v7633
      %v7635 = vpop.f32.mrb[0].mxu0
      %7636 = vmatprep.mubr.f32.mxu0 %v7524
      %7637 = vmatmul.mubr.f32.gmra.mrb[0].mxu0 %v7478
      %v7638 = vpop.f32.mrb[0].mxu0
      %v7639 = vadd.f32 %v7499, %v7638
      %v7640 = vpop.f32.mrb[0].mxu0
      %7641 = vmatprep.mubr.f32.mxu0 %v7527
      %7642 = vmatmul.mubr.f32.gmra.mrb[0].mxu0 %v7480
      %v7643 = vpop.f32.mrb[0].mxu0
      %v7644 = vadd.f32 %v7500, %v7643
      %v7645 = vpop.f32.mrb[0].mxu0
      %7646 = vmatprep.mubr.f32.mxu0 %v7530
      %7647 = vmatmul.mubr.f32.gmra.mrb[0].mxu0 %v7482
      %v7648 = vpop.f32.mrb[0].mxu0
      %v7649 = vadd.f32 %v7501, %v7648
      %v7650 = vpop.f32.mrb[0].mxu0
      %7651 = vmatprep.mubr.f32.mxu0 %v7533
      %7652 = vmatmul.mubr.f32.gmra.mrb[0].mxu0 %v7484
      %v7653 = vpop.f32.mrb[0].mxu0
      %v7654 = vadd.f32 %v7502, %v7653
      %v7655 = vpop.f32.mrb[0].mxu0
      %7656 = vmatprep.mubr.f32.mxu0 %v7536
      %7657 = vmatmul.mubr.f32.gmra.mrb[0].mxu0 %v7486
      %v7658 = vpop.f32.mrb[0].mxu0
      %v7659 = vadd.f32 %v7503, %v7658
      %v7660 = vpop.f32.mrb[0].mxu0
      %7661 = vmatprep.mubr.f32.mxu0 %v7539
      %7662 = vmatmul.mubr.f32.gmra.mrb[0].mxu0 %v7488
      %v7663 = vpop.f32.mrb[0].mxu0
      %v7664 = vadd.f32 %v7504, %v7663
      %v7665 = vpop.f32.mrb[0].mxu0
      %7666 = vmatprep.mubr.f32.mxu0 %v7542
      %7667 = vmatmul.mubr.f32.gmra.mrb[0].mxu0 %v7490
      %v7668 = vpop.f32.mrb[0].mxu0
      %v7669 = vadd.f32 %v7505, %v7668
      %v7670 = vpop.f32.mrb[0].mxu0
      %7671 = vmatprep.mubr.f32.mxu0 %v7545
      %7672 = vmatmul.mubr.f32.gmra.mrb[0].mxu0 %v7492
      %v7673 = vpop.f32.mrb[0].mxu0
      %v7674 = vadd.f32 %v7506, %v7673
      %v7675 = vpop.f32.mrb[0].mxu0
      %7676 = vdwg.mxu0
      %v7677 = vmax.f32 %v7614, 0.0
      %v7678 = vmax.f32 %v7619, 0.0
      %v7679 = vmax.f32 %v7624, 0.0
      %v7680 = vmax.f32 %v7629, 0.0
      %v7681 = vmax.f32 %v7634, 0.0
      %v7682 = vmax.f32 %v7639, 0.0
      %v7683 = vmax.f32 %v7644, 0.0
      %v7684 = vmax.f32 %v7649, 0.0
      %v7685 = vmax.f32 %v7654, 0.0
      %v7686 = vmax.f32 %v7659, 0.0
      %v7687 = vmax.f32 %v7664, 0.0
      %v7688 = vmax.f32 %v7669, 0.0
      %v7689 = vmax.f32 %v7674, 0.0
      %vm7690 = vcmask 7168
      %7691 = vst.msk [vmem:[%s464] sm:$0xff] %vm7690, %v7677
      %7692 = vst.msk [vmem:[%s464 + $0x8] sm:$0xff] %vm7690, %v7678
      %7693 = vst.msk [vmem:[%s464 + $0x10] sm:$0xff] %vm7690, %v7679
      %7694 = vst.msk [vmem:[%s464 + $0x18] sm:$0xff] %vm7690, %v7680
      %7695 = vst.msk [vmem:[%s464 + $0x20] sm:$0xff] %vm7690, %v7681
      %7696 = vst.msk [vmem:[%s464 + $0x28] sm:$0xff] %vm7690, %v7682
      %7697 = vst.msk [vmem:[%s464 + $0x30] sm:$0xff] %vm7690, %v7683
      %7698 = vst.msk [vmem:[%s464 + $0x38] sm:$0xff] %vm7690, %v7684
      %7699 = vst.msk [vmem:[%s464 + $0x40] sm:$0xff] %vm7690, %v7685
      %7700 = vst.msk [vmem:[%s464 + $0x48] sm:$0xff] %vm7690, %v7686
      %7701 = vst.msk [vmem:[%s464 + $0x50] sm:$0xff] %vm7690, %v7687
      %7702 = vst.msk [vmem:[%s464 + $0x58] sm:$0xff] %vm7690, %v7688
      %vm7703 = vcmask 3072
      %7704 = vst.msk [vmem:[%s464 + $0x60] sm:$0xf] %vm7703, %v7689
      %p7705 = scmp.lt.s32.totalorder %s25, 1
      %s7706 = scalar_select %p7705, %s25, 1
      %s7707 = smul.addr %s7706, 13
      %s7708 = smul.addr %s7707, 8
      %s7709 = scalar_lea.vmem %s14, %s7708
      // Predicated region
      $region77: #{tpu_custom_call.1} parent=75 // pred_check
        %p7710 = pneg %p342
      $region78: #{tpu_custom_call.1} parent=75 // pred_check_branch
        %7712 = sbr.rel (%p7710) target = $region80
      $region79: #{tpu_custom_call.1} parent=75 // pred_region
        _
      $region80: #{tpu_custom_call.1} parent=75 // pred_fallthru
        _
    $region76: #{tpu_custom_call.1} parent=5 // pred_fallthru
      _
    %p7713 = scmp.le.s32.totalorder 2, %s20
    // Predicated region
    $region81: #{tpu_custom_call.1} parent=5 // pred_check
      %p7714 = pneg %p7713
    $region82: #{tpu_custom_call.1} parent=5 // pred_check_branch
      %7716 = sbr.rel (%p7714) target = $region84
    $region83: #{tpu_custom_call.1} parent=5 // pred_region
      %s7717 = ssub.s32 %s20, 2
      // Predicated region
      $region85: #{tpu_custom_call.1} parent=83 // pred_check
        %p7718 = pneg %p348
      $region86: #{tpu_custom_call.1} parent=83 // pred_check_branch
        %7720 = sbr.rel (%p7718) target = $region88
      $region87: #{tpu_custom_call.1} parent=83 // pred_region
        %p7721 = scmp.lt.s32.totalorder %s26, 1
        %s7722 = scalar_select %p7721, %s26, 1
        %s7723 = smul.addr %s7722, 13
        %s7724 = smul.addr %s7723, 8
        %s7725 = scalar_lea.vmem %s14, %s7724
      $region88: #{tpu_custom_call.1} parent=83 // pred_fallthru
        _
    $region84: #{tpu_custom_call.1} parent=5 // pred_fallthru
      _
  $region6: #{tpu_custom_call.1} parent=0 // loop_footer
    %s24 = sadd.s32 1, %s20
  $region7: #{tpu_custom_call.1} parent=0 // loop_footer_branch
    %19 = sbr.rel target = $region3
  $region8: #{tpu_custom_call.1} parent=0 // loop_exit
    _

</llo_original>
